<compile_context>
chip_gen: v7x
topology: tpu7x:2x2x1
jax: 0.10.0
libtpu: 0.0.40
codegen_flags: <defaults>
</compile_context>

<pallas_src>
import functools

import numpy as np
import jax
import jax.numpy as jnp
from jax import lax
from jax.experimental import pallas as pl
from jax.experimental.pallas import tpu as pltpu


# ----------------------------------------------------------------------------
# Helpers
# ----------------------------------------------------------------------------

def _tile(dim, preferred, unit):
    """Largest multiple-of-`unit` divisor of `dim` that is <= preferred, else the
    full dim (a full-extent block is always legal on TPU).  NOTE: for very large,
    prime-ish dims this falls back to a full-extent block — watch VMEM."""
    if dim <= preferred:
        return dim
    t = (preferred // unit) * unit
    while t >= unit:
        if dim % t == 0:
            return t
        t -= unit
    return dim


def _qgelu(u):
    return u * jax.nn.sigmoid(1.702 * u)


def _apply_act(y, activation):
    if activation == "quick_gelu":
        return _qgelu(y)
    if activation == "softplus":
        return jax.nn.softplus(y)
    if activation == "sigmoid":
        return jax.nn.sigmoid(y)
    return y


_BF16 = jnp.bfloat16


# ----------------------------------------------------------------------------
# dim_conv linear fused with positional-embedding add (single-K, no scratch)
# ----------------------------------------------------------------------------

def _dimconv_kernel(x_ref, w_ref, b_ref, pos_ref, o_ref):
    y = jnp.dot(x_ref[...].astype(_BF16), w_ref[...],
                preferred_element_type=jnp.float32)
    o_ref[...] = (y + b_ref[...] + pos_ref[...]).astype(o_ref.dtype)


def dim_conv_pos(x, w, b, pos, B, T, *, tn_pref=512):
    """out[b*T + t] = x[b*T + t] @ w + b + pos[t].   x: (B*T, K) f32, w bf16."""
    M, K = x.shape
    D = w.shape[1]
    tm = _tile(T, 128, 8)
    tn = _tile(D, tn_pref, 128)
    nt = T // tm
    return pl.pallas_call(
        _dimconv_kernel,
        grid=(B, nt, D // tn),
        out_shape=jax.ShapeDtypeStruct((M, D), jnp.float32),
        in_specs=[
            pl.BlockSpec((tm, K), lambda bb, i, j: (bb * nt + i, 0)),
            pl.BlockSpec((K, tn), lambda bb, i, j: (0, j)),
            pl.BlockSpec((1, tn), lambda bb, i, j: (0, j)),
            pl.BlockSpec((tm, tn), lambda bb, i, j: (i, j)),
        ],
        out_specs=pl.BlockSpec((tm, tn), lambda bb, i, j: (bb * nt + i, j)),
        compiler_params=pltpu.CompilerParams(
            dimension_semantics=("parallel", "parallel", "parallel")),
    )(x, w, b.reshape(1, D), pos)


# ----------------------------------------------------------------------------
# Fused LayerNorm + linear (LN1 + QKV projection).  Single N-wide tile so LN is
# computed once per row block; emits bf16 for the attention kernel.
# ----------------------------------------------------------------------------

def _ln_linear_kernel(x_ref, g_ref, bln_ref, w_ref, b_ref, o_ref):
    x = x_ref[...].astype(jnp.float32)
    mean = jnp.mean(x, axis=-1, keepdims=True)
    var = jnp.mean(jnp.square(x - mean), axis=-1, keepdims=True)
    xn = (x - mean) * lax.rsqrt(var + 1e-5)
    xn = xn * g_ref[...] + bln_ref[...]
    y = jnp.dot(xn.astype(_BF16), w_ref[...],
                preferred_element_type=jnp.float32) + b_ref[...]
    o_ref[...] = y.astype(o_ref.dtype)


def ln_linear(x, g, bln, w, b, *, out_dtype=jnp.float32, tm_pref=128):
    M, K = x.shape
    N = w.shape[1]
    tm = _tile(M, tm_pref, 8)
    return pl.pallas_call(
        _ln_linear_kernel,
        grid=(M // tm,),
        out_shape=jax.ShapeDtypeStruct((M, N), out_dtype),
        in_specs=[
            pl.BlockSpec((tm, K), lambda i: (i, 0)),
            pl.BlockSpec((1, K), lambda i: (0, 0)),
            pl.BlockSpec((1, K), lambda i: (0, 0)),
            pl.BlockSpec((K, N), lambda i: (0, 0)),
            pl.BlockSpec((1, N), lambda i: (0, 0)),
        ],
        out_specs=pl.BlockSpec((tm, N), lambda i: (i, 0)),
        compiler_params=pltpu.CompilerParams(dimension_semantics=("parallel",)),
    )(x, g.reshape(1, K), bln.reshape(1, K), w, b.reshape(1, N))


# ----------------------------------------------------------------------------
# Windowed multi-head attention fused with the out-projection + residual add.
# The block-diagonal attn_mask is exploited: each window attends only within
# itself, so no mask tensor exists.  Multiple windows are processed per grid
# step; the head concat is folded into per-head row-slices of W_out.
# ----------------------------------------------------------------------------

def _attn_kernel(qkv_ref, x_ref, ow_ref, ob_ref, o_ref, *, n_head, window, scale):
    blk = qkv_ref[0]                                   # (R, 3D) bf16
    R = blk.shape[0]
    D = blk.shape[1] // 3
    dh = D // n_head
    wblk = R // window
    ow = ow_ref[...]                                   # (D, D) bf16
    acc = x_ref[0].astype(jnp.float32) + ob_ref[...].astype(jnp.float32)
    for h in range(n_head):                            # static unroll over heads
        qh = blk[:, h * dh:(h + 1) * dh].reshape(wblk, window, dh)
        kh = blk[:, D + h * dh:D + (h + 1) * dh].reshape(wblk, window, dh)
        vh = blk[:, 2 * D + h * dh:2 * D + (h + 1) * dh].reshape(wblk, window, dh)
        s = lax.dot_general(qh, kh, (((2,), (2,)), ((0,), (0,))),
                            preferred_element_type=jnp.float32) * scale
        s = s - jnp.max(s, axis=-1, keepdims=True)
        p = jnp.exp(s)
        p = p * pl.reciprocal(jnp.sum(p, axis=-1, keepdims=True), approx=True)
        oh = lax.dot_general(p.astype(_BF16), vh, (((2,), (1,)), ((0,), (0,))),
                             preferred_element_type=jnp.float32)   # (wblk, w, dh)
        # concat folded into the out-projection: sum_h  oh @ W_out[h*dh:(h+1)*dh, :]
        acc = acc + jnp.dot(oh.reshape(R, dh).astype(_BF16),
                            ow[h * dh:(h + 1) * dh, :],
                            preferred_element_type=jnp.float32)
    o_ref[0] = acc.astype(o_ref.dtype)


def _pick_wblk(nwin, window, target_rows=256):
    best = 1
    for wb in range(1, nwin + 1):
        if nwin % wb != 0:
            continue
        rows = wb * window
        if rows <= target_rows and (rows % 8 == 0 or wb == nwin):
            best = wb
    if (best * window) % 8 != 0 and best != nwin:
        best = nwin                                    # full-T block is always legal
    return best


def attention_block(qkv, x, out_w, out_b, n_head, window):
    """qkv: (B, T, 3D) bf16 from ln_linear; x: (B, T, D) f32 residual stream."""
    B, T, D3 = qkv.shape
    D = D3 // 3
    assert T % window == 0, "reference attn_mask produces NaN rows if T % window != 0"
    nwin = T // window
    wblk = _pick_wblk(nwin, window)
    R = wblk * window
    scale = 1.0 / float(np.sqrt(D // n_head))
    return pl.pallas_call(
        functools.partial(_attn_kernel, n_head=n_head, window=window, scale=scale),
        grid=(B, nwin // wblk),
        out_shape=jax.ShapeDtypeStruct((B, T, D), jnp.float32),
        in_specs=[
            pl.BlockSpec((1, R, D3), lambda b, wi: (b, wi, 0)),
            pl.BlockSpec((1, R, D), lambda b, wi: (b, wi, 0)),
            pl.BlockSpec((D, D), lambda b, wi: (0, 0)),
            pl.BlockSpec((1, D), lambda b, wi: (0, 0)),
        ],
        out_specs=pl.BlockSpec((1, R, D), lambda b, wi: (b, wi, 0)),
        compiler_params=pltpu.CompilerParams(
            dimension_semantics=("parallel", "parallel")),
    )(qkv, x, out_w, out_b.reshape(1, D))


# ----------------------------------------------------------------------------
# Fused transformer MLP block: x + proj(QuickGELU(fc(LN(x))))
# ----------------------------------------------------------------------------

def _mlp_block_kernel(x_ref, g_ref, bln_ref, fcw_ref, fcb_ref, pw_ref, pb_ref, o_ref):
    x = x_ref[...].astype(jnp.float32)
    mean = jnp.mean(x, axis=-1, keepdims=True)
    var = jnp.mean(jnp.square(x - mean), axis=-1, keepdims=True)
    xn = (x - mean) * lax.rsqrt(var + 1e-5) * g_ref[...] + bln_ref[...]
    h = jnp.dot(xn.astype(_BF16), fcw_ref[...],
                preferred_element_type=jnp.float32) + fcb_ref[...]
    h = _qgelu(h)
    y = jnp.dot(h.astype(_BF16), pw_ref[...],
                preferred_element_type=jnp.float32) + pb_ref[...]
    o_ref[...] = (x + y).astype(o_ref.dtype)


def mlp_block(x, g, bln, fcw, fcb, pw, pb, *, tm_pref=128):
    M, D = x.shape
    Dh = fcw.shape[1]
    tm = _tile(M, tm_pref, 8)
    return pl.pallas_call(
        _mlp_block_kernel,
        grid=(M // tm,),
        out_shape=jax.ShapeDtypeStruct((M, D), jnp.float32),
        in_specs=[
            pl.BlockSpec((tm, D), lambda i: (i, 0)),
            pl.BlockSpec((1, D), lambda i: (0, 0)),
            pl.BlockSpec((1, D), lambda i: (0, 0)),
            pl.BlockSpec((D, Dh), lambda i: (0, 0)),
            pl.BlockSpec((1, Dh), lambda i: (0, 0)),
            pl.BlockSpec((Dh, D), lambda i: (0, 0)),
            pl.BlockSpec((1, D), lambda i: (0, 0)),
        ],
        out_specs=pl.BlockSpec((tm, D), lambda i: (i, 0)),
        compiler_params=pltpu.CompilerParams(
            dimension_semantics=("parallel",),
            vmem_limit_bytes=32 * 1024 * 1024),     # v7x-safe ceiling
    )(x, g.reshape(1, D), bln.reshape(1, D), fcw, fcb.reshape(1, Dh),
      pw, pb.reshape(1, D))


# ----------------------------------------------------------------------------
# Fused GCN module: adj4 + gc1..gc4 + QuickGELU + concat + linear   (per batch)
# ----------------------------------------------------------------------------

def _gcn_kernel(x_ref, dist_ref, w1_ref, r1_ref, w2_ref, w3_ref, r3_ref, w4_ref,
                lw1_ref, lw2_ref, lb_ref, o_ref):
    x = x_ref[0].astype(jnp.float32)                          # (T, D)

    # adj4: cosine similarity (rows normalized first), threshold(0.7, 0),
    # softmax along dim 1 of the (T, T) slice — exact reciprocal (feeds 2 GCs).
    nrm2 = jnp.sum(x * x, axis=-1, keepdims=True)
    xn = x * lax.rsqrt(nrm2 + 1e-30)
    sim = lax.dot_general(xn, xn, (((1,), (1,)), ((), ())),
                          preferred_element_type=jnp.float32)         # (T, T)
    sim = jnp.where(sim > 0.7, sim, 0.0)
    sim = sim - jnp.max(sim, axis=1, keepdims=True)
    e = jnp.exp(sim)
    adj = e / jnp.sum(e, axis=1, keepdims=True)

    adj_b = adj.astype(_BF16)
    dist_b = dist_ref[...].astype(_BF16)
    xb = x.astype(_BF16)

    def gc(inp_b, a_b, w_ref2, res):
        # TODO(synk): GraphConvolution def not provided; canonical VadCLIP form assumed:
        #   out = adj @ (inp @ W) + residual   (identity res if in==out else projection)
        support = jnp.dot(inp_b, w_ref2[...], preferred_element_type=jnp.float32)
        return jnp.dot(a_b, support.astype(_BF16),
                       preferred_element_type=jnp.float32) + res

    # cosine-adjacency branch: gc1 -> gelu -> gc2 -> gelu
    res1 = jnp.dot(xb, r1_ref[...], preferred_element_type=jnp.float32)
    h1 = _qgelu(gc(xb, adj_b, w1_ref, res1))
    x1 = _qgelu(gc(h1.astype(_BF16), adj_b, w2_ref, h1))
    # distance-adjacency branch: gc3 -> gelu -> gc4 -> gelu
    res3 = jnp.dot(xb, r3_ref[...], preferred_element_type=jnp.float32)
    h2 = _qgelu(gc(xb, dist_b, w3_ref, res3))
    x2 = _qgelu(gc(h2.astype(_BF16), dist_b, w4_ref, h2))

    # concat([x1, x2], -1) @ linear_w + b  ==  x1 @ W_top + x2 @ W_bot + b
    out = (jnp.dot(x1.astype(_BF16), lw1_ref[...],
                   preferred_element_type=jnp.float32)
           + jnp.dot(x2.astype(_BF16), lw2_ref[...],
                     preferred_element_type=jnp.float32)
           + lb_ref[...])
    o_ref[0] = out.astype(o_ref.dtype)


def gcn_module(x, dist, p):
    B, T, D = x.shape
    Wg = p["gc1_w"].shape[1]
    cst = lambda b: (0, 0)
    return pl.pallas_call(
        _gcn_kernel,
        grid=(B,),
        out_shape=jax.ShapeDtypeStruct((B, T, D), jnp.float32),
        in_specs=[
            pl.BlockSpec((1, T, D), lambda b: (b, 0, 0)),
            pl.BlockSpec((T, T), cst),
            pl.BlockSpec((D, Wg), cst),    # gc1 weight
            pl.BlockSpec((D, Wg), cst),    # gc1 residual projection
            pl.BlockSpec((Wg, Wg), cst),   # gc2 weight
            pl.BlockSpec((D, Wg), cst),    # gc3 weight
            pl.BlockSpec((D, Wg), cst),    # gc3 residual projection
            pl.BlockSpec((Wg, Wg), cst),   # gc4 weight
            pl.BlockSpec((Wg, D), cst),    # linear weight (rows for x1)
            pl.BlockSpec((Wg, D), cst),    # linear weight (rows for x2)
            pl.BlockSpec((1, D), cst),     # linear bias
        ],
        out_specs=pl.BlockSpec((1, T, D), lambda b: (b, 0, 0)),
        compiler_params=pltpu.CompilerParams(dimension_semantics=("parallel",)),
    )(x, dist, p["gc1_w"], p["gc1_res_w"], p["gc2_w"], p["gc3_w"], p["gc3_res_w"],
      p["gc4_w"], p["lin_w_top"], p["lin_w_bot"], p["lin_b"].reshape(1, D))


# ----------------------------------------------------------------------------
# Fused two-layer head (classifier_v/a/av, var_head): fc + QuickGELU + fc (+act)
# ----------------------------------------------------------------------------

def _head_kernel(x_ref, w1_ref, b1_ref, w2_ref, b2_ref, o_ref, *, final_act):
    x = x_ref[...].astype(jnp.float32)
    h = jnp.dot(x.astype(_BF16), w1_ref[...],
                preferred_element_type=jnp.float32) + b1_ref[...]
    h = _qgelu(h)
    # Dropout(p=0.3) is identity at inference.
    y = jnp.dot(h.astype(_BF16), w2_ref[...],
                preferred_element_type=jnp.float32) + b2_ref[...]
    y = _apply_act(y, final_act)
    o_ref[...] = y.astype(o_ref.dtype)


def two_layer_head(x, p, final_act=None, tm_pref=512):
    lead = x.shape[:-1]
    D = x.shape[-1]
    M = int(np.prod(lead)) if lead else 1
    Dm = p["l1_w"].shape[1]
    No = p["l2_w"].shape[1]
    tm = _tile(M, tm_pref, 8)
    out = pl.pallas_call(
        functools.partial(_head_kernel, final_act=final_act),
        grid=(M // tm,),
        out_shape=jax.ShapeDtypeStruct((M, No), jnp.float32),
        in_specs=[
            pl.BlockSpec((tm, D), lambda i: (i, 0)),
            pl.BlockSpec((D, Dm), lambda i: (0, 0)),
            pl.BlockSpec((1, Dm), lambda i: (0, 0)),
            pl.BlockSpec((Dm, No), lambda i: (0, 0)),
            pl.BlockSpec((1, No), lambda i: (0, 0)),
        ],
        out_specs=pl.BlockSpec((tm, No), lambda i: (i, 0)),
        compiler_params=pltpu.CompilerParams(dimension_semantics=("parallel",)),
    )(x.reshape(M, D), p["l1_w"], p["l1_b"].reshape(1, Dm),
      p["l2_w"], p["l2_b"].reshape(1, No))
    return out.reshape(lead + (No,))


# ----------------------------------------------------------------------------
# Fused AdaptiveFusion: sigmoid(v@Wv + a@Wa + b) gated blend (no HBM concat)
# ----------------------------------------------------------------------------

def _fusion_kernel(v_ref, a_ref, wv_ref, wa_ref, b_ref, o_ref):
    v = v_ref[...].astype(jnp.float32)
    a = a_ref[...].astype(jnp.float32)
    g = (jnp.dot(v.astype(_BF16), wv_ref[...], preferred_element_type=jnp.float32)
         + jnp.dot(a.astype(_BF16), wa_ref[...], preferred_element_type=jnp.float32)
         + b_ref[...])
    g = jax.nn.sigmoid(g)
    o_ref[...] = (g * v + (1.0 - g) * a).astype(o_ref.dtype)


def adaptive_fusion(v, a, p, tm_pref=256):
    # TODO(synk): AdaptiveFusion class def not provided; gated fusion assumed:
    #   gate = sigmoid(Linear([v; a])); out = gate * v + (1 - gate) * a
    B, T, D = v.shape
    M = B * T
    tm = _tile(M, tm_pref, 8)
    out = pl.pallas_call(
        _fusion_kernel,
        grid=(M // tm,),
        out_shape=jax.ShapeDtypeStruct((M, D), jnp.float32),
        in_specs=[
            pl.BlockSpec((tm, D), lambda i: (i, 0)),
            pl.BlockSpec((tm, D), lambda i: (i, 0)),
            pl.BlockSpec((D, D), lambda i: (0, 0)),
            pl.BlockSpec((D, D), lambda i: (0, 0)),
            pl.BlockSpec((1, D), lambda i: (0, 0)),
        ],
        out_specs=pl.BlockSpec((tm, D), lambda i: (i, 0)),
        compiler_params=pltpu.CompilerParams(dimension_semantics=("parallel",)),
    )(v.reshape(M, D), a.reshape(M, D), p["gate_wv"], p["gate_wa"],
      p["gate_b"].reshape(1, D))
    return out.reshape(B, T, D)


# ----------------------------------------------------------------------------
# Fused text-logits path: attention pooling + norm + prompt add + mlp + norm +
# cosine logits/0.07 — all per batch element, everything kept in VMEM.
# ----------------------------------------------------------------------------

def _text_logits_kernel(lg_ref, x_ref, tf_ref, fcw_ref, fcb_ref, pw_ref, pb_ref, o_ref):
    lg = lg_ref[0].astype(jnp.float32)               # (T, 1)
    x = x_ref[0].astype(jnp.float32)                 # (T, D)
    # pooled = logits^T @ x  (1, D), then L2-normalize
    pooled = jnp.sum(lg * x, axis=0, keepdims=True)
    pooled = pooled / (jnp.sqrt(jnp.sum(pooled * pooled, axis=-1, keepdims=True)) + 1e-10)
    # text prompt: t = text_features + pooled, t = t + mlp(t)
    t = tf_ref[...].astype(jnp.float32) + pooled     # (nc, D)
    h = jnp.dot(t.astype(_BF16), fcw_ref[...],
                preferred_element_type=jnp.float32) + fcb_ref[...]
    h = _qgelu(h)
    t = t + jnp.dot(h.astype(_BF16), pw_ref[...],
                    preferred_element_type=jnp.float32) + pb_ref[...]
    # cosine logits (kept f32 — tiny matmul, output quality matters)
    tn = t / (jnp.sqrt(jnp.sum(t * t, axis=-1, keepdims=True)) + 1e-10)
    xn = x / (jnp.sqrt(jnp.sum(x * x, axis=-1, keepdims=True)) + 1e-10)
    o = lax.dot_general(xn, tn, (((1,), (1,)), ((), ())),
                        preferred_element_type=jnp.float32) / 0.07   # (T, nc)
    o_ref[0] = o.astype(o_ref.dtype)


def text_logits(logits, x, text_feat, p):
    B, T, D = x.shape
    nc = text_feat.shape[0]
    Dh = p["fc_w"].shape[1]
    cst = lambda b: (0, 0)
    return pl.pallas_call(
        _text_logits_kernel,
        grid=(B,),
        out_shape=jax.ShapeDtypeStruct((B, T, nc), jnp.float32),
        in_specs=[
            pl.BlockSpec((1, T, 1), lambda b: (b, 0, 0)),
            pl.BlockSpec((1, T, D), lambda b: (b, 0, 0)),
            pl.BlockSpec((nc, D), cst),
            pl.BlockSpec((D, Dh), cst),
            pl.BlockSpec((1, Dh), cst),
            pl.BlockSpec((Dh, D), cst),
            pl.BlockSpec((1, D), cst),
        ],
        out_specs=pl.BlockSpec((1, T, nc), lambda b: (b, 0, 0)),
        compiler_params=pltpu.CompilerParams(dimension_semantics=("parallel",)),
    )(logits, x, text_feat, p["fc_w"], p["fc_b"].reshape(1, Dh),
      p["proj_w"], p["proj_b"].reshape(1, D))


# ----------------------------------------------------------------------------
# Model glue (all data kept (B, T, D); reshapes below are free views)
# ----------------------------------------------------------------------------

def residual_block(x, p, n_head, window):
    B, T, D = x.shape
    x2 = x.reshape(B * T, D)
    # LN1 + QKV projection fused; QKV emitted bf16 for the attention kernel
    qkv = ln_linear(x2, p["ln1_g"], p["ln1_b"], p["attn"]["in_w"], p["attn"]["in_b"],
                    out_dtype=_BF16)
    # per-window attention + out-projection + residual fused
    x = attention_block(qkv.reshape(B, T, 3 * D), x,
                        p["attn"]["out_w"], p["attn"]["out_b"], n_head, window)
    # LN2 + fc + QuickGELU + proj + residual fused
    x2 = mlp_block(x.reshape(B * T, D), p["ln2_g"], p["ln2_b"], p["fc_w"], p["fc_b"],
                   p["proj_w"], p["proj_b"])
    return x2.reshape(B, T, D)


def transformer(x, layer_params, n_head, window):
    for p in layer_params:
        x = residual_block(x, p, n_head, window)
    return x


@functools.lru_cache(maxsize=None)
def distance_adj(T):
    # TODO(synk): DistanceAdj def not provided; canonical VadCLIP form assumed:
    #   adj[i, j] = exp(-|i - j| / e)  (batch-invariant, built once as (T, T)).
    idx = np.arange(T)
    dist = np.abs(idx[:, None] - idx[None, :]).astype(np.float32)
    return jnp.asarray(np.exp(-dist / np.exp(1.0)).astype(np.float32))


def encode_video(params, visual, audio, cfg):
    B, T, _ = visual.shape
    D = cfg["visual_width"]
    H = cfg["visual_head"]
    win = cfg["attn_window"]

    # dim_conv linear fused with the positional-embedding add (no extra HBM trip)
    images = dim_conv_pos(visual.reshape(B * T, -1).astype(jnp.float32),
                          params["visual_dim_conv_w"], params["visual_dim_conv_b"],
                          params["frame_pos_emb"], B, T).reshape(B, T, D)
    aud = dim_conv_pos(audio.reshape(B * T, -1).astype(jnp.float32),
                       params["audio_dim_conv_w"], params["audio_dim_conv_b"],
                       params["audio_pos_emb"], B, T).reshape(B, T, D)

    x_visual = transformer(images, params["temporal"], H, win)
    x_audio = transformer(aud, params["audio_temporal"], H, win)

    dist = distance_adj(T)                               # (T, T) constant
    xv = gcn_module(x_visual, dist, params["gcn_v"])     # adj4+gc1..gc4+linear fused
    xa = gcn_module(x_audio, dist, params["gcn_a"])

    x_av = adaptive_fusion(xv, xa, params["fusion"])
    var_pred = two_layer_head(xv, params["var_head"], final_act="softplus")
    return xv, xa, x_av, var_pred


def clipvad_forward(params, visual, audio, padding_mask, lengths, cfg):
    # Reference passes None as padding_mask into the temporal transformers, and
    # lengths=None selects the whole-sequence adj4 branch.
    del padding_mask, lengths

    x_visual, x_audio, x_av, var_pred = encode_video(params, visual, audio, cfg)

    logits_v = two_layer_head(x_visual, params["classifier_v"])     # (B, T, 1)
    logits_a = two_layer_head(x_audio, params["classifier_a"])
    logits_av = two_layer_head(x_av, params["classifier_av"])

    # TODO(synk): CLIP ViT-B/16 text encoder (clip.load / encode_textprompt) cannot be
    # reproduced in-script; deterministic synthetic text features stand in.
    text_features_ori = params["text_features"]                     # (num_class, D)

    logits_tv = text_logits(logits_v, x_visual, text_features_ori, params["mlp1"])
    logits_tav = text_logits(logits_av, x_av, text_features_ori, params["mlp2"])

    return (text_features_ori, logits_v, logits_a, logits_av, logits_tv, logits_tav,
            x_av, var_pred, x_visual, x_audio)


# ----------------------------------------------------------------------------
# Deterministic parameter init (synthetic; shapes follow CLIPVAD.__init__).
# Weight matrices stored bf16; biases / LN params / pos-emb / text features f32.
# ----------------------------------------------------------------------------

def init_params(key, cfg):
    D = cfg["visual_width"]
    T = cfg["visual_length"]
    Wg = D // 2
    keys = iter(jax.random.split(key, 128))

    def nrm(shape, std=0.02, dtype=_BF16):
        w = std * jax.random.normal(next(keys), shape, dtype=jnp.float32)
        return w.astype(dtype)

    def lin(din, dout):
        return nrm((din, dout)), jnp.zeros((dout,), jnp.float32)

    def block_params():
        in_w, in_b = lin(D, 3 * D)
        out_w, out_b = lin(D, D)
        fc_w, fc_b = lin(D, 4 * D)
        proj_w, proj_b = lin(4 * D, D)
        return dict(
            ln1_g=jnp.ones((D,), jnp.float32), ln1_b=jnp.zeros((D,), jnp.float32),
            ln2_g=jnp.ones((D,), jnp.float32), ln2_b=jnp.zeros((D,), jnp.float32),
            attn=dict(in_w=in_w, in_b=in_b, out_w=out_w, out_b=out_b),
            fc_w=fc_w, fc_b=fc_b, proj_w=proj_w, proj_b=proj_b)

    def gcn_params():
        lw, lb = lin(D, D)
        return dict(
            gc1_w=nrm((D, Wg)), gc1_res_w=nrm((D, Wg)), gc2_w=nrm((Wg, Wg)),
            gc3_w=nrm((D, Wg)), gc3_res_w=nrm((D, Wg)), gc4_w=nrm((Wg, Wg)),
            lin_w_top=lw[:Wg], lin_w_bot=lw[Wg:], lin_b=lb)

    p = {}
    p["visual_dim_conv_w"], p["visual_dim_conv_b"] = lin(512, D)
    p["audio_dim_conv_w"], p["audio_dim_conv_b"] = lin(cfg["audio_dim"], D)
    p["frame_pos_emb"] = nrm((T, D), std=0.01, dtype=jnp.float32)
    p["audio_pos_emb"] = nrm((T, D), std=0.01, dtype=jnp.float32)
    p["temporal"] = [block_params() for _ in range(cfg["visual_layers"])]
    p["audio_temporal"] = [block_params() for _ in range(cfg["visual_layers"])]
    p["gcn_v"] = gcn_params()
    p["gcn_a"] = gcn_params()

    for name in ("mlp1", "mlp2"):
        fc_w, fc_b = lin(D, 4 * D)
        proj_w, proj_b = lin(4 * D, D)
        p[name] = dict(fc_w=fc_w, fc_b=fc_b, proj_w=proj_w, proj_b=proj_b)

    for name in ("classifier_v", "classifier_a", "classifier_av", "var_head"):
        l1_w, l1_b = lin(D, D // 4)
        l2_w, l2_b = lin(D // 4, 1)
        p[name] = dict(l1_w=l1_w, l1_b=l1_b, l2_w=l2_w, l2_b=l2_b)

    gate_wv, _ = lin(D, D)
    gate_wa, gate_b = lin(D, D)
    p["fusion"] = dict(gate_wv=gate_wv, gate_wa=gate_wa, gate_b=gate_b)

    p["text_features"] = nrm((cfg["num_class"], cfg["embed_dim"]), std=0.02,
                             dtype=jnp.float32)
    return p


# ----------------------------------------------------------------------------
# Main
# ----------------------------------------------------------------------------

if __name__ == "__main__":
    cfg = dict(num_class=3, embed_dim=32, visual_length=16, visual_width=32,
               visual_head=2, visual_layers=1, attn_window=8,
               prompt_prefix=2, prompt_postfix=2, audio_dim=24)

    key = jax.random.PRNGKey(0)
    pkey, vkey, akey = jax.random.split(key, 3)
    params = init_params(pkey, cfg)

    B, T = 2, cfg["visual_length"]
    visual = jax.random.normal(vkey, (B, T, 512), dtype=jnp.float32)
    audio = jax.random.normal(akey, (B, T, cfg["audio_dim"]), dtype=jnp.float32)

    fwd = jax.jit(lambda p, v, a: clipvad_forward(p, v, a, None, None, cfg))
    outs = fwd(params, visual, audio)
    outs = jax.block_until_ready(outs)
    print("KERNEL_OK")
</pallas_src>

<mosaic_0001>
module attributes {stable_mosaic.version = 11 : i64} {
  func.func @_dimconv_kernel(%arg0: i32, %arg1: i32, %arg2: i32, %arg3: memref<16x512xf32, #tpu.memory_space<vmem>>, %arg4: memref<512x32xbf16, #tpu.memory_space<vmem>>, %arg5: memref<1x32xf32, #tpu.memory_space<vmem>>, %arg6: memref<16x32xf32, #tpu.memory_space<vmem>>, %arg7: memref<16x32xf32, #tpu.memory_space<vmem>>) attributes {dimension_semantics = [#tpu.dimension_semantics<parallel>, #tpu.dimension_semantics<parallel>, #tpu.dimension_semantics<parallel>], iteration_bounds = array<i64: 2, 1, 1>, scalar_prefetch = 0 : i64, scratch_operands = 0 : i64, tpu.core_type = #tpu.core_type<tc>, window_params = [{transform_indices = @transform_0, window_bounds = array<i64: 16, 512>}, {transform_indices = @transform_1, window_bounds = array<i64: 512, 32>}, {transform_indices = @transform_2, window_bounds = array<i64: 1, 32>}, {transform_indices = @transform_3, window_bounds = array<i64: 16, 32>}, {transform_indices = @transform_4, window_bounds = array<i64: 16, 32>}]} {
    %c0 = arith.constant 0 : index
    %c0_0 = arith.constant 0 : index
    %0 = vector.load %arg3[%c0, %c0_0] : memref<16x512xf32, #tpu.memory_space<vmem>>, vector<16x512xf32>
    %1 = arith.truncf %0 : vector<16x512xf32> to vector<16x512xbf16>
    %c0_1 = arith.constant 0 : index
    %c0_2 = arith.constant 0 : index
    %2 = vector.load %arg4[%c0_1, %c0_2] : memref<512x32xbf16, #tpu.memory_space<vmem>>, vector<512x32xbf16>
    %cst = arith.constant dense<0.000000e+00> : vector<16x32xf32>
    %3 = tpu.matmul %1, %2, %cst {dimension_numbers = #tpu.dot_dimension_numbers<[1], [0], [0], [1], [0, 0, 1, 1], [], []>} : vector<16x512xbf16>, vector<512x32xbf16>, vector<16x32xf32> -> vector<16x32xf32>
    %c0_3 = arith.constant 0 : index
    %c0_4 = arith.constant 0 : index
    %4 = vector.load %arg5[%c0_3, %c0_4] : memref<1x32xf32, #tpu.memory_space<vmem>>, vector<1x32xf32>
    %5 = vector.broadcast %4 : vector<1x32xf32> to vector<16x32xf32>
    %6 = arith.addf %3, %5 : vector<16x32xf32>
    %c0_5 = arith.constant 0 : index
    %c0_6 = arith.constant 0 : index
    %7 = vector.load %arg6[%c0_5, %c0_6] : memref<16x32xf32, #tpu.memory_space<vmem>>, vector<16x32xf32>
    %8 = arith.addf %6, %7 : vector<16x32xf32>
    %c0_7 = arith.constant 0 : index
    %c0_8 = arith.constant 0 : index
    %9 = vector.load %arg7[%c0_7, %c0_8] : memref<16x32xf32, #tpu.memory_space<vmem>>, vector<16x32xf32>
    tpu.vector_store %arg7[%c0_7, %c0_8], %8 {strides = array<i32>} : memref<16x32xf32, #tpu.memory_space<vmem>>, vector<16x32xf32>,
    return
  }
  func.func @transform_0(%arg0: i32, %arg1: i32, %arg2: i32) -> (i32, i32) {
    %c1_i32 = arith.constant 1 : i32
    %0 = arith.muli %arg0, %c1_i32 : i32
    %1 = arith.addi %0, %arg1 : i32
    %c0_i32 = arith.constant 0 : i32
    %c0_i32_0 = arith.constant 0 : i32
    return %1, %c0_i32 : i32, i32
  }
  func.func @transform_1(%arg0: i32, %arg1: i32, %arg2: i32) -> (i32, i32) {
    %c0_i32 = arith.constant 0 : i32
    %c0_i32_0 = arith.constant 0 : i32
    return %c0_i32, %arg2 : i32, i32
  }
  func.func @transform_2(%arg0: i32, %arg1: i32, %arg2: i32) -> (i32, i32) {
    %c0_i32 = arith.constant 0 : i32
    %c0_i32_0 = arith.constant 0 : i32
    return %c0_i32, %arg2 : i32, i32
  }
  func.func @transform_3(%arg0: i32, %arg1: i32, %arg2: i32) -> (i32, i32) {
    %c0_i32 = arith.constant 0 : i32
    return %arg1, %arg2 : i32, i32
  }
  func.func @transform_4(%arg0: i32, %arg1: i32, %arg2: i32) -> (i32, i32) {
    %c1_i32 = arith.constant 1 : i32
    %0 = arith.muli %arg0, %c1_i32 : i32
    %1 = arith.addi %0, %arg1 : i32
    %c0_i32 = arith.constant 0 : i32
    return %1, %arg2 : i32, i32
  }
}

module attributes {stable_mosaic.version = 11 : i64} {
  func.func @_ln_linear_kernel(%arg0: i32, %arg1: memref<32x32xf32, #tpu.memory_space<vmem>>, %arg2: memref<1x32xf32, #tpu.memory_space<vmem>>, %arg3: memref<1x32xf32, #tpu.memory_space<vmem>>, %arg4: memref<32x96xbf16, #tpu.memory_space<vmem>>, %arg5: memref<1x96xf32, #tpu.memory_space<vmem>>, %arg6: memref<32x96xbf16, #tpu.memory_space<vmem>>) attributes {dimension_semantics = [#tpu.dimension_semantics<parallel>], iteration_bounds = array<i64: 1>, scalar_prefetch = 0 : i64, scratch_operands = 0 : i64, tpu.core_type = #tpu.core_type<tc>, window_params = [{transform_indices = @transform_0, window_bounds = array<i64: 32, 32>}, {pipeline_mode = #tpu.pipeline_mode<synchronous>, transform_indices = @transform_1, window_bounds = array<i64: 1, 32>}, {pipeline_mode = #tpu.pipeline_mode<synchronous>, transform_indices = @transform_2, window_bounds = array<i64: 1, 32>}, {pipeline_mode = #tpu.pipeline_mode<synchronous>, transform_indices = @transform_3, window_bounds = array<i64: 32, 96>}, {pipeline_mode = #tpu.pipeline_mode<synchronous>, transform_indices = @transform_4, window_bounds = array<i64: 1, 96>}, {transform_indices = @transform_5, window_bounds = array<i64: 32, 96>}]} {
    %c0 = arith.constant 0 : index
    %c0_0 = arith.constant 0 : index
    %0 = vector.load %arg1[%c0, %c0_0] : memref<32x32xf32, #tpu.memory_space<vmem>>, vector<32x32xf32>
    %cst = arith.constant dense<0.000000e+00> : vector<32xf32>
    %1 = vector.multi_reduction <add>, %0, %cst [1] : vector<32x32xf32> to vector<32xf32>
    %2 = vector.shape_cast %1 : vector<32xf32> to vector<32x1xf32>
    %cst_1 = arith.constant 3.200000e+01 : f32
    %3 = vector.broadcast %cst_1 : f32 to vector<32x1xf32>
    %4 = arith.divf %2, %3 : vector<32x1xf32>
    %5 = vector.broadcast %4 : vector<32x1xf32> to vector<32x32xf32>
    %6 = arith.subf %0, %5 : vector<32x32xf32>
    %7 = arith.mulf %6, %6 : vector<32x32xf32>
    %cst_2 = arith.constant dense<0.000000e+00> : vector<32xf32>
    %8 = vector.multi_reduction <add>, %7, %cst_2 [1] : vector<32x32xf32> to vector<32xf32>
    %9 = vector.shape_cast %8 : vector<32xf32> to vector<32x1xf32>
    %cst_3 = arith.constant 3.200000e+01 : f32
    %10 = vector.broadcast %cst_3 : f32 to vector<32x1xf32>
    %11 = arith.divf %9, %10 : vector<32x1xf32>
    %12 = vector.broadcast %4 : vector<32x1xf32> to vector<32x32xf32>
    %13 = arith.subf %0, %12 : vector<32x32xf32>
    %cst_4 = arith.constant 9.99999974E-6 : f32
    %14 = vector.broadcast %cst_4 : f32 to vector<32x1xf32>
    %15 = arith.addf %11, %14 : vector<32x1xf32>
    %16 = math.rsqrt %15 : vector<32x1xf32>
    %17 = vector.broadcast %16 : vector<32x1xf32> to vector<32x32xf32>
    %18 = arith.mulf %13, %17 : vector<32x32xf32>
    %c0_5 = arith.constant 0 : index
    %c0_6 = arith.constant 0 : index
    %19 = vector.load %arg2[%c0_5, %c0_6] : memref<1x32xf32, #tpu.memory_space<vmem>>, vector<1x32xf32>
    %20 = vector.broadcast %19 : vector<1x32xf32> to vector<32x32xf32>
    %21 = arith.mulf %18, %20 : vector<32x32xf32>
    %c0_7 = arith.constant 0 : index
    %c0_8 = arith.constant 0 : index
    %22 = vector.load %arg3[%c0_7, %c0_8] : memref<1x32xf32, #tpu.memory_space<vmem>>, vector<1x32xf32>
    %23 = vector.broadcast %22 : vector<1x32xf32> to vector<32x32xf32>
    %24 = arith.addf %21, %23 : vector<32x32xf32>
    %25 = arith.truncf %24 : vector<32x32xf32> to vector<32x32xbf16>
    %c0_9 = arith.constant 0 : index
    %c0_10 = arith.constant 0 : index
    %26 = vector.load %arg4[%c0_9, %c0_10] : memref<32x96xbf16, #tpu.memory_space<vmem>>, vector<32x96xbf16>
    %cst_11 = arith.constant dense<0.000000e+00> : vector<32x96xf32>
    %27 = tpu.matmul %25, %26, %cst_11 {dimension_numbers = #tpu.dot_dimension_numbers<[1], [0], [0], [1], [0, 0, 1, 1], [], []>} : vector<32x32xbf16>, vector<32x96xbf16>, vector<32x96xf32> -> vector<32x96xf32>
    %c0_12 = arith.constant 0 : index
    %c0_13 = arith.constant 0 : index
    %28 = vector.load %arg5[%c0_12, %c0_13] : memref<1x96xf32, #tpu.memory_space<vmem>>, vector<1x96xf32>
    %29 = vector.broadcast %28 : vector<1x96xf32> to vector<32x96xf32>
    %30 = arith.addf %27, %29 : vector<32x96xf32>
    %31 = arith.truncf %30 : vector<32x96xf32> to vector<32x96xbf16>
    %c0_14 = arith.constant 0 : index
    %c0_15 = arith.constant 0 : index
    %32 = vector.load %arg6[%c0_14, %c0_15] : memref<32x96xbf16, #tpu.memory_space<vmem>>, vector<32x96xbf16>
    tpu.vector_store %arg6[%c0_14, %c0_15], %31 {strides = array<i32>} : memref<32x96xbf16, #tpu.memory_space<vmem>>, vector<32x96xbf16>,
    return
  }
  func.func @transform_0(%arg0: i32) -> (i32, i32) {
    %c0_i32 = arith.constant 0 : i32
    %c0_i32_0 = arith.constant 0 : i32
    return %arg0, %c0_i32 : i32, i32
  }
  func.func @transform_1(%arg0: i32) -> (i32, i32) {
    %c0_i32 = arith.constant 0 : i32
    %c0_i32_0 = arith.constant 0 : i32
    %c0_i32_1 = arith.constant 0 : i32
    return %c0_i32, %c0_i32_0 : i32, i32
  }
  func.func @transform_2(%arg0: i32) -> (i32, i32) {
    %c0_i32 = arith.constant 0 : i32
    %c0_i32_0 = arith.constant 0 : i32
    %c0_i32_1 = arith.constant 0 : i32
    return %c0_i32, %c0_i32_0 : i32, i32
  }
  func.func @transform_3(%arg0: i32) -> (i32, i32) {
    %c0_i32 = arith.constant 0 : i32
    %c0_i32_0 = arith.constant 0 : i32
    %c0_i32_1 = arith.constant 0 : i32
    return %c0_i32, %c0_i32_0 : i32, i32
  }
  func.func @transform_4(%arg0: i32) -> (i32, i32) {
    %c0_i32 = arith.constant 0 : i32
    %c0_i32_0 = arith.constant 0 : i32
    %c0_i32_1 = arith.constant 0 : i32
    return %c0_i32, %c0_i32_0 : i32, i32
  }
  func.func @transform_5(%arg0: i32) -> (i32, i32) {
    %c0_i32 = arith.constant 0 : i32
    %c0_i32_0 = arith.constant 0 : i32
    return %arg0, %c0_i32 : i32, i32
  }
}

module attributes {stable_mosaic.version = 11 : i64} {
  func.func @_attn_kernel(%arg0: i32, %arg1: i32, %arg2: memref<1x16x96xbf16, #tpu.memory_space<vmem>>, %arg3: memref<1x16x32xf32, #tpu.memory_space<vmem>>, %arg4: memref<32x32xbf16, #tpu.memory_space<vmem>>, %arg5: memref<1x32xf32, #tpu.memory_space<vmem>>, %arg6: memref<1x16x32xf32, #tpu.memory_space<vmem>>) attributes {dimension_semantics = [#tpu.dimension_semantics<parallel>, #tpu.dimension_semantics<parallel>], iteration_bounds = array<i64: 2, 1>, scalar_prefetch = 0 : i64, scratch_operands = 0 : i64, tpu.core_type = #tpu.core_type<tc>, window_params = [{transform_indices = @transform_0, window_bounds = array<i64: 1, 16, 96>}, {transform_indices = @transform_1, window_bounds = array<i64: 1, 16, 32>}, {pipeline_mode = #tpu.pipeline_mode<synchronous>, transform_indices = @transform_2, window_bounds = array<i64: 32, 32>}, {pipeline_mode = #tpu.pipeline_mode<synchronous>, transform_indices = @transform_3, window_bounds = array<i64: 1, 32>}, {transform_indices = @transform_4, window_bounds = array<i64: 1, 16, 32>}]} {
    %c0 = arith.constant 0 : index
    %c0_0 = arith.constant 0 : index
    %c0_1 = arith.constant 0 : index
    %0 = vector.load %arg2[%c0, %c0_0, %c0_1] : memref<1x16x96xbf16, #tpu.memory_space<vmem>>, vector<1x16x96xbf16>
    %1 = vector.shape_cast %0 : vector<1x16x96xbf16> to vector<16x96xbf16>
    %c0_2 = arith.constant 0 : index
    %c0_3 = arith.constant 0 : index
    %2 = vector.load %arg4[%c0_2, %c0_3] : memref<32x32xbf16, #tpu.memory_space<vmem>>, vector<32x32xbf16>
    %c0_4 = arith.constant 0 : index
    %c0_5 = arith.constant 0 : index
    %c0_6 = arith.constant 0 : index
    %3 = vector.load %arg3[%c0_4, %c0_5, %c0_6] : memref<1x16x32xf32, #tpu.memory_space<vmem>>, vector<1x16x32xf32>
    %4 = vector.shape_cast %3 : vector<1x16x32xf32> to vector<16x32xf32>
    %c0_7 = arith.constant 0 : index
    %c0_8 = arith.constant 0 : index
    %5 = vector.load %arg5[%c0_7, %c0_8] : memref<1x32xf32, #tpu.memory_space<vmem>>, vector<1x32xf32>
    %6 = vector.broadcast %5 : vector<1x32xf32> to vector<16x32xf32>
    %7 = arith.addf %4, %6 : vector<16x32xf32>
    %8 = vector.extract_strided_slice %1 {offsets = [0, 0], sizes = [16, 16], strides = [1, 1]} : vector<16x96xbf16> to vector<16x16xbf16>
    %9 = vector.shape_cast %8 : vector<16x16xbf16> to vector<2x8x16xbf16>
    %10 = vector.extract_strided_slice %1 {offsets = [0, 32], sizes = [16, 16], strides = [1, 1]} : vector<16x96xbf16> to vector<16x16xbf16>
    %11 = vector.shape_cast %10 : vector<16x16xbf16> to vector<2x8x16xbf16>
    %12 = vector.extract_strided_slice %1 {offsets = [0, 64], sizes = [16, 16], strides = [1, 1]} : vector<16x96xbf16> to vector<16x16xbf16>
    %13 = vector.shape_cast %12 : vector<16x16xbf16> to vector<2x8x16xbf16>
    %cst = arith.constant dense<0.000000e+00> : vector<2x8x8xf32>
    %14 = tpu.matmul %9, %11, %cst {dimension_numbers = #tpu.dot_dimension_numbers<[2], [2], [1], [1], [0, 0, 0, 1, 1, 1], [0], [0]>} : vector<2x8x16xbf16>, vector<2x8x16xbf16>, vector<2x8x8xf32> -> vector<2x8x8xf32>
    %cst_9 = arith.constant 2.500000e-01 : f32
    %15 = vector.broadcast %cst_9 : f32 to vector<2x8x8xf32>
    %16 = arith.mulf %14, %15 : vector<2x8x8xf32>
    %cst_10 = arith.constant dense<0xFF800000> : vector<2x8xf32>
    %17 = vector.multi_reduction <maximumf>, %16, %cst_10 [2] : vector<2x8x8xf32> to vector<2x8xf32>
    %18 = vector.shape_cast %17 : vector<2x8xf32> to vector<2x8x1xf32>
    %19 = vector.broadcast %18 : vector<2x8x1xf32> to vector<2x8x8xf32>
    %20 = arith.subf %16, %19 : vector<2x8x8xf32>
    %21 = math.exp %20 : vector<2x8x8xf32>
    %cst_11 = arith.constant dense<0.000000e+00> : vector<2x8xf32>
    %22 = vector.multi_reduction <add>, %21, %cst_11 [2] : vector<2x8x8xf32> to vector<2x8xf32>
    %23 = vector.shape_cast %22 : vector<2x8xf32> to vector<2x8x1xf32>
    %24 = tpu.reciprocal %23 {approx = true} : vector<2x8x1xf32> -> vector<2x8x1xf32>
    %25 = vector.broadcast %24 : vector<2x8x1xf32> to vector<2x8x8xf32>
    %26 = arith.mulf %21, %25 : vector<2x8x8xf32>
    %27 = arith.truncf %26 : vector<2x8x8xf32> to vector<2x8x8xbf16>
    %cst_12 = arith.constant dense<0.000000e+00> : vector<2x8x16xf32>
    %28 = tpu.matmul %27, %13, %cst_12 {dimension_numbers = #tpu.dot_dimension_numbers<[2], [1], [1], [2], [0, 0, 0, 1, 1, 2], [0], [0]>} : vector<2x8x8xbf16>, vector<2x8x16xbf16>, vector<2x8x16xf32> -> vector<2x8x16xf32>
    %29 = vector.shape_cast %28 : vector<2x8x16xf32> to vector<16x16xf32>
    %30 = arith.truncf %29 : vector<16x16xf32> to vector<16x16xbf16>
    %31 = vector.extract_strided_slice %2 {offsets = [0, 0], sizes = [16, 32], strides = [1, 1]} : vector<32x32xbf16> to vector<16x32xbf16>
    %cst_13 = arith.constant dense<0.000000e+00> : vector<16x32xf32>
    %32 = tpu.matmul %30, %31, %cst_13 {dimension_numbers = #tpu.dot_dimension_numbers<[1], [0], [0], [1], [0, 0, 1, 1], [], []>} : vector<16x16xbf16>, vector<16x32xbf16>, vector<16x32xf32> -> vector<16x32xf32>
    %33 = arith.addf %7, %32 : vector<16x32xf32>
    %34 = vector.extract_strided_slice %1 {offsets = [0, 16], sizes = [16, 16], strides = [1, 1]} : vector<16x96xbf16> to vector<16x16xbf16>
    %35 = vector.shape_cast %34 : vector<16x16xbf16> to vector<2x8x16xbf16>
    %36 = vector.extract_strided_slice %1 {offsets = [0, 48], sizes = [16, 16], strides = [1, 1]} : vector<16x96xbf16> to vector<16x16xbf16>
    %37 = vector.shape_cast %36 : vector<16x16xbf16> to vector<2x8x16xbf16>
    %38 = vector.extract_strided_slice %1 {offsets = [0, 80], sizes = [16, 16], strides = [1, 1]} : vector<16x96xbf16> to vector<16x16xbf16>
    %39 = vector.shape_cast %38 : vector<16x16xbf16> to vector<2x8x16xbf16>
    %cst_14 = arith.constant dense<0.000000e+00> : vector<2x8x8xf32>
    %40 = tpu.matmul %35, %37, %cst_14 {dimension_numbers = #tpu.dot_dimension_numbers<[2], [2], [1], [1], [0, 0, 0, 1, 1, 1], [0], [0]>} : vector<2x8x16xbf16>, vector<2x8x16xbf16>, vector<2x8x8xf32> -> vector<2x8x8xf32>
    %cst_15 = arith.constant 2.500000e-01 : f32
    %41 = vector.broadcast %cst_15 : f32 to vector<2x8x8xf32>
    %42 = arith.mulf %40, %41 : vector<2x8x8xf32>
    %cst_16 = arith.constant dense<0xFF800000> : vector<2x8xf32>
    %43 = vector.multi_reduction <maximumf>, %42, %cst_16 [2] : vector<2x8x8xf32> to vector<2x8xf32>
    %44 = vector.shape_cast %43 : vector<2x8xf32> to vector<2x8x1xf32>
    %45 = vector.broadcast %44 : vector<2x8x1xf32> to vector<2x8x8xf32>
    %46 = arith.subf %42, %45 : vector<2x8x8xf32>
    %47 = math.exp %46 : vector<2x8x8xf32>
    %cst_17 = arith.constant dense<0.000000e+00> : vector<2x8xf32>
    %48 = vector.multi_reduction <add>, %47, %cst_17 [2] : vector<2x8x8xf32> to vector<2x8xf32>
    %49 = vector.shape_cast %48 : vector<2x8xf32> to vector<2x8x1xf32>
    %50 = tpu.reciprocal %49 {approx = true} : vector<2x8x1xf32> -> vector<2x8x1xf32>
    %51 = vector.broadcast %50 : vector<2x8x1xf32> to vector<2x8x8xf32>
    %52 = arith.mulf %47, %51 : vector<2x8x8xf32>
    %53 = arith.truncf %52 : vector<2x8x8xf32> to vector<2x8x8xbf16>
    %cst_18 = arith.constant dense<0.000000e+00> : vector<2x8x16xf32>
    %54 = tpu.matmul %53, %39, %cst_18 {dimension_numbers = #tpu.dot_dimension_numbers<[2], [1], [1], [2], [0, 0, 0, 1, 1, 2], [0], [0]>} : vector<2x8x8xbf16>, vector<2x8x16xbf16>, vector<2x8x16xf32> -> vector<2x8x16xf32>
    %55 = vector.shape_cast %54 : vector<2x8x16xf32> to vector<16x16xf32>
    %56 = arith.truncf %55 : vector<16x16xf32> to vector<16x16xbf16>
    %57 = vector.extract_strided_slice %2 {offsets = [16, 0], sizes = [16, 32], strides = [1, 1]} : vector<32x32xbf16> to vector<16x32xbf16>
    %cst_19 = arith.constant dense<0.000000e+00> : vector<16x32xf32>
    %58 = tpu.matmul %56, %57, %cst_19 {dimension_numbers = #tpu.dot_dimension_numbers<[1], [0], [0], [1], [0, 0, 1, 1], [], []>} : vector<16x16xbf16>, vector<16x32xbf16>, vector<16x32xf32> -> vector<16x32xf32>
    %59 = arith.addf %33, %58 : vector<16x32xf32>
    %c0_20 = arith.constant 0 : index
    %c0_21 = arith.constant 0 : index
    %c0_22 = arith.constant 0 : index
    %60 = vector.load %arg6[%c0_20, %c0_21, %c0_22] : memref<1x16x32xf32, #tpu.memory_space<vmem>>, vector<1x16x32xf32>
    %61 = vector.shape_cast %60 : vector<1x16x32xf32> to vector<16x32xf32>
    %62 = vector.shape_cast %59 : vector<16x32xf32> to vector<1x16x32xf32>
    tpu.vector_store %arg6[%c0_20, %c0_21, %c0_22], %62 {strides = array<i32>} : memref<1x16x32xf32, #tpu.memory_space<vmem>>, vector<1x16x32xf32>,
    return
  }
  func.func @transform_0(%arg0: i32, %arg1: i32) -> (i32, i32, i32) {
    %c0_i32 = arith.constant 0 : i32
    %c0_i32_0 = arith.constant 0 : i32
    return %arg0, %arg1, %c0_i32 : i32, i32, i32
  }
  func.func @transform_1(%arg0: i32, %arg1: i32) -> (i32, i32, i32) {
    %c0_i32 = arith.constant 0 : i32
    %c0_i32_0 = arith.constant 0 : i32
    return %arg0, %arg1, %c0_i32 : i32, i32, i32
  }
  func.func @transform_2(%arg0: i32, %arg1: i32) -> (i32, i32) {
    %c0_i32 = arith.constant 0 : i32
    %c0_i32_0 = arith.constant 0 : i32
    %c0_i32_1 = arith.constant 0 : i32
    return %c0_i32, %c0_i32_0 : i32, i32
  }
  func.func @transform_3(%arg0: i32, %arg1: i32) -> (i32, i32) {
    %c0_i32 = arith.constant 0 : i32
    %c0_i32_0 = arith.constant 0 : i32
    %c0_i32_1 = arith.constant 0 : i32
    return %c0_i32, %c0_i32_0 : i32, i32
  }
  func.func @transform_4(%arg0: i32, %arg1: i32) -> (i32, i32, i32) {
    %c0_i32 = arith.constant 0 : i32
    %c0_i32_0 = arith.constant 0 : i32
    return %arg0, %arg1, %c0_i32 : i32, i32, i32
  }
}

module attributes {stable_mosaic.version = 11 : i64} {
  func.func @_mlp_block_kernel(%arg0: i32, %arg1: memref<32x32xf32, #tpu.memory_space<vmem>>, %arg2: memref<1x32xf32, #tpu.memory_space<vmem>>, %arg3: memref<1x32xf32, #tpu.memory_space<vmem>>, %arg4: memref<32x128xbf16, #tpu.memory_space<vmem>>, %arg5: memref<1x128xf32, #tpu.memory_space<vmem>>, %arg6: memref<128x32xbf16, #tpu.memory_space<vmem>>, %arg7: memref<1x32xf32, #tpu.memory_space<vmem>>, %arg8: memref<32x32xf32, #tpu.memory_space<vmem>>) attributes {dimension_semantics = [#tpu.dimension_semantics<parallel>], iteration_bounds = array<i64: 1>, scalar_prefetch = 0 : i64, scratch_operands = 0 : i64, tpu.core_type = #tpu.core_type<tc>, window_params = [{transform_indices = @transform_0, window_bounds = array<i64: 32, 32>}, {pipeline_mode = #tpu.pipeline_mode<synchronous>, transform_indices = @transform_1, window_bounds = array<i64: 1, 32>}, {pipeline_mode = #tpu.pipeline_mode<synchronous>, transform_indices = @transform_2, window_bounds = array<i64: 1, 32>}, {pipeline_mode = #tpu.pipeline_mode<synchronous>, transform_indices = @transform_3, window_bounds = array<i64: 32, 128>}, {pipeline_mode = #tpu.pipeline_mode<synchronous>, transform_indices = @transform_4, window_bounds = array<i64: 1, 128>}, {pipeline_mode = #tpu.pipeline_mode<synchronous>, transform_indices = @transform_5, window_bounds = array<i64: 128, 32>}, {pipeline_mode = #tpu.pipeline_mode<synchronous>, transform_indices = @transform_6, window_bounds = array<i64: 1, 32>}, {transform_indices = @transform_7, window_bounds = array<i64: 32, 32>}]} {
    %c0 = arith.constant 0 : index
    %c0_0 = arith.constant 0 : index
    %0 = vector.load %arg1[%c0, %c0_0] : memref<32x32xf32, #tpu.memory_space<vmem>>, vector<32x32xf32>
    %cst = arith.constant dense<0.000000e+00> : vector<32xf32>
    %1 = vector.multi_reduction <add>, %0, %cst [1] : vector<32x32xf32> to vector<32xf32>
    %2 = vector.shape_cast %1 : vector<32xf32> to vector<32x1xf32>
    %cst_1 = arith.constant 3.200000e+01 : f32
    %3 = vector.broadcast %cst_1 : f32 to vector<32x1xf32>
    %4 = arith.divf %2, %3 : vector<32x1xf32>
    %5 = vector.broadcast %4 : vector<32x1xf32> to vector<32x32xf32>
    %6 = arith.subf %0, %5 : vector<32x32xf32>
    %7 = arith.mulf %6, %6 : vector<32x32xf32>
    %cst_2 = arith.constant dense<0.000000e+00> : vector<32xf32>
    %8 = vector.multi_reduction <add>, %7, %cst_2 [1] : vector<32x32xf32> to vector<32xf32>
    %9 = vector.shape_cast %8 : vector<32xf32> to vector<32x1xf32>
    %cst_3 = arith.constant 3.200000e+01 : f32
    %10 = vector.broadcast %cst_3 : f32 to vector<32x1xf32>
    %11 = arith.divf %9, %10 : vector<32x1xf32>
    %12 = vector.broadcast %4 : vector<32x1xf32> to vector<32x32xf32>
    %13 = arith.subf %0, %12 : vector<32x32xf32>
    %cst_4 = arith.constant 9.99999974E-6 : f32
    %14 = vector.broadcast %cst_4 : f32 to vector<32x1xf32>
    %15 = arith.addf %11, %14 : vector<32x1xf32>
    %16 = math.rsqrt %15 : vector<32x1xf32>
    %17 = vector.broadcast %16 : vector<32x1xf32> to vector<32x32xf32>
    %18 = arith.mulf %13, %17 : vector<32x32xf32>
    %c0_5 = arith.constant 0 : index
    %c0_6 = arith.constant 0 : index
    %19 = vector.load %arg2[%c0_5, %c0_6] : memref<1x32xf32, #tpu.memory_space<vmem>>, vector<1x32xf32>
    %20 = vector.broadcast %19 : vector<1x32xf32> to vector<32x32xf32>
    %21 = arith.mulf %18, %20 : vector<32x32xf32>
    %c0_7 = arith.constant 0 : index
    %c0_8 = arith.constant 0 : index
    %22 = vector.load %arg3[%c0_7, %c0_8] : memref<1x32xf32, #tpu.memory_space<vmem>>, vector<1x32xf32>
    %23 = vector.broadcast %22 : vector<1x32xf32> to vector<32x32xf32>
    %24 = arith.addf %21, %23 : vector<32x32xf32>
    %25 = arith.truncf %24 : vector<32x32xf32> to vector<32x32xbf16>
    %c0_9 = arith.constant 0 : index
    %c0_10 = arith.constant 0 : index
    %26 = vector.load %arg4[%c0_9, %c0_10] : memref<32x128xbf16, #tpu.memory_space<vmem>>, vector<32x128xbf16>
    %cst_11 = arith.constant dense<0.000000e+00> : vector<32x128xf32>
    %27 = tpu.matmul %25, %26, %cst_11 {dimension_numbers = #tpu.dot_dimension_numbers<[1], [0], [0], [1], [0, 0, 1, 1], [], []>} : vector<32x32xbf16>, vector<32x128xbf16>, vector<32x128xf32> -> vector<32x128xf32>
    %c0_12 = arith.constant 0 : index
    %c0_13 = arith.constant 0 : index
    %28 = vector.load %arg5[%c0_12, %c0_13] : memref<1x128xf32, #tpu.memory_space<vmem>>, vector<1x128xf32>
    %29 = vector.broadcast %28 : vector<1x128xf32> to vector<32x128xf32>
    %30 = arith.addf %27, %29 : vector<32x128xf32>
    %cst_14 = arith.constant 1.702000e+00 : f32
    %31 = vector.broadcast %cst_14 : f32 to vector<32x128xf32>
    %32 = arith.mulf %31, %30 : vector<32x128xf32>
    %33 = arith.negf %32 : vector<32x128xf32>
    %34 = math.exp %33 : vector<32x128xf32>
    %cst_15 = arith.constant 1.000000e+00 : f32
    %35 = vector.broadcast %cst_15 : f32 to vector<32x128xf32>
    %36 = arith.addf %35, %34 : vector<32x128xf32>
    %37 = arith.divf %35, %36 : vector<32x128xf32>
    %38 = arith.mulf %30, %37 : vector<32x128xf32>
    %39 = arith.truncf %38 : vector<32x128xf32> to vector<32x128xbf16>
    %c0_16 = arith.constant 0 : index
    %c0_17 = arith.constant 0 : index
    %40 = vector.load %arg6[%c0_16, %c0_17] : memref<128x32xbf16, #tpu.memory_space<vmem>>, vector<128x32xbf16>
    %cst_18 = arith.constant dense<0.000000e+00> : vector<32x32xf32>
    %41 = tpu.matmul %39, %40, %cst_18 {dimension_numbers = #tpu.dot_dimension_numbers<[1], [0], [0], [1], [0, 0, 1, 1], [], []>} : vector<32x128xbf16>, vector<128x32xbf16>, vector<32x32xf32> -> vector<32x32xf32>
    %c0_19 = arith.constant 0 : index
    %c0_20 = arith.constant 0 : index
    %42 = vector.load %arg7[%c0_19, %c0_20] : memref<1x32xf32, #tpu.memory_space<vmem>>, vector<1x32xf32>
    %43 = vector.broadcast %42 : vector<1x32xf32> to vector<32x32xf32>
    %44 = arith.addf %41, %43 : vector<32x32xf32>
    %45 = arith.addf %0, %44 : vector<32x32xf32>
    %c0_21 = arith.constant 0 : index
    %c0_22 = arith.constant 0 : index
    %46 = vector.load %arg8[%c0_21, %c0_22] : memref<32x32xf32, #tpu.memory_space<vmem>>, vector<32x32xf32>
    tpu.vector_store %arg8[%c0_21, %c0_22], %45 {strides = array<i32>} : memref<32x32xf32, #tpu.memory_space<vmem>>, vector<32x32xf32>,
    return
  }
  func.func @transform_0(%arg0: i32) -> (i32, i32) {
    %c0_i32 = arith.constant 0 : i32
    %c0_i32_0 = arith.constant 0 : i32
    return %arg0, %c0_i32 : i32, i32
  }
  func.func @transform_1(%arg0: i32) -> (i32, i32) {
    %c0_i32 = arith.constant 0 : i32
    %c0_i32_0 = arith.constant 0 : i32
    %c0_i32_1 = arith.constant 0 : i32
    return %c0_i32, %c0_i32_0 : i32, i32
  }
  func.func @transform_2(%arg0: i32) -> (i32, i32) {
    %c0_i32 = arith.constant 0 : i32
    %c0_i32_0 = arith.constant 0 : i32
    %c0_i32_1 = arith.constant 0 : i32
    return %c0_i32, %c0_i32_0 : i32, i32
  }
  func.func @transform_3(%arg0: i32) -> (i32, i32) {
    %c0_i32 = arith.constant 0 : i32
    %c0_i32_0 = arith.constant 0 : i32
    %c0_i32_1 = arith.constant 0 : i32
    return %c0_i32, %c0_i32_0 : i32, i32
  }
  func.func @transform_4(%arg0: i32) -> (i32, i32) {
    %c0_i32 = arith.constant 0 : i32
    %c0_i32_0 = arith.constant 0 : i32
    %c0_i32_1 = arith.constant 0 : i32
    return %c0_i32, %c0_i32_0 : i32, i32
  }
  func.func @transform_5(%arg0: i32) -> (i32, i32) {
    %c0_i32 = arith.constant 0 : i32
    %c0_i32_0 = arith.constant 0 : i32
    %c0_i32_1 = arith.constant 0 : i32
    return %c0_i32, %c0_i32_0 : i32, i32
  }
  func.func @transform_6(%arg0: i32) -> (i32, i32) {
    %c0_i32 = arith.constant 0 : i32
    %c0_i32_0 = arith.constant 0 : i32
    %c0_i32_1 = arith.constant 0 : i32
    return %c0_i32, %c0_i32_0 : i32, i32
  }
  func.func @transform_7(%arg0: i32) -> (i32, i32) {
    %c0_i32 = arith.constant 0 : i32
    %c0_i32_0 = arith.constant 0 : i32
    return %arg0, %c0_i32 : i32, i32
  }
}

module attributes {stable_mosaic.version = 11 : i64} {
  func.func @_dimconv_kernel(%arg0: i32, %arg1: i32, %arg2: i32, %arg3: memref<16x24xf32, #tpu.memory_space<vmem>>, %arg4: memref<24x32xbf16, #tpu.memory_space<vmem>>, %arg5: memref<1x32xf32, #tpu.memory_space<vmem>>, %arg6: memref<16x32xf32, #tpu.memory_space<vmem>>, %arg7: memref<16x32xf32, #tpu.memory_space<vmem>>) attributes {dimension_semantics = [#tpu.dimension_semantics<parallel>, #tpu.dimension_semantics<parallel>, #tpu.dimension_semantics<parallel>], iteration_bounds = array<i64: 2, 1, 1>, scalar_prefetch = 0 : i64, scratch_operands = 0 : i64, tpu.core_type = #tpu.core_type<tc>, window_params = [{transform_indices = @transform_0, window_bounds = array<i64: 16, 24>}, {transform_indices = @transform_1, window_bounds = array<i64: 24, 32>}, {transform_indices = @transform_2, window_bounds = array<i64: 1, 32>}, {transform_indices = @transform_3, window_bounds = array<i64: 16, 32>}, {transform_indices = @transform_4, window_bounds = array<i64: 16, 32>}]} {
    %c0 = arith.constant 0 : index
    %c0_0 = arith.constant 0 : index
    %0 = vector.load %arg3[%c0, %c0_0] : memref<16x24xf32, #tpu.memory_space<vmem>>, vector<16x24xf32>
    %1 = arith.truncf %0 : vector<16x24xf32> to vector<16x24xbf16>
    %c0_1 = arith.constant 0 : index
    %c0_2 = arith.constant 0 : index
    %2 = vector.load %arg4[%c0_1, %c0_2] : memref<24x32xbf16, #tpu.memory_space<vmem>>, vector<24x32xbf16>
    %cst = arith.constant dense<0.000000e+00> : vector<16x32xf32>
    %3 = tpu.matmul %1, %2, %cst {dimension_numbers = #tpu.dot_dimension_numbers<[1], [0], [0], [1], [0, 0, 1, 1], [], []>} : vector<16x24xbf16>, vector<24x32xbf16>, vector<16x32xf32> -> vector<16x32xf32>
    %c0_3 = arith.constant 0 : index
    %c0_4 = arith.constant 0 : index
    %4 = vector.load %arg5[%c0_3, %c0_4] : memref<1x32xf32, #tpu.memory_space<vmem>>, vector<1x32xf32>
    %5 = vector.broadcast %4 : vector<1x32xf32> to vector<16x32xf32>
    %6 = arith.addf %3, %5 : vector<16x32xf32>
    %c0_5 = arith.constant 0 : index
    %c0_6 = arith.constant 0 : index
    %7 = vector.load %arg6[%c0_5, %c0_6] : memref<16x32xf32, #tpu.memory_space<vmem>>, vector<16x32xf32>
    %8 = arith.addf %6, %7 : vector<16x32xf32>
    %c0_7 = arith.constant 0 : index
    %c0_8 = arith.constant 0 : index
    %9 = vector.load %arg7[%c0_7, %c0_8] : memref<16x32xf32, #tpu.memory_space<vmem>>, vector<16x32xf32>
    tpu.vector_store %arg7[%c0_7, %c0_8], %8 {strides = array<i32>} : memref<16x32xf32, #tpu.memory_space<vmem>>, vector<16x32xf32>,
    return
  }
  func.func @transform_0(%arg0: i32, %arg1: i32, %arg2: i32) -> (i32, i32) {
    %c1_i32 = arith.constant 1 : i32
    %0 = arith.muli %arg0, %c1_i32 : i32
    %1 = arith.addi %0, %arg1 : i32
    %c0_i32 = arith.constant 0 : i32
    %c0_i32_0 = arith.constant 0 : i32
    return %1, %c0_i32 : i32, i32
  }
  func.func @transform_1(%arg0: i32, %arg1: i32, %arg2: i32) -> (i32, i32) {
    %c0_i32 = arith.constant 0 : i32
    %c0_i32_0 = arith.constant 0 : i32
    return %c0_i32, %arg2 : i32, i32
  }
  func.func @transform_2(%arg0: i32, %arg1: i32, %arg2: i32) -> (i32, i32) {
    %c0_i32 = arith.constant 0 : i32
    %c0_i32_0 = arith.constant 0 : i32
    return %c0_i32, %arg2 : i32, i32
  }
  func.func @transform_3(%arg0: i32, %arg1: i32, %arg2: i32) -> (i32, i32) {
    %c0_i32 = arith.constant 0 : i32
    return %arg1, %arg2 : i32, i32
  }
  func.func @transform_4(%arg0: i32, %arg1: i32, %arg2: i32) -> (i32, i32) {
    %c1_i32 = arith.constant 1 : i32
    %0 = arith.muli %arg0, %c1_i32 : i32
    %1 = arith.addi %0, %arg1 : i32
    %c0_i32 = arith.constant 0 : i32
    return %1, %arg2 : i32, i32
  }
}

module attributes {stable_mosaic.version = 11 : i64} {
  func.func @_gcn_kernel(%arg0: i32, %arg1: memref<1x16x32xf32, #tpu.memory_space<vmem>>, %arg2: memref<16x16xf32, #tpu.memory_space<vmem>>, %arg3: memref<32x16xbf16, #tpu.memory_space<vmem>>, %arg4: memref<32x16xbf16, #tpu.memory_space<vmem>>, %arg5: memref<16x16xbf16, #tpu.memory_space<vmem>>, %arg6: memref<32x16xbf16, #tpu.memory_space<vmem>>, %arg7: memref<32x16xbf16, #tpu.memory_space<vmem>>, %arg8: memref<16x16xbf16, #tpu.memory_space<vmem>>, %arg9: memref<16x32xbf16, #tpu.memory_space<vmem>>, %arg10: memref<16x32xbf16, #tpu.memory_space<vmem>>, %arg11: memref<1x32xf32, #tpu.memory_space<vmem>>, %arg12: memref<1x16x32xf32, #tpu.memory_space<vmem>>) attributes {dimension_semantics = [#tpu.dimension_semantics<parallel>], iteration_bounds = array<i64: 2>, scalar_prefetch = 0 : i64, scratch_operands = 0 : i64, tpu.core_type = #tpu.core_type<tc>, window_params = [{transform_indices = @transform_0, window_bounds = array<i64: 1, 16, 32>}, {pipeline_mode = #tpu.pipeline_mode<synchronous>, transform_indices = @transform_1, window_bounds = array<i64: 16, 16>}, {pipeline_mode = #tpu.pipeline_mode<synchronous>, transform_indices = @transform_2, window_bounds = array<i64: 32, 16>}, {pipeline_mode = #tpu.pipeline_mode<synchronous>, transform_indices = @transform_3, window_bounds = array<i64: 32, 16>}, {pipeline_mode = #tpu.pipeline_mode<synchronous>, transform_indices = @transform_4, window_bounds = array<i64: 16, 16>}, {pipeline_mode = #tpu.pipeline_mode<synchronous>, transform_indices = @transform_5, window_bounds = array<i64: 32, 16>}, {pipeline_mode = #tpu.pipeline_mode<synchronous>, transform_indices = @transform_6, window_bounds = array<i64: 32, 16>}, {pipeline_mode = #tpu.pipeline_mode<synchronous>, transform_indices = @transform_7, window_bounds = array<i64: 16, 16>}, {pipeline_mode = #tpu.pipeline_mode<synchronous>, transform_indices = @transform_8, window_bounds = array<i64: 16, 32>}, {pipeline_mode = #tpu.pipeline_mode<synchronous>, transform_indices = @transform_9, window_bounds = array<i64: 16, 32>}, {pipeline_mode = #tpu.pipeline_mode<synchronous>, transform_indices = @transform_10, window_bounds = array<i64: 1, 32>}, {transform_indices = @transform_11, window_bounds = array<i64: 1, 16, 32>}]} {
    %c0 = arith.constant 0 : index
    %c0_0 = arith.constant 0 : index
    %c0_1 = arith.constant 0 : index
    %0 = vector.load %arg1[%c0, %c0_0, %c0_1] : memref<1x16x32xf32, #tpu.memory_space<vmem>>, vector<1x16x32xf32>
    %1 = vector.shape_cast %0 : vector<1x16x32xf32> to vector<16x32xf32>
    %2 = arith.mulf %1, %1 : vector<16x32xf32>
    %cst = arith.constant dense<0.000000e+00> : vector<16xf32>
    %3 = vector.multi_reduction <add>, %2, %cst [1] : vector<16x32xf32> to vector<16xf32>
    %4 = vector.shape_cast %3 : vector<16xf32> to vector<16x1xf32>
    %cst_2 = arith.constant 1.000000e-30 : f32
    %5 = vector.broadcast %cst_2 : f32 to vector<16x1xf32>
    %6 = arith.addf %4, %5 : vector<16x1xf32>
    %7 = math.rsqrt %6 : vector<16x1xf32>
    %8 = vector.broadcast %7 : vector<16x1xf32> to vector<16x32xf32>
    %9 = arith.mulf %1, %8 : vector<16x32xf32>
    %cst_3 = arith.constant dense<0.000000e+00> : vector<16x16xf32>
    %10 = tpu.matmul %9, %9, %cst_3 {dimension_numbers = #tpu.dot_dimension_numbers<[1], [1], [0], [0], [0, 0, 1, 0], [], []>} : vector<16x32xf32>, vector<16x32xf32>, vector<16x16xf32> -> vector<16x16xf32>
    %cst_4 = arith.constant 0.699999988 : f32
    %11 = vector.broadcast %cst_4 : f32 to vector<16x16xf32>
    %12 = arith.cmpf ogt, %10, %11 : vector<16x16xf32>
    %cst_5 = arith.constant 0.000000e+00 : f32
    %13 = vector.broadcast %cst_5 : f32 to vector<16x16xf32>
    %14 = arith.select %12, %10, %13 : vector<16x16xi1>, vector<16x16xf32>
    %cst_6 = arith.constant dense<0xFF800000> : vector<16xf32>
    %15 = vector.multi_reduction <maximumf>, %14, %cst_6 [1] : vector<16x16xf32> to vector<16xf32>
    %16 = vector.shape_cast %15 : vector<16xf32> to vector<16x1xf32>
    %17 = vector.broadcast %16 : vector<16x1xf32> to vector<16x16xf32>
    %18 = arith.subf %14, %17 : vector<16x16xf32>
    %19 = math.exp %18 : vector<16x16xf32>
    %cst_7 = arith.constant dense<0.000000e+00> : vector<16xf32>
    %20 = vector.multi_reduction <add>, %19, %cst_7 [1] : vector<16x16xf32> to vector<16xf32>
    %21 = vector.shape_cast %20 : vector<16xf32> to vector<16x1xf32>
    %22 = vector.broadcast %21 : vector<16x1xf32> to vector<16x16xf32>
    %23 = arith.divf %19, %22 : vector<16x16xf32>
    %24 = arith.truncf %23 : vector<16x16xf32> to vector<16x16xbf16>
    %c0_8 = arith.constant 0 : index
    %c0_9 = arith.constant 0 : index
    %25 = vector.load %arg2[%c0_8, %c0_9] : memref<16x16xf32, #tpu.memory_space<vmem>>, vector<16x16xf32>
    %26 = arith.truncf %25 : vector<16x16xf32> to vector<16x16xbf16>
    %27 = arith.truncf %1 : vector<16x32xf32> to vector<16x32xbf16>
    %c0_10 = arith.constant 0 : index
    %c0_11 = arith.constant 0 : index
    %28 = vector.load %arg4[%c0_10, %c0_11] : memref<32x16xbf16, #tpu.memory_space<vmem>>, vector<32x16xbf16>
    %cst_12 = arith.constant dense<0.000000e+00> : vector<16x16xf32>
    %29 = tpu.matmul %27, %28, %cst_12 {dimension_numbers = #tpu.dot_dimension_numbers<[1], [0], [0], [1], [0, 0, 1, 1], [], []>} : vector<16x32xbf16>, vector<32x16xbf16>, vector<16x16xf32> -> vector<16x16xf32>
    %c0_13 = arith.constant 0 : index
    %c0_14 = arith.constant 0 : index
    %30 = vector.load %arg3[%c0_13, %c0_14] : memref<32x16xbf16, #tpu.memory_space<vmem>>, vector<32x16xbf16>
    %cst_15 = arith.constant dense<0.000000e+00> : vector<16x16xf32>
    %31 = tpu.matmul %27, %30, %cst_15 {dimension_numbers = #tpu.dot_dimension_numbers<[1], [0], [0], [1], [0, 0, 1, 1], [], []>} : vector<16x32xbf16>, vector<32x16xbf16>, vector<16x16xf32> -> vector<16x16xf32>
    %32 = arith.truncf %31 : vector<16x16xf32> to vector<16x16xbf16>
    %cst_16 = arith.constant dense<0.000000e+00> : vector<16x16xf32>
    %33 = tpu.matmul %24, %32, %cst_16 {dimension_numbers = #tpu.dot_dimension_numbers<[1], [0], [0], [1], [0, 0, 1, 1], [], []>} : vector<16x16xbf16>, vector<16x16xbf16>, vector<16x16xf32> -> vector<16x16xf32>
    %34 = arith.addf %33, %29 : vector<16x16xf32>
    %cst_17 = arith.constant 1.702000e+00 : f32
    %35 = vector.broadcast %cst_17 : f32 to vector<16x16xf32>
    %36 = arith.mulf %35, %34 : vector<16x16xf32>
    %37 = arith.negf %36 : vector<16x16xf32>
    %38 = math.exp %37 : vector<16x16xf32>
    %cst_18 = arith.constant 1.000000e+00 : f32
    %39 = vector.broadcast %cst_18 : f32 to vector<16x16xf32>
    %40 = arith.addf %39, %38 : vector<16x16xf32>
    %41 = arith.divf %39, %40 : vector<16x16xf32>
    %42 = arith.mulf %34, %41 : vector<16x16xf32>
    %43 = arith.truncf %42 : vector<16x16xf32> to vector<16x16xbf16>
    %c0_19 = arith.constant 0 : index
    %c0_20 = arith.constant 0 : index
    %44 = vector.load %arg5[%c0_19, %c0_20] : memref<16x16xbf16, #tpu.memory_space<vmem>>, vector<16x16xbf16>
    %cst_21 = arith.constant dense<0.000000e+00> : vector<16x16xf32>
    %45 = tpu.matmul %43, %44, %cst_21 {dimension_numbers = #tpu.dot_dimension_numbers<[1], [0], [0], [1], [0, 0, 1, 1], [], []>} : vector<16x16xbf16>, vector<16x16xbf16>, vector<16x16xf32> -> vector<16x16xf32>
    %46 = arith.truncf %45 : vector<16x16xf32> to vector<16x16xbf16>
    %cst_22 = arith.constant dense<0.000000e+00> : vector<16x16xf32>
    %47 = tpu.matmul %24, %46, %cst_22 {dimension_numbers = #tpu.dot_dimension_numbers<[1], [0], [0], [1], [0, 0, 1, 1], [], []>} : vector<16x16xbf16>, vector<16x16xbf16>, vector<16x16xf32> -> vector<16x16xf32>
    %48 = arith.addf %47, %42 : vector<16x16xf32>
    %cst_23 = arith.constant 1.702000e+00 : f32
    %49 = vector.broadcast %cst_23 : f32 to vector<16x16xf32>
    %50 = arith.mulf %49, %48 : vector<16x16xf32>
    %51 = arith.negf %50 : vector<16x16xf32>
    %52 = math.exp %51 : vector<16x16xf32>
    %cst_24 = arith.constant 1.000000e+00 : f32
    %53 = vector.broadcast %cst_24 : f32 to vector<16x16xf32>
    %54 = arith.addf %53, %52 : vector<16x16xf32>
    %55 = arith.divf %53, %54 : vector<16x16xf32>
    %56 = arith.mulf %48, %55 : vector<16x16xf32>
    %c0_25 = arith.constant 0 : index
    %c0_26 = arith.constant 0 : index
    %57 = vector.load %arg7[%c0_25, %c0_26] : memref<32x16xbf16, #tpu.memory_space<vmem>>, vector<32x16xbf16>
    %cst_27 = arith.constant dense<0.000000e+00> : vector<16x16xf32>
    %58 = tpu.matmul %27, %57, %cst_27 {dimension_numbers = #tpu.dot_dimension_numbers<[1], [0], [0], [1], [0, 0, 1, 1], [], []>} : vector<16x32xbf16>, vector<32x16xbf16>, vector<16x16xf32> -> vector<16x16xf32>
    %c0_28 = arith.constant 0 : index
    %c0_29 = arith.constant 0 : index
    %59 = vector.load %arg6[%c0_28, %c0_29] : memref<32x16xbf16, #tpu.memory_space<vmem>>, vector<32x16xbf16>
    %cst_30 = arith.constant dense<0.000000e+00> : vector<16x16xf32>
    %60 = tpu.matmul %27, %59, %cst_30 {dimension_numbers = #tpu.dot_dimension_numbers<[1], [0], [0], [1], [0, 0, 1, 1], [], []>} : vector<16x32xbf16>, vector<32x16xbf16>, vector<16x16xf32> -> vector<16x16xf32>
    %61 = arith.truncf %60 : vector<16x16xf32> to vector<16x16xbf16>
    %cst_31 = arith.constant dense<0.000000e+00> : vector<16x16xf32>
    %62 = tpu.matmul %26, %61, %cst_31 {dimension_numbers = #tpu.dot_dimension_numbers<[1], [0], [0], [1], [0, 0, 1, 1], [], []>} : vector<16x16xbf16>, vector<16x16xbf16>, vector<16x16xf32> -> vector<16x16xf32>
    %63 = arith.addf %62, %58 : vector<16x16xf32>
    %cst_32 = arith.constant 1.702000e+00 : f32
    %64 = vector.broadcast %cst_32 : f32 to vector<16x16xf32>
    %65 = arith.mulf %64, %63 : vector<16x16xf32>
    %66 = arith.negf %65 : vector<16x16xf32>
    %67 = math.exp %66 : vector<16x16xf32>
    %cst_33 = arith.constant 1.000000e+00 : f32
    %68 = vector.broadcast %cst_33 : f32 to vector<16x16xf32>
    %69 = arith.addf %68, %67 : vector<16x16xf32>
    %70 = arith.divf %68, %69 : vector<16x16xf32>
    %71 = arith.mulf %63, %70 : vector<16x16xf32>
    %72 = arith.truncf %71 : vector<16x16xf32> to vector<16x16xbf16>
    %c0_34 = arith.constant 0 : index
    %c0_35 = arith.constant 0 : index
    %73 = vector.load %arg8[%c0_34, %c0_35] : memref<16x16xbf16, #tpu.memory_space<vmem>>, vector<16x16xbf16>
    %cst_36 = arith.constant dense<0.000000e+00> : vector<16x16xf32>
    %74 = tpu.matmul %72, %73, %cst_36 {dimension_numbers = #tpu.dot_dimension_numbers<[1], [0], [0], [1], [0, 0, 1, 1], [], []>} : vector<16x16xbf16>, vector<16x16xbf16>, vector<16x16xf32> -> vector<16x16xf32>
    %75 = arith.truncf %74 : vector<16x16xf32> to vector<16x16xbf16>
    %cst_37 = arith.constant dense<0.000000e+00> : vector<16x16xf32>
    %76 = tpu.matmul %26, %75, %cst_37 {dimension_numbers = #tpu.dot_dimension_numbers<[1], [0], [0], [1], [0, 0, 1, 1], [], []>} : vector<16x16xbf16>, vector<16x16xbf16>, vector<16x16xf32> -> vector<16x16xf32>
    %77 = arith.addf %76, %71 : vector<16x16xf32>
    %cst_38 = arith.constant 1.702000e+00 : f32
    %78 = vector.broadcast %cst_38 : f32 to vector<16x16xf32>
    %79 = arith.mulf %78, %77 : vector<16x16xf32>
    %80 = arith.negf %79 : vector<16x16xf32>
    %81 = math.exp %80 : vector<16x16xf32>
    %cst_39 = arith.constant 1.000000e+00 : f32
    %82 = vector.broadcast %cst_39 : f32 to vector<16x16xf32>
    %83 = arith.addf %82, %81 : vector<16x16xf32>
    %84 = arith.divf %82, %83 : vector<16x16xf32>
    %85 = arith.mulf %77, %84 : vector<16x16xf32>
    %86 = arith.truncf %56 : vector<16x16xf32> to vector<16x16xbf16>
    %c0_40 = arith.constant 0 : index
    %c0_41 = arith.constant 0 : index
    %87 = vector.load %arg9[%c0_40, %c0_41] : memref<16x32xbf16, #tpu.memory_space<vmem>>, vector<16x32xbf16>
    %cst_42 = arith.constant dense<0.000000e+00> : vector<16x32xf32>
    %88 = tpu.matmul %86, %87, %cst_42 {dimension_numbers = #tpu.dot_dimension_numbers<[1], [0], [0], [1], [0, 0, 1, 1], [], []>} : vector<16x16xbf16>, vector<16x32xbf16>, vector<16x32xf32> -> vector<16x32xf32>
    %89 = arith.truncf %85 : vector<16x16xf32> to vector<16x16xbf16>
    %c0_43 = arith.constant 0 : index
    %c0_44 = arith.constant 0 : index
    %90 = vector.load %arg10[%c0_43, %c0_44] : memref<16x32xbf16, #tpu.memory_space<vmem>>, vector<16x32xbf16>
    %cst_45 = arith.constant dense<0.000000e+00> : vector<16x32xf32>
    %91 = tpu.matmul %89, %90, %cst_45 {dimension_numbers = #tpu.dot_dimension_numbers<[1], [0], [0], [1], [0, 0, 1, 1], [], []>} : vector<16x16xbf16>, vector<16x32xbf16>, vector<16x32xf32> -> vector<16x32xf32>
    %92 = arith.addf %88, %91 : vector<16x32xf32>
    %c0_46 = arith.constant 0 : index
    %c0_47 = arith.constant 0 : index
    %93 = vector.load %arg11[%c0_46, %c0_47] : memref<1x32xf32, #tpu.memory_space<vmem>>, vector<1x32xf32>
    %94 = vector.broadcast %93 : vector<1x32xf32> to vector<16x32xf32>
    %95 = arith.addf %92, %94 : vector<16x32xf32>
    %c0_48 = arith.constant 0 : index
    %c0_49 = arith.constant 0 : index
    %c0_50 = arith.constant 0 : index
    %96 = vector.load %arg12[%c0_48, %c0_49, %c0_50] : memref<1x16x32xf32, #tpu.memory_space<vmem>>, vector<1x16x32xf32>
    %97 = vector.shape_cast %96 : vector<1x16x32xf32> to vector<16x32xf32>
    %98 = vector.shape_cast %95 : vector<16x32xf32> to vector<1x16x32xf32>
    tpu.vector_store %arg12[%c0_48, %c0_49, %c0_50], %98 {strides = array<i32>} : memref<1x16x32xf32, #tpu.memory_space<vmem>>, vector<1x16x32xf32>,
    return
  }
  func.func @transform_0(%arg0: i32) -> (i32, i32, i32) {
    %c0_i32 = arith.constant 0 : i32
    %c0_i32_0 = arith.constant 0 : i32
    %c0_i32_1 = arith.constant 0 : i32
    return %arg0, %c0_i32, %c0_i32_0 : i32, i32, i32
  }
  func.func @transform_1(%arg0: i32) -> (i32, i32) {
    %c0_i32 = arith.constant 0 : i32
    %c0_i32_0 = arith.constant 0 : i32
    %c0_i32_1 = arith.constant 0 : i32
    return %c0_i32, %c0_i32_0 : i32, i32
  }
  func.func @transform_2(%arg0: i32) -> (i32, i32) {
    %c0_i32 = arith.constant 0 : i32
    %c0_i32_0 = arith.constant 0 : i32
    %c0_i32_1 = arith.constant 0 : i32
    return %c0_i32, %c0_i32_0 : i32, i32
  }
  func.func @transform_3(%arg0: i32) -> (i32, i32) {
    %c0_i32 = arith.constant 0 : i32
    %c0_i32_0 = arith.constant 0 : i32
    %c0_i32_1 = arith.constant 0 : i32
    return %c0_i32, %c0_i32_0 : i32, i32
  }
  func.func @transform_4(%arg0: i32) -> (i32, i32) {
    %c0_i32 = arith.constant 0 : i32
    %c0_i32_0 = arith.constant 0 : i32
    %c0_i32_1 = arith.constant 0 : i32
    return %c0_i32, %c0_i32_0 : i32, i32
  }
  func.func @transform_5(%arg0: i32) -> (i32, i32) {
    %c0_i32 = arith.constant 0 : i32
    %c0_i32_0 = arith.constant 0 : i32
    %c0_i32_1 = arith.constant 0 : i32
    return %c0_i32, %c0_i32_0 : i32, i32
  }
  func.func @transform_6(%arg0: i32) -> (i32, i32) {
    %c0_i32 = arith.constant 0 : i32
    %c0_i32_0 = arith.constant 0 : i32
    %c0_i32_1 = arith.constant 0 : i32
    return %c0_i32, %c0_i32_0 : i32, i32
  }
  func.func @transform_7(%arg0: i32) -> (i32, i32) {
    %c0_i32 = arith.constant 0 : i32
    %c0_i32_0 = arith.constant 0 : i32
    %c0_i32_1 = arith.constant 0 : i32
    return %c0_i32, %c0_i32_0 : i32, i32
  }
  func.func @transform_8(%arg0: i32) -> (i32, i32) {
    %c0_i32 = arith.constant 0 : i32
    %c0_i32_0 = arith.constant 0 : i32
    %c0_i32_1 = arith.constant 0 : i32
    return %c0_i32, %c0_i32_0 : i32, i32
  }
  func.func @transform_9(%arg0: i32) -> (i32, i32) {
    %c0_i32 = arith.constant 0 : i32
    %c0_i32_0 = arith.constant 0 : i32
    %c0_i32_1 = arith.constant 0 : i32
    return %c0_i32, %c0_i32_0 : i32, i32
  }
  func.func @transform_10(%arg0: i32) -> (i32, i32) {
    %c0_i32 = arith.constant 0 : i32
    %c0_i32_0 = arith.constant 0 : i32
    %c0_i32_1 = arith.constant 0 : i32
    return %c0_i32, %c0_i32_0 : i32, i32
  }
  func.func @transform_11(%arg0: i32) -> (i32, i32, i32) {
    %c0_i32 = arith.constant 0 : i32
    %c0_i32_0 = arith.constant 0 : i32
    %c0_i32_1 = arith.constant 0 : i32
    return %arg0, %c0_i32, %c0_i32_0 : i32, i32, i32
  }
}

module attributes {stable_mosaic.version = 11 : i64} {
  func.func @_fusion_kernel(%arg0: i32, %arg1: memref<32x32xf32, #tpu.memory_space<vmem>>, %arg2: memref<32x32xf32, #tpu.memory_space<vmem>>, %arg3: memref<32x32xbf16, #tpu.memory_space<vmem>>, %arg4: memref<32x32xbf16, #tpu.memory_space<vmem>>, %arg5: memref<1x32xf32, #tpu.memory_space<vmem>>, %arg6: memref<32x32xf32, #tpu.memory_space<vmem>>) attributes {dimension_semantics = [#tpu.dimension_semantics<parallel>], iteration_bounds = array<i64: 1>, scalar_prefetch = 0 : i64, scratch_operands = 0 : i64, tpu.core_type = #tpu.core_type<tc>, window_params = [{transform_indices = @transform_0, window_bounds = array<i64: 32, 32>}, {transform_indices = @transform_1, window_bounds = array<i64: 32, 32>}, {pipeline_mode = #tpu.pipeline_mode<synchronous>, transform_indices = @transform_2, window_bounds = array<i64: 32, 32>}, {pipeline_mode = #tpu.pipeline_mode<synchronous>, transform_indices = @transform_3, window_bounds = array<i64: 32, 32>}, {pipeline_mode = #tpu.pipeline_mode<synchronous>, transform_indices = @transform_4, window_bounds = array<i64: 1, 32>}, {transform_indices = @transform_5, window_bounds = array<i64: 32, 32>}]} {
    %c0 = arith.constant 0 : index
    %c0_0 = arith.constant 0 : index
    %0 = vector.load %arg1[%c0, %c0_0] : memref<32x32xf32, #tpu.memory_space<vmem>>, vector<32x32xf32>
    %c0_1 = arith.constant 0 : index
    %c0_2 = arith.constant 0 : index
    %1 = vector.load %arg2[%c0_1, %c0_2] : memref<32x32xf32, #tpu.memory_space<vmem>>, vector<32x32xf32>
    %2 = arith.truncf %0 : vector<32x32xf32> to vector<32x32xbf16>
    %c0_3 = arith.constant 0 : index
    %c0_4 = arith.constant 0 : index
    %3 = vector.load %arg3[%c0_3, %c0_4] : memref<32x32xbf16, #tpu.memory_space<vmem>>, vector<32x32xbf16>
    %cst = arith.constant dense<0.000000e+00> : vector<32x32xf32>
    %4 = tpu.matmul %2, %3, %cst {dimension_numbers = #tpu.dot_dimension_numbers<[1], [0], [0], [1], [0, 0, 1, 1], [], []>} : vector<32x32xbf16>, vector<32x32xbf16>, vector<32x32xf32> -> vector<32x32xf32>
    %5 = arith.truncf %1 : vector<32x32xf32> to vector<32x32xbf16>
    %c0_5 = arith.constant 0 : index
    %c0_6 = arith.constant 0 : index
    %6 = vector.load %arg4[%c0_5, %c0_6] : memref<32x32xbf16, #tpu.memory_space<vmem>>, vector<32x32xbf16>
    %cst_7 = arith.constant dense<0.000000e+00> : vector<32x32xf32>
    %7 = tpu.matmul %5, %6, %cst_7 {dimension_numbers = #tpu.dot_dimension_numbers<[1], [0], [0], [1], [0, 0, 1, 1], [], []>} : vector<32x32xbf16>, vector<32x32xbf16>, vector<32x32xf32> -> vector<32x32xf32>
    %8 = arith.addf %4, %7 : vector<32x32xf32>
    %c0_8 = arith.constant 0 : index
    %c0_9 = arith.constant 0 : index
    %9 = vector.load %arg5[%c0_8, %c0_9] : memref<1x32xf32, #tpu.memory_space<vmem>>, vector<1x32xf32>
    %10 = vector.broadcast %9 : vector<1x32xf32> to vector<32x32xf32>
    %11 = arith.addf %8, %10 : vector<32x32xf32>
    %12 = arith.negf %11 : vector<32x32xf32>
    %13 = math.exp %12 : vector<32x32xf32>
    %cst_10 = arith.constant 1.000000e+00 : f32
    %14 = vector.broadcast %cst_10 : f32 to vector<32x32xf32>
    %15 = arith.addf %14, %13 : vector<32x32xf32>
    %16 = arith.divf %14, %15 : vector<32x32xf32>
    %17 = arith.mulf %16, %0 : vector<32x32xf32>
    %cst_11 = arith.constant 1.000000e+00 : f32
    %18 = vector.broadcast %cst_11 : f32 to vector<32x32xf32>
    %19 = arith.subf %18, %16 : vector<32x32xf32>
    %20 = arith.mulf %19, %1 : vector<32x32xf32>
    %21 = arith.addf %17, %20 : vector<32x32xf32>
    %c0_12 = arith.constant 0 : index
    %c0_13 = arith.constant 0 : index
    %22 = vector.load %arg6[%c0_12, %c0_13] : memref<32x32xf32, #tpu.memory_space<vmem>>, vector<32x32xf32>
    tpu.vector_store %arg6[%c0_12, %c0_13], %21 {strides = array<i32>} : memref<32x32xf32, #tpu.memory_space<vmem>>, vector<32x32xf32>,
    return
  }
  func.func @transform_0(%arg0: i32) -> (i32, i32) {
    %c0_i32 = arith.constant 0 : i32
    %c0_i32_0 = arith.constant 0 : i32
    return %arg0, %c0_i32 : i32, i32
  }
  func.func @transform_1(%arg0: i32) -> (i32, i32) {
    %c0_i32 = arith.constant 0 : i32
    %c0_i32_0 = arith.constant 0 : i32
    return %arg0, %c0_i32 : i32, i32
  }
  func.func @transform_2(%arg0: i32) -> (i32, i32) {
    %c0_i32 = arith.constant 0 : i32
    %c0_i32_0 = arith.constant 0 : i32
    %c0_i32_1 = arith.constant 0 : i32
    return %c0_i32, %c0_i32_0 : i32, i32
  }
  func.func @transform_3(%arg0: i32) -> (i32, i32) {
    %c0_i32 = arith.constant 0 : i32
    %c0_i32_0 = arith.constant 0 : i32
    %c0_i32_1 = arith.constant 0 : i32
    return %c0_i32, %c0_i32_0 : i32, i32
  }
  func.func @transform_4(%arg0: i32) -> (i32, i32) {
    %c0_i32 = arith.constant 0 : i32
    %c0_i32_0 = arith.constant 0 : i32
    %c0_i32_1 = arith.constant 0 : i32
    return %c0_i32, %c0_i32_0 : i32, i32
  }
  func.func @transform_5(%arg0: i32) -> (i32, i32) {
    %c0_i32 = arith.constant 0 : i32
    %c0_i32_0 = arith.constant 0 : i32
    return %arg0, %c0_i32 : i32, i32
  }
}

module attributes {stable_mosaic.version = 11 : i64} {
  func.func @_head_kernel(%arg0: i32, %arg1: memref<32x32xf32, #tpu.memory_space<vmem>>, %arg2: memref<32x8xbf16, #tpu.memory_space<vmem>>, %arg3: memref<1x8xf32, #tpu.memory_space<vmem>>, %arg4: memref<8x1xbf16, #tpu.memory_space<vmem>>, %arg5: memref<1x1xf32, #tpu.memory_space<vmem>>, %arg6: memref<32x1xf32, #tpu.memory_space<vmem>>) attributes {dimension_semantics = [#tpu.dimension_semantics<parallel>], iteration_bounds = array<i64: 1>, scalar_prefetch = 0 : i64, scratch_operands = 0 : i64, tpu.core_type = #tpu.core_type<tc>, window_params = [{transform_indices = @transform_0, window_bounds = array<i64: 32, 32>}, {pipeline_mode = #tpu.pipeline_mode<synchronous>, transform_indices = @transform_1, window_bounds = array<i64: 32, 8>}, {pipeline_mode = #tpu.pipeline_mode<synchronous>, transform_indices = @transform_2, window_bounds = array<i64: 1, 8>}, {pipeline_mode = #tpu.pipeline_mode<synchronous>, transform_indices = @transform_3, window_bounds = array<i64: 8, 1>}, {pipeline_mode = #tpu.pipeline_mode<synchronous>, transform_indices = @transform_4, window_bounds = array<i64: 1, 1>}, {transform_indices = @transform_5, window_bounds = array<i64: 32, 1>}]} {
    %c0 = arith.constant 0 : index
    %c0_0 = arith.constant 0 : index
    %0 = vector.load %arg1[%c0, %c0_0] : memref<32x32xf32, #tpu.memory_space<vmem>>, vector<32x32xf32>
    %1 = arith.truncf %0 : vector<32x32xf32> to vector<32x32xbf16>
    %c0_1 = arith.constant 0 : index
    %c0_2 = arith.constant 0 : index
    %2 = vector.load %arg2[%c0_1, %c0_2] : memref<32x8xbf16, #tpu.memory_space<vmem>>, vector<32x8xbf16>
    %cst = arith.constant dense<0.000000e+00> : vector<32x8xf32>
    %3 = tpu.matmul %1, %2, %cst {dimension_numbers = #tpu.dot_dimension_numbers<[1], [0], [0], [1], [0, 0, 1, 1], [], []>} : vector<32x32xbf16>, vector<32x8xbf16>, vector<32x8xf32> -> vector<32x8xf32>
    %c0_3 = arith.constant 0 : index
    %c0_4 = arith.constant 0 : index
    %4 = vector.load %arg3[%c0_3, %c0_4] : memref<1x8xf32, #tpu.memory_space<vmem>>, vector<1x8xf32>
    %5 = vector.broadcast %4 : vector<1x8xf32> to vector<32x8xf32>
    %6 = arith.addf %3, %5 : vector<32x8xf32>
    %cst_5 = arith.constant 1.702000e+00 : f32
    %7 = vector.broadcast %cst_5 : f32 to vector<32x8xf32>
    %8 = arith.mulf %7, %6 : vector<32x8xf32>
    %9 = arith.negf %8 : vector<32x8xf32>
    %10 = math.exp %9 : vector<32x8xf32>
    %cst_6 = arith.constant 1.000000e+00 : f32
    %11 = vector.broadcast %cst_6 : f32 to vector<32x8xf32>
    %12 = arith.addf %11, %10 : vector<32x8xf32>
    %13 = arith.divf %11, %12 : vector<32x8xf32>
    %14 = arith.mulf %6, %13 : vector<32x8xf32>
    %15 = arith.truncf %14 : vector<32x8xf32> to vector<32x8xbf16>
    %c0_7 = arith.constant 0 : index
    %c0_8 = arith.constant 0 : index
    %16 = vector.load %arg4[%c0_7, %c0_8] : memref<8x1xbf16, #tpu.memory_space<vmem>>, vector<8x1xbf16>
    %cst_9 = arith.constant dense<0.000000e+00> : vector<32x1xf32>
    %17 = tpu.matmul %15, %16, %cst_9 {dimension_numbers = #tpu.dot_dimension_numbers<[1], [0], [0], [1], [0, 0, 1, 1], [], []>} : vector<32x8xbf16>, vector<8x1xbf16>, vector<32x1xf32> -> vector<32x1xf32>
    %c0_10 = arith.constant 0 : index
    %c0_11 = arith.constant 0 : index
    %18 = vector.load %arg5[%c0_10, %c0_11] : memref<1x1xf32, #tpu.memory_space<vmem>>, vector<1x1xf32>
    %19 = vector.broadcast %18 : vector<1x1xf32> to vector<32x1xf32>
    %20 = arith.addf %17, %19 : vector<32x1xf32>
    %c0_12 = arith.constant 0 : index
    %c0_13 = arith.constant 0 : index
    %21 = vector.load %arg6[%c0_12, %c0_13] : memref<32x1xf32, #tpu.memory_space<vmem>>, vector<32x1xf32>
    tpu.vector_store %arg6[%c0_12, %c0_13], %20 {strides = array<i32>} : memref<32x1xf32, #tpu.memory_space<vmem>>, vector<32x1xf32>,
    return
  }
  func.func @transform_0(%arg0: i32) -> (i32, i32) {
    %c0_i32 = arith.constant 0 : i32
    %c0_i32_0 = arith.constant 0 : i32
    return %arg0, %c0_i32 : i32, i32
  }
  func.func @transform_1(%arg0: i32) -> (i32, i32) {
    %c0_i32 = arith.constant 0 : i32
    %c0_i32_0 = arith.constant 0 : i32
    %c0_i32_1 = arith.constant 0 : i32
    return %c0_i32, %c0_i32_0 : i32, i32
  }
  func.func @transform_2(%arg0: i32) -> (i32, i32) {
    %c0_i32 = arith.constant 0 : i32
    %c0_i32_0 = arith.constant 0 : i32
    %c0_i32_1 = arith.constant 0 : i32
    return %c0_i32, %c0_i32_0 : i32, i32
  }
  func.func @transform_3(%arg0: i32) -> (i32, i32) {
    %c0_i32 = arith.constant 0 : i32
    %c0_i32_0 = arith.constant 0 : i32
    %c0_i32_1 = arith.constant 0 : i32
    return %c0_i32, %c0_i32_0 : i32, i32
  }
  func.func @transform_4(%arg0: i32) -> (i32, i32) {
    %c0_i32 = arith.constant 0 : i32
    %c0_i32_0 = arith.constant 0 : i32
    %c0_i32_1 = arith.constant 0 : i32
    return %c0_i32, %c0_i32_0 : i32, i32
  }
  func.func @transform_5(%arg0: i32) -> (i32, i32) {
    %c0_i32 = arith.constant 0 : i32
    %c0_i32_0 = arith.constant 0 : i32
    return %arg0, %c0_i32 : i32, i32
  }
}

module attributes {stable_mosaic.version = 11 : i64} {
  func.func @_text_logits_kernel(%arg0: i32, %arg1: memref<1x16x1xf32, #tpu.memory_space<vmem>>, %arg2: memref<1x16x32xf32, #tpu.memory_space<vmem>>, %arg3: memref<3x32xf32, #tpu.memory_space<vmem>>, %arg4: memref<32x128xbf16, #tpu.memory_space<vmem>>, %arg5: memref<1x128xf32, #tpu.memory_space<vmem>>, %arg6: memref<128x32xbf16, #tpu.memory_space<vmem>>, %arg7: memref<1x32xf32, #tpu.memory_space<vmem>>, %arg8: memref<1x16x3xf32, #tpu.memory_space<vmem>>) attributes {dimension_semantics = [#tpu.dimension_semantics<parallel>], iteration_bounds = array<i64: 2>, scalar_prefetch = 0 : i64, scratch_operands = 0 : i64, tpu.core_type = #tpu.core_type<tc>, window_params = [{transform_indices = @transform_0, window_bounds = array<i64: 1, 16, 1>}, {transform_indices = @transform_1, window_bounds = array<i64: 1, 16, 32>}, {pipeline_mode = #tpu.pipeline_mode<synchronous>, transform_indices = @transform_2, window_bounds = array<i64: 3, 32>}, {pipeline_mode = #tpu.pipeline_mode<synchronous>, transform_indices = @transform_3, window_bounds = array<i64: 32, 128>}, {pipeline_mode = #tpu.pipeline_mode<synchronous>, transform_indices = @transform_4, window_bounds = array<i64: 1, 128>}, {pipeline_mode = #tpu.pipeline_mode<synchronous>, transform_indices = @transform_5, window_bounds = array<i64: 128, 32>}, {pipeline_mode = #tpu.pipeline_mode<synchronous>, transform_indices = @transform_6, window_bounds = array<i64: 1, 32>}, {transform_indices = @transform_7, window_bounds = array<i64: 1, 16, 3>}]} {
    %c0 = arith.constant 0 : index
    %c0_0 = arith.constant 0 : index
    %c0_1 = arith.constant 0 : index
    %0 = vector.load %arg1[%c0, %c0_0, %c0_1] : memref<1x16x1xf32, #tpu.memory_space<vmem>>, vector<1x16x1xf32>
    %1 = vector.shape_cast %0 : vector<1x16x1xf32> to vector<16x1xf32>
    %c0_2 = arith.constant 0 : index
    %c0_3 = arith.constant 0 : index
    %c0_4 = arith.constant 0 : index
    %2 = vector.load %arg2[%c0_2, %c0_3, %c0_4] : memref<1x16x32xf32, #tpu.memory_space<vmem>>, vector<1x16x32xf32>
    %3 = vector.shape_cast %2 : vector<1x16x32xf32> to vector<16x32xf32>
    %4 = vector.broadcast %1 : vector<16x1xf32> to vector<16x32xf32>
    %5 = arith.mulf %4, %3 : vector<16x32xf32>
    %cst = arith.constant dense<0.000000e+00> : vector<32xf32>
    %6 = vector.multi_reduction <add>, %5, %cst [0] : vector<16x32xf32> to vector<32xf32>
    %7 = vector.shape_cast %6 : vector<32xf32> to vector<1x32xf32>
    %8 = arith.mulf %7, %7 : vector<1x32xf32>
    %cst_5 = arith.constant dense<0.000000e+00> : vector<1xf32>
    %9 = vector.multi_reduction <add>, %8, %cst_5 [1] : vector<1x32xf32> to vector<1xf32>
    %10 = vector.shape_cast %9 : vector<1xf32> to vector<1x1xf32>
    %11 = math.sqrt %10 : vector<1x1xf32>
    %cst_6 = arith.constant 1.000000e-10 : f32
    %12 = vector.broadcast %cst_6 : f32 to vector<1x1xf32>
    %13 = arith.addf %11, %12 : vector<1x1xf32>
    %14 = vector.broadcast %13 : vector<1x1xf32> to vector<1x32xf32>
    %15 = arith.divf %7, %14 : vector<1x32xf32>
    %c0_7 = arith.constant 0 : index
    %c0_8 = arith.constant 0 : index
    %16 = vector.load %arg3[%c0_7, %c0_8] : memref<3x32xf32, #tpu.memory_space<vmem>>, vector<3x32xf32>
    %17 = vector.broadcast %15 : vector<1x32xf32> to vector<3x32xf32>
    %18 = arith.addf %16, %17 : vector<3x32xf32>
    %19 = arith.truncf %18 : vector<3x32xf32> to vector<3x32xbf16>
    %c0_9 = arith.constant 0 : index
    %c0_10 = arith.constant 0 : index
    %20 = vector.load %arg4[%c0_9, %c0_10] : memref<32x128xbf16, #tpu.memory_space<vmem>>, vector<32x128xbf16>
    %cst_11 = arith.constant dense<0.000000e+00> : vector<3x128xf32>
    %21 = tpu.matmul %19, %20, %cst_11 {dimension_numbers = #tpu.dot_dimension_numbers<[1], [0], [0], [1], [0, 0, 1, 1], [], []>} : vector<3x32xbf16>, vector<32x128xbf16>, vector<3x128xf32> -> vector<3x128xf32>
    %c0_12 = arith.constant 0 : index
    %c0_13 = arith.constant 0 : index
    %22 = vector.load %arg5[%c0_12, %c0_13] : memref<1x128xf32, #tpu.memory_space<vmem>>, vector<1x128xf32>
    %23 = vector.broadcast %22 : vector<1x128xf32> to vector<3x128xf32>
    %24 = arith.addf %21, %23 : vector<3x128xf32>
    %cst_14 = arith.constant 1.702000e+00 : f32
    %25 = vector.broadcast %cst_14 : f32 to vector<3x128xf32>
    %26 = arith.mulf %25, %24 : vector<3x128xf32>
    %27 = arith.negf %26 : vector<3x128xf32>
    %28 = math.exp %27 : vector<3x128xf32>
    %cst_15 = arith.constant 1.000000e+00 : f32
    %29 = vector.broadcast %cst_15 : f32 to vector<3x128xf32>
    %30 = arith.addf %29, %28 : vector<3x128xf32>
    %31 = arith.divf %29, %30 : vector<3x128xf32>
    %32 = arith.mulf %24, %31 : vector<3x128xf32>
    %33 = arith.truncf %32 : vector<3x128xf32> to vector<3x128xbf16>
    %c0_16 = arith.constant 0 : index
    %c0_17 = arith.constant 0 : index
    %34 = vector.load %arg6[%c0_16, %c0_17] : memref<128x32xbf16, #tpu.memory_space<vmem>>, vector<128x32xbf16>
    %cst_18 = arith.constant dense<0.000000e+00> : vector<3x32xf32>
    %35 = tpu.matmul %33, %34, %cst_18 {dimension_numbers = #tpu.dot_dimension_numbers<[1], [0], [0], [1], [0, 0, 1, 1], [], []>} : vector<3x128xbf16>, vector<128x32xbf16>, vector<3x32xf32> -> vector<3x32xf32>
    %36 = arith.addf %18, %35 : vector<3x32xf32>
    %c0_19 = arith.constant 0 : index
    %c0_20 = arith.constant 0 : index
    %37 = vector.load %arg7[%c0_19, %c0_20] : memref<1x32xf32, #tpu.memory_space<vmem>>, vector<1x32xf32>
    %38 = vector.broadcast %37 : vector<1x32xf32> to vector<3x32xf32>
    %39 = arith.addf %36, %38 : vector<3x32xf32>
    %40 = arith.mulf %39, %39 : vector<3x32xf32>
    %cst_21 = arith.constant dense<0.000000e+00> : vector<3xf32>
    %41 = vector.multi_reduction <add>, %40, %cst_21 [1] : vector<3x32xf32> to vector<3xf32>
    %42 = vector.shape_cast %41 : vector<3xf32> to vector<3x1xf32>
    %43 = math.sqrt %42 : vector<3x1xf32>
    %cst_22 = arith.constant 1.000000e-10 : f32
    %44 = vector.broadcast %cst_22 : f32 to vector<3x1xf32>
    %45 = arith.addf %43, %44 : vector<3x1xf32>
    %46 = vector.broadcast %45 : vector<3x1xf32> to vector<3x32xf32>
    %47 = arith.divf %39, %46 : vector<3x32xf32>
    %48 = arith.mulf %3, %3 : vector<16x32xf32>
    %cst_23 = arith.constant dense<0.000000e+00> : vector<16xf32>
    %49 = vector.multi_reduction <add>, %48, %cst_23 [1] : vector<16x32xf32> to vector<16xf32>
    %50 = vector.shape_cast %49 : vector<16xf32> to vector<16x1xf32>
    %51 = math.sqrt %50 : vector<16x1xf32>
    %cst_24 = arith.constant 1.000000e-10 : f32
    %52 = vector.broadcast %cst_24 : f32 to vector<16x1xf32>
    %53 = arith.addf %51, %52 : vector<16x1xf32>
    %54 = vector.broadcast %53 : vector<16x1xf32> to vector<16x32xf32>
    %55 = arith.divf %3, %54 : vector<16x32xf32>
    %cst_25 = arith.constant dense<0.000000e+00> : vector<16x3xf32>
    %56 = tpu.matmul %55, %47, %cst_25 {dimension_numbers = #tpu.dot_dimension_numbers<[1], [1], [0], [0], [0, 0, 1, 0], [], []>} : vector<16x32xf32>, vector<3x32xf32>, vector<16x3xf32> -> vector<16x3xf32>
    %cst_26 = arith.constant 7.000000e-02 : f32
    %57 = vector.broadcast %cst_26 : f32 to vector<16x3xf32>
    %58 = arith.divf %56, %57 : vector<16x3xf32>
    %c0_27 = arith.constant 0 : index
    %c0_28 = arith.constant 0 : index
    %c0_29 = arith.constant 0 : index
    %59 = vector.load %arg8[%c0_27, %c0_28, %c0_29] : memref<1x16x3xf32, #tpu.memory_space<vmem>>, vector<1x16x3xf32>
    %60 = vector.shape_cast %59 : vector<1x16x3xf32> to vector<16x3xf32>
    %61 = vector.shape_cast %58 : vector<16x3xf32> to vector<1x16x3xf32>
    tpu.vector_store %arg8[%c0_27, %c0_28, %c0_29], %61 {strides = array<i32>} : memref<1x16x3xf32, #tpu.memory_space<vmem>>, vector<1x16x3xf32>,
    return
  }
  func.func @transform_0(%arg0: i32) -> (i32, i32, i32) {
    %c0_i32 = arith.constant 0 : i32
    %c0_i32_0 = arith.constant 0 : i32
    %c0_i32_1 = arith.constant 0 : i32
    return %arg0, %c0_i32, %c0_i32_0 : i32, i32, i32
  }
  func.func @transform_1(%arg0: i32) -> (i32, i32, i32) {
    %c0_i32 = arith.constant 0 : i32
    %c0_i32_0 = arith.constant 0 : i32
    %c0_i32_1 = arith.constant 0 : i32
    return %arg0, %c0_i32, %c0_i32_0 : i32, i32, i32
  }
  func.func @transform_2(%arg0: i32) -> (i32, i32) {
    %c0_i32 = arith.constant 0 : i32
    %c0_i32_0 = arith.constant 0 : i32
    %c0_i32_1 = arith.constant 0 : i32
    return %c0_i32, %c0_i32_0 : i32, i32
  }
  func.func @transform_3(%arg0: i32) -> (i32, i32) {
    %c0_i32 = arith.constant 0 : i32
    %c0_i32_0 = arith.constant 0 : i32
    %c0_i32_1 = arith.constant 0 : i32
    return %c0_i32, %c0_i32_0 : i32, i32
  }
  func.func @transform_4(%arg0: i32) -> (i32, i32) {
    %c0_i32 = arith.constant 0 : i32
    %c0_i32_0 = arith.constant 0 : i32
    %c0_i32_1 = arith.constant 0 : i32
    return %c0_i32, %c0_i32_0 : i32, i32
  }
  func.func @transform_5(%arg0: i32) -> (i32, i32) {
    %c0_i32 = arith.constant 0 : i32
    %c0_i32_0 = arith.constant 0 : i32
    %c0_i32_1 = arith.constant 0 : i32
    return %c0_i32, %c0_i32_0 : i32, i32
  }
  func.func @transform_6(%arg0: i32) -> (i32, i32) {
    %c0_i32 = arith.constant 0 : i32
    %c0_i32_0 = arith.constant 0 : i32
    %c0_i32_1 = arith.constant 0 : i32
    return %c0_i32, %c0_i32_0 : i32, i32
  }
  func.func @transform_7(%arg0: i32) -> (i32, i32, i32) {
    %c0_i32 = arith.constant 0 : i32
    %c0_i32_0 = arith.constant 0 : i32
    %c0_i32_1 = arith.constant 0 : i32
    return %arg0, %c0_i32, %c0_i32_0 : i32, i32, i32
  }
}

module attributes {stable_mosaic.version = 11 : i64} {
  func.func @_head_kernel(%arg0: i32, %arg1: memref<32x32xf32, #tpu.memory_space<vmem>>, %arg2: memref<32x8xbf16, #tpu.memory_space<vmem>>, %arg3: memref<1x8xf32, #tpu.memory_space<vmem>>, %arg4: memref<8x1xbf16, #tpu.memory_space<vmem>>, %arg5: memref<1x1xf32, #tpu.memory_space<vmem>>, %arg6: memref<32x1xf32, #tpu.memory_space<vmem>>) attributes {dimension_semantics = [#tpu.dimension_semantics<parallel>], iteration_bounds = array<i64: 1>, scalar_prefetch = 0 : i64, scratch_operands = 0 : i64, tpu.core_type = #tpu.core_type<tc>, window_params = [{transform_indices = @transform_0, window_bounds = array<i64: 32, 32>}, {pipeline_mode = #tpu.pipeline_mode<synchronous>, transform_indices = @transform_1, window_bounds = array<i64: 32, 8>}, {pipeline_mode = #tpu.pipeline_mode<synchronous>, transform_indices = @transform_2, window_bounds = array<i64: 1, 8>}, {pipeline_mode = #tpu.pipeline_mode<synchronous>, transform_indices = @transform_3, window_bounds = array<i64: 8, 1>}, {pipeline_mode = #tpu.pipeline_mode<synchronous>, transform_indices = @transform_4, window_bounds = array<i64: 1, 1>}, {transform_indices = @transform_5, window_bounds = array<i64: 32, 1>}]} {
    %c0 = arith.constant 0 : index
    %c0_0 = arith.constant 0 : index
    %0 = vector.load %arg1[%c0, %c0_0] : memref<32x32xf32, #tpu.memory_space<vmem>>, vector<32x32xf32>
    %1 = arith.truncf %0 : vector<32x32xf32> to vector<32x32xbf16>
    %c0_1 = arith.constant 0 : index
    %c0_2 = arith.constant 0 : index
    %2 = vector.load %arg2[%c0_1, %c0_2] : memref<32x8xbf16, #tpu.memory_space<vmem>>, vector<32x8xbf16>
    %cst = arith.constant dense<0.000000e+00> : vector<32x8xf32>
    %3 = tpu.matmul %1, %2, %cst {dimension_numbers = #tpu.dot_dimension_numbers<[1], [0], [0], [1], [0, 0, 1, 1], [], []>} : vector<32x32xbf16>, vector<32x8xbf16>, vector<32x8xf32> -> vector<32x8xf32>
    %c0_3 = arith.constant 0 : index
    %c0_4 = arith.constant 0 : index
    %4 = vector.load %arg3[%c0_3, %c0_4] : memref<1x8xf32, #tpu.memory_space<vmem>>, vector<1x8xf32>
    %5 = vector.broadcast %4 : vector<1x8xf32> to vector<32x8xf32>
    %6 = arith.addf %3, %5 : vector<32x8xf32>
    %cst_5 = arith.constant 1.702000e+00 : f32
    %7 = vector.broadcast %cst_5 : f32 to vector<32x8xf32>
    %8 = arith.mulf %7, %6 : vector<32x8xf32>
    %9 = arith.negf %8 : vector<32x8xf32>
    %10 = math.exp %9 : vector<32x8xf32>
    %cst_6 = arith.constant 1.000000e+00 : f32
    %11 = vector.broadcast %cst_6 : f32 to vector<32x8xf32>
    %12 = arith.addf %11, %10 : vector<32x8xf32>
    %13 = arith.divf %11, %12 : vector<32x8xf32>
    %14 = arith.mulf %6, %13 : vector<32x8xf32>
    %15 = arith.truncf %14 : vector<32x8xf32> to vector<32x8xbf16>
    %c0_7 = arith.constant 0 : index
    %c0_8 = arith.constant 0 : index
    %16 = vector.load %arg4[%c0_7, %c0_8] : memref<8x1xbf16, #tpu.memory_space<vmem>>, vector<8x1xbf16>
    %cst_9 = arith.constant dense<0.000000e+00> : vector<32x1xf32>
    %17 = tpu.matmul %15, %16, %cst_9 {dimension_numbers = #tpu.dot_dimension_numbers<[1], [0], [0], [1], [0, 0, 1, 1], [], []>} : vector<32x8xbf16>, vector<8x1xbf16>, vector<32x1xf32> -> vector<32x1xf32>
    %c0_10 = arith.constant 0 : index
    %c0_11 = arith.constant 0 : index
    %18 = vector.load %arg5[%c0_10, %c0_11] : memref<1x1xf32, #tpu.memory_space<vmem>>, vector<1x1xf32>
    %19 = vector.broadcast %18 : vector<1x1xf32> to vector<32x1xf32>
    %20 = arith.addf %17, %19 : vector<32x1xf32>
    %cst_12 = arith.constant 0.000000e+00 : f32
    %21 = vector.broadcast %cst_12 : f32 to vector<32x1xf32>
    %22 = arith.maximumf %20, %21 : vector<32x1xf32>
    %23 = vector.broadcast %cst_12 : f32 to vector<32x1xf32>
    %24 = arith.subf %20, %23 : vector<32x1xf32>
    %25 = arith.cmpf one, %24, %24 : vector<32x1xf32>
    %26 = vector.broadcast %cst_12 : f32 to vector<32x1xf32>
    %27 = arith.addf %20, %26 : vector<32x1xf32>
    %28 = math.absf %24 : vector<32x1xf32>
    %cst_13 = arith.constant 0.000000e+00 : f32
    %29 = vector.broadcast %cst_13 : f32 to vector<32x1xf32>
    %30 = arith.subf %29, %28 : vector<32x1xf32>
    %31 = math.exp %30 : vector<32x1xf32>
    %32 = math.log1p %31 : vector<32x1xf32>
    %33 = arith.addf %22, %32 : vector<32x1xf32>
    %34 = arith.select %25, %27, %33 : vector<32x1xi1>, vector<32x1xf32>
    %c0_14 = arith.constant 0 : index
    %c0_15 = arith.constant 0 : index
    %35 = vector.load %arg6[%c0_14, %c0_15] : memref<32x1xf32, #tpu.memory_space<vmem>>, vector<32x1xf32>
    tpu.vector_store %arg6[%c0_14, %c0_15], %34 {strides = array<i32>} : memref<32x1xf32, #tpu.memory_space<vmem>>, vector<32x1xf32>,
    return
  }
  func.func @transform_0(%arg0: i32) -> (i32, i32) {
    %c0_i32 = arith.constant 0 : i32
    %c0_i32_0 = arith.constant 0 : i32
    return %arg0, %c0_i32 : i32, i32
  }
  func.func @transform_1(%arg0: i32) -> (i32, i32) {
    %c0_i32 = arith.constant 0 : i32
    %c0_i32_0 = arith.constant 0 : i32
    %c0_i32_1 = arith.constant 0 : i32
    return %c0_i32, %c0_i32_0 : i32, i32
  }
  func.func @transform_2(%arg0: i32) -> (i32, i32) {
    %c0_i32 = arith.constant 0 : i32
    %c0_i32_0 = arith.constant 0 : i32
    %c0_i32_1 = arith.constant 0 : i32
    return %c0_i32, %c0_i32_0 : i32, i32
  }
  func.func @transform_3(%arg0: i32) -> (i32, i32) {
    %c0_i32 = arith.constant 0 : i32
    %c0_i32_0 = arith.constant 0 : i32
    %c0_i32_1 = arith.constant 0 : i32
    return %c0_i32, %c0_i32_0 : i32, i32
  }
  func.func @transform_4(%arg0: i32) -> (i32, i32) {
    %c0_i32 = arith.constant 0 : i32
    %c0_i32_0 = arith.constant 0 : i32
    %c0_i32_1 = arith.constant 0 : i32
    return %c0_i32, %c0_i32_0 : i32, i32
  }
  func.func @transform_5(%arg0: i32) -> (i32, i32) {
    %c0_i32 = arith.constant 0 : i32
    %c0_i32_0 = arith.constant 0 : i32
    return %arg0, %c0_i32 : i32, i32
  }
}

</mosaic_0001>

<llo_original>
// kernel: _lambda_.19
$region0: #{_lambda_.19}
  #allocation0 [shape = 'u32[]', space=smem, size = 0x4, offset = 0x4, fixed_abs, tag = 'smem constant byte address 0x4 - core index']
  #allocation1 [shape = 'u32[144,128]{1,0:T(1,128)}', space=vmem, size = 0x12000, scoped, tag = 'internal scratch']
  %s0 = inlined_call_operand.vmem [shape: f32[32,32], index: 0, kind: input, shape index: {}]
  %s1 = inlined_call_operand.vmem [shape: f32[1,32], index: 1, kind: input, shape index: {}]
  %s2 = inlined_call_operand.vmem [shape: f32[1,32], index: 2, kind: input, shape index: {}]
  %s3 = inlined_call_operand.vmem [shape: bf16[32,96], index: 3, kind: input, shape index: {}]
  %s4 = inlined_call_operand.vmem [shape: f32[1,96], index: 4, kind: input, shape index: {}]
  %s5 = inlined_call_operand.vmem [shape: bf16[32,96], index: 5, kind: output, shape index: {}]
  %s6 = sld [smem:[#allocation0]]
  $region30: #{_lambda_.19} parent=0
    _
  %s8 = ssub.s32 1, %s6
  %s9 = scalar_select 0, %s8, %s6
  // Predicated region
  $region2: #{_lambda_.19} parent=0 // pred_check
    _
  $region3: #{_lambda_.19} parent=0 // pred_check_branch
    %11 = sbr.rel (0) target = $region5
  $region4: #{_lambda_.19} parent=0 // pred_region
    _
  $region5: #{_lambda_.19} parent=0 // pred_fallthru
    _
  // Predicated region
  $region6: #{_lambda_.19} parent=0 // pred_check
    _
  $region7: #{_lambda_.19} parent=0 // pred_check_branch
    %13 = sbr.rel (0) target = $region9
  $region8: #{_lambda_.19} parent=0 // pred_region
    _
  $region9: #{_lambda_.19} parent=0 // pred_fallthru
    _
  // Predicated region
  $region10: #{_lambda_.19} parent=0 // pred_check
    _
  $region11: #{_lambda_.19} parent=0 // pred_check_branch
    %15 = sbr.rel (0) target = $region13
  $region12: #{_lambda_.19} parent=0 // pred_region
    _
  $region13: #{_lambda_.19} parent=0 // pred_fallthru
    _
  // Predicated region
  $region14: #{_lambda_.19} parent=0 // pred_check
    _
  $region15: #{_lambda_.19} parent=0 // pred_check_branch
    %17 = sbr.rel (0) target = $region17
  $region16: #{_lambda_.19} parent=0 // pred_region
    _
  $region17: #{_lambda_.19} parent=0 // pred_fallthru
    _
  // Predicated region
  $region18: #{_lambda_.19} parent=0 // pred_check
    _
  $region19: #{_lambda_.19} parent=0 // pred_check_branch
    %19 = sbr.rel (0) target = $region21
  $region20: #{_lambda_.19} parent=0 // pred_region
    _
  $region21: #{_lambda_.19} parent=0 // pred_fallthru
    _
  %v21 = vld [vmem:[%s0] sm:$0xff]
  %v22 = vld [vmem:[%s0 + $0x8] sm:$0xff]
  %v23 = vld [vmem:[%s0 + $0x10] sm:$0xff]
  %v24 = vld [vmem:[%s0 + $0x18] sm:$0xff]
  %vm25 = vcmask 261120
  %v26 = vsel %vm25, %v21, 0.0
  %27 = vadd.xlane.f32.xlu0 %v26
  %v28 = vpop.xlane.xlu0 %27
  %v29 = vsel %vm25, %v22, 0.0
  %30 = vadd.xlane.f32.xlu0 %v29
  %v31 = vpop.xlane.xlu0 %30
  %v32 = vsel %vm25, %v23, 0.0
  %33 = vadd.xlane.f32.xlu0 %v32
  %v34 = vpop.xlane.xlu0 %33
  %v35 = vsel %vm25, %v24, 0.0
  %36 = vadd.xlane.f32.xlu0 %v35
  %v37 = vpop.xlane.xlu0 %36
  %v38 = vrcp.pop 32.0
  %v39 = vmul.f32 %v28, %v38
  %v40 = vmul.f32 %v31, %v38
  %v41 = vmul.f32 %v34, %v38
  %v42 = vmul.f32 %v37, %v38
  %v43 = vsub.f32 %v21, %v39
  %v44 = vsub.f32 %v22, %v40
  %v45 = vsub.f32 %v23, %v41
  %v46 = vsub.f32 %v24, %v42
  %v47 = vmul.f32 %v43, %v43
  %v48 = vmul.f32 %v44, %v44
  %v49 = vmul.f32 %v45, %v45
  %v50 = vmul.f32 %v46, %v46
  %v51 = vsel %vm25, %v47, 0.0
  %52 = vadd.xlane.f32.xlu0 %v51
  %v53 = vpop.xlane.xlu0 %52
  %v54 = vsel %vm25, %v48, 0.0
  %55 = vadd.xlane.f32.xlu0 %v54
  %v56 = vpop.xlane.xlu0 %55
  %v57 = vsel %vm25, %v49, 0.0
  %58 = vadd.xlane.f32.xlu0 %v57
  %v59 = vpop.xlane.xlu0 %58
  %v60 = vsel %vm25, %v50, 0.0
  %61 = vadd.xlane.f32.xlu0 %v60
  %v62 = vpop.xlane.xlu0 %61
  %v63 = vmul.f32 %v53, %v38
  %v64 = vmul.f32 %v56, %v38
  %v65 = vmul.f32 %v59, %v38
  %v66 = vmul.f32 %v62, %v38
  %v67 = vadd.f32 %v63, 1e-05
  %v68 = vadd.f32 %v64, 1e-05
  %v69 = vadd.f32 %v65, 1e-05
  %v70 = vadd.f32 %v66, 1e-05
  %v71 = vrsqrt.pop %v67
  %v72 = vrsqrt.pop %v68
  %v73 = vrsqrt.pop %v69
  %v74 = vrsqrt.pop %v70
  %v75 = vmul.f32 %v43, %v71
  %v76 = vmul.f32 %v44, %v72
  %v77 = vmul.f32 %v45, %v73
  %v78 = vmul.f32 %v46, %v74
  %v79 = vld [vmem:[%s1] sm:$0x1]
  %v81 = vlaneseq
  %v82 = vshrl.u32 %v81, 7
  %v83 = vsub.s32 0, %v82
  %v84 = vrot.slane %v79, %v83
  %v86 = vmul.f32 %v75, %v84
  %v87 = vmul.f32 %v76, %v84
  %v88 = vmul.f32 %v77, %v84
  %v89 = vmul.f32 %v78, %v84
  %v90 = vld [vmem:[%s2] sm:$0x1]
  %v92 = vlaneseq
  %v93 = vshrl.u32 %v92, 7
  %v94 = vsub.s32 0, %v93
  %v95 = vrot.slane %v90, %v94
  %v97 = vadd.f32 %v86, %v95
  %v98 = vadd.f32 %v87, %v95
  %v99 = vadd.f32 %v88, %v95
  %v100 = vadd.f32 %v89, %v95
  %v101 = vpack.c.bf16 %v98, %v97
  %v102 = vpack.c.bf16 %v100, %v99
  %v103 = vld [vmem:[%s3] sm:$0xf]
  %v104 = vld [vmem:[%s3 + $0x4] sm:$0xf]
  %v105 = vld [vmem:[%s3 + $0x8] sm:$0xf]
  %v106 = vld [vmem:[%s3 + $0xc] sm:$0xf]
  %v107 = vld [vmem:[%s4] sm:$0x1]
  %v109 = vlaneseq
  %v110 = vshrl.u32 %v109, 7
  %v111 = vsub.s32 0, %v110
  %v112 = vrot.slane %v107, %v111
  %v118 = vunpack.c.l.b16 %v103
  %v119 = vunpack.c.l.b16 %v104
  %v120 = vunpack.c.l.b16 %v105
  %v121 = vunpack.c.l.b16 %v106
  %v122 = vpack.c.b16 %v119, %v118
  %v123 = vpack.c.b16 %v121, %v120
  %v127 = vsel %vm25, %v101, 0
  %v130 = vsel %vm25, %v102, 0
  %132 = vmatprep.subr.bf16.mxu0 0
  %133 = vmatpush1.bf16.msra.mxu0 %v122
  %134 = vmatprep.subr.bf16.mxu0 0
  %135 = vmatpush1.bf16.msra.mxu0 %v123
  %136 = vmatprep.subr.bf16.mxu0 0
  %137 = vmatpush1.bf16.msra.mxu0 0
  %138 = vmatprep.subr.bf16.mxu0 0
  %139 = vmatpush1.bf16.msra.mxu0 0
  %140 = vmatprep.subr.bf16.mxu0 0
  %141 = vmatpush1.bf16.msra.mxu0 0
  %142 = vmatprep.subr.bf16.mxu0 0
  %143 = vmatpush1.bf16.msra.mxu0 0
  %144 = vmatprep.subr.bf16.mxu0 0
  %145 = vmatpush1.bf16.msra.mxu0 0
  %146 = vmatprep.subr.bf16.mxu0 0
  %147 = vmatpush1.bf16.msra.mxu0 0
  %148 = vmatprep.subr.bf16.mxu0 0
  %149 = vmatpush1.bf16.msra.mxu0 0
  %150 = vmatprep.subr.bf16.mxu0 0
  %151 = vmatpush1.bf16.msra.mxu0 0
  %152 = vmatprep.subr.bf16.mxu0 0
  %153 = vmatpush1.bf16.msra.mxu0 0
  %154 = vmatprep.subr.bf16.mxu0 0
  %155 = vmatpush1.bf16.msra.mxu0 0
  %156 = vmatprep.subr.bf16.mxu0 0
  %157 = vmatpush1.bf16.msra.mxu0 0
  %158 = vmatprep.subr.bf16.mxu0 0
  %159 = vmatpush1.bf16.msra.mxu0 0
  %160 = vmatprep.subr.bf16.mxu0 0
  %161 = vmatpush1.bf16.msra.mxu0 0
  %162 = vmatprep.subr.bf16.mxu0 0
  %163 = vmatpush1.bf16.msra.mxu0 0
  %164 = vmatprep.mubr.bf16.mxu0 0
  %165 = vmatmul.mubr.bf16.gmra.mrb[0].mxu0 %v127
  %v166 = vpop.f32.mrb[0].mxu0
  %v167 = vadd.f32 %v112, %v166
  %v168 = vpop.f32.mrb[0].mxu0
  %v169 = vpop.f32.mrb[0].mxu0
  %v170 = vadd.f32 %v112, %v169
  %v171 = vpop.f32.mrb[0].mxu0
  %172 = vmatprep.mubr.bf16.mxu0 0
  %173 = vmatmul.mubr.bf16.gmra.mrb[0].mxu0 %v130
  %v174 = vpop.f32.mrb[0].mxu0
  %v175 = vadd.f32 %v112, %v174
  %v176 = vpop.f32.mrb[0].mxu0
  %v177 = vpop.f32.mrb[0].mxu0
  %v178 = vadd.f32 %v112, %v177
  %v179 = vpop.f32.mrb[0].mxu0
  %180 = vdwg.mxu0
  %v181 = vpack.c.bf16 %v170, %v167
  %v182 = vpack.c.bf16 %v178, %v175
  %v185 = vunpack.c.l.b16 %v181
  %v186 = vunpack.c.h.b16 %v181
  %v187 = vunpack.c.l.b16 %v182
  %v188 = vunpack.c.h.b16 %v182
  %v189 = vpack.c.b16 %v185, %v185
  %v190 = vpack.c.b16 %v186, %v186
  %v191 = vpack.c.b16 %v187, %v187
  %v192 = vpack.c.b16 %v188, %v188
  %vm197 = vcmask 781312
  %198 = vst.msk [vmem:[%s5] sm:$0xf] %vm197, %v189
  %199 = vst.msk [vmem:[%s5 + $0x4] sm:$0xf] %vm197, %v190
  %200 = vst.msk [vmem:[%s5 + $0x8] sm:$0xf] %vm197, %v191
  %201 = vst.msk [vmem:[%s5 + $0xc] sm:$0xf] %vm197, %v192
  // Predicated region
  $region22: #{_lambda_.19} parent=0 // pred_check
    _
  $region23: #{_lambda_.19} parent=0 // pred_check_branch
    %203 = sbr.rel (0) target = $region25
  $region24: #{_lambda_.19} parent=0 // pred_region
    _
  $region25: #{_lambda_.19} parent=0 // pred_fallthru
    _
  // Predicated region
  $region26: #{_lambda_.19} parent=0 // pred_check
    _
  $region27: #{_lambda_.19} parent=0 // pred_check_branch
    %205 = sbr.rel (0) target = $region29
  $region28: #{_lambda_.19} parent=0 // pred_region
    _
  $region29: #{_lambda_.19} parent=0 // pred_fallthru
    _

// kernel: _lambda_.17
$region0: #{_lambda_.17}
  #allocation0 [shape = 'u32[]', space=smem, size = 0x4, offset = 0x4, fixed_abs, tag = 'smem constant byte address 0x4 - core index']
  #allocation1 [shape = 'u32[144,128]{1,0:T(1,128)}', space=vmem, size = 0x12000, scoped, tag = 'internal scratch']
  %s0 = inlined_call_operand.vmem [shape: f32[32,512], index: 0, kind: input, shape index: {}]
  %s1 = inlined_call_operand.vmem [shape: bf16[512,32], index: 1, kind: input, shape index: {}]
  %s2 = inlined_call_operand.vmem [shape: f32[1,32], index: 2, kind: input, shape index: {}]
  %s3 = inlined_call_operand.vmem [shape: f32[16,32], index: 3, kind: input, shape index: {}]
  %s4 = inlined_call_operand.vmem [shape: f32[32,32], index: 4, kind: output, shape index: {}]
  %s5 = sld [smem:[#allocation0]]
  $region49: #{_lambda_.17} parent=0
    _
  %s7 = ssub.s32 1, %s5
  %s8 = scalar_select 0, %s7, %s5
  loop: start=0, step=1, limit=4
  $region2: #{_lambda_.17} parent=0 // loop_pre_header
    _
  $region3: #{_lambda_.17} parent=0 // loop_header
    %s10 = sphi 0, %s14
    %p11 = scmp.ge.s32.totalorder %s10, 4
    %s17 = sphi 0, %s36
    %s18 = sphi 0, %s32
    %s19 = sphi 0, %s28
    %s20 = sphi 0, %s17
    %s21 = sphi 0, %s18
    %s22 = sphi 0, %s19
    %s23 = sphi 0, %s20
    %s24 = sphi 0, %s21
    %s25 = sphi 0, %s22
    %s41 = sphi 0, %s43
    %s44 = sphi 0, %s41
    %s45 = sphi 0, %s44
    %s61 = sphi 0, %s45
    %s67 = sphi 0, %s69
    %s70 = sphi 0, %s67
    %s71 = sphi 0, %s70
    %s87 = sphi 0, %s71
    %s93 = sphi 0, %s95
    %s96 = sphi 0, %s93
    %s97 = sphi 0, %s96
    %s113 = sphi 0, %s97
    %s121 = sphi 0, %s123
    %s124 = sphi 0, %s121
    %s125 = sphi 0, %s124
    %s141 = sphi 0, %s125
    %s151 = sphi 0, %s153
    %s154 = sphi 0, %s151
    %s155 = sphi 0, %s154
    %s171 = sphi 0, %s155
  $region4: #{_lambda_.17} parent=0 // loop_header_branch
    %13 = sbr.rel (%p11) target = $region8
  $region5: #{_lambda_.17} parent=0 // loop_body
    %s15 = ssub.s32 %s10, 1
    %s16 = ssub.s32 %s10, 2
    %s26 = sadd.s32 1, %s19
    %p27 = scmp.ge.s32.totalorder %s26, 1
    %s28 = scalar_select %p27, 0, %s26
    %s29 = sadd.s32 1, %s18
    %s30 = scalar_select %p27, %s29, %s18
    %p31 = scmp.ge.s32.totalorder %s30, 1
    %s32 = scalar_select %p31, 0, %s30
    %s33 = sadd.s32 1, %s17
    %s34 = scalar_select %p31, %s33, %s17
    %p35 = scmp.ge.s32.totalorder %s34, 2
    %s36 = scalar_select %p35, 0, %s34
    %s37 = sadd.s32 %s17, %s18
    %s38 = sadd.s32 %s36, %s32
    %s39 = ssub.s32 %s37, %s38
    %p40 = scmp.eq.s32.totalorder %s39, 0
    %s42 = sadd.s32 %s41, 1
    %s43 = scalar_select %p40, %s41, %s42
    %p46 = pneg %p40
    %p47 = scmp.eq.s32.totalorder %s10, 1
    %p48 = por %p46, %p47
    %p49 = scmp.ne.s32.totalorder %s41, %s44
    %p50 = scmp.eq.s32.totalorder %s10, 0
    %p51 = por %p49, %p50
    %p52 = scmp.ne.s32.totalorder %s41, %s44
    %p53 = scmp.eq.s32.totalorder %s15, 1
    %p54 = por %p52, %p53
    %p55 = scmp.ne.s32.totalorder %s44, %s45
    %p56 = scmp.eq.s32.totalorder %s15, 0
    %p57 = por %p55, %p56
    %p58 = scmp.ne.s32.totalorder %s44, %s45
    %p59 = scmp.eq.s32.totalorder %s16, 1
    %p60 = por %p58, %p59
    %p62 = scmp.ne.s32.totalorder %s45, %s61
    %p63 = scmp.eq.s32.totalorder %s16, 0
    %p64 = por %p62, %p63
    %s65 = ssub.s32 %s19, %s28
    %p66 = scmp.eq.s32.totalorder %s65, 0
    %s68 = sadd.s32 %s67, 1
    %s69 = scalar_select %p66, %s67, %s68
    %p72 = pneg %p66
    %p73 = scmp.eq.s32.totalorder %s10, 1
    %p74 = por %p72, %p73
    %p75 = scmp.ne.s32.totalorder %s67, %s70
    %p76 = scmp.eq.s32.totalorder %s10, 0
    %p77 = por %p75, %p76
    %p78 = scmp.ne.s32.totalorder %s67, %s70
    %p79 = scmp.eq.s32.totalorder %s15, 1
    %p80 = por %p78, %p79
    %p81 = scmp.ne.s32.totalorder %s70, %s71
    %p82 = scmp.eq.s32.totalorder %s15, 0
    %p83 = por %p81, %p82
    %p84 = scmp.ne.s32.totalorder %s70, %s71
    %p85 = scmp.eq.s32.totalorder %s16, 1
    %p86 = por %p84, %p85
    %p88 = scmp.ne.s32.totalorder %s71, %s87
    %p89 = scmp.eq.s32.totalorder %s16, 0
    %p90 = por %p88, %p89
    %s91 = ssub.s32 %s19, %s28
    %p92 = scmp.eq.s32.totalorder %s91, 0
    %s94 = sadd.s32 %s93, 1
    %s95 = scalar_select %p92, %s93, %s94
    %p98 = pneg %p92
    %p99 = scmp.eq.s32.totalorder %s10, 1
    %p100 = por %p98, %p99
    %p101 = scmp.ne.s32.totalorder %s93, %s96
    %p102 = scmp.eq.s32.totalorder %s10, 0
    %p103 = por %p101, %p102
    %p104 = scmp.ne.s32.totalorder %s93, %s96
    %p105 = scmp.eq.s32.totalorder %s15, 1
    %p106 = por %p104, %p105
    %p107 = scmp.ne.s32.totalorder %s96, %s97
    %p108 = scmp.eq.s32.totalorder %s15, 0
    %p109 = por %p107, %p108
    %p110 = scmp.ne.s32.totalorder %s96, %s97
    %p111 = scmp.eq.s32.totalorder %s16, 1
    %p112 = por %p110, %p111
    %p114 = scmp.ne.s32.totalorder %s97, %s113
    %p115 = scmp.eq.s32.totalorder %s16, 0
    %p116 = por %p114, %p115
    %s117 = ssub.s32 %s18, %s32
    %s118 = ssub.s32 %s19, %s28
    %s119 = sor.u32 %s117, %s118
    %p120 = scmp.eq.s32.totalorder %s119, 0
    %s122 = sadd.s32 %s121, 1
    %s123 = scalar_select %p120, %s121, %s122
    %p126 = pneg %p120
    %p127 = scmp.eq.s32.totalorder %s10, 1
    %p128 = por %p126, %p127
    %p129 = scmp.ne.s32.totalorder %s121, %s124
    %p130 = scmp.eq.s32.totalorder %s10, 0
    %p131 = por %p129, %p130
    %p132 = scmp.ne.s32.totalorder %s121, %s124
    %p133 = scmp.eq.s32.totalorder %s15, 1
    %p134 = por %p132, %p133
    %p135 = scmp.ne.s32.totalorder %s124, %s125
    %p136 = scmp.eq.s32.totalorder %s15, 0
    %p137 = por %p135, %p136
    %p138 = scmp.ne.s32.totalorder %s124, %s125
    %p139 = scmp.eq.s32.totalorder %s16, 1
    %p140 = por %p138, %p139
    %p142 = scmp.ne.s32.totalorder %s125, %s141
    %p143 = scmp.eq.s32.totalorder %s16, 0
    %p144 = por %p142, %p143
    %s145 = sadd.s32 %s17, %s18
    %s146 = sadd.s32 %s36, %s32
    %s147 = ssub.s32 %s145, %s146
    %s148 = ssub.s32 %s19, %s28
    %s149 = sor.u32 %s147, %s148
    %p150 = scmp.eq.s32.totalorder %s149, 0
    %s152 = sadd.s32 %s151, 1
    %s153 = scalar_select %p150, %s151, %s152
    %p156 = pneg %p150
    %p157 = scmp.eq.s32.totalorder %s10, 1
    %p158 = por %p156, %p157
    %p159 = scmp.ne.s32.totalorder %s151, %s154
    %p160 = scmp.eq.s32.totalorder %s10, 0
    %p161 = por %p159, %p160
    %p162 = scmp.ne.s32.totalorder %s151, %s154
    %p163 = scmp.eq.s32.totalorder %s15, 1
    %p164 = por %p162, %p163
    %p165 = scmp.ne.s32.totalorder %s154, %s155
    %p166 = scmp.eq.s32.totalorder %s15, 0
    %p167 = por %p165, %p166
    %p168 = scmp.ne.s32.totalorder %s154, %s155
    %p169 = scmp.eq.s32.totalorder %s16, 1
    %p170 = por %p168, %p169
    %p172 = scmp.ne.s32.totalorder %s155, %s171
    %p173 = scmp.eq.s32.totalorder %s16, 0
    %p174 = por %p172, %p173
    %p175 = scmp.le.s32.totalorder 1, %s10
    %p176 = scmp.lt.s32.totalorder %s10, 3
    %p177 = pnand %p175, %p176
    %p178 = pneg %p177
    // Predicated region
    $region9: #{_lambda_.17} parent=5 // pred_check
      _
    $region10: #{_lambda_.17} parent=5 // pred_check_branch
      %180 = sbr.rel (%p177) target = $region12
    $region11: #{_lambda_.17} parent=5 // pred_region
      %s181 = ssub.s32 %s10, 1
      // Predicated region
      $region13: #{_lambda_.17} parent=11 // pred_check
        %p182 = pneg %p83
      $region14: #{_lambda_.17} parent=11 // pred_check_branch
        %184 = sbr.rel (%p182) target = $region16
      $region15: #{_lambda_.17} parent=11 // pred_region
        %p185 = scmp.lt.s32.totalorder %s22, 0
        %s186 = scalar_select %p185, %s22, 0
        %s187 = smul.addr %s186, 4
        %s188 = scalar_lea.vmem %s1, %s187
      $region16: #{_lambda_.17} parent=11 // pred_fallthru
        _
      // Predicated region
      $region17: #{_lambda_.17} parent=11 // pred_check
        %p189 = pneg %p109
      $region18: #{_lambda_.17} parent=11 // pred_check_branch
        %191 = sbr.rel (%p189) target = $region20
      $region19: #{_lambda_.17} parent=11 // pred_region
        %p192 = scmp.lt.s32.totalorder %s22, 0
        %s193 = scalar_select %p192, %s22, 0
        %s194 = scalar_lea.vmem %s2, %s193
      $region20: #{_lambda_.17} parent=11 // pred_fallthru
        _
      // Predicated region
      $region21: #{_lambda_.17} parent=11 // pred_check
        %p195 = pneg %p137
      $region22: #{_lambda_.17} parent=11 // pred_check_branch
        %197 = sbr.rel (%p195) target = $region24
      $region23: #{_lambda_.17} parent=11 // pred_region
        %s198 = smul.u32 2, %s21
        %p199 = scmp.lt.s32.totalorder %s198, 1
        %s200 = scalar_select %p199, %s198, 1
        %p201 = scmp.lt.s32.totalorder %s22, 0
        %s202 = scalar_select %p201, %s22, 0
        %s203 = sadd.s32 %s202, %s200
        %s204 = smul.addr %s203, 8
        %s205 = scalar_lea.vmem %s3, %s204
        %s206 = smul.u32 2, %s21
      $region24: #{_lambda_.17} parent=11 // pred_fallthru
        _
    $region12: #{_lambda_.17} parent=5 // pred_fallthru
      _
    %p207 = scmp.lt.s32.totalorder %s10, 2
    // Predicated region
    $region25: #{_lambda_.17} parent=5 // pred_check
      %p208 = pneg %p207
    $region26: #{_lambda_.17} parent=5 // pred_check_branch
      %210 = sbr.rel (%p208) target = $region28
    $region27: #{_lambda_.17} parent=5 // pred_region
      // Predicated region
      $region29: #{_lambda_.17} parent=27 // pred_check
        %p211 = pneg %p51
      $region30: #{_lambda_.17} parent=27 // pred_check_branch
        %213 = sbr.rel (%p211) target = $region32
      $region31: #{_lambda_.17} parent=27 // pred_region
        %s214 = sadd.s32 %s17, %s18
        %s215 = smul.u32 2, %s214
        %p216 = scmp.lt.s32.totalorder %s215, 3
        %s217 = scalar_select %p216, %s215, 3
        %s218 = smul.addr %s217, 4
        %s219 = smul.addr %s218, 8
        %s220 = scalar_lea.vmem %s0, %s219
        %s221 = sadd.s32 %s17, %s18
        %s222 = smul.u32 2, %s221
      $region32: #{_lambda_.17} parent=27 // pred_fallthru
        _
    $region28: #{_lambda_.17} parent=5 // pred_fallthru
      _
    %p223 = scmp.le.s32.totalorder 1, %s10
    %p224 = scmp.lt.s32.totalorder %s10, 3
    %p225 = pnand %p223, %p224
    %p226 = pneg %p225
    // Predicated region
    $region33: #{_lambda_.17} parent=5 // pred_check
      _
    $region34: #{_lambda_.17} parent=5 // pred_check_branch
      %228 = sbr.rel (%p225) target = $region36
    $region35: #{_lambda_.17} parent=5 // pred_region
      %s229 = ssub.s32 %s10, 1
      %s230 = sadd.s32 %s20, %s21
      %s231 = smul.u32 2, %s230
      %p232 = scmp.lt.s32.totalorder %s231, 3
      %s233 = scalar_select %p232, %s231, 3
      %s234 = smul.addr %s233, 4
      %s235 = smul.addr %s234, 8
      %s236 = scalar_lea.vmem %s0, %s235
      %p237 = pneg %p57
      %p238 = pneg %p54
      %p239 = scmp.lt.s32.totalorder %s22, 0
      %s240 = scalar_select %p239, %s22, 0
      %s241 = smul.addr %s240, 4
      %s242 = scalar_lea.vmem %s1, %s241
      %p243 = pneg %p83
      %p244 = pneg %p80
      %p245 = scmp.lt.s32.totalorder %s22, 0
      %s246 = scalar_select %p245, %s22, 0
      %s247 = scalar_lea.vmem %s2, %s246
      %p248 = pneg %p109
      %p249 = pneg %p106
      %s250 = smul.u32 2, %s21
      %p251 = scmp.lt.s32.totalorder %s250, 1
      %s252 = scalar_select %p251, %s250, 1
      %p253 = scmp.lt.s32.totalorder %s22, 0
      %s254 = scalar_select %p253, %s22, 0
      %s255 = sadd.s32 %s254, %s252
      %s256 = smul.addr %s255, 8
      %s257 = scalar_lea.vmem %s3, %s256
      %p258 = pneg %p137
      %p259 = pneg %p134
      %p260 = pneg %p167
      %p261 = pneg %p164
      %s262 = sadd.s32 %s20, %s21
      %s263 = smul.u32 2, %s262
      %p264 = scmp.lt.s32.totalorder %s263, 3
      %s265 = scalar_select %p264, %s263, 3
      %p266 = scmp.lt.s32.totalorder %s22, 0
      %s267 = scalar_select %p266, %s22, 0
      %s268 = sadd.s32 %s267, %s265
      %s269 = smul.addr %s268, 8
      %s270 = scalar_lea.vmem %s4, %s269
      %s271 = sadd.s32 %s20, %s21
      %s272 = smul.u32 2, %s271
      %p273 = scmp.lt.s32.totalorder %s272, 3
      %s274 = scalar_select %p273, %s272, 3
      %s275 = smul.addr %s274, 4
      %s276 = smul.addr %s275, 8
      %s277 = scalar_lea.vmem %s0, %s276
      %s278 = sadd.s32 %s20, %s21
      %s279 = smul.u32 2, %s278
      %p280 = scmp.lt.s32.totalorder %s22, 0
      %s281 = scalar_select %p280, %s22, 0
      %s282 = smul.addr %s281, 4
      %s283 = scalar_lea.vmem %s1, %s282
      %p284 = scmp.lt.s32.totalorder %s22, 0
      %s285 = scalar_select %p284, %s22, 0
      %s286 = scalar_lea.vmem %s2, %s285
      %s287 = smul.u32 2, %s21
      %p288 = scmp.lt.s32.totalorder %s287, 1
      %s289 = scalar_select %p288, %s287, 1
      %p290 = scmp.lt.s32.totalorder %s22, 0
      %s291 = scalar_select %p290, %s22, 0
      %s292 = sadd.s32 %s291, %s289
      %s293 = smul.addr %s292, 8
      %s294 = scalar_lea.vmem %s3, %s293
      %s295 = smul.u32 2, %s21
      %s296 = sadd.s32 %s20, %s21
      %s297 = smul.u32 2, %s296
      %p298 = scmp.lt.s32.totalorder %s297, 3
      %s299 = scalar_select %p298, %s297, 3
      %p300 = scmp.lt.s32.totalorder %s22, 0
      %s301 = scalar_select %p300, %s22, 0
      %s302 = sadd.s32 %s301, %s299
      %s303 = smul.addr %s302, 8
      %s304 = scalar_lea.vmem %s4, %s303
      %s305 = sadd.s32 %s20, %s21
      %s306 = smul.u32 2, %s305
      %v308 = vld [vmem:[%s277] sm:$0xff]
      %v309 = vld [vmem:[%s277 + $0x8] sm:$0xff]
      %v310 = vld [vmem:[%s277 + $0x10] sm:$0xff]
      %v311 = vld [vmem:[%s277 + $0x18] sm:$0xff]
      %v312 = vld [vmem:[%s277 + $0x20] sm:$0xff]
      %v313 = vld [vmem:[%s277 + $0x28] sm:$0xff]
      %v314 = vld [vmem:[%s277 + $0x30] sm:$0xff]
      %v315 = vld [vmem:[%s277 + $0x38] sm:$0xff]
      %v316 = vpack.c.bf16 %v312, %v308
      %v317 = vpack.c.bf16 %v313, %v309
      %v318 = vpack.c.bf16 %v314, %v310
      %v319 = vpack.c.bf16 %v315, %v311
      %v320 = vld [vmem:[%s283] sm:$0xf]
      %v321 = vld [vmem:[%s283 + $0x4] sm:$0xf]
      %v322 = vld [vmem:[%s283 + $0x8] sm:$0xf]
      %v323 = vld [vmem:[%s283 + $0xc] sm:$0xf]
      %v324 = vld [vmem:[%s283 + $0x10] sm:$0xf]
      %v325 = vld [vmem:[%s283 + $0x14] sm:$0xf]
      %v326 = vld [vmem:[%s283 + $0x18] sm:$0xf]
      %v327 = vld [vmem:[%s283 + $0x1c] sm:$0xf]
      %v328 = vld [vmem:[%s283 + $0x20] sm:$0xf]
      %v329 = vld [vmem:[%s283 + $0x24] sm:$0xf]
      %v330 = vld [vmem:[%s283 + $0x28] sm:$0xf]
      %v331 = vld [vmem:[%s283 + $0x2c] sm:$0xf]
      %v332 = vld [vmem:[%s283 + $0x30] sm:$0xf]
      %v333 = vld [vmem:[%s283 + $0x34] sm:$0xf]
      %v334 = vld [vmem:[%s283 + $0x38] sm:$0xf]
      %v335 = vld [vmem:[%s283 + $0x3c] sm:$0xf]
      %v336 = vld [vmem:[%s283 + $0x40] sm:$0xf]
      %v337 = vld [vmem:[%s283 + $0x44] sm:$0xf]
      %v338 = vld [vmem:[%s283 + $0x48] sm:$0xf]
      %v339 = vld [vmem:[%s283 + $0x4c] sm:$0xf]
      %v340 = vld [vmem:[%s283 + $0x50] sm:$0xf]
      %v341 = vld [vmem:[%s283 + $0x54] sm:$0xf]
      %v342 = vld [vmem:[%s283 + $0x58] sm:$0xf]
      %v343 = vld [vmem:[%s283 + $0x5c] sm:$0xf]
      %v344 = vld [vmem:[%s283 + $0x60] sm:$0xf]
      %v345 = vld [vmem:[%s283 + $0x64] sm:$0xf]
      %v346 = vld [vmem:[%s283 + $0x68] sm:$0xf]
      %v347 = vld [vmem:[%s283 + $0x6c] sm:$0xf]
      %v348 = vld [vmem:[%s283 + $0x70] sm:$0xf]
      %v349 = vld [vmem:[%s283 + $0x74] sm:$0xf]
      %v350 = vld [vmem:[%s283 + $0x78] sm:$0xf]
      %v351 = vld [vmem:[%s283 + $0x7c] sm:$0xf]
      %v352 = vld [vmem:[%s283 + $0x80] sm:$0xf]
      %v353 = vld [vmem:[%s283 + $0x84] sm:$0xf]
      %v354 = vld [vmem:[%s283 + $0x88] sm:$0xf]
      %v355 = vld [vmem:[%s283 + $0x8c] sm:$0xf]
      %v356 = vld [vmem:[%s283 + $0x90] sm:$0xf]
      %v357 = vld [vmem:[%s283 + $0x94] sm:$0xf]
      %v358 = vld [vmem:[%s283 + $0x98] sm:$0xf]
      %v359 = vld [vmem:[%s283 + $0x9c] sm:$0xf]
      %v360 = vld [vmem:[%s283 + $0xa0] sm:$0xf]
      %v361 = vld [vmem:[%s283 + $0xa4] sm:$0xf]
      %v362 = vld [vmem:[%s283 + $0xa8] sm:$0xf]
      %v363 = vld [vmem:[%s283 + $0xac] sm:$0xf]
      %v364 = vld [vmem:[%s283 + $0xb0] sm:$0xf]
      %v365 = vld [vmem:[%s283 + $0xb4] sm:$0xf]
      %v366 = vld [vmem:[%s283 + $0xb8] sm:$0xf]
      %v367 = vld [vmem:[%s283 + $0xbc] sm:$0xf]
      %v368 = vld [vmem:[%s283 + $0xc0] sm:$0xf]
      %v369 = vld [vmem:[%s283 + $0xc4] sm:$0xf]
      %v370 = vld [vmem:[%s283 + $0xc8] sm:$0xf]
      %v371 = vld [vmem:[%s283 + $0xcc] sm:$0xf]
      %v372 = vld [vmem:[%s283 + $0xd0] sm:$0xf]
      %v373 = vld [vmem:[%s283 + $0xd4] sm:$0xf]
      %v374 = vld [vmem:[%s283 + $0xd8] sm:$0xf]
      %v375 = vld [vmem:[%s283 + $0xdc] sm:$0xf]
      %v376 = vld [vmem:[%s283 + $0xe0] sm:$0xf]
      %v377 = vld [vmem:[%s283 + $0xe4] sm:$0xf]
      %v378 = vld [vmem:[%s283 + $0xe8] sm:$0xf]
      %v379 = vld [vmem:[%s283 + $0xec] sm:$0xf]
      %v380 = vld [vmem:[%s283 + $0xf0] sm:$0xf]
      %v381 = vld [vmem:[%s283 + $0xf4] sm:$0xf]
      %v382 = vld [vmem:[%s283 + $0xf8] sm:$0xf]
      %v383 = vld [vmem:[%s283 + $0xfc] sm:$0xf]
      %v384 = vld [vmem:[%s286] sm:$0x1]
      %v386 = vlaneseq
      %v387 = vshrl.u32 %v386, 7
      %v388 = vsub.s32 0, %v387
      %v389 = vrot.slane %v384, %v388
      %v455 = vunpack.c.l.b16 %v320
      %v456 = vunpack.c.l.b16 %v321
      %v457 = vunpack.c.l.b16 %v322
      %v458 = vunpack.c.l.b16 %v323
      %v459 = vunpack.c.l.b16 %v324
      %v460 = vunpack.c.l.b16 %v325
      %v461 = vunpack.c.l.b16 %v326
      %v462 = vunpack.c.l.b16 %v327
      %v463 = vunpack.c.l.b16 %v328
      %v464 = vunpack.c.l.b16 %v329
      %v465 = vunpack.c.l.b16 %v330
      %v466 = vunpack.c.l.b16 %v331
      %v467 = vunpack.c.l.b16 %v332
      %v468 = vunpack.c.l.b16 %v333
      %v469 = vunpack.c.l.b16 %v334
      %v470 = vunpack.c.l.b16 %v335
      %v471 = vunpack.c.l.b16 %v336
      %v472 = vunpack.c.l.b16 %v337
      %v473 = vunpack.c.l.b16 %v338
      %v474 = vunpack.c.l.b16 %v339
      %v475 = vunpack.c.l.b16 %v340
      %v476 = vunpack.c.l.b16 %v341
      %v477 = vunpack.c.l.b16 %v342
      %v478 = vunpack.c.l.b16 %v343
      %v479 = vunpack.c.l.b16 %v344
      %v480 = vunpack.c.l.b16 %v345
      %v481 = vunpack.c.l.b16 %v346
      %v482 = vunpack.c.l.b16 %v347
      %v483 = vunpack.c.l.b16 %v348
      %v484 = vunpack.c.l.b16 %v349
      %v485 = vunpack.c.l.b16 %v350
      %v486 = vunpack.c.l.b16 %v351
      %v487 = vunpack.c.l.b16 %v352
      %v488 = vunpack.c.l.b16 %v353
      %v489 = vunpack.c.l.b16 %v354
      %v490 = vunpack.c.l.b16 %v355
      %v491 = vunpack.c.l.b16 %v356
      %v492 = vunpack.c.l.b16 %v357
      %v493 = vunpack.c.l.b16 %v358
      %v494 = vunpack.c.l.b16 %v359
      %v495 = vunpack.c.l.b16 %v360
      %v496 = vunpack.c.l.b16 %v361
      %v497 = vunpack.c.l.b16 %v362
      %v498 = vunpack.c.l.b16 %v363
      %v499 = vunpack.c.l.b16 %v364
      %v500 = vunpack.c.l.b16 %v365
      %v501 = vunpack.c.l.b16 %v366
      %v502 = vunpack.c.l.b16 %v367
      %v503 = vunpack.c.l.b16 %v368
      %v504 = vunpack.c.l.b16 %v369
      %v505 = vunpack.c.l.b16 %v370
      %v506 = vunpack.c.l.b16 %v371
      %v507 = vunpack.c.l.b16 %v372
      %v508 = vunpack.c.l.b16 %v373
      %v509 = vunpack.c.l.b16 %v374
      %v510 = vunpack.c.l.b16 %v375
      %v511 = vunpack.c.l.b16 %v376
      %v512 = vunpack.c.l.b16 %v377
      %v513 = vunpack.c.l.b16 %v378
      %v514 = vunpack.c.l.b16 %v379
      %v515 = vunpack.c.l.b16 %v380
      %v516 = vunpack.c.l.b16 %v381
      %v517 = vunpack.c.l.b16 %v382
      %v518 = vunpack.c.l.b16 %v383
      %v519 = vpack.c.b16 %v456, %v455
      %v520 = vpack.c.b16 %v458, %v457
      %v521 = vpack.c.b16 %v460, %v459
      %v522 = vpack.c.b16 %v462, %v461
      %v523 = vpack.c.b16 %v464, %v463
      %v524 = vpack.c.b16 %v466, %v465
      %v525 = vpack.c.b16 %v468, %v467
      %v526 = vpack.c.b16 %v470, %v469
      %v527 = vpack.c.b16 %v472, %v471
      %v528 = vpack.c.b16 %v474, %v473
      %v529 = vpack.c.b16 %v476, %v475
      %v530 = vpack.c.b16 %v478, %v477
      %v531 = vpack.c.b16 %v480, %v479
      %v532 = vpack.c.b16 %v482, %v481
      %v533 = vpack.c.b16 %v484, %v483
      %v534 = vpack.c.b16 %v486, %v485
      %v535 = vpack.c.b16 %v488, %v487
      %v536 = vpack.c.b16 %v490, %v489
      %v537 = vpack.c.b16 %v492, %v491
      %v538 = vpack.c.b16 %v494, %v493
      %v539 = vpack.c.b16 %v496, %v495
      %v540 = vpack.c.b16 %v498, %v497
      %v541 = vpack.c.b16 %v500, %v499
      %v542 = vpack.c.b16 %v502, %v501
      %v543 = vpack.c.b16 %v504, %v503
      %v544 = vpack.c.b16 %v506, %v505
      %v545 = vpack.c.b16 %v508, %v507
      %v546 = vpack.c.b16 %v510, %v509
      %v547 = vpack.c.b16 %v512, %v511
      %v548 = vpack.c.b16 %v514, %v513
      %v549 = vpack.c.b16 %v516, %v515
      %v550 = vpack.c.b16 %v518, %v517
      %583 = vmatprep.subr.bf16.mxu0 0
      %584 = vmatpush1.bf16.msra.mxu0 %v519
      %585 = vmatprep.subr.bf16.mxu0 0
      %586 = vmatpush1.bf16.msra.mxu0 %v520
      %587 = vmatprep.subr.bf16.mxu0 0
      %588 = vmatpush1.bf16.msra.mxu0 %v521
      %589 = vmatprep.subr.bf16.mxu0 0
      %590 = vmatpush1.bf16.msra.mxu0 %v522
      %591 = vmatprep.subr.bf16.mxu0 0
      %592 = vmatpush1.bf16.msra.mxu0 %v523
      %593 = vmatprep.subr.bf16.mxu0 0
      %594 = vmatpush1.bf16.msra.mxu0 %v524
      %595 = vmatprep.subr.bf16.mxu0 0
      %596 = vmatpush1.bf16.msra.mxu0 %v525
      %597 = vmatprep.subr.bf16.mxu0 0
      %598 = vmatpush1.bf16.msra.mxu0 %v526
      %599 = vmatprep.subr.bf16.mxu0 0
      %600 = vmatpush1.bf16.msra.mxu0 %v527
      %601 = vmatprep.subr.bf16.mxu0 0
      %602 = vmatpush1.bf16.msra.mxu0 %v528
      %603 = vmatprep.subr.bf16.mxu0 0
      %604 = vmatpush1.bf16.msra.mxu0 %v529
      %605 = vmatprep.subr.bf16.mxu0 0
      %606 = vmatpush1.bf16.msra.mxu0 %v530
      %607 = vmatprep.subr.bf16.mxu0 0
      %608 = vmatpush1.bf16.msra.mxu0 %v531
      %609 = vmatprep.subr.bf16.mxu0 0
      %610 = vmatpush1.bf16.msra.mxu0 %v532
      %611 = vmatprep.subr.bf16.mxu0 0
      %612 = vmatpush1.bf16.msra.mxu0 %v533
      %613 = vmatprep.subr.bf16.mxu0 0
      %614 = vmatpush1.bf16.msra.mxu0 %v534
      %615 = vmatprep.mubr.bf16.mxu0 %v317
      %616 = vmatmul.mubr.bf16.gmra.mrb[0].mxu0 %v316
      %v617 = vpop.f32.mrb[0].mxu0
      %v618 = vadd.f32 %v389, %v617
      %v619 = vpop.f32.mrb[0].mxu0
      %v620 = vpop.f32.mrb[0].mxu0
      %v621 = vadd.f32 %v389, %v620
      %v622 = vpop.f32.mrb[0].mxu0
      %623 = vdwg.mxu0
      %624 = vmatprep.subr.bf16.mxu0 0
      %625 = vmatpush1.bf16.msra.mxu0 %v535
      %626 = vmatprep.subr.bf16.mxu0 0
      %627 = vmatpush1.bf16.msra.mxu0 %v536
      %628 = vmatprep.subr.bf16.mxu0 0
      %629 = vmatpush1.bf16.msra.mxu0 %v537
      %630 = vmatprep.subr.bf16.mxu0 0
      %631 = vmatpush1.bf16.msra.mxu0 %v538
      %632 = vmatprep.subr.bf16.mxu0 0
      %633 = vmatpush1.bf16.msra.mxu0 %v539
      %634 = vmatprep.subr.bf16.mxu0 0
      %635 = vmatpush1.bf16.msra.mxu0 %v540
      %636 = vmatprep.subr.bf16.mxu0 0
      %637 = vmatpush1.bf16.msra.mxu0 %v541
      %638 = vmatprep.subr.bf16.mxu0 0
      %639 = vmatpush1.bf16.msra.mxu0 %v542
      %640 = vmatprep.subr.bf16.mxu0 0
      %641 = vmatpush1.bf16.msra.mxu0 %v543
      %642 = vmatprep.subr.bf16.mxu0 0
      %643 = vmatpush1.bf16.msra.mxu0 %v544
      %644 = vmatprep.subr.bf16.mxu0 0
      %645 = vmatpush1.bf16.msra.mxu0 %v545
      %646 = vmatprep.subr.bf16.mxu0 0
      %647 = vmatpush1.bf16.msra.mxu0 %v546
      %648 = vmatprep.subr.bf16.mxu0 0
      %649 = vmatpush1.bf16.msra.mxu0 %v547
      %650 = vmatprep.subr.bf16.mxu0 0
      %651 = vmatpush1.bf16.msra.mxu0 %v548
      %652 = vmatprep.subr.bf16.mxu0 0
      %653 = vmatpush1.bf16.msra.mxu0 %v549
      %654 = vmatprep.subr.bf16.mxu0 0
      %655 = vmatpush1.bf16.msra.mxu0 %v550
      %656 = vmatprep.mubr.bf16.mxu0 %v319
      %657 = vmatmul.mubr.bf16.gmra.mrb[0].mxu0 %v318
      %v658 = vpop.f32.mrb[0].mxu0
      %v659 = vadd.f32 %v618, %v658
      %v660 = vpop.f32.mrb[0].mxu0
      %v661 = vpop.f32.mrb[0].mxu0
      %v662 = vadd.f32 %v621, %v661
      %v663 = vpop.f32.mrb[0].mxu0
      %664 = vdwg.mxu0
      %v665 = vld [vmem:[%s294] sm:$0xff]
      %v666 = vld [vmem:[%s294 + $0x8] sm:$0xff]
      %v667 = vadd.f32 %v659, %v665
      %v668 = vadd.f32 %v662, %v666
      %vm669 = vcmask 261120
      %670 = vst.msk [vmem:[%s304] sm:$0xff] %vm669, %v667
      %671 = vst.msk [vmem:[%s304 + $0x8] sm:$0xff] %vm669, %v668
      %s672 = sadd.s32 %s20, %s21
      %s673 = smul.u32 2, %s672
      %p674 = scmp.lt.s32.totalorder %s673, 3
      %s675 = scalar_select %p674, %s673, 3
      %p676 = scmp.lt.s32.totalorder %s22, 0
      %s677 = scalar_select %p676, %s22, 0
      %s678 = sadd.s32 %s677, %s675
      %s679 = smul.addr %s678, 8
      %s680 = scalar_lea.vmem %s4, %s679
      // Predicated region
      $region37: #{_lambda_.17} parent=35 // pred_check
        %p681 = pneg %p164
      $region38: #{_lambda_.17} parent=35 // pred_check_branch
        %683 = sbr.rel (%p681) target = $region40
      $region39: #{_lambda_.17} parent=35 // pred_region
        %s684 = sadd.s32 %s20, %s21
        %s685 = smul.u32 2, %s684
      $region40: #{_lambda_.17} parent=35 // pred_fallthru
        _
    $region36: #{_lambda_.17} parent=5 // pred_fallthru
      _
    %p686 = scmp.le.s32.totalorder 2, %s10
    // Predicated region
    $region41: #{_lambda_.17} parent=5 // pred_check
      %p687 = pneg %p686
    $region42: #{_lambda_.17} parent=5 // pred_check_branch
      %689 = sbr.rel (%p687) target = $region44
    $region43: #{_lambda_.17} parent=5 // pred_region
      %s690 = ssub.s32 %s10, 2
      // Predicated region
      $region45: #{_lambda_.17} parent=43 // pred_check
        %p691 = pneg %p170
      $region46: #{_lambda_.17} parent=43 // pred_check_branch
        %693 = sbr.rel (%p691) target = $region48
      $region47: #{_lambda_.17} parent=43 // pred_region
        %s694 = sadd.s32 %s23, %s24
        %s695 = smul.u32 2, %s694
        %p696 = scmp.lt.s32.totalorder %s695, 3
        %s697 = scalar_select %p696, %s695, 3
        %p698 = scmp.lt.s32.totalorder %s25, 0
        %s699 = scalar_select %p698, %s25, 0
        %s700 = sadd.s32 %s699, %s697
        %s701 = smul.addr %s700, 8
        %s702 = scalar_lea.vmem %s4, %s701
      $region48: #{_lambda_.17} parent=43 // pred_fallthru
        _
    $region44: #{_lambda_.17} parent=5 // pred_fallthru
      _
  $region6: #{_lambda_.17} parent=0 // loop_footer
    %s14 = sadd.s32 1, %s10
  $region7: #{_lambda_.17} parent=0 // loop_footer_branch
    %9 = sbr.rel target = $region3
  $region8: #{_lambda_.17} parent=0 // loop_exit
    _

// kernel: _lambda_.20
$region0: #{_lambda_.20}
  #allocation0 [shape = 'u32[]', space=smem, size = 0x4, offset = 0x4, fixed_abs, tag = 'smem constant byte address 0x4 - core index']
  #allocation1 [shape = 'u32[144,128]{1,0:T(1,128)}', space=vmem, size = 0x12000, scoped, tag = 'internal scratch']
  %s0 = inlined_call_operand.vmem [shape: bf16[2,16,96], index: 0, kind: input, shape index: {}]
  %s1 = inlined_call_operand.vmem [shape: f32[2,16,32], index: 1, kind: input, shape index: {}]
  %s2 = inlined_call_operand.vmem [shape: bf16[32,32], index: 2, kind: input, shape index: {}]
  %s3 = inlined_call_operand.vmem [shape: f32[1,32], index: 3, kind: input, shape index: {}]
  %s4 = inlined_call_operand.vmem [shape: f32[2,16,32], index: 4, kind: output, shape index: {}]
  %s5 = sld [smem:[#allocation0]]
  $region49: #{_lambda_.20} parent=0
    _
  %s7 = ssub.s32 1, %s5
  %s8 = scalar_select 0, %s7, %s5
  loop: start=0, step=1, limit=4
  $region2: #{_lambda_.20} parent=0 // loop_pre_header
    _
  $region3: #{_lambda_.20} parent=0 // loop_header
    %s10 = sphi 0, %s14
    %p11 = scmp.ge.s32.totalorder %s10, 4
    %s17 = sphi 0, %s29
    %s18 = sphi 0, %s25
    %s19 = sphi 0, %s17
    %s20 = sphi 0, %s18
    %s21 = sphi 0, %s19
    %s22 = sphi 0, %s20
    %s34 = sphi 0, %s36
    %s37 = sphi 0, %s34
    %s38 = sphi 0, %s37
    %s54 = sphi 0, %s38
    %s62 = sphi 0, %s64
    %s65 = sphi 0, %s62
    %s66 = sphi 0, %s65
    %s82 = sphi 0, %s66
    %s86 = sphi 0, %s86
    %s88 = sphi 0, %s86
    %s89 = sphi 0, %s88
    %s103 = sphi 0, %s89
    %s107 = sphi 0, %s107
    %s109 = sphi 0, %s107
    %s110 = sphi 0, %s109
    %s124 = sphi 0, %s110
    %s132 = sphi 0, %s134
    %s135 = sphi 0, %s132
    %s136 = sphi 0, %s135
    %s152 = sphi 0, %s136
  $region4: #{_lambda_.20} parent=0 // loop_header_branch
    %13 = sbr.rel (%p11) target = $region8
  $region5: #{_lambda_.20} parent=0 // loop_body
    %s15 = ssub.s32 %s10, 1
    %s16 = ssub.s32 %s10, 2
    %s23 = sadd.s32 1, %s18
    %p24 = scmp.ge.s32.totalorder %s23, 1
    %s25 = scalar_select %p24, 0, %s23
    %s26 = sadd.s32 1, %s17
    %s27 = scalar_select %p24, %s26, %s17
    %p28 = scmp.ge.s32.totalorder %s27, 2
    %s29 = scalar_select %p28, 0, %s27
    %s30 = ssub.s32 %s17, %s29
    %s31 = ssub.s32 %s18, %s25
    %s32 = sor.u32 %s30, %s31
    %p33 = scmp.eq.s32.totalorder %s32, 0
    %s35 = sadd.s32 %s34, 1
    %s36 = scalar_select %p33, %s34, %s35
    %p39 = pneg %p33
    %p40 = scmp.eq.s32.totalorder %s10, 1
    %p41 = por %p39, %p40
    %p42 = scmp.ne.s32.totalorder %s34, %s37
    %p43 = scmp.eq.s32.totalorder %s10, 0
    %p44 = por %p42, %p43
    %p45 = scmp.ne.s32.totalorder %s34, %s37
    %p46 = scmp.eq.s32.totalorder %s15, 1
    %p47 = por %p45, %p46
    %p48 = scmp.ne.s32.totalorder %s37, %s38
    %p49 = scmp.eq.s32.totalorder %s15, 0
    %p50 = por %p48, %p49
    %p51 = scmp.ne.s32.totalorder %s37, %s38
    %p52 = scmp.eq.s32.totalorder %s16, 1
    %p53 = por %p51, %p52
    %p55 = scmp.ne.s32.totalorder %s38, %s54
    %p56 = scmp.eq.s32.totalorder %s16, 0
    %p57 = por %p55, %p56
    %s58 = ssub.s32 %s17, %s29
    %s59 = ssub.s32 %s18, %s25
    %s60 = sor.u32 %s58, %s59
    %p61 = scmp.eq.s32.totalorder %s60, 0
    %s63 = sadd.s32 %s62, 1
    %s64 = scalar_select %p61, %s62, %s63
    %p67 = pneg %p61
    %p68 = scmp.eq.s32.totalorder %s10, 1
    %p69 = por %p67, %p68
    %p70 = scmp.ne.s32.totalorder %s62, %s65
    %p71 = scmp.eq.s32.totalorder %s10, 0
    %p72 = por %p70, %p71
    %p73 = scmp.ne.s32.totalorder %s62, %s65
    %p74 = scmp.eq.s32.totalorder %s15, 1
    %p75 = por %p73, %p74
    %p76 = scmp.ne.s32.totalorder %s65, %s66
    %p77 = scmp.eq.s32.totalorder %s15, 0
    %p78 = por %p76, %p77
    %p79 = scmp.ne.s32.totalorder %s65, %s66
    %p80 = scmp.eq.s32.totalorder %s16, 1
    %p81 = por %p79, %p80
    %p83 = scmp.ne.s32.totalorder %s66, %s82
    %p84 = scmp.eq.s32.totalorder %s16, 0
    %p85 = por %p83, %p84
    %s87 = sadd.s32 %s86, 1
    %p90 = scmp.eq.s32.totalorder %s10, 1
    %p91 = scmp.ne.s32.totalorder %s86, %s88
    %p92 = scmp.eq.s32.totalorder %s10, 0
    %p93 = por %p91, %p92
    %p94 = scmp.ne.s32.totalorder %s86, %s88
    %p95 = scmp.eq.s32.totalorder %s15, 1
    %p96 = por %p94, %p95
    %p97 = scmp.ne.s32.totalorder %s88, %s89
    %p98 = scmp.eq.s32.totalorder %s15, 0
    %p99 = por %p97, %p98
    %p100 = scmp.ne.s32.totalorder %s88, %s89
    %p101 = scmp.eq.s32.totalorder %s16, 1
    %p102 = por %p100, %p101
    %p104 = scmp.ne.s32.totalorder %s89, %s103
    %p105 = scmp.eq.s32.totalorder %s16, 0
    %p106 = por %p104, %p105
    %s108 = sadd.s32 %s107, 1
    %p111 = scmp.eq.s32.totalorder %s10, 1
    %p112 = scmp.ne.s32.totalorder %s107, %s109
    %p113 = scmp.eq.s32.totalorder %s10, 0
    %p114 = por %p112, %p113
    %p115 = scmp.ne.s32.totalorder %s107, %s109
    %p116 = scmp.eq.s32.totalorder %s15, 1
    %p117 = por %p115, %p116
    %p118 = scmp.ne.s32.totalorder %s109, %s110
    %p119 = scmp.eq.s32.totalorder %s15, 0
    %p120 = por %p118, %p119
    %p121 = scmp.ne.s32.totalorder %s109, %s110
    %p122 = scmp.eq.s32.totalorder %s16, 1
    %p123 = por %p121, %p122
    %p125 = scmp.ne.s32.totalorder %s110, %s124
    %p126 = scmp.eq.s32.totalorder %s16, 0
    %p127 = por %p125, %p126
    %s128 = ssub.s32 %s17, %s29
    %s129 = ssub.s32 %s18, %s25
    %s130 = sor.u32 %s128, %s129
    %p131 = scmp.eq.s32.totalorder %s130, 0
    %s133 = sadd.s32 %s132, 1
    %s134 = scalar_select %p131, %s132, %s133
    %p137 = pneg %p131
    %p138 = scmp.eq.s32.totalorder %s10, 1
    %p139 = por %p137, %p138
    %p140 = scmp.ne.s32.totalorder %s132, %s135
    %p141 = scmp.eq.s32.totalorder %s10, 0
    %p142 = por %p140, %p141
    %p143 = scmp.ne.s32.totalorder %s132, %s135
    %p144 = scmp.eq.s32.totalorder %s15, 1
    %p145 = por %p143, %p144
    %p146 = scmp.ne.s32.totalorder %s135, %s136
    %p147 = scmp.eq.s32.totalorder %s15, 0
    %p148 = por %p146, %p147
    %p149 = scmp.ne.s32.totalorder %s135, %s136
    %p150 = scmp.eq.s32.totalorder %s16, 1
    %p151 = por %p149, %p150
    %p153 = scmp.ne.s32.totalorder %s136, %s152
    %p154 = scmp.eq.s32.totalorder %s16, 0
    %p155 = por %p153, %p154
    %p156 = scmp.le.s32.totalorder 1, %s10
    %p157 = scmp.lt.s32.totalorder %s10, 3
    %p158 = pnand %p156, %p157
    %p159 = pneg %p158
    // Predicated region
    $region9: #{_lambda_.20} parent=5 // pred_check
      _
    $region10: #{_lambda_.20} parent=5 // pred_check_branch
      %161 = sbr.rel (%p158) target = $region12
    $region11: #{_lambda_.20} parent=5 // pred_region
      %s162 = ssub.s32 %s10, 1
      // Predicated region
      $region13: #{_lambda_.20} parent=11 // pred_check
        %p163 = pneg %p99
      $region14: #{_lambda_.20} parent=11 // pred_check_branch
        %165 = sbr.rel (%p163) target = $region16
      $region15: #{_lambda_.20} parent=11 // pred_region
        _
      $region16: #{_lambda_.20} parent=11 // pred_fallthru
        _
      // Predicated region
      $region17: #{_lambda_.20} parent=11 // pred_check
        %p166 = pneg %p120
      $region18: #{_lambda_.20} parent=11 // pred_check_branch
        %168 = sbr.rel (%p166) target = $region20
      $region19: #{_lambda_.20} parent=11 // pred_region
        _
      $region20: #{_lambda_.20} parent=11 // pred_fallthru
        _
    $region12: #{_lambda_.20} parent=5 // pred_fallthru
      _
    %p169 = scmp.lt.s32.totalorder %s10, 2
    // Predicated region
    $region21: #{_lambda_.20} parent=5 // pred_check
      %p170 = pneg %p169
    $region22: #{_lambda_.20} parent=5 // pred_check_branch
      %172 = sbr.rel (%p170) target = $region24
    $region23: #{_lambda_.20} parent=5 // pred_region
      // Predicated region
      $region25: #{_lambda_.20} parent=23 // pred_check
        %p173 = pneg %p44
      $region26: #{_lambda_.20} parent=23 // pred_check_branch
        %175 = sbr.rel (%p173) target = $region28
      $region27: #{_lambda_.20} parent=23 // pred_region
        %s176 = smul.u32 2, %s18
        %p177 = scmp.lt.s32.totalorder %s17, 1
        %s178 = scalar_select %p177, %s17, 1
        %p179 = scmp.lt.s32.totalorder %s176, 1
        %s180 = scalar_select %p179, %s176, 1
        %s181 = smul.addr %s178, 2
        %s182 = sadd.s32 %s180, %s181
        %s183 = smul.addr %s182, 4
        %s184 = scalar_lea.vmem %s0, %s183
        %s185 = smul.u32 2, %s18
      $region28: #{_lambda_.20} parent=23 // pred_fallthru
        _
      // Predicated region
      $region29: #{_lambda_.20} parent=23 // pred_check
        %p186 = pneg %p72
      $region30: #{_lambda_.20} parent=23 // pred_check_branch
        %188 = sbr.rel (%p186) target = $region32
      $region31: #{_lambda_.20} parent=23 // pred_region
        %s189 = smul.u32 2, %s18
        %p190 = scmp.lt.s32.totalorder %s17, 1
        %s191 = scalar_select %p190, %s17, 1
        %p192 = scmp.lt.s32.totalorder %s189, 1
        %s193 = scalar_select %p192, %s189, 1
        %s194 = smul.addr %s191, 2
        %s195 = sadd.s32 %s193, %s194
        %s196 = smul.addr %s195, 8
        %s197 = scalar_lea.vmem %s1, %s196
        %s198 = smul.u32 2, %s18
      $region32: #{_lambda_.20} parent=23 // pred_fallthru
        _
    $region24: #{_lambda_.20} parent=5 // pred_fallthru
      _
    %p199 = scmp.le.s32.totalorder 1, %s10
    %p200 = scmp.lt.s32.totalorder %s10, 3
    %p201 = pnand %p199, %p200
    %p202 = pneg %p201
    // Predicated region
    $region33: #{_lambda_.20} parent=5 // pred_check
      _
    $region34: #{_lambda_.20} parent=5 // pred_check_branch
      %204 = sbr.rel (%p201) target = $region36
    $region35: #{_lambda_.20} parent=5 // pred_region
      %s205 = ssub.s32 %s10, 1
      %s206 = smul.u32 2, %s20
      %p207 = scmp.lt.s32.totalorder %s19, 1
      %s208 = scalar_select %p207, %s19, 1
      %p209 = scmp.lt.s32.totalorder %s206, 1
      %s210 = scalar_select %p209, %s206, 1
      %s211 = smul.addr %s208, 2
      %s212 = sadd.s32 %s210, %s211
      %s213 = smul.addr %s212, 4
      %s214 = scalar_lea.vmem %s0, %s213
      %p215 = pneg %p50
      %p216 = pneg %p47
      %s217 = smul.u32 2, %s20
      %p218 = scmp.lt.s32.totalorder %s19, 1
      %s219 = scalar_select %p218, %s19, 1
      %p220 = scmp.lt.s32.totalorder %s217, 1
      %s221 = scalar_select %p220, %s217, 1
      %s222 = smul.addr %s219, 2
      %s223 = sadd.s32 %s221, %s222
      %s224 = smul.addr %s223, 8
      %s225 = scalar_lea.vmem %s1, %s224
      %p226 = pneg %p78
      %p227 = pneg %p75
      %p228 = pneg %p99
      %p229 = pneg %p96
      %p230 = pneg %p120
      %p231 = pneg %p117
      %p232 = pneg %p148
      %p233 = pneg %p145
      %s234 = smul.u32 2, %s20
      %p235 = scmp.lt.s32.totalorder %s19, 1
      %s236 = scalar_select %p235, %s19, 1
      %p237 = scmp.lt.s32.totalorder %s234, 1
      %s238 = scalar_select %p237, %s234, 1
      %s239 = smul.addr %s236, 2
      %s240 = sadd.s32 %s238, %s239
      %s241 = smul.addr %s240, 8
      %s242 = scalar_lea.vmem %s4, %s241
      %s243 = smul.u32 2, %s20
      %p244 = scmp.lt.s32.totalorder %s19, 1
      %s245 = scalar_select %p244, %s19, 1
      %p246 = scmp.lt.s32.totalorder %s243, 1
      %s247 = scalar_select %p246, %s243, 1
      %s248 = smul.addr %s245, 2
      %s249 = sadd.s32 %s247, %s248
      %s250 = smul.addr %s249, 4
      %s251 = scalar_lea.vmem %s0, %s250
      %s252 = smul.u32 2, %s20
      %s253 = smul.u32 2, %s20
      %p254 = scmp.lt.s32.totalorder %s19, 1
      %s255 = scalar_select %p254, %s19, 1
      %p256 = scmp.lt.s32.totalorder %s253, 1
      %s257 = scalar_select %p256, %s253, 1
      %s258 = smul.addr %s255, 2
      %s259 = sadd.s32 %s257, %s258
      %s260 = smul.addr %s259, 8
      %s261 = scalar_lea.vmem %s1, %s260
      %s262 = smul.u32 2, %s20
      %s263 = smul.u32 2, %s20
      %p264 = scmp.lt.s32.totalorder %s19, 1
      %s265 = scalar_select %p264, %s19, 1
      %p266 = scmp.lt.s32.totalorder %s263, 1
      %s267 = scalar_select %p266, %s263, 1
      %s268 = smul.addr %s265, 2
      %s269 = sadd.s32 %s267, %s268
      %s270 = smul.addr %s269, 8
      %s271 = scalar_lea.vmem %s4, %s270
      %s272 = smul.u32 2, %s20
      %v274 = vld [vmem:[%s251] sm:$0xf]
      %v275 = vld [vmem:[%s251 + $0x4] sm:$0xf]
      %v276 = vld [vmem:[%s2] sm:$0xf]
      %v277 = vld [vmem:[%s2 + $0x4] sm:$0xf]
      %v278 = vld [vmem:[%s2 + $0x8] sm:$0xf]
      %v279 = vld [vmem:[%s2 + $0xc] sm:$0xf]
      %v280 = vld [vmem:[%s261] sm:$0xff]
      %v281 = vld [vmem:[%s261 + $0x8] sm:$0xff]
      %v282 = vld [vmem:[%s3] sm:$0x1]
      %v284 = vlaneseq
      %v285 = vshrl.u32 %v284, 7
      %v286 = vsub.s32 0, %v285
      %v287 = vrot.slane %v282, %v286
      %v289 = vadd.f32 %v280, %v287
      %v290 = vadd.f32 %v281, %v287
      %v292 = vunpack.c.l.b16 %v274
      %v293 = vpack.c.b16 %v292, %v292
      %294 = vrot.lane.b32.xlu0 %v293, 96
      %v295 = vpop.permute.xlu0 %294
      %vm296 = vcmask 130048
      %v298 = vsel %vm296, %v274, 0
      %v301 = vsel %vm296, %v295, 0
      %303 = vmatprep.subr.bf16.mxu0 0
      %304 = vmatpush1.bf16.xpose.msra.mxu0 %v301
      %305 = vmatprep.subr.bf16.mxu0 0
      %306 = vmatpush1.bf16.xpose.msra.mxu0 0
      %307 = vmatprep.subr.bf16.mxu0 0
      %308 = vmatpush1.bf16.xpose.msra.mxu0 0
      %309 = vmatprep.subr.bf16.mxu0 0
      %310 = vmatpush1.bf16.xpose.msra.mxu0 0
      %311 = vmatprep.subr.bf16.mxu0 0
      %312 = vmatpush1.bf16.xpose.msra.mxu0 0
      %313 = vmatprep.subr.bf16.mxu0 0
      %314 = vmatpush1.bf16.xpose.msra.mxu0 0
      %315 = vmatprep.subr.bf16.mxu0 0
      %316 = vmatpush1.bf16.xpose.msra.mxu0 0
      %317 = vmatprep.subr.bf16.mxu0 0
      %318 = vmatpush1.bf16.xpose.msra.mxu0 0
      %319 = vmatprep.subr.bf16.mxu0 0
      %320 = vmatpush1.bf16.xpose.msra.mxu0 0
      %321 = vmatprep.subr.bf16.mxu0 0
      %322 = vmatpush1.bf16.xpose.msra.mxu0 0
      %323 = vmatprep.subr.bf16.mxu0 0
      %324 = vmatpush1.bf16.xpose.msra.mxu0 0
      %325 = vmatprep.subr.bf16.mxu0 0
      %326 = vmatpush1.bf16.xpose.msra.mxu0 0
      %327 = vmatprep.subr.bf16.mxu0 0
      %328 = vmatpush1.bf16.xpose.msra.mxu0 0
      %329 = vmatprep.subr.bf16.mxu0 0
      %330 = vmatpush1.bf16.xpose.msra.mxu0 0
      %331 = vmatprep.subr.bf16.mxu0 0
      %332 = vmatpush1.bf16.xpose.msra.mxu0 0
      %333 = vmatprep.subr.bf16.mxu0 0
      %334 = vmatpush1.bf16.xpose.msra.mxu0 0
      %335 = vmatprep.mubr.bf16.mxu0 0
      %336 = vmatmul.mubr.bf16.gmra.mrb[0].mxu0 %v298
      %v337 = vpop.f32.mrb[0].mxu0
      %v338 = vadd.f32 0.0, %v337
      %v339 = vpop.f32.mrb[0].mxu0
      %v340 = vpop.f32.mrb[0].mxu0
      %v341 = vpop.f32.mrb[0].mxu0
      %342 = vdwg.mxu0
      %v344 = vunpack.c.l.b16 %v275
      %v345 = vpack.c.b16 %v344, %v344
      %346 = vrot.lane.b32.xlu0 %v345, 96
      %v347 = vpop.permute.xlu0 %346
      %v349 = vsel %vm296, %v275, 0
      %v352 = vsel %vm296, %v347, 0
      %354 = vmatprep.subr.bf16.mxu0 0
      %355 = vmatpush1.bf16.xpose.msra.mxu0 %v352
      %356 = vmatprep.subr.bf16.mxu0 0
      %357 = vmatpush1.bf16.xpose.msra.mxu0 0
      %358 = vmatprep.subr.bf16.mxu0 0
      %359 = vmatpush1.bf16.xpose.msra.mxu0 0
      %360 = vmatprep.subr.bf16.mxu0 0
      %361 = vmatpush1.bf16.xpose.msra.mxu0 0
      %362 = vmatprep.subr.bf16.mxu0 0
      %363 = vmatpush1.bf16.xpose.msra.mxu0 0
      %364 = vmatprep.subr.bf16.mxu0 0
      %365 = vmatpush1.bf16.xpose.msra.mxu0 0
      %366 = vmatprep.subr.bf16.mxu0 0
      %367 = vmatpush1.bf16.xpose.msra.mxu0 0
      %368 = vmatprep.subr.bf16.mxu0 0
      %369 = vmatpush1.bf16.xpose.msra.mxu0 0
      %370 = vmatprep.subr.bf16.mxu0 0
      %371 = vmatpush1.bf16.xpose.msra.mxu0 0
      %372 = vmatprep.subr.bf16.mxu0 0
      %373 = vmatpush1.bf16.xpose.msra.mxu0 0
      %374 = vmatprep.subr.bf16.mxu0 0
      %375 = vmatpush1.bf16.xpose.msra.mxu0 0
      %376 = vmatprep.subr.bf16.mxu0 0
      %377 = vmatpush1.bf16.xpose.msra.mxu0 0
      %378 = vmatprep.subr.bf16.mxu0 0
      %379 = vmatpush1.bf16.xpose.msra.mxu0 0
      %380 = vmatprep.subr.bf16.mxu0 0
      %381 = vmatpush1.bf16.xpose.msra.mxu0 0
      %382 = vmatprep.subr.bf16.mxu0 0
      %383 = vmatpush1.bf16.xpose.msra.mxu0 0
      %384 = vmatprep.subr.bf16.mxu0 0
      %385 = vmatpush1.bf16.xpose.msra.mxu0 0
      %386 = vmatprep.mubr.bf16.mxu0 0
      %387 = vmatmul.mubr.bf16.gmra.mrb[0].mxu0 %v349
      %v388 = vpop.f32.mrb[0].mxu0
      %v389 = vadd.f32 0.0, %v388
      %v390 = vpop.f32.mrb[0].mxu0
      %v391 = vpop.f32.mrb[0].mxu0
      %v392 = vpop.f32.mrb[0].mxu0
      %393 = vdwg.mxu0
      %v394 = vmul.f32 %v338, 0.25
      %v395 = vmul.f32 %v389, 0.25
      %vm396 = vcmask 64512
      %v397 = vsel %vm396, %v394, -inf
      %398 = vmax.xlane.f32.xlu0 %v397
      %v399 = vpop.xlane.xlu0 %398
      %v400 = vsel %vm396, %v395, -inf
      %401 = vmax.xlane.f32.xlu0 %v400
      %v402 = vpop.xlane.xlu0 %401
      %v403 = vsub.f32 %v394, %v399
      %v404 = vsub.f32 %v395, %v402
      %v405 = vmul.f32 %v403, 1.442695
      %v406 = vpow.pop %v405
      %v407 = vmul.f32 %v404, 1.442695
      %v408 = vpow.pop %v407
      %v409 = vsel %vm396, %v406, 0.0
      %410 = vadd.xlane.f32.xlu0 %v409
      %v411 = vpop.xlane.xlu0 %410
      %v412 = vsel %vm396, %v408, 0.0
      %413 = vadd.xlane.f32.xlu0 %v412
      %v414 = vpop.xlane.xlu0 %413
      %v415 = vrcp.pop %v411
      %v416 = vrcp.pop %v414
      %v417 = vmul.f32 %v406, %v415
      %v418 = vmul.f32 %v408, %v416
      %v419 = vpack.c.bf16 %v417, %v417
      %v420 = vpack.c.bf16 %v418, %v418
      %421 = vrot.lane.b32.xlu0 %v293, 64
      %v422 = vpop.permute.xlu0 %421
      %v424 = vsel %vm396, %v419, 0
      %vm426 = vcmask 1043456
      %v428 = vsel %vm426, %v422, 0
      %430 = vmatprep.subr.bf16.mxu0 0
      %431 = vmatpush1.bf16.msra.mxu0 %v428
      %432 = vmatprep.subr.bf16.mxu0 0
      %433 = vmatpush1.bf16.msra.mxu0 0
      %434 = vmatprep.subr.bf16.mxu0 0
      %435 = vmatpush1.bf16.msra.mxu0 0
      %436 = vmatprep.subr.bf16.mxu0 0
      %437 = vmatpush1.bf16.msra.mxu0 0
      %438 = vmatprep.subr.bf16.mxu0 0
      %439 = vmatpush1.bf16.msra.mxu0 0
      %440 = vmatprep.subr.bf16.mxu0 0
      %441 = vmatpush1.bf16.msra.mxu0 0
      %442 = vmatprep.subr.bf16.mxu0 0
      %443 = vmatpush1.bf16.msra.mxu0 0
      %444 = vmatprep.subr.bf16.mxu0 0
      %445 = vmatpush1.bf16.msra.mxu0 0
      %446 = vmatprep.subr.bf16.mxu0 0
      %447 = vmatpush1.bf16.msra.mxu0 0
      %448 = vmatprep.subr.bf16.mxu0 0
      %449 = vmatpush1.bf16.msra.mxu0 0
      %450 = vmatprep.subr.bf16.mxu0 0
      %451 = vmatpush1.bf16.msra.mxu0 0
      %452 = vmatprep.subr.bf16.mxu0 0
      %453 = vmatpush1.bf16.msra.mxu0 0
      %454 = vmatprep.subr.bf16.mxu0 0
      %455 = vmatpush1.bf16.msra.mxu0 0
      %456 = vmatprep.subr.bf16.mxu0 0
      %457 = vmatpush1.bf16.msra.mxu0 0
      %458 = vmatprep.subr.bf16.mxu0 0
      %459 = vmatpush1.bf16.msra.mxu0 0
      %460 = vmatprep.subr.bf16.mxu0 0
      %461 = vmatpush1.bf16.msra.mxu0 0
      %462 = vmatprep.mubr.bf16.mxu0 0
      %463 = vmatmul.mubr.bf16.gmra.mrb[0].mxu0 %v424
      %v464 = vpop.f32.mrb[0].mxu0
      %v465 = vadd.f32 0.0, %v464
      %v466 = vpop.f32.mrb[0].mxu0
      %v467 = vpop.f32.mrb[0].mxu0
      %v468 = vpop.f32.mrb[0].mxu0
      %469 = vdwg.mxu0
      %470 = vrot.lane.b32.xlu0 %v345, 64
      %v471 = vpop.permute.xlu0 %470
      %v473 = vsel %vm396, %v420, 0
      %v476 = vsel %vm426, %v471, 0
      %478 = vmatprep.subr.bf16.mxu0 0
      %479 = vmatpush1.bf16.msra.mxu0 %v476
      %480 = vmatprep.subr.bf16.mxu0 0
      %481 = vmatpush1.bf16.msra.mxu0 0
      %482 = vmatprep.subr.bf16.mxu0 0
      %483 = vmatpush1.bf16.msra.mxu0 0
      %484 = vmatprep.subr.bf16.mxu0 0
      %485 = vmatpush1.bf16.msra.mxu0 0
      %486 = vmatprep.subr.bf16.mxu0 0
      %487 = vmatpush1.bf16.msra.mxu0 0
      %488 = vmatprep.subr.bf16.mxu0 0
      %489 = vmatpush1.bf16.msra.mxu0 0
      %490 = vmatprep.subr.bf16.mxu0 0
      %491 = vmatpush1.bf16.msra.mxu0 0
      %492 = vmatprep.subr.bf16.mxu0 0
      %493 = vmatpush1.bf16.msra.mxu0 0
      %494 = vmatprep.subr.bf16.mxu0 0
      %495 = vmatpush1.bf16.msra.mxu0 0
      %496 = vmatprep.subr.bf16.mxu0 0
      %497 = vmatpush1.bf16.msra.mxu0 0
      %498 = vmatprep.subr.bf16.mxu0 0
      %499 = vmatpush1.bf16.msra.mxu0 0
      %500 = vmatprep.subr.bf16.mxu0 0
      %501 = vmatpush1.bf16.msra.mxu0 0
      %502 = vmatprep.subr.bf16.mxu0 0
      %503 = vmatpush1.bf16.msra.mxu0 0
      %504 = vmatprep.subr.bf16.mxu0 0
      %505 = vmatpush1.bf16.msra.mxu0 0
      %506 = vmatprep.subr.bf16.mxu0 0
      %507 = vmatpush1.bf16.msra.mxu0 0
      %508 = vmatprep.subr.bf16.mxu0 0
      %509 = vmatpush1.bf16.msra.mxu0 0
      %510 = vmatprep.mubr.bf16.mxu0 0
      %511 = vmatmul.mubr.bf16.gmra.mrb[0].mxu0 %v473
      %v512 = vpop.f32.mrb[0].mxu0
      %v513 = vadd.f32 0.0, %v512
      %v514 = vpop.f32.mrb[0].mxu0
      %v515 = vpop.f32.mrb[0].mxu0
      %v516 = vpop.f32.mrb[0].mxu0
      %517 = vdwg.mxu0
      %v518 = vpack.c.bf16 %v513, %v465
      %v521 = vunpack.c.l.b16 %v276
      %v522 = vunpack.c.l.b16 %v277
      %v523 = vpack.c.b16 %v522, %v521
      %v526 = vsel %vm296, %v518, 0
      %528 = vmatprep.subr.bf16.mxu0 0
      %529 = vmatpush1.bf16.msra.mxu0 %v523
      %530 = vmatprep.subr.bf16.mxu0 0
      %531 = vmatpush1.bf16.msra.mxu0 0
      %532 = vmatprep.subr.bf16.mxu0 0
      %533 = vmatpush1.bf16.msra.mxu0 0
      %534 = vmatprep.subr.bf16.mxu0 0
      %535 = vmatpush1.bf16.msra.mxu0 0
      %536 = vmatprep.subr.bf16.mxu0 0
      %537 = vmatpush1.bf16.msra.mxu0 0
      %538 = vmatprep.subr.bf16.mxu0 0
      %539 = vmatpush1.bf16.msra.mxu0 0
      %540 = vmatprep.subr.bf16.mxu0 0
      %541 = vmatpush1.bf16.msra.mxu0 0
      %542 = vmatprep.subr.bf16.mxu0 0
      %543 = vmatpush1.bf16.msra.mxu0 0
      %544 = vmatprep.subr.bf16.mxu0 0
      %545 = vmatpush1.bf16.msra.mxu0 0
      %546 = vmatprep.subr.bf16.mxu0 0
      %547 = vmatpush1.bf16.msra.mxu0 0
      %548 = vmatprep.subr.bf16.mxu0 0
      %549 = vmatpush1.bf16.msra.mxu0 0
      %550 = vmatprep.subr.bf16.mxu0 0
      %551 = vmatpush1.bf16.msra.mxu0 0
      %552 = vmatprep.subr.bf16.mxu0 0
      %553 = vmatpush1.bf16.msra.mxu0 0
      %554 = vmatprep.subr.bf16.mxu0 0
      %555 = vmatpush1.bf16.msra.mxu0 0
      %556 = vmatprep.subr.bf16.mxu0 0
      %557 = vmatpush1.bf16.msra.mxu0 0
      %558 = vmatprep.subr.bf16.mxu0 0
      %559 = vmatpush1.bf16.msra.mxu0 0
      %560 = vmatprep.mubr.bf16.mxu0 0
      %561 = vmatmul.mubr.bf16.gmra.mrb[0].mxu0 %v526
      %v562 = vpop.f32.mrb[0].mxu0
      %v563 = vadd.f32 0.0, %v562
      %v564 = vpop.f32.mrb[0].mxu0
      %v565 = vpop.f32.mrb[0].mxu0
      %v566 = vadd.f32 0.0, %v565
      %v567 = vpop.f32.mrb[0].mxu0
      %568 = vdwg.mxu0
      %v569 = vadd.f32 %v289, %v563
      %v570 = vadd.f32 %v290, %v566
      %571 = vrot.lane.b32.xlu0 %v293, 112
      %v572 = vpop.permute.xlu0 %571
      %573 = vrot.lane.b32.xlu0 %v293, 80
      %v574 = vpop.permute.xlu0 %573
      %v576 = vsel %vm296, %v572, 0
      %v579 = vsel %vm296, %v574, 0
      %581 = vmatprep.subr.bf16.mxu0 0
      %582 = vmatpush1.bf16.xpose.msra.mxu0 %v579
      %583 = vmatprep.subr.bf16.mxu0 0
      %584 = vmatpush1.bf16.xpose.msra.mxu0 0
      %585 = vmatprep.subr.bf16.mxu0 0
      %586 = vmatpush1.bf16.xpose.msra.mxu0 0
      %587 = vmatprep.subr.bf16.mxu0 0
      %588 = vmatpush1.bf16.xpose.msra.mxu0 0
      %589 = vmatprep.subr.bf16.mxu0 0
      %590 = vmatpush1.bf16.xpose.msra.mxu0 0
      %591 = vmatprep.subr.bf16.mxu0 0
      %592 = vmatpush1.bf16.xpose.msra.mxu0 0
      %593 = vmatprep.subr.bf16.mxu0 0
      %594 = vmatpush1.bf16.xpose.msra.mxu0 0
      %595 = vmatprep.subr.bf16.mxu0 0
      %596 = vmatpush1.bf16.xpose.msra.mxu0 0
      %597 = vmatprep.subr.bf16.mxu0 0
      %598 = vmatpush1.bf16.xpose.msra.mxu0 0
      %599 = vmatprep.subr.bf16.mxu0 0
      %600 = vmatpush1.bf16.xpose.msra.mxu0 0
      %601 = vmatprep.subr.bf16.mxu0 0
      %602 = vmatpush1.bf16.xpose.msra.mxu0 0
      %603 = vmatprep.subr.bf16.mxu0 0
      %604 = vmatpush1.bf16.xpose.msra.mxu0 0
      %605 = vmatprep.subr.bf16.mxu0 0
      %606 = vmatpush1.bf16.xpose.msra.mxu0 0
      %607 = vmatprep.subr.bf16.mxu0 0
      %608 = vmatpush1.bf16.xpose.msra.mxu0 0
      %609 = vmatprep.subr.bf16.mxu0 0
      %610 = vmatpush1.bf16.xpose.msra.mxu0 0
      %611 = vmatprep.subr.bf16.mxu0 0
      %612 = vmatpush1.bf16.xpose.msra.mxu0 0
      %613 = vmatprep.mubr.bf16.mxu0 0
      %614 = vmatmul.mubr.bf16.gmra.mrb[0].mxu0 %v576
      %v615 = vpop.f32.mrb[0].mxu0
      %v616 = vadd.f32 0.0, %v615
      %v617 = vpop.f32.mrb[0].mxu0
      %v618 = vpop.f32.mrb[0].mxu0
      %v619 = vpop.f32.mrb[0].mxu0
      %620 = vdwg.mxu0
      %621 = vrot.lane.b32.xlu0 %v345, 112
      %v622 = vpop.permute.xlu0 %621
      %623 = vrot.lane.b32.xlu0 %v345, 80
      %v624 = vpop.permute.xlu0 %623
      %v626 = vsel %vm296, %v622, 0
      %v629 = vsel %vm296, %v624, 0
      %631 = vmatprep.subr.bf16.mxu0 0
      %632 = vmatpush1.bf16.xpose.msra.mxu0 %v629
      %633 = vmatprep.subr.bf16.mxu0 0
      %634 = vmatpush1.bf16.xpose.msra.mxu0 0
      %635 = vmatprep.subr.bf16.mxu0 0
      %636 = vmatpush1.bf16.xpose.msra.mxu0 0
      %637 = vmatprep.subr.bf16.mxu0 0
      %638 = vmatpush1.bf16.xpose.msra.mxu0 0
      %639 = vmatprep.subr.bf16.mxu0 0
      %640 = vmatpush1.bf16.xpose.msra.mxu0 0
      %641 = vmatprep.subr.bf16.mxu0 0
      %642 = vmatpush1.bf16.xpose.msra.mxu0 0
      %643 = vmatprep.subr.bf16.mxu0 0
      %644 = vmatpush1.bf16.xpose.msra.mxu0 0
      %645 = vmatprep.subr.bf16.mxu0 0
      %646 = vmatpush1.bf16.xpose.msra.mxu0 0
      %647 = vmatprep.subr.bf16.mxu0 0
      %648 = vmatpush1.bf16.xpose.msra.mxu0 0
      %649 = vmatprep.subr.bf16.mxu0 0
      %650 = vmatpush1.bf16.xpose.msra.mxu0 0
      %651 = vmatprep.subr.bf16.mxu0 0
      %652 = vmatpush1.bf16.xpose.msra.mxu0 0
      %653 = vmatprep.subr.bf16.mxu0 0
      %654 = vmatpush1.bf16.xpose.msra.mxu0 0
      %655 = vmatprep.subr.bf16.mxu0 0
      %656 = vmatpush1.bf16.xpose.msra.mxu0 0
      %657 = vmatprep.subr.bf16.mxu0 0
      %658 = vmatpush1.bf16.xpose.msra.mxu0 0
      %659 = vmatprep.subr.bf16.mxu0 0
      %660 = vmatpush1.bf16.xpose.msra.mxu0 0
      %661 = vmatprep.subr.bf16.mxu0 0
      %662 = vmatpush1.bf16.xpose.msra.mxu0 0
      %663 = vmatprep.mubr.bf16.mxu0 0
      %664 = vmatmul.mubr.bf16.gmra.mrb[0].mxu0 %v626
      %v665 = vpop.f32.mrb[0].mxu0
      %v666 = vadd.f32 0.0, %v665
      %v667 = vpop.f32.mrb[0].mxu0
      %v668 = vpop.f32.mrb[0].mxu0
      %v669 = vpop.f32.mrb[0].mxu0
      %670 = vdwg.mxu0
      %v671 = vmul.f32 %v616, 0.25
      %v672 = vmul.f32 %v666, 0.25
      %v673 = vsel %vm396, %v671, -inf
      %674 = vmax.xlane.f32.xlu0 %v673
      %v675 = vpop.xlane.xlu0 %674
      %v676 = vsel %vm396, %v672, -inf
      %677 = vmax.xlane.f32.xlu0 %v676
      %v678 = vpop.xlane.xlu0 %677
      %v679 = vsub.f32 %v671, %v675
      %v680 = vsub.f32 %v672, %v678
      %v681 = vmul.f32 %v679, 1.442695
      %v682 = vpow.pop %v681
      %v683 = vmul.f32 %v680, 1.442695
      %v684 = vpow.pop %v683
      %v685 = vsel %vm396, %v682, 0.0
      %686 = vadd.xlane.f32.xlu0 %v685
      %v687 = vpop.xlane.xlu0 %686
      %v688 = vsel %vm396, %v684, 0.0
      %689 = vadd.xlane.f32.xlu0 %v688
      %v690 = vpop.xlane.xlu0 %689
      %v691 = vrcp.pop %v687
      %v692 = vrcp.pop %v690
      %v693 = vmul.f32 %v682, %v691
      %v694 = vmul.f32 %v684, %v692
      %v695 = vpack.c.bf16 %v693, %v693
      %v696 = vpack.c.bf16 %v694, %v694
      %697 = vrot.lane.b32.xlu0 %v293, 48
      %v698 = vpop.permute.xlu0 %697
      %v700 = vsel %vm396, %v695, 0
      %v703 = vsel %vm426, %v698, 0
      %705 = vmatprep.subr.bf16.mxu0 0
      %706 = vmatpush1.bf16.msra.mxu0 %v703
      %707 = vmatprep.subr.bf16.mxu0 0
      %708 = vmatpush1.bf16.msra.mxu0 0
      %709 = vmatprep.subr.bf16.mxu0 0
      %710 = vmatpush1.bf16.msra.mxu0 0
      %711 = vmatprep.subr.bf16.mxu0 0
      %712 = vmatpush1.bf16.msra.mxu0 0
      %713 = vmatprep.subr.bf16.mxu0 0
      %714 = vmatpush1.bf16.msra.mxu0 0
      %715 = vmatprep.subr.bf16.mxu0 0
      %716 = vmatpush1.bf16.msra.mxu0 0
      %717 = vmatprep.subr.bf16.mxu0 0
      %718 = vmatpush1.bf16.msra.mxu0 0
      %719 = vmatprep.subr.bf16.mxu0 0
      %720 = vmatpush1.bf16.msra.mxu0 0
      %721 = vmatprep.subr.bf16.mxu0 0
      %722 = vmatpush1.bf16.msra.mxu0 0
      %723 = vmatprep.subr.bf16.mxu0 0
      %724 = vmatpush1.bf16.msra.mxu0 0
      %725 = vmatprep.subr.bf16.mxu0 0
      %726 = vmatpush1.bf16.msra.mxu0 0
      %727 = vmatprep.subr.bf16.mxu0 0
      %728 = vmatpush1.bf16.msra.mxu0 0
      %729 = vmatprep.subr.bf16.mxu0 0
      %730 = vmatpush1.bf16.msra.mxu0 0
      %731 = vmatprep.subr.bf16.mxu0 0
      %732 = vmatpush1.bf16.msra.mxu0 0
      %733 = vmatprep.subr.bf16.mxu0 0
      %734 = vmatpush1.bf16.msra.mxu0 0
      %735 = vmatprep.subr.bf16.mxu0 0
      %736 = vmatpush1.bf16.msra.mxu0 0
      %737 = vmatprep.mubr.bf16.mxu0 0
      %738 = vmatmul.mubr.bf16.gmra.mrb[0].mxu0 %v700
      %v739 = vpop.f32.mrb[0].mxu0
      %v740 = vadd.f32 0.0, %v739
      %v741 = vpop.f32.mrb[0].mxu0
      %v742 = vpop.f32.mrb[0].mxu0
      %v743 = vpop.f32.mrb[0].mxu0
      %744 = vdwg.mxu0
      %745 = vrot.lane.b32.xlu0 %v345, 48
      %v746 = vpop.permute.xlu0 %745
      %v748 = vsel %vm396, %v696, 0
      %v751 = vsel %vm426, %v746, 0
      %753 = vmatprep.subr.bf16.mxu0 0
      %754 = vmatpush1.bf16.msra.mxu0 %v751
      %755 = vmatprep.subr.bf16.mxu0 0
      %756 = vmatpush1.bf16.msra.mxu0 0
      %757 = vmatprep.subr.bf16.mxu0 0
      %758 = vmatpush1.bf16.msra.mxu0 0
      %759 = vmatprep.subr.bf16.mxu0 0
      %760 = vmatpush1.bf16.msra.mxu0 0
      %761 = vmatprep.subr.bf16.mxu0 0
      %762 = vmatpush1.bf16.msra.mxu0 0
      %763 = vmatprep.subr.bf16.mxu0 0
      %764 = vmatpush1.bf16.msra.mxu0 0
      %765 = vmatprep.subr.bf16.mxu0 0
      %766 = vmatpush1.bf16.msra.mxu0 0
      %767 = vmatprep.subr.bf16.mxu0 0
      %768 = vmatpush1.bf16.msra.mxu0 0
      %769 = vmatprep.subr.bf16.mxu0 0
      %770 = vmatpush1.bf16.msra.mxu0 0
      %771 = vmatprep.subr.bf16.mxu0 0
      %772 = vmatpush1.bf16.msra.mxu0 0
      %773 = vmatprep.subr.bf16.mxu0 0
      %774 = vmatpush1.bf16.msra.mxu0 0
      %775 = vmatprep.subr.bf16.mxu0 0
      %776 = vmatpush1.bf16.msra.mxu0 0
      %777 = vmatprep.subr.bf16.mxu0 0
      %778 = vmatpush1.bf16.msra.mxu0 0
      %779 = vmatprep.subr.bf16.mxu0 0
      %780 = vmatpush1.bf16.msra.mxu0 0
      %781 = vmatprep.subr.bf16.mxu0 0
      %782 = vmatpush1.bf16.msra.mxu0 0
      %783 = vmatprep.subr.bf16.mxu0 0
      %784 = vmatpush1.bf16.msra.mxu0 0
      %785 = vmatprep.mubr.bf16.mxu0 0
      %786 = vmatmul.mubr.bf16.gmra.mrb[0].mxu0 %v748
      %v787 = vpop.f32.mrb[0].mxu0
      %v788 = vadd.f32 0.0, %v787
      %v789 = vpop.f32.mrb[0].mxu0
      %v790 = vpop.f32.mrb[0].mxu0
      %v791 = vpop.f32.mrb[0].mxu0
      %792 = vdwg.mxu0
      %v793 = vpack.c.bf16 %v788, %v740
      %v796 = vunpack.c.l.b16 %v278
      %v797 = vunpack.c.l.b16 %v279
      %v798 = vpack.c.b16 %v797, %v796
      %v801 = vsel %vm296, %v793, 0
      %803 = vmatprep.subr.bf16.mxu0 0
      %804 = vmatpush1.bf16.msra.mxu0 %v798
      %805 = vmatprep.subr.bf16.mxu0 0
      %806 = vmatpush1.bf16.msra.mxu0 0
      %807 = vmatprep.subr.bf16.mxu0 0
      %808 = vmatpush1.bf16.msra.mxu0 0
      %809 = vmatprep.subr.bf16.mxu0 0
      %810 = vmatpush1.bf16.msra.mxu0 0
      %811 = vmatprep.subr.bf16.mxu0 0
      %812 = vmatpush1.bf16.msra.mxu0 0
      %813 = vmatprep.subr.bf16.mxu0 0
      %814 = vmatpush1.bf16.msra.mxu0 0
      %815 = vmatprep.subr.bf16.mxu0 0
      %816 = vmatpush1.bf16.msra.mxu0 0
      %817 = vmatprep.subr.bf16.mxu0 0
      %818 = vmatpush1.bf16.msra.mxu0 0
      %819 = vmatprep.subr.bf16.mxu0 0
      %820 = vmatpush1.bf16.msra.mxu0 0
      %821 = vmatprep.subr.bf16.mxu0 0
      %822 = vmatpush1.bf16.msra.mxu0 0
      %823 = vmatprep.subr.bf16.mxu0 0
      %824 = vmatpush1.bf16.msra.mxu0 0
      %825 = vmatprep.subr.bf16.mxu0 0
      %826 = vmatpush1.bf16.msra.mxu0 0
      %827 = vmatprep.subr.bf16.mxu0 0
      %828 = vmatpush1.bf16.msra.mxu0 0
      %829 = vmatprep.subr.bf16.mxu0 0
      %830 = vmatpush1.bf16.msra.mxu0 0
      %831 = vmatprep.subr.bf16.mxu0 0
      %832 = vmatpush1.bf16.msra.mxu0 0
      %833 = vmatprep.subr.bf16.mxu0 0
      %834 = vmatpush1.bf16.msra.mxu0 0
      %835 = vmatprep.mubr.bf16.mxu0 0
      %836 = vmatmul.mubr.bf16.gmra.mrb[0].mxu0 %v801
      %v837 = vpop.f32.mrb[0].mxu0
      %v838 = vadd.f32 0.0, %v837
      %v839 = vpop.f32.mrb[0].mxu0
      %v840 = vpop.f32.mrb[0].mxu0
      %v841 = vadd.f32 0.0, %v840
      %v842 = vpop.f32.mrb[0].mxu0
      %843 = vdwg.mxu0
      %v844 = vadd.f32 %v569, %v838
      %v845 = vadd.f32 %v570, %v841
      %vm846 = vcmask 261120
      %847 = vst.msk [vmem:[%s271] sm:$0xff] %vm846, %v844
      %848 = vst.msk [vmem:[%s271 + $0x8] sm:$0xff] %vm846, %v845
      %s849 = smul.u32 2, %s20
      %p850 = scmp.lt.s32.totalorder %s19, 1
      %s851 = scalar_select %p850, %s19, 1
      %p852 = scmp.lt.s32.totalorder %s849, 1
      %s853 = scalar_select %p852, %s849, 1
      %s854 = smul.addr %s851, 2
      %s855 = sadd.s32 %s853, %s854
      %s856 = smul.addr %s855, 8
      %s857 = scalar_lea.vmem %s4, %s856
      // Predicated region
      $region37: #{_lambda_.20} parent=35 // pred_check
        %p858 = pneg %p145
      $region38: #{_lambda_.20} parent=35 // pred_check_branch
        %860 = sbr.rel (%p858) target = $region40
      $region39: #{_lambda_.20} parent=35 // pred_region
        %s861 = smul.u32 2, %s20
      $region40: #{_lambda_.20} parent=35 // pred_fallthru
        _
    $region36: #{_lambda_.20} parent=5 // pred_fallthru
      _
    %p862 = scmp.le.s32.totalorder 2, %s10
    // Predicated region
    $region41: #{_lambda_.20} parent=5 // pred_check
      %p863 = pneg %p862
    $region42: #{_lambda_.20} parent=5 // pred_check_branch
      %865 = sbr.rel (%p863) target = $region44
    $region43: #{_lambda_.20} parent=5 // pred_region
      %s866 = ssub.s32 %s10, 2
      // Predicated region
      $region45: #{_lambda_.20} parent=43 // pred_check
        %p867 = pneg %p151
      $region46: #{_lambda_.20} parent=43 // pred_check_branch
        %869 = sbr.rel (%p867) target = $region48
      $region47: #{_lambda_.20} parent=43 // pred_region
        %s870 = smul.u32 2, %s22
        %p871 = scmp.lt.s32.totalorder %s21, 1
        %s872 = scalar_select %p871, %s21, 1
        %p873 = scmp.lt.s32.totalorder %s870, 1
        %s874 = scalar_select %p873, %s870, 1
        %s875 = smul.addr %s872, 2
        %s876 = sadd.s32 %s874, %s875
        %s877 = smul.addr %s876, 8
        %s878 = scalar_lea.vmem %s4, %s877
      $region48: #{_lambda_.20} parent=43 // pred_fallthru
        _
    $region44: #{_lambda_.20} parent=5 // pred_fallthru
      _
  $region6: #{_lambda_.20} parent=0 // loop_footer
    %s14 = sadd.s32 1, %s10
  $region7: #{_lambda_.20} parent=0 // loop_footer_branch
    %9 = sbr.rel target = $region3
  $region8: #{_lambda_.20} parent=0 // loop_exit
    _

// kernel: _lambda_.18
$region0: #{_lambda_.18}
  #allocation0 [shape = 'u32[]', space=smem, size = 0x4, offset = 0x4, fixed_abs, tag = 'smem constant byte address 0x4 - core index']
  #allocation1 [shape = 'u32[144,128]{1,0:T(1,128)}', space=vmem, size = 0x12000, scoped, tag = 'internal scratch']
  %s0 = inlined_call_operand.vmem [shape: f32[32,24], index: 0, kind: input, shape index: {}]
  %s1 = inlined_call_operand.vmem [shape: bf16[24,32], index: 1, kind: input, shape index: {}]
  %s2 = inlined_call_operand.vmem [shape: f32[1,32], index: 2, kind: input, shape index: {}]
  %s3 = inlined_call_operand.vmem [shape: f32[16,32], index: 3, kind: input, shape index: {}]
  %s4 = inlined_call_operand.vmem [shape: f32[32,32], index: 4, kind: output, shape index: {}]
  %s5 = sld [smem:[#allocation0]]
  $region49: #{_lambda_.18} parent=0
    _
  %s7 = ssub.s32 1, %s5
  %s8 = scalar_select 0, %s7, %s5
  loop: start=0, step=1, limit=4
  $region2: #{_lambda_.18} parent=0 // loop_pre_header
    _
  $region3: #{_lambda_.18} parent=0 // loop_header
    %s10 = sphi 0, %s14
    %p11 = scmp.ge.s32.totalorder %s10, 4
    %s17 = sphi 0, %s36
    %s18 = sphi 0, %s32
    %s19 = sphi 0, %s28
    %s20 = sphi 0, %s17
    %s21 = sphi 0, %s18
    %s22 = sphi 0, %s19
    %s23 = sphi 0, %s20
    %s24 = sphi 0, %s21
    %s25 = sphi 0, %s22
    %s41 = sphi 0, %s43
    %s44 = sphi 0, %s41
    %s45 = sphi 0, %s44
    %s61 = sphi 0, %s45
    %s67 = sphi 0, %s69
    %s70 = sphi 0, %s67
    %s71 = sphi 0, %s70
    %s87 = sphi 0, %s71
    %s93 = sphi 0, %s95
    %s96 = sphi 0, %s93
    %s97 = sphi 0, %s96
    %s113 = sphi 0, %s97
    %s121 = sphi 0, %s123
    %s124 = sphi 0, %s121
    %s125 = sphi 0, %s124
    %s141 = sphi 0, %s125
    %s151 = sphi 0, %s153
    %s154 = sphi 0, %s151
    %s155 = sphi 0, %s154
    %s171 = sphi 0, %s155
  $region4: #{_lambda_.18} parent=0 // loop_header_branch
    %13 = sbr.rel (%p11) target = $region8
  $region5: #{_lambda_.18} parent=0 // loop_body
    %s15 = ssub.s32 %s10, 1
    %s16 = ssub.s32 %s10, 2
    %s26 = sadd.s32 1, %s19
    %p27 = scmp.ge.s32.totalorder %s26, 1
    %s28 = scalar_select %p27, 0, %s26
    %s29 = sadd.s32 1, %s18
    %s30 = scalar_select %p27, %s29, %s18
    %p31 = scmp.ge.s32.totalorder %s30, 1
    %s32 = scalar_select %p31, 0, %s30
    %s33 = sadd.s32 1, %s17
    %s34 = scalar_select %p31, %s33, %s17
    %p35 = scmp.ge.s32.totalorder %s34, 2
    %s36 = scalar_select %p35, 0, %s34
    %s37 = sadd.s32 %s17, %s18
    %s38 = sadd.s32 %s36, %s32
    %s39 = ssub.s32 %s37, %s38
    %p40 = scmp.eq.s32.totalorder %s39, 0
    %s42 = sadd.s32 %s41, 1
    %s43 = scalar_select %p40, %s41, %s42
    %p46 = pneg %p40
    %p47 = scmp.eq.s32.totalorder %s10, 1
    %p48 = por %p46, %p47
    %p49 = scmp.ne.s32.totalorder %s41, %s44
    %p50 = scmp.eq.s32.totalorder %s10, 0
    %p51 = por %p49, %p50
    %p52 = scmp.ne.s32.totalorder %s41, %s44
    %p53 = scmp.eq.s32.totalorder %s15, 1
    %p54 = por %p52, %p53
    %p55 = scmp.ne.s32.totalorder %s44, %s45
    %p56 = scmp.eq.s32.totalorder %s15, 0
    %p57 = por %p55, %p56
    %p58 = scmp.ne.s32.totalorder %s44, %s45
    %p59 = scmp.eq.s32.totalorder %s16, 1
    %p60 = por %p58, %p59
    %p62 = scmp.ne.s32.totalorder %s45, %s61
    %p63 = scmp.eq.s32.totalorder %s16, 0
    %p64 = por %p62, %p63
    %s65 = ssub.s32 %s19, %s28
    %p66 = scmp.eq.s32.totalorder %s65, 0
    %s68 = sadd.s32 %s67, 1
    %s69 = scalar_select %p66, %s67, %s68
    %p72 = pneg %p66
    %p73 = scmp.eq.s32.totalorder %s10, 1
    %p74 = por %p72, %p73
    %p75 = scmp.ne.s32.totalorder %s67, %s70
    %p76 = scmp.eq.s32.totalorder %s10, 0
    %p77 = por %p75, %p76
    %p78 = scmp.ne.s32.totalorder %s67, %s70
    %p79 = scmp.eq.s32.totalorder %s15, 1
    %p80 = por %p78, %p79
    %p81 = scmp.ne.s32.totalorder %s70, %s71
    %p82 = scmp.eq.s32.totalorder %s15, 0
    %p83 = por %p81, %p82
    %p84 = scmp.ne.s32.totalorder %s70, %s71
    %p85 = scmp.eq.s32.totalorder %s16, 1
    %p86 = por %p84, %p85
    %p88 = scmp.ne.s32.totalorder %s71, %s87
    %p89 = scmp.eq.s32.totalorder %s16, 0
    %p90 = por %p88, %p89
    %s91 = ssub.s32 %s19, %s28
    %p92 = scmp.eq.s32.totalorder %s91, 0
    %s94 = sadd.s32 %s93, 1
    %s95 = scalar_select %p92, %s93, %s94
    %p98 = pneg %p92
    %p99 = scmp.eq.s32.totalorder %s10, 1
    %p100 = por %p98, %p99
    %p101 = scmp.ne.s32.totalorder %s93, %s96
    %p102 = scmp.eq.s32.totalorder %s10, 0
    %p103 = por %p101, %p102
    %p104 = scmp.ne.s32.totalorder %s93, %s96
    %p105 = scmp.eq.s32.totalorder %s15, 1
    %p106 = por %p104, %p105
    %p107 = scmp.ne.s32.totalorder %s96, %s97
    %p108 = scmp.eq.s32.totalorder %s15, 0
    %p109 = por %p107, %p108
    %p110 = scmp.ne.s32.totalorder %s96, %s97
    %p111 = scmp.eq.s32.totalorder %s16, 1
    %p112 = por %p110, %p111
    %p114 = scmp.ne.s32.totalorder %s97, %s113
    %p115 = scmp.eq.s32.totalorder %s16, 0
    %p116 = por %p114, %p115
    %s117 = ssub.s32 %s18, %s32
    %s118 = ssub.s32 %s19, %s28
    %s119 = sor.u32 %s117, %s118
    %p120 = scmp.eq.s32.totalorder %s119, 0
    %s122 = sadd.s32 %s121, 1
    %s123 = scalar_select %p120, %s121, %s122
    %p126 = pneg %p120
    %p127 = scmp.eq.s32.totalorder %s10, 1
    %p128 = por %p126, %p127
    %p129 = scmp.ne.s32.totalorder %s121, %s124
    %p130 = scmp.eq.s32.totalorder %s10, 0
    %p131 = por %p129, %p130
    %p132 = scmp.ne.s32.totalorder %s121, %s124
    %p133 = scmp.eq.s32.totalorder %s15, 1
    %p134 = por %p132, %p133
    %p135 = scmp.ne.s32.totalorder %s124, %s125
    %p136 = scmp.eq.s32.totalorder %s15, 0
    %p137 = por %p135, %p136
    %p138 = scmp.ne.s32.totalorder %s124, %s125
    %p139 = scmp.eq.s32.totalorder %s16, 1
    %p140 = por %p138, %p139
    %p142 = scmp.ne.s32.totalorder %s125, %s141
    %p143 = scmp.eq.s32.totalorder %s16, 0
    %p144 = por %p142, %p143
    %s145 = sadd.s32 %s17, %s18
    %s146 = sadd.s32 %s36, %s32
    %s147 = ssub.s32 %s145, %s146
    %s148 = ssub.s32 %s19, %s28
    %s149 = sor.u32 %s147, %s148
    %p150 = scmp.eq.s32.totalorder %s149, 0
    %s152 = sadd.s32 %s151, 1
    %s153 = scalar_select %p150, %s151, %s152
    %p156 = pneg %p150
    %p157 = scmp.eq.s32.totalorder %s10, 1
    %p158 = por %p156, %p157
    %p159 = scmp.ne.s32.totalorder %s151, %s154
    %p160 = scmp.eq.s32.totalorder %s10, 0
    %p161 = por %p159, %p160
    %p162 = scmp.ne.s32.totalorder %s151, %s154
    %p163 = scmp.eq.s32.totalorder %s15, 1
    %p164 = por %p162, %p163
    %p165 = scmp.ne.s32.totalorder %s154, %s155
    %p166 = scmp.eq.s32.totalorder %s15, 0
    %p167 = por %p165, %p166
    %p168 = scmp.ne.s32.totalorder %s154, %s155
    %p169 = scmp.eq.s32.totalorder %s16, 1
    %p170 = por %p168, %p169
    %p172 = scmp.ne.s32.totalorder %s155, %s171
    %p173 = scmp.eq.s32.totalorder %s16, 0
    %p174 = por %p172, %p173
    %p175 = scmp.le.s32.totalorder 1, %s10
    %p176 = scmp.lt.s32.totalorder %s10, 3
    %p177 = pnand %p175, %p176
    %p178 = pneg %p177
    // Predicated region
    $region9: #{_lambda_.18} parent=5 // pred_check
      _
    $region10: #{_lambda_.18} parent=5 // pred_check_branch
      %180 = sbr.rel (%p177) target = $region12
    $region11: #{_lambda_.18} parent=5 // pred_region
      %s181 = ssub.s32 %s10, 1
      // Predicated region
      $region13: #{_lambda_.18} parent=11 // pred_check
        %p182 = pneg %p83
      $region14: #{_lambda_.18} parent=11 // pred_check_branch
        %184 = sbr.rel (%p182) target = $region16
      $region15: #{_lambda_.18} parent=11 // pred_region
        %p185 = scmp.lt.s32.totalorder %s22, 0
        %s186 = scalar_select %p185, %s22, 0
        %s187 = smul.addr %s186, 4
        %s188 = scalar_lea.vmem %s1, %s187
      $region16: #{_lambda_.18} parent=11 // pred_fallthru
        _
      // Predicated region
      $region17: #{_lambda_.18} parent=11 // pred_check
        %p189 = pneg %p109
      $region18: #{_lambda_.18} parent=11 // pred_check_branch
        %191 = sbr.rel (%p189) target = $region20
      $region19: #{_lambda_.18} parent=11 // pred_region
        %p192 = scmp.lt.s32.totalorder %s22, 0
        %s193 = scalar_select %p192, %s22, 0
        %s194 = scalar_lea.vmem %s2, %s193
      $region20: #{_lambda_.18} parent=11 // pred_fallthru
        _
      // Predicated region
      $region21: #{_lambda_.18} parent=11 // pred_check
        %p195 = pneg %p137
      $region22: #{_lambda_.18} parent=11 // pred_check_branch
        %197 = sbr.rel (%p195) target = $region24
      $region23: #{_lambda_.18} parent=11 // pred_region
        %s198 = smul.u32 2, %s21
        %p199 = scmp.lt.s32.totalorder %s198, 1
        %s200 = scalar_select %p199, %s198, 1
        %p201 = scmp.lt.s32.totalorder %s22, 0
        %s202 = scalar_select %p201, %s22, 0
        %s203 = sadd.s32 %s202, %s200
        %s204 = smul.addr %s203, 8
        %s205 = scalar_lea.vmem %s3, %s204
        %s206 = smul.u32 2, %s21
      $region24: #{_lambda_.18} parent=11 // pred_fallthru
        _
    $region12: #{_lambda_.18} parent=5 // pred_fallthru
      _
    %p207 = scmp.lt.s32.totalorder %s10, 2
    // Predicated region
    $region25: #{_lambda_.18} parent=5 // pred_check
      %p208 = pneg %p207
    $region26: #{_lambda_.18} parent=5 // pred_check_branch
      %210 = sbr.rel (%p208) target = $region28
    $region27: #{_lambda_.18} parent=5 // pred_region
      // Predicated region
      $region29: #{_lambda_.18} parent=27 // pred_check
        %p211 = pneg %p51
      $region30: #{_lambda_.18} parent=27 // pred_check_branch
        %213 = sbr.rel (%p211) target = $region32
      $region31: #{_lambda_.18} parent=27 // pred_region
        %s214 = sadd.s32 %s17, %s18
        %s215 = smul.u32 2, %s214
        %p216 = scmp.lt.s32.totalorder %s215, 3
        %s217 = scalar_select %p216, %s215, 3
        %s218 = smul.addr %s217, 8
        %s219 = scalar_lea.vmem %s0, %s218
        %s220 = sadd.s32 %s17, %s18
        %s221 = smul.u32 2, %s220
      $region32: #{_lambda_.18} parent=27 // pred_fallthru
        _
    $region28: #{_lambda_.18} parent=5 // pred_fallthru
      _
    %p222 = scmp.le.s32.totalorder 1, %s10
    %p223 = scmp.lt.s32.totalorder %s10, 3
    %p224 = pnand %p222, %p223
    %p225 = pneg %p224
    // Predicated region
    $region33: #{_lambda_.18} parent=5 // pred_check
      _
    $region34: #{_lambda_.18} parent=5 // pred_check_branch
      %227 = sbr.rel (%p224) target = $region36
    $region35: #{_lambda_.18} parent=5 // pred_region
      %s228 = ssub.s32 %s10, 1
      %s229 = sadd.s32 %s20, %s21
      %s230 = smul.u32 2, %s229
      %p231 = scmp.lt.s32.totalorder %s230, 3
      %s232 = scalar_select %p231, %s230, 3
      %s233 = smul.addr %s232, 8
      %s234 = scalar_lea.vmem %s0, %s233
      %p235 = pneg %p57
      %p236 = pneg %p54
      %p237 = scmp.lt.s32.totalorder %s22, 0
      %s238 = scalar_select %p237, %s22, 0
      %s239 = smul.addr %s238, 4
      %s240 = scalar_lea.vmem %s1, %s239
      %p241 = pneg %p83
      %p242 = pneg %p80
      %p243 = scmp.lt.s32.totalorder %s22, 0
      %s244 = scalar_select %p243, %s22, 0
      %s245 = scalar_lea.vmem %s2, %s244
      %p246 = pneg %p109
      %p247 = pneg %p106
      %s248 = smul.u32 2, %s21
      %p249 = scmp.lt.s32.totalorder %s248, 1
      %s250 = scalar_select %p249, %s248, 1
      %p251 = scmp.lt.s32.totalorder %s22, 0
      %s252 = scalar_select %p251, %s22, 0
      %s253 = sadd.s32 %s252, %s250
      %s254 = smul.addr %s253, 8
      %s255 = scalar_lea.vmem %s3, %s254
      %p256 = pneg %p137
      %p257 = pneg %p134
      %p258 = pneg %p167
      %p259 = pneg %p164
      %s260 = sadd.s32 %s20, %s21
      %s261 = smul.u32 2, %s260
      %p262 = scmp.lt.s32.totalorder %s261, 3
      %s263 = scalar_select %p262, %s261, 3
      %p264 = scmp.lt.s32.totalorder %s22, 0
      %s265 = scalar_select %p264, %s22, 0
      %s266 = sadd.s32 %s265, %s263
      %s267 = smul.addr %s266, 8
      %s268 = scalar_lea.vmem %s4, %s267
      %s269 = sadd.s32 %s20, %s21
      %s270 = smul.u32 2, %s269
      %p271 = scmp.lt.s32.totalorder %s270, 3
      %s272 = scalar_select %p271, %s270, 3
      %s273 = smul.addr %s272, 8
      %s274 = scalar_lea.vmem %s0, %s273
      %s275 = sadd.s32 %s20, %s21
      %s276 = smul.u32 2, %s275
      %p277 = scmp.lt.s32.totalorder %s22, 0
      %s278 = scalar_select %p277, %s22, 0
      %s279 = smul.addr %s278, 4
      %s280 = scalar_lea.vmem %s1, %s279
      %p281 = scmp.lt.s32.totalorder %s22, 0
      %s282 = scalar_select %p281, %s22, 0
      %s283 = scalar_lea.vmem %s2, %s282
      %s284 = smul.u32 2, %s21
      %p285 = scmp.lt.s32.totalorder %s284, 1
      %s286 = scalar_select %p285, %s284, 1
      %p287 = scmp.lt.s32.totalorder %s22, 0
      %s288 = scalar_select %p287, %s22, 0
      %s289 = sadd.s32 %s288, %s286
      %s290 = smul.addr %s289, 8
      %s291 = scalar_lea.vmem %s3, %s290
      %s292 = smul.u32 2, %s21
      %s293 = sadd.s32 %s20, %s21
      %s294 = smul.u32 2, %s293
      %p295 = scmp.lt.s32.totalorder %s294, 3
      %s296 = scalar_select %p295, %s294, 3
      %p297 = scmp.lt.s32.totalorder %s22, 0
      %s298 = scalar_select %p297, %s22, 0
      %s299 = sadd.s32 %s298, %s296
      %s300 = smul.addr %s299, 8
      %s301 = scalar_lea.vmem %s4, %s300
      %s302 = sadd.s32 %s20, %s21
      %s303 = smul.u32 2, %s302
      %v305 = vld [vmem:[%s274] sm:$0xff]
      %v306 = vld [vmem:[%s274 + $0x8] sm:$0xff]
      %v307 = vpack.c.bf16 %v306, %v305
      %v308 = vld [vmem:[%s280] sm:$0xf]
      %v309 = vld [vmem:[%s280 + $0x4] sm:$0xf]
      %v310 = vld [vmem:[%s280 + $0x8] sm:$0xf]
      %v311 = vld [vmem:[%s283] sm:$0x1]
      %v313 = vlaneseq
      %v314 = vshrl.u32 %v313, 7
      %v315 = vsub.s32 0, %v314
      %v316 = vrot.slane %v311, %v315
      %v321 = vunpack.c.l.b16 %v308
      %v322 = vunpack.c.l.b16 %v309
      %v323 = vunpack.c.l.b16 %v310
      %v324 = vpack.c.b16 %v322, %v321
      %v325 = vpack.c.b16 %v323, %v323
      %vm327 = vcmask 195584
      %v329 = vsel %vm327, %v307, 0
      %vm331 = vcmask 1043456
      %v333 = vsel %vm331, %v325, 0
      %335 = vmatprep.subr.bf16.mxu0 0
      %336 = vmatpush1.bf16.msra.mxu0 %v324
      %337 = vmatprep.subr.bf16.mxu0 0
      %338 = vmatpush1.bf16.msra.mxu0 %v333
      %339 = vmatprep.subr.bf16.mxu0 0
      %340 = vmatpush1.bf16.msra.mxu0 0
      %341 = vmatprep.subr.bf16.mxu0 0
      %342 = vmatpush1.bf16.msra.mxu0 0
      %343 = vmatprep.subr.bf16.mxu0 0
      %344 = vmatpush1.bf16.msra.mxu0 0
      %345 = vmatprep.subr.bf16.mxu0 0
      %346 = vmatpush1.bf16.msra.mxu0 0
      %347 = vmatprep.subr.bf16.mxu0 0
      %348 = vmatpush1.bf16.msra.mxu0 0
      %349 = vmatprep.subr.bf16.mxu0 0
      %350 = vmatpush1.bf16.msra.mxu0 0
      %351 = vmatprep.subr.bf16.mxu0 0
      %352 = vmatpush1.bf16.msra.mxu0 0
      %353 = vmatprep.subr.bf16.mxu0 0
      %354 = vmatpush1.bf16.msra.mxu0 0
      %355 = vmatprep.subr.bf16.mxu0 0
      %356 = vmatpush1.bf16.msra.mxu0 0
      %357 = vmatprep.subr.bf16.mxu0 0
      %358 = vmatpush1.bf16.msra.mxu0 0
      %359 = vmatprep.subr.bf16.mxu0 0
      %360 = vmatpush1.bf16.msra.mxu0 0
      %361 = vmatprep.subr.bf16.mxu0 0
      %362 = vmatpush1.bf16.msra.mxu0 0
      %363 = vmatprep.subr.bf16.mxu0 0
      %364 = vmatpush1.bf16.msra.mxu0 0
      %365 = vmatprep.subr.bf16.mxu0 0
      %366 = vmatpush1.bf16.msra.mxu0 0
      %367 = vmatprep.mubr.bf16.mxu0 0
      %368 = vmatmul.mubr.bf16.gmra.mrb[0].mxu0 %v329
      %v369 = vpop.f32.mrb[0].mxu0
      %v370 = vadd.f32 %v316, %v369
      %v371 = vpop.f32.mrb[0].mxu0
      %v372 = vpop.f32.mrb[0].mxu0
      %v373 = vadd.f32 %v316, %v372
      %v374 = vpop.f32.mrb[0].mxu0
      %375 = vdwg.mxu0
      %v376 = vld [vmem:[%s291] sm:$0xff]
      %v377 = vld [vmem:[%s291 + $0x8] sm:$0xff]
      %v378 = vadd.f32 %v370, %v376
      %v379 = vadd.f32 %v373, %v377
      %vm380 = vcmask 261120
      %381 = vst.msk [vmem:[%s301] sm:$0xff] %vm380, %v378
      %382 = vst.msk [vmem:[%s301 + $0x8] sm:$0xff] %vm380, %v379
      %s383 = sadd.s32 %s20, %s21
      %s384 = smul.u32 2, %s383
      %p385 = scmp.lt.s32.totalorder %s384, 3
      %s386 = scalar_select %p385, %s384, 3
      %p387 = scmp.lt.s32.totalorder %s22, 0
      %s388 = scalar_select %p387, %s22, 0
      %s389 = sadd.s32 %s388, %s386
      %s390 = smul.addr %s389, 8
      %s391 = scalar_lea.vmem %s4, %s390
      // Predicated region
      $region37: #{_lambda_.18} parent=35 // pred_check
        %p392 = pneg %p164
      $region38: #{_lambda_.18} parent=35 // pred_check_branch
        %394 = sbr.rel (%p392) target = $region40
      $region39: #{_lambda_.18} parent=35 // pred_region
        %s395 = sadd.s32 %s20, %s21
        %s396 = smul.u32 2, %s395
      $region40: #{_lambda_.18} parent=35 // pred_fallthru
        _
    $region36: #{_lambda_.18} parent=5 // pred_fallthru
      _
    %p397 = scmp.le.s32.totalorder 2, %s10
    // Predicated region
    $region41: #{_lambda_.18} parent=5 // pred_check
      %p398 = pneg %p397
    $region42: #{_lambda_.18} parent=5 // pred_check_branch
      %400 = sbr.rel (%p398) target = $region44
    $region43: #{_lambda_.18} parent=5 // pred_region
      %s401 = ssub.s32 %s10, 2
      // Predicated region
      $region45: #{_lambda_.18} parent=43 // pred_check
        %p402 = pneg %p170
      $region46: #{_lambda_.18} parent=43 // pred_check_branch
        %404 = sbr.rel (%p402) target = $region48
      $region47: #{_lambda_.18} parent=43 // pred_region
        %s405 = sadd.s32 %s23, %s24
        %s406 = smul.u32 2, %s405
        %p407 = scmp.lt.s32.totalorder %s406, 3
        %s408 = scalar_select %p407, %s406, 3
        %p409 = scmp.lt.s32.totalorder %s25, 0
        %s410 = scalar_select %p409, %s25, 0
        %s411 = sadd.s32 %s410, %s408
        %s412 = smul.addr %s411, 8
        %s413 = scalar_lea.vmem %s4, %s412
      $region48: #{_lambda_.18} parent=43 // pred_fallthru
        _
    $region44: #{_lambda_.18} parent=5 // pred_fallthru
      _
  $region6: #{_lambda_.18} parent=0 // loop_footer
    %s14 = sadd.s32 1, %s10
  $region7: #{_lambda_.18} parent=0 // loop_footer_branch
    %9 = sbr.rel target = $region3
  $region8: #{_lambda_.18} parent=0 // loop_exit
    _

// kernel: _lambda_.21
$region0: #{_lambda_.21}
  #allocation0 [shape = 'u32[]', space=smem, size = 0x4, offset = 0x4, fixed_abs, tag = 'smem constant byte address 0x4 - core index']
  #allocation1 [shape = 'u32[144,128]{1,0:T(1,128)}', space=vmem, size = 0x12000, scoped, tag = 'internal scratch']
  %s0 = inlined_call_operand.vmem [shape: f32[32,32], index: 0, kind: input, shape index: {}]
  %s1 = inlined_call_operand.vmem [shape: f32[1,32], index: 1, kind: input, shape index: {}]
  %s2 = inlined_call_operand.vmem [shape: f32[1,32], index: 2, kind: input, shape index: {}]
  %s3 = inlined_call_operand.vmem [shape: bf16[32,128], index: 3, kind: input, shape index: {}]
  %s4 = inlined_call_operand.vmem [shape: f32[1,128], index: 4, kind: input, shape index: {}]
  %s5 = inlined_call_operand.vmem [shape: bf16[128,32], index: 5, kind: input, shape index: {}]
  %s6 = inlined_call_operand.vmem [shape: f32[1,32], index: 6, kind: input, shape index: {}]
  %s7 = inlined_call_operand.vmem [shape: f32[32,32], index: 7, kind: output, shape index: {}]
  %s8 = sld [smem:[#allocation0]]
  $region38: #{_lambda_.21} parent=0
    _
  %s10 = ssub.s32 1, %s8
  %s11 = scalar_select 0, %s10, %s8
  // Predicated region
  $region2: #{_lambda_.21} parent=0 // pred_check
    _
  $region3: #{_lambda_.21} parent=0 // pred_check_branch
    %13 = sbr.rel (0) target = $region5
  $region4: #{_lambda_.21} parent=0 // pred_region
    _
  $region5: #{_lambda_.21} parent=0 // pred_fallthru
    _
  // Predicated region
  $region6: #{_lambda_.21} parent=0 // pred_check
    _
  $region7: #{_lambda_.21} parent=0 // pred_check_branch
    %15 = sbr.rel (0) target = $region9
  $region8: #{_lambda_.21} parent=0 // pred_region
    _
  $region9: #{_lambda_.21} parent=0 // pred_fallthru
    _
  // Predicated region
  $region10: #{_lambda_.21} parent=0 // pred_check
    _
  $region11: #{_lambda_.21} parent=0 // pred_check_branch
    %17 = sbr.rel (0) target = $region13
  $region12: #{_lambda_.21} parent=0 // pred_region
    _
  $region13: #{_lambda_.21} parent=0 // pred_fallthru
    _
  // Predicated region
  $region14: #{_lambda_.21} parent=0 // pred_check
    _
  $region15: #{_lambda_.21} parent=0 // pred_check_branch
    %19 = sbr.rel (0) target = $region17
  $region16: #{_lambda_.21} parent=0 // pred_region
    _
  $region17: #{_lambda_.21} parent=0 // pred_fallthru
    _
  // Predicated region
  $region18: #{_lambda_.21} parent=0 // pred_check
    _
  $region19: #{_lambda_.21} parent=0 // pred_check_branch
    %21 = sbr.rel (0) target = $region21
  $region20: #{_lambda_.21} parent=0 // pred_region
    _
  $region21: #{_lambda_.21} parent=0 // pred_fallthru
    _
  // Predicated region
  $region22: #{_lambda_.21} parent=0 // pred_check
    _
  $region23: #{_lambda_.21} parent=0 // pred_check_branch
    %23 = sbr.rel (0) target = $region25
  $region24: #{_lambda_.21} parent=0 // pred_region
    _
  $region25: #{_lambda_.21} parent=0 // pred_fallthru
    _
  // Predicated region
  $region26: #{_lambda_.21} parent=0 // pred_check
    _
  $region27: #{_lambda_.21} parent=0 // pred_check_branch
    %25 = sbr.rel (0) target = $region29
  $region28: #{_lambda_.21} parent=0 // pred_region
    _
  $region29: #{_lambda_.21} parent=0 // pred_fallthru
    _
  %v27 = vld [vmem:[%s0] sm:$0xff]
  %v28 = vld [vmem:[%s0 + $0x8] sm:$0xff]
  %v29 = vld [vmem:[%s0 + $0x10] sm:$0xff]
  %v30 = vld [vmem:[%s0 + $0x18] sm:$0xff]
  %vm31 = vcmask 261120
  %v32 = vsel %vm31, %v27, 0.0
  %33 = vadd.xlane.f32.xlu0 %v32
  %v34 = vpop.xlane.xlu0 %33
  %v35 = vsel %vm31, %v28, 0.0
  %36 = vadd.xlane.f32.xlu0 %v35
  %v37 = vpop.xlane.xlu0 %36
  %v38 = vsel %vm31, %v29, 0.0
  %39 = vadd.xlane.f32.xlu0 %v38
  %v40 = vpop.xlane.xlu0 %39
  %v41 = vsel %vm31, %v30, 0.0
  %42 = vadd.xlane.f32.xlu0 %v41
  %v43 = vpop.xlane.xlu0 %42
  %v44 = vrcp.pop 32.0
  %v45 = vmul.f32 %v34, %v44
  %v46 = vmul.f32 %v37, %v44
  %v47 = vmul.f32 %v40, %v44
  %v48 = vmul.f32 %v43, %v44
  %v49 = vsub.f32 %v27, %v45
  %v50 = vsub.f32 %v28, %v46
  %v51 = vsub.f32 %v29, %v47
  %v52 = vsub.f32 %v30, %v48
  %v53 = vmul.f32 %v49, %v49
  %v54 = vmul.f32 %v50, %v50
  %v55 = vmul.f32 %v51, %v51
  %v56 = vmul.f32 %v52, %v52
  %v57 = vsel %vm31, %v53, 0.0
  %58 = vadd.xlane.f32.xlu0 %v57
  %v59 = vpop.xlane.xlu0 %58
  %v60 = vsel %vm31, %v54, 0.0
  %61 = vadd.xlane.f32.xlu0 %v60
  %v62 = vpop.xlane.xlu0 %61
  %v63 = vsel %vm31, %v55, 0.0
  %64 = vadd.xlane.f32.xlu0 %v63
  %v65 = vpop.xlane.xlu0 %64
  %v66 = vsel %vm31, %v56, 0.0
  %67 = vadd.xlane.f32.xlu0 %v66
  %v68 = vpop.xlane.xlu0 %67
  %v69 = vmul.f32 %v59, %v44
  %v70 = vmul.f32 %v62, %v44
  %v71 = vmul.f32 %v65, %v44
  %v72 = vmul.f32 %v68, %v44
  %v73 = vadd.f32 %v69, 1e-05
  %v74 = vadd.f32 %v70, 1e-05
  %v75 = vadd.f32 %v71, 1e-05
  %v76 = vadd.f32 %v72, 1e-05
  %v77 = vrsqrt.pop %v73
  %v78 = vrsqrt.pop %v74
  %v79 = vrsqrt.pop %v75
  %v80 = vrsqrt.pop %v76
  %v81 = vmul.f32 %v49, %v77
  %v82 = vmul.f32 %v50, %v78
  %v83 = vmul.f32 %v51, %v79
  %v84 = vmul.f32 %v52, %v80
  %v85 = vld [vmem:[%s1] sm:$0x1]
  %v87 = vlaneseq
  %v88 = vshrl.u32 %v87, 7
  %v89 = vsub.s32 0, %v88
  %v90 = vrot.slane %v85, %v89
  %v92 = vmul.f32 %v81, %v90
  %v93 = vmul.f32 %v82, %v90
  %v94 = vmul.f32 %v83, %v90
  %v95 = vmul.f32 %v84, %v90
  %v96 = vld [vmem:[%s2] sm:$0x1]
  %v98 = vlaneseq
  %v99 = vshrl.u32 %v98, 7
  %v100 = vsub.s32 0, %v99
  %v101 = vrot.slane %v96, %v100
  %v103 = vadd.f32 %v92, %v101
  %v104 = vadd.f32 %v93, %v101
  %v105 = vadd.f32 %v94, %v101
  %v106 = vadd.f32 %v95, %v101
  %v107 = vpack.c.bf16 %v104, %v103
  %v108 = vpack.c.bf16 %v106, %v105
  %v109 = vld [vmem:[%s3] sm:$0xf]
  %v110 = vld [vmem:[%s3 + $0x4] sm:$0xf]
  %v111 = vld [vmem:[%s3 + $0x8] sm:$0xf]
  %v112 = vld [vmem:[%s3 + $0xc] sm:$0xf]
  %v113 = vld [vmem:[%s4] sm:$0x1]
  %v115 = vlaneseq
  %v116 = vshrl.u32 %v115, 7
  %v117 = vsub.s32 0, %v116
  %v118 = vrot.slane %v113, %v117
  %v124 = vunpack.c.l.b16 %v109
  %v125 = vunpack.c.l.b16 %v110
  %v126 = vunpack.c.l.b16 %v111
  %v127 = vunpack.c.l.b16 %v112
  %v128 = vpack.c.b16 %v125, %v124
  %v129 = vpack.c.b16 %v127, %v126
  %v133 = vsel %vm31, %v107, 0
  %v136 = vsel %vm31, %v108, 0
  %138 = vmatprep.subr.bf16.mxu0 0
  %139 = vmatpush1.bf16.msra.mxu0 %v128
  %140 = vmatprep.subr.bf16.mxu0 0
  %141 = vmatpush1.bf16.msra.mxu0 %v129
  %142 = vmatprep.subr.bf16.mxu0 0
  %143 = vmatpush1.bf16.msra.mxu0 0
  %144 = vmatprep.subr.bf16.mxu0 0
  %145 = vmatpush1.bf16.msra.mxu0 0
  %146 = vmatprep.subr.bf16.mxu0 0
  %147 = vmatpush1.bf16.msra.mxu0 0
  %148 = vmatprep.subr.bf16.mxu0 0
  %149 = vmatpush1.bf16.msra.mxu0 0
  %150 = vmatprep.subr.bf16.mxu0 0
  %151 = vmatpush1.bf16.msra.mxu0 0
  %152 = vmatprep.subr.bf16.mxu0 0
  %153 = vmatpush1.bf16.msra.mxu0 0
  %154 = vmatprep.subr.bf16.mxu0 0
  %155 = vmatpush1.bf16.msra.mxu0 0
  %156 = vmatprep.subr.bf16.mxu0 0
  %157 = vmatpush1.bf16.msra.mxu0 0
  %158 = vmatprep.subr.bf16.mxu0 0
  %159 = vmatpush1.bf16.msra.mxu0 0
  %160 = vmatprep.subr.bf16.mxu0 0
  %161 = vmatpush1.bf16.msra.mxu0 0
  %162 = vmatprep.subr.bf16.mxu0 0
  %163 = vmatpush1.bf16.msra.mxu0 0
  %164 = vmatprep.subr.bf16.mxu0 0
  %165 = vmatpush1.bf16.msra.mxu0 0
  %166 = vmatprep.subr.bf16.mxu0 0
  %167 = vmatpush1.bf16.msra.mxu0 0
  %168 = vmatprep.subr.bf16.mxu0 0
  %169 = vmatpush1.bf16.msra.mxu0 0
  %170 = vmatprep.mubr.bf16.mxu0 0
  %171 = vmatmul.mubr.bf16.gmra.mrb[0].mxu0 %v133
  %v172 = vpop.f32.mrb[0].mxu0
  %v173 = vadd.f32 %v118, %v172
  %v174 = vpop.f32.mrb[0].mxu0
  %v175 = vpop.f32.mrb[0].mxu0
  %v176 = vadd.f32 %v118, %v175
  %v177 = vpop.f32.mrb[0].mxu0
  %178 = vmatprep.mubr.bf16.mxu0 0
  %179 = vmatmul.mubr.bf16.gmra.mrb[0].mxu0 %v136
  %v180 = vpop.f32.mrb[0].mxu0
  %v181 = vadd.f32 %v118, %v180
  %v182 = vpop.f32.mrb[0].mxu0
  %v183 = vpop.f32.mrb[0].mxu0
  %v184 = vadd.f32 %v118, %v183
  %v185 = vpop.f32.mrb[0].mxu0
  %186 = vdwg.mxu0
  %v187 = vmul.f32 %v173, 1.702
  %v188 = vmul.f32 %v176, 1.702
  %v189 = vmul.f32 %v181, 1.702
  %v190 = vmul.f32 %v184, 1.702
  %v191 = vxor.u32 %v187, 2147483648
  %v192 = vxor.u32 %v188, 2147483648
  %v193 = vxor.u32 %v189, 2147483648
  %v194 = vxor.u32 %v190, 2147483648
  %v195 = vmul.f32 %v191, 1.442695
  %v196 = vpow.pop %v195
  %v197 = vmul.f32 %v192, 1.442695
  %v198 = vpow.pop %v197
  %v199 = vmul.f32 %v193, 1.442695
  %v200 = vpow.pop %v199
  %v201 = vmul.f32 %v194, 1.442695
  %v202 = vpow.pop %v201
  %v203 = vadd.f32 %v196, 1.0
  %v204 = vadd.f32 %v198, 1.0
  %v205 = vadd.f32 %v200, 1.0
  %v206 = vadd.f32 %v202, 1.0
  %v207 = vrcp.pop %v203
  %v208 = vmul.f32 1.0, %v207
  %v209 = vrcp.pop %v204
  %v210 = vmul.f32 1.0, %v209
  %v211 = vrcp.pop %v205
  %v212 = vmul.f32 1.0, %v211
  %v213 = vrcp.pop %v206
  %v214 = vmul.f32 1.0, %v213
  %v215 = vmul.f32 %v173, %v208
  %v216 = vmul.f32 %v176, %v210
  %v217 = vmul.f32 %v181, %v212
  %v218 = vmul.f32 %v184, %v214
  %v219 = vpack.c.bf16 %v216, %v215
  %v220 = vpack.c.bf16 %v218, %v217
  %v221 = vld [vmem:[%s5] sm:$0xf]
  %v222 = vld [vmem:[%s5 + $0x4] sm:$0xf]
  %v223 = vld [vmem:[%s5 + $0x8] sm:$0xf]
  %v224 = vld [vmem:[%s5 + $0xc] sm:$0xf]
  %v225 = vld [vmem:[%s5 + $0x10] sm:$0xf]
  %v226 = vld [vmem:[%s5 + $0x14] sm:$0xf]
  %v227 = vld [vmem:[%s5 + $0x18] sm:$0xf]
  %v228 = vld [vmem:[%s5 + $0x1c] sm:$0xf]
  %v229 = vld [vmem:[%s5 + $0x20] sm:$0xf]
  %v230 = vld [vmem:[%s5 + $0x24] sm:$0xf]
  %v231 = vld [vmem:[%s5 + $0x28] sm:$0xf]
  %v232 = vld [vmem:[%s5 + $0x2c] sm:$0xf]
  %v233 = vld [vmem:[%s5 + $0x30] sm:$0xf]
  %v234 = vld [vmem:[%s5 + $0x34] sm:$0xf]
  %v235 = vld [vmem:[%s5 + $0x38] sm:$0xf]
  %v236 = vld [vmem:[%s5 + $0x3c] sm:$0xf]
  %v237 = vld [vmem:[%s6] sm:$0x1]
  %v239 = vlaneseq
  %v240 = vshrl.u32 %v239, 7
  %v241 = vsub.s32 0, %v240
  %v242 = vrot.slane %v237, %v241
  %v260 = vunpack.c.l.b16 %v221
  %v261 = vunpack.c.l.b16 %v222
  %v262 = vunpack.c.l.b16 %v223
  %v263 = vunpack.c.l.b16 %v224
  %v264 = vunpack.c.l.b16 %v225
  %v265 = vunpack.c.l.b16 %v226
  %v266 = vunpack.c.l.b16 %v227
  %v267 = vunpack.c.l.b16 %v228
  %v268 = vunpack.c.l.b16 %v229
  %v269 = vunpack.c.l.b16 %v230
  %v270 = vunpack.c.l.b16 %v231
  %v271 = vunpack.c.l.b16 %v232
  %v272 = vunpack.c.l.b16 %v233
  %v273 = vunpack.c.l.b16 %v234
  %v274 = vunpack.c.l.b16 %v235
  %v275 = vunpack.c.l.b16 %v236
  %v276 = vpack.c.b16 %v261, %v260
  %v277 = vpack.c.b16 %v263, %v262
  %v278 = vpack.c.b16 %v265, %v264
  %v279 = vpack.c.b16 %v267, %v266
  %v280 = vpack.c.b16 %v269, %v268
  %v281 = vpack.c.b16 %v271, %v270
  %v282 = vpack.c.b16 %v273, %v272
  %v283 = vpack.c.b16 %v275, %v274
  %292 = vmatprep.subr.bf16.mxu0 0
  %293 = vmatpush1.bf16.msra.mxu0 %v276
  %294 = vmatprep.subr.bf16.mxu0 0
  %295 = vmatpush1.bf16.msra.mxu0 %v277
  %296 = vmatprep.subr.bf16.mxu0 0
  %297 = vmatpush1.bf16.msra.mxu0 %v278
  %298 = vmatprep.subr.bf16.mxu0 0
  %299 = vmatpush1.bf16.msra.mxu0 %v279
  %300 = vmatprep.subr.bf16.mxu0 0
  %301 = vmatpush1.bf16.msra.mxu0 %v280
  %302 = vmatprep.subr.bf16.mxu0 0
  %303 = vmatpush1.bf16.msra.mxu0 %v281
  %304 = vmatprep.subr.bf16.mxu0 0
  %305 = vmatpush1.bf16.msra.mxu0 %v282
  %306 = vmatprep.subr.bf16.mxu0 0
  %307 = vmatpush1.bf16.msra.mxu0 %v283
  %308 = vmatprep.subr.bf16.mxu0 0
  %309 = vmatpush1.bf16.msra.mxu0 0
  %310 = vmatprep.subr.bf16.mxu0 0
  %311 = vmatpush1.bf16.msra.mxu0 0
  %312 = vmatprep.subr.bf16.mxu0 0
  %313 = vmatpush1.bf16.msra.mxu0 0
  %314 = vmatprep.subr.bf16.mxu0 0
  %315 = vmatpush1.bf16.msra.mxu0 0
  %316 = vmatprep.subr.bf16.mxu0 0
  %317 = vmatpush1.bf16.msra.mxu0 0
  %318 = vmatprep.subr.bf16.mxu0 0
  %319 = vmatpush1.bf16.msra.mxu0 0
  %320 = vmatprep.subr.bf16.mxu0 0
  %321 = vmatpush1.bf16.msra.mxu0 0
  %322 = vmatprep.subr.bf16.mxu0 0
  %323 = vmatpush1.bf16.msra.mxu0 0
  %324 = vmatprep.mubr.bf16.mxu0 0
  %325 = vmatmul.mubr.bf16.gmra.mrb[0].mxu0 %v219
  %v326 = vpop.f32.mrb[0].mxu0
  %v327 = vadd.f32 %v242, %v326
  %v328 = vpop.f32.mrb[0].mxu0
  %v329 = vpop.f32.mrb[0].mxu0
  %v330 = vadd.f32 %v242, %v329
  %v331 = vpop.f32.mrb[0].mxu0
  %332 = vmatprep.mubr.bf16.mxu0 0
  %333 = vmatmul.mubr.bf16.gmra.mrb[0].mxu0 %v220
  %v334 = vpop.f32.mrb[0].mxu0
  %v335 = vadd.f32 %v242, %v334
  %v336 = vpop.f32.mrb[0].mxu0
  %v337 = vpop.f32.mrb[0].mxu0
  %v338 = vadd.f32 %v242, %v337
  %v339 = vpop.f32.mrb[0].mxu0
  %340 = vdwg.mxu0
  %v341 = vadd.f32 %v27, %v327
  %v342 = vadd.f32 %v28, %v330
  %v343 = vadd.f32 %v29, %v335
  %v344 = vadd.f32 %v30, %v338
  %345 = vst.msk [vmem:[%s7] sm:$0xff] %vm31, %v341
  %346 = vst.msk [vmem:[%s7 + $0x8] sm:$0xff] %vm31, %v342
  %347 = vst.msk [vmem:[%s7 + $0x10] sm:$0xff] %vm31, %v343
  %348 = vst.msk [vmem:[%s7 + $0x18] sm:$0xff] %vm31, %v344
  // Predicated region
  $region30: #{_lambda_.21} parent=0 // pred_check
    _
  $region31: #{_lambda_.21} parent=0 // pred_check_branch
    %350 = sbr.rel (0) target = $region33
  $region32: #{_lambda_.21} parent=0 // pred_region
    _
  $region33: #{_lambda_.21} parent=0 // pred_fallthru
    _
  // Predicated region
  $region34: #{_lambda_.21} parent=0 // pred_check
    _
  $region35: #{_lambda_.21} parent=0 // pred_check_branch
    %352 = sbr.rel (0) target = $region37
  $region36: #{_lambda_.21} parent=0 // pred_region
    _
  $region37: #{_lambda_.21} parent=0 // pred_fallthru
    _

// kernel: _lambda_.27
$region0: #{_lambda_.27}
  #allocation0 [shape = 'u32[]', space=smem, size = 0x4, offset = 0x4, fixed_abs, tag = 'smem constant byte address 0x4 - core index']
  #allocation1 [shape = 'u32[144,128]{1,0:T(1,128)}', space=vmem, size = 0x12000, scoped, tag = 'internal scratch']
  %s0 = inlined_call_operand.vmem [shape: f32[32,32], index: 0, kind: input, shape index: {}]
  %s1 = inlined_call_operand.vmem [shape: f32[32,32], index: 1, kind: input, shape index: {}]
  %s2 = inlined_call_operand.vmem [shape: bf16[32,32], index: 2, kind: input, shape index: {}]
  %s3 = inlined_call_operand.vmem [shape: bf16[32,32], index: 3, kind: input, shape index: {}]
  %s4 = inlined_call_operand.vmem [shape: f32[1,32], index: 4, kind: input, shape index: {}]
  %s5 = inlined_call_operand.vmem [shape: f32[32,32], index: 5, kind: output, shape index: {}]
  %s6 = sld [smem:[#allocation0]]
  $region30: #{_lambda_.27} parent=0
    _
  %s8 = ssub.s32 1, %s6
  %s9 = scalar_select 0, %s8, %s6
  // Predicated region
  $region2: #{_lambda_.27} parent=0 // pred_check
    _
  $region3: #{_lambda_.27} parent=0 // pred_check_branch
    %11 = sbr.rel (0) target = $region5
  $region4: #{_lambda_.27} parent=0 // pred_region
    _
  $region5: #{_lambda_.27} parent=0 // pred_fallthru
    _
  // Predicated region
  $region6: #{_lambda_.27} parent=0 // pred_check
    _
  $region7: #{_lambda_.27} parent=0 // pred_check_branch
    %13 = sbr.rel (0) target = $region9
  $region8: #{_lambda_.27} parent=0 // pred_region
    _
  $region9: #{_lambda_.27} parent=0 // pred_fallthru
    _
  // Predicated region
  $region10: #{_lambda_.27} parent=0 // pred_check
    _
  $region11: #{_lambda_.27} parent=0 // pred_check_branch
    %15 = sbr.rel (0) target = $region13
  $region12: #{_lambda_.27} parent=0 // pred_region
    _
  $region13: #{_lambda_.27} parent=0 // pred_fallthru
    _
  // Predicated region
  $region14: #{_lambda_.27} parent=0 // pred_check
    _
  $region15: #{_lambda_.27} parent=0 // pred_check_branch
    %17 = sbr.rel (0) target = $region17
  $region16: #{_lambda_.27} parent=0 // pred_region
    _
  $region17: #{_lambda_.27} parent=0 // pred_fallthru
    _
  // Predicated region
  $region18: #{_lambda_.27} parent=0 // pred_check
    _
  $region19: #{_lambda_.27} parent=0 // pred_check_branch
    %19 = sbr.rel (0) target = $region21
  $region20: #{_lambda_.27} parent=0 // pred_region
    _
  $region21: #{_lambda_.27} parent=0 // pred_fallthru
    _
  %v21 = vld [vmem:[%s0] sm:$0xff]
  %v22 = vld [vmem:[%s0 + $0x8] sm:$0xff]
  %v23 = vld [vmem:[%s0 + $0x10] sm:$0xff]
  %v24 = vld [vmem:[%s0 + $0x18] sm:$0xff]
  %v25 = vld [vmem:[%s1] sm:$0xff]
  %v26 = vld [vmem:[%s1 + $0x8] sm:$0xff]
  %v27 = vld [vmem:[%s1 + $0x10] sm:$0xff]
  %v28 = vld [vmem:[%s1 + $0x18] sm:$0xff]
  %v29 = vpack.c.bf16 %v22, %v21
  %v30 = vpack.c.bf16 %v24, %v23
  %v31 = vld [vmem:[%s2] sm:$0xf]
  %v32 = vld [vmem:[%s2 + $0x4] sm:$0xf]
  %v33 = vld [vmem:[%s2 + $0x8] sm:$0xf]
  %v34 = vld [vmem:[%s2 + $0xc] sm:$0xf]
  %v35 = vpack.c.bf16 %v26, %v25
  %v36 = vpack.c.bf16 %v28, %v27
  %v37 = vld [vmem:[%s3] sm:$0xf]
  %v38 = vld [vmem:[%s3 + $0x4] sm:$0xf]
  %v39 = vld [vmem:[%s3 + $0x8] sm:$0xf]
  %v40 = vld [vmem:[%s3 + $0xc] sm:$0xf]
  %v45 = vunpack.c.l.b16 %v37
  %v46 = vunpack.c.l.b16 %v38
  %v47 = vunpack.c.l.b16 %v39
  %v48 = vunpack.c.l.b16 %v40
  %v49 = vpack.c.b16 %v46, %v45
  %v50 = vpack.c.b16 %v48, %v47
  %vm53 = vcmask 261120
  %v55 = vsel %vm53, %v35, 0
  %v58 = vsel %vm53, %v36, 0
  %60 = vmatprep.subr.bf16.mxu0 0
  %61 = vmatpush1.bf16.msra.mxu0 %v49
  %62 = vmatprep.subr.bf16.mxu0 0
  %63 = vmatpush1.bf16.msra.mxu0 %v50
  %64 = vmatprep.subr.bf16.mxu0 0
  %65 = vmatpush1.bf16.msra.mxu0 0
  %66 = vmatprep.subr.bf16.mxu0 0
  %67 = vmatpush1.bf16.msra.mxu0 0
  %68 = vmatprep.subr.bf16.mxu0 0
  %69 = vmatpush1.bf16.msra.mxu0 0
  %70 = vmatprep.subr.bf16.mxu0 0
  %71 = vmatpush1.bf16.msra.mxu0 0
  %72 = vmatprep.subr.bf16.mxu0 0
  %73 = vmatpush1.bf16.msra.mxu0 0
  %74 = vmatprep.subr.bf16.mxu0 0
  %75 = vmatpush1.bf16.msra.mxu0 0
  %76 = vmatprep.subr.bf16.mxu0 0
  %77 = vmatpush1.bf16.msra.mxu0 0
  %78 = vmatprep.subr.bf16.mxu0 0
  %79 = vmatpush1.bf16.msra.mxu0 0
  %80 = vmatprep.subr.bf16.mxu0 0
  %81 = vmatpush1.bf16.msra.mxu0 0
  %82 = vmatprep.subr.bf16.mxu0 0
  %83 = vmatpush1.bf16.msra.mxu0 0
  %84 = vmatprep.subr.bf16.mxu0 0
  %85 = vmatpush1.bf16.msra.mxu0 0
  %86 = vmatprep.subr.bf16.mxu0 0
  %87 = vmatpush1.bf16.msra.mxu0 0
  %88 = vmatprep.subr.bf16.mxu0 0
  %89 = vmatpush1.bf16.msra.mxu0 0
  %90 = vmatprep.subr.bf16.mxu0 0
  %91 = vmatpush1.bf16.msra.mxu0 0
  %92 = vmatprep.mubr.bf16.mxu0 0
  %93 = vmatmul.mubr.bf16.gmra.mrb[0].mxu0 %v55
  %v94 = vpop.f32.mrb[0].mxu0
  %v95 = vadd.f32 0.0, %v94
  %v96 = vpop.f32.mrb[0].mxu0
  %v97 = vpop.f32.mrb[0].mxu0
  %v98 = vadd.f32 0.0, %v97
  %v99 = vpop.f32.mrb[0].mxu0
  %100 = vmatprep.mubr.bf16.mxu0 0
  %101 = vmatmul.mubr.bf16.gmra.mrb[0].mxu0 %v58
  %v102 = vpop.f32.mrb[0].mxu0
  %v103 = vadd.f32 0.0, %v102
  %v104 = vpop.f32.mrb[0].mxu0
  %v105 = vpop.f32.mrb[0].mxu0
  %v106 = vadd.f32 0.0, %v105
  %v107 = vpop.f32.mrb[0].mxu0
  %108 = vdwg.mxu0
  %v113 = vunpack.c.l.b16 %v31
  %v114 = vunpack.c.l.b16 %v32
  %v115 = vunpack.c.l.b16 %v33
  %v116 = vunpack.c.l.b16 %v34
  %v117 = vpack.c.b16 %v114, %v113
  %v118 = vpack.c.b16 %v116, %v115
  %v122 = vsel %vm53, %v29, 0
  %v125 = vsel %vm53, %v30, 0
  %127 = vmatprep.subr.bf16.mxu0 0
  %128 = vmatpush1.bf16.msra.mxu0 %v117
  %129 = vmatprep.subr.bf16.mxu0 0
  %130 = vmatpush1.bf16.msra.mxu0 %v118
  %131 = vmatprep.subr.bf16.mxu0 0
  %132 = vmatpush1.bf16.msra.mxu0 0
  %133 = vmatprep.subr.bf16.mxu0 0
  %134 = vmatpush1.bf16.msra.mxu0 0
  %135 = vmatprep.subr.bf16.mxu0 0
  %136 = vmatpush1.bf16.msra.mxu0 0
  %137 = vmatprep.subr.bf16.mxu0 0
  %138 = vmatpush1.bf16.msra.mxu0 0
  %139 = vmatprep.subr.bf16.mxu0 0
  %140 = vmatpush1.bf16.msra.mxu0 0
  %141 = vmatprep.subr.bf16.mxu0 0
  %142 = vmatpush1.bf16.msra.mxu0 0
  %143 = vmatprep.subr.bf16.mxu0 0
  %144 = vmatpush1.bf16.msra.mxu0 0
  %145 = vmatprep.subr.bf16.mxu0 0
  %146 = vmatpush1.bf16.msra.mxu0 0
  %147 = vmatprep.subr.bf16.mxu0 0
  %148 = vmatpush1.bf16.msra.mxu0 0
  %149 = vmatprep.subr.bf16.mxu0 0
  %150 = vmatpush1.bf16.msra.mxu0 0
  %151 = vmatprep.subr.bf16.mxu0 0
  %152 = vmatpush1.bf16.msra.mxu0 0
  %153 = vmatprep.subr.bf16.mxu0 0
  %154 = vmatpush1.bf16.msra.mxu0 0
  %155 = vmatprep.subr.bf16.mxu0 0
  %156 = vmatpush1.bf16.msra.mxu0 0
  %157 = vmatprep.subr.bf16.mxu0 0
  %158 = vmatpush1.bf16.msra.mxu0 0
  %159 = vmatprep.mubr.bf16.mxu0 0
  %160 = vmatmul.mubr.bf16.gmra.mrb[0].mxu0 %v122
  %v161 = vpop.f32.mrb[0].mxu0
  %v162 = vadd.f32 %v95, %v161
  %v163 = vpop.f32.mrb[0].mxu0
  %v164 = vpop.f32.mrb[0].mxu0
  %v165 = vadd.f32 %v98, %v164
  %v166 = vpop.f32.mrb[0].mxu0
  %167 = vmatprep.mubr.bf16.mxu0 0
  %168 = vmatmul.mubr.bf16.gmra.mrb[0].mxu0 %v125
  %v169 = vpop.f32.mrb[0].mxu0
  %v170 = vadd.f32 %v103, %v169
  %v171 = vpop.f32.mrb[0].mxu0
  %v172 = vpop.f32.mrb[0].mxu0
  %v173 = vadd.f32 %v106, %v172
  %v174 = vpop.f32.mrb[0].mxu0
  %175 = vdwg.mxu0
  %v176 = vld [vmem:[%s4] sm:$0x1]
  %v178 = vlaneseq
  %v179 = vshrl.u32 %v178, 7
  %v180 = vsub.s32 0, %v179
  %v181 = vrot.slane %v176, %v180
  %v183 = vadd.f32 %v162, %v181
  %v184 = vadd.f32 %v165, %v181
  %v185 = vadd.f32 %v170, %v181
  %v186 = vadd.f32 %v173, %v181
  %v187 = vxor.u32 %v183, 2147483648
  %v188 = vxor.u32 %v184, 2147483648
  %v189 = vxor.u32 %v185, 2147483648
  %v190 = vxor.u32 %v186, 2147483648
  %v191 = vmul.f32 %v187, 1.442695
  %v192 = vpow.pop %v191
  %v193 = vmul.f32 %v188, 1.442695
  %v194 = vpow.pop %v193
  %v195 = vmul.f32 %v189, 1.442695
  %v196 = vpow.pop %v195
  %v197 = vmul.f32 %v190, 1.442695
  %v198 = vpow.pop %v197
  %v199 = vadd.f32 %v192, 1.0
  %v200 = vadd.f32 %v194, 1.0
  %v201 = vadd.f32 %v196, 1.0
  %v202 = vadd.f32 %v198, 1.0
  %v203 = vrcp.pop %v199
  %v204 = vmul.f32 1.0, %v203
  %v205 = vrcp.pop %v200
  %v206 = vmul.f32 1.0, %v205
  %v207 = vrcp.pop %v201
  %v208 = vmul.f32 1.0, %v207
  %v209 = vrcp.pop %v202
  %v210 = vmul.f32 1.0, %v209
  %v211 = vmul.f32 %v204, %v21
  %v212 = vmul.f32 %v206, %v22
  %v213 = vmul.f32 %v208, %v23
  %v214 = vmul.f32 %v210, %v24
  %v215 = vsub.f32 1.0, %v204
  %v216 = vsub.f32 1.0, %v206
  %v217 = vsub.f32 1.0, %v208
  %v218 = vsub.f32 1.0, %v210
  %v219 = vmul.f32 %v215, %v25
  %v220 = vmul.f32 %v216, %v26
  %v221 = vmul.f32 %v217, %v27
  %v222 = vmul.f32 %v218, %v28
  %v223 = vadd.f32 %v211, %v219
  %v224 = vadd.f32 %v212, %v220
  %v225 = vadd.f32 %v213, %v221
  %v226 = vadd.f32 %v214, %v222
  %227 = vst.msk [vmem:[%s5] sm:$0xff] %vm53, %v223
  %228 = vst.msk [vmem:[%s5 + $0x8] sm:$0xff] %vm53, %v224
  %229 = vst.msk [vmem:[%s5 + $0x10] sm:$0xff] %vm53, %v225
  %230 = vst.msk [vmem:[%s5 + $0x18] sm:$0xff] %vm53, %v226
  // Predicated region
  $region22: #{_lambda_.27} parent=0 // pred_check
    _
  $region23: #{_lambda_.27} parent=0 // pred_check_branch
    %232 = sbr.rel (0) target = $region25
  $region24: #{_lambda_.27} parent=0 // pred_region
    _
  $region25: #{_lambda_.27} parent=0 // pred_fallthru
    _
  // Predicated region
  $region26: #{_lambda_.27} parent=0 // pred_check
    _
  $region27: #{_lambda_.27} parent=0 // pred_check_branch
    %234 = sbr.rel (0) target = $region29
  $region28: #{_lambda_.27} parent=0 // pred_region
    _
  $region29: #{_lambda_.27} parent=0 // pred_fallthru
    _

// kernel: _lambda_.25
$region0: #{_lambda_.25}
  #allocation0 [shape = 'u32[]', space=smem, size = 0x4, offset = 0x4, fixed_abs, tag = 'smem constant byte address 0x4 - core index']
  #allocation1 [shape = 'u32[144,128]{1,0:T(1,128)}', space=vmem, size = 0x12000, scoped, tag = 'internal scratch']
  %s0 = inlined_call_operand.vmem [shape: f32[2,16,32], index: 0, kind: input, shape index: {}]
  %s1 = inlined_call_operand.vmem [shape: f32[16,16], index: 1, kind: input, shape index: {}]
  %s2 = inlined_call_operand.vmem [shape: bf16[32,16], index: 2, kind: input, shape index: {}]
  %s3 = inlined_call_operand.vmem [shape: bf16[32,16], index: 3, kind: input, shape index: {}]
  %s4 = inlined_call_operand.vmem [shape: bf16[16,16], index: 4, kind: input, shape index: {}]
  %s5 = inlined_call_operand.vmem [shape: bf16[32,16], index: 5, kind: input, shape index: {}]
  %s6 = inlined_call_operand.vmem [shape: bf16[32,16], index: 6, kind: input, shape index: {}]
  %s7 = inlined_call_operand.vmem [shape: bf16[16,16], index: 7, kind: input, shape index: {}]
  %s8 = inlined_call_operand.vmem [shape: bf16[16,32], index: 8, kind: input, shape index: {}]
  %s9 = inlined_call_operand.vmem [shape: bf16[16,32], index: 9, kind: input, shape index: {}]
  %s10 = inlined_call_operand.vmem [shape: f32[1,32], index: 10, kind: input, shape index: {}]
  %s11 = inlined_call_operand.vmem [shape: f32[2,16,32], index: 11, kind: output, shape index: {}]
  %s12 = sld [smem:[#allocation0]]
  $region77: #{_lambda_.25} parent=0
    _
  %s14 = ssub.s32 1, %s12
  %s15 = scalar_select 0, %s14, %s12
  loop: start=0, step=1, limit=4
  $region2: #{_lambda_.25} parent=0 // loop_pre_header
    _
  $region3: #{_lambda_.25} parent=0 // loop_header
    %s17 = sphi 0, %s21
    %p18 = scmp.ge.s32.totalorder %s17, 4
    %s27 = sphi 0, %s29
    %s30 = sphi 0, %s27
    %s31 = sphi 0, %s30
    %s47 = sphi 0, %s31
    %s51 = sphi 0, %s51
    %s53 = sphi 0, %s51
    %s54 = sphi 0, %s53
    %s68 = sphi 0, %s54
    %s72 = sphi 0, %s72
    %s74 = sphi 0, %s72
    %s75 = sphi 0, %s74
    %s89 = sphi 0, %s75
    %s93 = sphi 0, %s93
    %s95 = sphi 0, %s93
    %s96 = sphi 0, %s95
    %s110 = sphi 0, %s96
    %s114 = sphi 0, %s114
    %s116 = sphi 0, %s114
    %s117 = sphi 0, %s116
    %s131 = sphi 0, %s117
    %s135 = sphi 0, %s135
    %s137 = sphi 0, %s135
    %s138 = sphi 0, %s137
    %s152 = sphi 0, %s138
    %s156 = sphi 0, %s156
    %s158 = sphi 0, %s156
    %s159 = sphi 0, %s158
    %s173 = sphi 0, %s159
    %s177 = sphi 0, %s177
    %s179 = sphi 0, %s177
    %s180 = sphi 0, %s179
    %s194 = sphi 0, %s180
    %s198 = sphi 0, %s198
    %s200 = sphi 0, %s198
    %s201 = sphi 0, %s200
    %s215 = sphi 0, %s201
    %s219 = sphi 0, %s219
    %s221 = sphi 0, %s219
    %s222 = sphi 0, %s221
    %s236 = sphi 0, %s222
    %s240 = sphi 0, %s240
    %s242 = sphi 0, %s240
    %s243 = sphi 0, %s242
    %s257 = sphi 0, %s243
    %s263 = sphi 0, %s265
    %s266 = sphi 0, %s263
    %s267 = sphi 0, %s266
    %s283 = sphi 0, %s267
  $region4: #{_lambda_.25} parent=0 // loop_header_branch
    %20 = sbr.rel (%p18) target = $region8
  $region5: #{_lambda_.25} parent=0 // loop_body
    %s22 = ssub.s32 %s17, 1
    %s23 = ssub.s32 %s17, 2
    %s24 = sadd.s32 %s17, 1
    %s25 = ssub.s32 %s17, %s24
    %p26 = scmp.eq.s32.totalorder %s25, 0
    %s28 = sadd.s32 %s27, 1
    %s29 = scalar_select %p26, %s27, %s28
    %p32 = pneg %p26
    %p33 = scmp.eq.s32.totalorder %s17, 1
    %p34 = por %p32, %p33
    %p35 = scmp.ne.s32.totalorder %s27, %s30
    %p36 = scmp.eq.s32.totalorder %s17, 0
    %p37 = por %p35, %p36
    %p38 = scmp.ne.s32.totalorder %s27, %s30
    %p39 = scmp.eq.s32.totalorder %s22, 1
    %p40 = por %p38, %p39
    %p41 = scmp.ne.s32.totalorder %s30, %s31
    %p42 = scmp.eq.s32.totalorder %s22, 0
    %p43 = por %p41, %p42
    %p44 = scmp.ne.s32.totalorder %s30, %s31
    %p45 = scmp.eq.s32.totalorder %s23, 1
    %p46 = por %p44, %p45
    %p48 = scmp.ne.s32.totalorder %s31, %s47
    %p49 = scmp.eq.s32.totalorder %s23, 0
    %p50 = por %p48, %p49
    %s52 = sadd.s32 %s51, 1
    %p55 = scmp.eq.s32.totalorder %s17, 1
    %p56 = scmp.ne.s32.totalorder %s51, %s53
    %p57 = scmp.eq.s32.totalorder %s17, 0
    %p58 = por %p56, %p57
    %p59 = scmp.ne.s32.totalorder %s51, %s53
    %p60 = scmp.eq.s32.totalorder %s22, 1
    %p61 = por %p59, %p60
    %p62 = scmp.ne.s32.totalorder %s53, %s54
    %p63 = scmp.eq.s32.totalorder %s22, 0
    %p64 = por %p62, %p63
    %p65 = scmp.ne.s32.totalorder %s53, %s54
    %p66 = scmp.eq.s32.totalorder %s23, 1
    %p67 = por %p65, %p66
    %p69 = scmp.ne.s32.totalorder %s54, %s68
    %p70 = scmp.eq.s32.totalorder %s23, 0
    %p71 = por %p69, %p70
    %s73 = sadd.s32 %s72, 1
    %p76 = scmp.eq.s32.totalorder %s17, 1
    %p77 = scmp.ne.s32.totalorder %s72, %s74
    %p78 = scmp.eq.s32.totalorder %s17, 0
    %p79 = por %p77, %p78
    %p80 = scmp.ne.s32.totalorder %s72, %s74
    %p81 = scmp.eq.s32.totalorder %s22, 1
    %p82 = por %p80, %p81
    %p83 = scmp.ne.s32.totalorder %s74, %s75
    %p84 = scmp.eq.s32.totalorder %s22, 0
    %p85 = por %p83, %p84
    %p86 = scmp.ne.s32.totalorder %s74, %s75
    %p87 = scmp.eq.s32.totalorder %s23, 1
    %p88 = por %p86, %p87
    %p90 = scmp.ne.s32.totalorder %s75, %s89
    %p91 = scmp.eq.s32.totalorder %s23, 0
    %p92 = por %p90, %p91
    %s94 = sadd.s32 %s93, 1
    %p97 = scmp.eq.s32.totalorder %s17, 1
    %p98 = scmp.ne.s32.totalorder %s93, %s95
    %p99 = scmp.eq.s32.totalorder %s17, 0
    %p100 = por %p98, %p99
    %p101 = scmp.ne.s32.totalorder %s93, %s95
    %p102 = scmp.eq.s32.totalorder %s22, 1
    %p103 = por %p101, %p102
    %p104 = scmp.ne.s32.totalorder %s95, %s96
    %p105 = scmp.eq.s32.totalorder %s22, 0
    %p106 = por %p104, %p105
    %p107 = scmp.ne.s32.totalorder %s95, %s96
    %p108 = scmp.eq.s32.totalorder %s23, 1
    %p109 = por %p107, %p108
    %p111 = scmp.ne.s32.totalorder %s96, %s110
    %p112 = scmp.eq.s32.totalorder %s23, 0
    %p113 = por %p111, %p112
    %s115 = sadd.s32 %s114, 1
    %p118 = scmp.eq.s32.totalorder %s17, 1
    %p119 = scmp.ne.s32.totalorder %s114, %s116
    %p120 = scmp.eq.s32.totalorder %s17, 0
    %p121 = por %p119, %p120
    %p122 = scmp.ne.s32.totalorder %s114, %s116
    %p123 = scmp.eq.s32.totalorder %s22, 1
    %p124 = por %p122, %p123
    %p125 = scmp.ne.s32.totalorder %s116, %s117
    %p126 = scmp.eq.s32.totalorder %s22, 0
    %p127 = por %p125, %p126
    %p128 = scmp.ne.s32.totalorder %s116, %s117
    %p129 = scmp.eq.s32.totalorder %s23, 1
    %p130 = por %p128, %p129
    %p132 = scmp.ne.s32.totalorder %s117, %s131
    %p133 = scmp.eq.s32.totalorder %s23, 0
    %p134 = por %p132, %p133
    %s136 = sadd.s32 %s135, 1
    %p139 = scmp.eq.s32.totalorder %s17, 1
    %p140 = scmp.ne.s32.totalorder %s135, %s137
    %p141 = scmp.eq.s32.totalorder %s17, 0
    %p142 = por %p140, %p141
    %p143 = scmp.ne.s32.totalorder %s135, %s137
    %p144 = scmp.eq.s32.totalorder %s22, 1
    %p145 = por %p143, %p144
    %p146 = scmp.ne.s32.totalorder %s137, %s138
    %p147 = scmp.eq.s32.totalorder %s22, 0
    %p148 = por %p146, %p147
    %p149 = scmp.ne.s32.totalorder %s137, %s138
    %p150 = scmp.eq.s32.totalorder %s23, 1
    %p151 = por %p149, %p150
    %p153 = scmp.ne.s32.totalorder %s138, %s152
    %p154 = scmp.eq.s32.totalorder %s23, 0
    %p155 = por %p153, %p154
    %s157 = sadd.s32 %s156, 1
    %p160 = scmp.eq.s32.totalorder %s17, 1
    %p161 = scmp.ne.s32.totalorder %s156, %s158
    %p162 = scmp.eq.s32.totalorder %s17, 0
    %p163 = por %p161, %p162
    %p164 = scmp.ne.s32.totalorder %s156, %s158
    %p165 = scmp.eq.s32.totalorder %s22, 1
    %p166 = por %p164, %p165
    %p167 = scmp.ne.s32.totalorder %s158, %s159
    %p168 = scmp.eq.s32.totalorder %s22, 0
    %p169 = por %p167, %p168
    %p170 = scmp.ne.s32.totalorder %s158, %s159
    %p171 = scmp.eq.s32.totalorder %s23, 1
    %p172 = por %p170, %p171
    %p174 = scmp.ne.s32.totalorder %s159, %s173
    %p175 = scmp.eq.s32.totalorder %s23, 0
    %p176 = por %p174, %p175
    %s178 = sadd.s32 %s177, 1
    %p181 = scmp.eq.s32.totalorder %s17, 1
    %p182 = scmp.ne.s32.totalorder %s177, %s179
    %p183 = scmp.eq.s32.totalorder %s17, 0
    %p184 = por %p182, %p183
    %p185 = scmp.ne.s32.totalorder %s177, %s179
    %p186 = scmp.eq.s32.totalorder %s22, 1
    %p187 = por %p185, %p186
    %p188 = scmp.ne.s32.totalorder %s179, %s180
    %p189 = scmp.eq.s32.totalorder %s22, 0
    %p190 = por %p188, %p189
    %p191 = scmp.ne.s32.totalorder %s179, %s180
    %p192 = scmp.eq.s32.totalorder %s23, 1
    %p193 = por %p191, %p192
    %p195 = scmp.ne.s32.totalorder %s180, %s194
    %p196 = scmp.eq.s32.totalorder %s23, 0
    %p197 = por %p195, %p196
    %s199 = sadd.s32 %s198, 1
    %p202 = scmp.eq.s32.totalorder %s17, 1
    %p203 = scmp.ne.s32.totalorder %s198, %s200
    %p204 = scmp.eq.s32.totalorder %s17, 0
    %p205 = por %p203, %p204
    %p206 = scmp.ne.s32.totalorder %s198, %s200
    %p207 = scmp.eq.s32.totalorder %s22, 1
    %p208 = por %p206, %p207
    %p209 = scmp.ne.s32.totalorder %s200, %s201
    %p210 = scmp.eq.s32.totalorder %s22, 0
    %p211 = por %p209, %p210
    %p212 = scmp.ne.s32.totalorder %s200, %s201
    %p213 = scmp.eq.s32.totalorder %s23, 1
    %p214 = por %p212, %p213
    %p216 = scmp.ne.s32.totalorder %s201, %s215
    %p217 = scmp.eq.s32.totalorder %s23, 0
    %p218 = por %p216, %p217
    %s220 = sadd.s32 %s219, 1
    %p223 = scmp.eq.s32.totalorder %s17, 1
    %p224 = scmp.ne.s32.totalorder %s219, %s221
    %p225 = scmp.eq.s32.totalorder %s17, 0
    %p226 = por %p224, %p225
    %p227 = scmp.ne.s32.totalorder %s219, %s221
    %p228 = scmp.eq.s32.totalorder %s22, 1
    %p229 = por %p227, %p228
    %p230 = scmp.ne.s32.totalorder %s221, %s222
    %p231 = scmp.eq.s32.totalorder %s22, 0
    %p232 = por %p230, %p231
    %p233 = scmp.ne.s32.totalorder %s221, %s222
    %p234 = scmp.eq.s32.totalorder %s23, 1
    %p235 = por %p233, %p234
    %p237 = scmp.ne.s32.totalorder %s222, %s236
    %p238 = scmp.eq.s32.totalorder %s23, 0
    %p239 = por %p237, %p238
    %s241 = sadd.s32 %s240, 1
    %p244 = scmp.eq.s32.totalorder %s17, 1
    %p245 = scmp.ne.s32.totalorder %s240, %s242
    %p246 = scmp.eq.s32.totalorder %s17, 0
    %p247 = por %p245, %p246
    %p248 = scmp.ne.s32.totalorder %s240, %s242
    %p249 = scmp.eq.s32.totalorder %s22, 1
    %p250 = por %p248, %p249
    %p251 = scmp.ne.s32.totalorder %s242, %s243
    %p252 = scmp.eq.s32.totalorder %s22, 0
    %p253 = por %p251, %p252
    %p254 = scmp.ne.s32.totalorder %s242, %s243
    %p255 = scmp.eq.s32.totalorder %s23, 1
    %p256 = por %p254, %p255
    %p258 = scmp.ne.s32.totalorder %s243, %s257
    %p259 = scmp.eq.s32.totalorder %s23, 0
    %p260 = por %p258, %p259
    %s261 = ssub.s32 %s17, %s24
    %p262 = scmp.eq.s32.totalorder %s261, 0
    %s264 = sadd.s32 %s263, 1
    %s265 = scalar_select %p262, %s263, %s264
    %p268 = pneg %p262
    %p269 = scmp.eq.s32.totalorder %s17, 1
    %p270 = por %p268, %p269
    %p271 = scmp.ne.s32.totalorder %s263, %s266
    %p272 = scmp.eq.s32.totalorder %s17, 0
    %p273 = por %p271, %p272
    %p274 = scmp.ne.s32.totalorder %s263, %s266
    %p275 = scmp.eq.s32.totalorder %s22, 1
    %p276 = por %p274, %p275
    %p277 = scmp.ne.s32.totalorder %s266, %s267
    %p278 = scmp.eq.s32.totalorder %s22, 0
    %p279 = por %p277, %p278
    %p280 = scmp.ne.s32.totalorder %s266, %s267
    %p281 = scmp.eq.s32.totalorder %s23, 1
    %p282 = por %p280, %p281
    %p284 = scmp.ne.s32.totalorder %s267, %s283
    %p285 = scmp.eq.s32.totalorder %s23, 0
    %p286 = por %p284, %p285
    %p287 = scmp.le.s32.totalorder 1, %s17
    %p288 = scmp.lt.s32.totalorder %s17, 3
    %p289 = pnand %p287, %p288
    %p290 = pneg %p289
    // Predicated region
    $region9: #{_lambda_.25} parent=5 // pred_check
      _
    $region10: #{_lambda_.25} parent=5 // pred_check_branch
      %292 = sbr.rel (%p289) target = $region12
    $region11: #{_lambda_.25} parent=5 // pred_region
      %s293 = ssub.s32 %s17, 1
      // Predicated region
      $region13: #{_lambda_.25} parent=11 // pred_check
        %p294 = pneg %p64
      $region14: #{_lambda_.25} parent=11 // pred_check_branch
        %296 = sbr.rel (%p294) target = $region16
      $region15: #{_lambda_.25} parent=11 // pred_region
        _
      $region16: #{_lambda_.25} parent=11 // pred_fallthru
        _
      // Predicated region
      $region17: #{_lambda_.25} parent=11 // pred_check
        %p297 = pneg %p85
      $region18: #{_lambda_.25} parent=11 // pred_check_branch
        %299 = sbr.rel (%p297) target = $region20
      $region19: #{_lambda_.25} parent=11 // pred_region
        _
      $region20: #{_lambda_.25} parent=11 // pred_fallthru
        _
      // Predicated region
      $region21: #{_lambda_.25} parent=11 // pred_check
        %p300 = pneg %p106
      $region22: #{_lambda_.25} parent=11 // pred_check_branch
        %302 = sbr.rel (%p300) target = $region24
      $region23: #{_lambda_.25} parent=11 // pred_region
        _
      $region24: #{_lambda_.25} parent=11 // pred_fallthru
        _
      // Predicated region
      $region25: #{_lambda_.25} parent=11 // pred_check
        %p303 = pneg %p127
      $region26: #{_lambda_.25} parent=11 // pred_check_branch
        %305 = sbr.rel (%p303) target = $region28
      $region27: #{_lambda_.25} parent=11 // pred_region
        _
      $region28: #{_lambda_.25} parent=11 // pred_fallthru
        _
      // Predicated region
      $region29: #{_lambda_.25} parent=11 // pred_check
        %p306 = pneg %p148
      $region30: #{_lambda_.25} parent=11 // pred_check_branch
        %308 = sbr.rel (%p306) target = $region32
      $region31: #{_lambda_.25} parent=11 // pred_region
        _
      $region32: #{_lambda_.25} parent=11 // pred_fallthru
        _
      // Predicated region
      $region33: #{_lambda_.25} parent=11 // pred_check
        %p309 = pneg %p169
      $region34: #{_lambda_.25} parent=11 // pred_check_branch
        %311 = sbr.rel (%p309) target = $region36
      $region35: #{_lambda_.25} parent=11 // pred_region
        _
      $region36: #{_lambda_.25} parent=11 // pred_fallthru
        _
      // Predicated region
      $region37: #{_lambda_.25} parent=11 // pred_check
        %p312 = pneg %p190
      $region38: #{_lambda_.25} parent=11 // pred_check_branch
        %314 = sbr.rel (%p312) target = $region40
      $region39: #{_lambda_.25} parent=11 // pred_region
        _
      $region40: #{_lambda_.25} parent=11 // pred_fallthru
        _
      // Predicated region
      $region41: #{_lambda_.25} parent=11 // pred_check
        %p315 = pneg %p211
      $region42: #{_lambda_.25} parent=11 // pred_check_branch
        %317 = sbr.rel (%p315) target = $region44
      $region43: #{_lambda_.25} parent=11 // pred_region
        _
      $region44: #{_lambda_.25} parent=11 // pred_fallthru
        _
      // Predicated region
      $region45: #{_lambda_.25} parent=11 // pred_check
        %p318 = pneg %p232
      $region46: #{_lambda_.25} parent=11 // pred_check_branch
        %320 = sbr.rel (%p318) target = $region48
      $region47: #{_lambda_.25} parent=11 // pred_region
        _
      $region48: #{_lambda_.25} parent=11 // pred_fallthru
        _
      // Predicated region
      $region49: #{_lambda_.25} parent=11 // pred_check
        %p321 = pneg %p253
      $region50: #{_lambda_.25} parent=11 // pred_check_branch
        %323 = sbr.rel (%p321) target = $region52
      $region51: #{_lambda_.25} parent=11 // pred_region
        _
      $region52: #{_lambda_.25} parent=11 // pred_fallthru
        _
    $region12: #{_lambda_.25} parent=5 // pred_fallthru
      _
    %p324 = scmp.lt.s32.totalorder %s17, 2
    // Predicated region
    $region53: #{_lambda_.25} parent=5 // pred_check
      %p325 = pneg %p324
    $region54: #{_lambda_.25} parent=5 // pred_check_branch
      %327 = sbr.rel (%p325) target = $region56
    $region55: #{_lambda_.25} parent=5 // pred_region
      // Predicated region
      $region57: #{_lambda_.25} parent=55 // pred_check
        %p328 = pneg %p37
      $region58: #{_lambda_.25} parent=55 // pred_check_branch
        %330 = sbr.rel (%p328) target = $region60
      $region59: #{_lambda_.25} parent=55 // pred_region
        %p331 = scmp.lt.s32.totalorder %s17, 1
        %s332 = scalar_select %p331, %s17, 1
        %s333 = smul.addr %s332, 2
        %s334 = smul.addr %s333, 8
        %s335 = scalar_lea.vmem %s0, %s334
      $region60: #{_lambda_.25} parent=55 // pred_fallthru
        _
    $region56: #{_lambda_.25} parent=5 // pred_fallthru
      _
    %p336 = scmp.le.s32.totalorder 1, %s17
    %p337 = scmp.lt.s32.totalorder %s17, 3
    %p338 = pnand %p336, %p337
    %p339 = pneg %p338
    // Predicated region
    $region61: #{_lambda_.25} parent=5 // pred_check
      _
    $region62: #{_lambda_.25} parent=5 // pred_check_branch
      %341 = sbr.rel (%p338) target = $region64
    $region63: #{_lambda_.25} parent=5 // pred_region
      %s342 = ssub.s32 %s17, 1
      %p343 = scmp.lt.s32.totalorder %s22, 1
      %s344 = scalar_select %p343, %s22, 1
      %s345 = smul.addr %s344, 2
      %s346 = smul.addr %s345, 8
      %s347 = scalar_lea.vmem %s0, %s346
      %p348 = pneg %p43
      %p349 = pneg %p40
      %p350 = pneg %p64
      %p351 = pneg %p61
      %p352 = pneg %p85
      %p353 = pneg %p82
      %p354 = pneg %p106
      %p355 = pneg %p103
      %p356 = pneg %p127
      %p357 = pneg %p124
      %p358 = pneg %p148
      %p359 = pneg %p145
      %p360 = pneg %p169
      %p361 = pneg %p166
      %p362 = pneg %p190
      %p363 = pneg %p187
      %p364 = pneg %p211
      %p365 = pneg %p208
      %p366 = pneg %p232
      %p367 = pneg %p229
      %p368 = pneg %p253
      %p369 = pneg %p250
      %p370 = pneg %p279
      %p371 = pneg %p276
      %p372 = scmp.lt.s32.totalorder %s22, 1
      %s373 = scalar_select %p372, %s22, 1
      %s374 = smul.addr %s373, 2
      %s375 = smul.addr %s374, 8
      %s376 = scalar_lea.vmem %s11, %s375
      %p377 = scmp.lt.s32.totalorder %s22, 1
      %s378 = scalar_select %p377, %s22, 1
      %s379 = smul.addr %s378, 2
      %s380 = smul.addr %s379, 8
      %s381 = scalar_lea.vmem %s0, %s380
      %p382 = scmp.lt.s32.totalorder %s22, 1
      %s383 = scalar_select %p382, %s22, 1
      %s384 = smul.addr %s383, 2
      %s385 = smul.addr %s384, 8
      %s386 = scalar_lea.vmem %s11, %s385
      %v388 = vld [vmem:[%s381] sm:$0xff]
      %v389 = vld [vmem:[%s381 + $0x8] sm:$0xff]
      %v390 = vmul.f32 %v388, %v388
      %v391 = vmul.f32 %v389, %v389
      %vm392 = vcmask 261120
      %v393 = vsel %vm392, %v390, 0.0
      %394 = vadd.xlane.f32.xlu0 %v393
      %v395 = vpop.xlane.xlu0 %394
      %v396 = vsel %vm392, %v391, 0.0
      %397 = vadd.xlane.f32.xlu0 %v396
      %v398 = vpop.xlane.xlu0 %397
      %v399 = vadd.f32 %v395, 1e-30
      %v400 = vadd.f32 %v398, 1e-30
      %v401 = vrsqrt.pop %v399
      %v402 = vrsqrt.pop %v400
      %v403 = vmul.f32 %v388, %v401
      %v404 = vmul.f32 %v389, %v402
      %v406 = vsel %vm392, %v403, 0
      %v409 = vsel %vm392, %v404, 0
      %411 = vmatprep.subr.mxu0 0.0
      %412 = vmatpush1.xpose.msra.mxu0 %v406
      %413 = vmatprep.subr.mxu0 0.0
      %414 = vmatpush1.xpose.msra.mxu0 %v409
      %415 = vmatprep.subr.mxu0 0.0
      %416 = vmatpush1.xpose.msra.mxu0 0.0
      %417 = vmatprep.subr.mxu0 0.0
      %418 = vmatpush1.xpose.msra.mxu0 0.0
      %419 = vmatprep.subr.mxu0 0.0
      %420 = vmatpush1.xpose.msra.mxu0 0.0
      %421 = vmatprep.subr.mxu0 0.0
      %422 = vmatpush1.xpose.msra.mxu0 0.0
      %423 = vmatprep.subr.mxu0 0.0
      %424 = vmatpush1.xpose.msra.mxu0 0.0
      %425 = vmatprep.subr.mxu0 0.0
      %426 = vmatpush1.xpose.msra.mxu0 0.0
      %427 = vmatprep.subr.mxu0 0.0
      %428 = vmatpush1.xpose.msra.mxu0 0.0
      %429 = vmatprep.subr.mxu0 0.0
      %430 = vmatpush1.xpose.msra.mxu0 0.0
      %431 = vmatprep.subr.mxu0 0.0
      %432 = vmatpush1.xpose.msra.mxu0 0.0
      %433 = vmatprep.subr.mxu0 0.0
      %434 = vmatpush1.xpose.msra.mxu0 0.0
      %435 = vmatprep.subr.mxu0 0.0
      %436 = vmatpush1.xpose.msra.mxu0 0.0
      %437 = vmatprep.subr.mxu0 0.0
      %438 = vmatpush1.xpose.msra.mxu0 0.0
      %439 = vmatprep.subr.mxu0 0.0
      %440 = vmatpush1.xpose.msra.mxu0 0.0
      %441 = vmatprep.subr.mxu0 0.0
      %442 = vmatpush1.xpose.msra.mxu0 0.0
      %443 = vmatprep.subr.mxu0 0.0
      %444 = vmatpush1.xpose.msra.mxu0 0.0
      %445 = vmatprep.subr.mxu0 0.0
      %446 = vmatpush1.xpose.msra.mxu0 0.0
      %447 = vmatprep.subr.mxu0 0.0
      %448 = vmatpush1.xpose.msra.mxu0 0.0
      %449 = vmatprep.subr.mxu0 0.0
      %450 = vmatpush1.xpose.msra.mxu0 0.0
      %451 = vmatprep.subr.mxu0 0.0
      %452 = vmatpush1.xpose.msra.mxu0 0.0
      %453 = vmatprep.subr.mxu0 0.0
      %454 = vmatpush1.xpose.msra.mxu0 0.0
      %455 = vmatprep.subr.mxu0 0.0
      %456 = vmatpush1.xpose.msra.mxu0 0.0
      %457 = vmatprep.subr.mxu0 0.0
      %458 = vmatpush1.xpose.msra.mxu0 0.0
      %459 = vmatprep.subr.mxu0 0.0
      %460 = vmatpush1.xpose.msra.mxu0 0.0
      %461 = vmatprep.subr.mxu0 0.0
      %462 = vmatpush1.xpose.msra.mxu0 0.0
      %463 = vmatprep.subr.mxu0 0.0
      %464 = vmatpush1.xpose.msra.mxu0 0.0
      %465 = vmatprep.subr.mxu0 0.0
      %466 = vmatpush1.xpose.msra.mxu0 0.0
      %467 = vmatprep.subr.mxu0 0.0
      %468 = vmatpush1.xpose.msra.mxu0 0.0
      %469 = vmatprep.subr.mxu0 0.0
      %470 = vmatpush1.xpose.msra.mxu0 0.0
      %471 = vmatprep.subr.mxu0 0.0
      %472 = vmatpush1.xpose.msra.mxu0 0.0
      %473 = vmatprep.subr.mxu0 0.0
      %474 = vmatpush1.xpose.msra.mxu0 0.0
      %475 = vmatprep.mubr.f32.mxu0 0.0
      %476 = vmatmul.mubr.f32.gmra.mrb[0].mxu0 %v406
      %v477 = vpop.f32.mrb[0].mxu0
      %v478 = vadd.f32 0.0, %v477
      %v479 = vpop.f32.mrb[0].mxu0
      %480 = vmatprep.mubr.f32.mxu0 0.0
      %481 = vmatmul.mubr.f32.gmra.mrb[0].mxu0 %v409
      %v482 = vpop.f32.mrb[0].mxu0
      %v483 = vadd.f32 0.0, %v482
      %v484 = vpop.f32.mrb[0].mxu0
      %485 = vdwg.mxu0
      %vm486 = vcmp.gt.f32.partialorder %v478, 0.7
      %vm487 = vcmp.gt.f32.partialorder %v483, 0.7
      %v488 = vsel %vm486, %v478, 0.0
      %v489 = vsel %vm487, %v483, 0.0
      %vm490 = vcmask 130048
      %v491 = vsel %vm490, %v488, -inf
      %492 = vmax.xlane.f32.xlu0 %v491
      %v493 = vpop.xlane.xlu0 %492
      %v494 = vsel %vm490, %v489, -inf
      %495 = vmax.xlane.f32.xlu0 %v494
      %v496 = vpop.xlane.xlu0 %495
      %v497 = vsub.f32 %v488, %v493
      %v498 = vsub.f32 %v489, %v496
      %v499 = vmul.f32 %v497, 1.442695
      %v500 = vpow.pop %v499
      %v501 = vmul.f32 %v498, 1.442695
      %v502 = vpow.pop %v501
      %v503 = vsel %vm490, %v500, 0.0
      %504 = vadd.xlane.f32.xlu0 %v503
      %v505 = vpop.xlane.xlu0 %504
      %v506 = vsel %vm490, %v502, 0.0
      %507 = vadd.xlane.f32.xlu0 %v506
      %v508 = vpop.xlane.xlu0 %507
      %v509 = vrcp.pop %v505
      %v510 = vmul.f32 %v500, %v509
      %v511 = vrcp.pop %v508
      %v512 = vmul.f32 %v502, %v511
      %v513 = vpack.c.bf16 %v512, %v510
      %v514 = vld [vmem:[%s1] sm:$0xff]
      %v515 = vld [vmem:[%s1 + $0x8] sm:$0xff]
      %v516 = vpack.c.bf16 %v515, %v514
      %v517 = vpack.c.bf16 %v389, %v388
      %v518 = vld [vmem:[%s3] sm:$0xf]
      %v519 = vld [vmem:[%s3 + $0x4] sm:$0xf]
      %v520 = vld [vmem:[%s3 + $0x8] sm:$0xf]
      %v521 = vld [vmem:[%s3 + $0xc] sm:$0xf]
      %v526 = vunpack.c.l.b16 %v518
      %v527 = vunpack.c.l.b16 %v519
      %v528 = vunpack.c.l.b16 %v520
      %v529 = vunpack.c.l.b16 %v521
      %v530 = vpack.c.b16 %v527, %v526
      %v531 = vpack.c.b16 %v529, %v528
      %v535 = vsel %vm392, %v517, 0
      %537 = vmatprep.subr.bf16.mxu0 0
      %538 = vmatpush1.bf16.msra.mxu0 %v530
      %539 = vmatprep.subr.bf16.mxu0 0
      %540 = vmatpush1.bf16.msra.mxu0 %v531
      %541 = vmatprep.subr.bf16.mxu0 0
      %542 = vmatpush1.bf16.msra.mxu0 0
      %543 = vmatprep.subr.bf16.mxu0 0
      %544 = vmatpush1.bf16.msra.mxu0 0
      %545 = vmatprep.subr.bf16.mxu0 0
      %546 = vmatpush1.bf16.msra.mxu0 0
      %547 = vmatprep.subr.bf16.mxu0 0
      %548 = vmatpush1.bf16.msra.mxu0 0
      %549 = vmatprep.subr.bf16.mxu0 0
      %550 = vmatpush1.bf16.msra.mxu0 0
      %551 = vmatprep.subr.bf16.mxu0 0
      %552 = vmatpush1.bf16.msra.mxu0 0
      %553 = vmatprep.subr.bf16.mxu0 0
      %554 = vmatpush1.bf16.msra.mxu0 0
      %555 = vmatprep.subr.bf16.mxu0 0
      %556 = vmatpush1.bf16.msra.mxu0 0
      %557 = vmatprep.subr.bf16.mxu0 0
      %558 = vmatpush1.bf16.msra.mxu0 0
      %559 = vmatprep.subr.bf16.mxu0 0
      %560 = vmatpush1.bf16.msra.mxu0 0
      %561 = vmatprep.subr.bf16.mxu0 0
      %562 = vmatpush1.bf16.msra.mxu0 0
      %563 = vmatprep.subr.bf16.mxu0 0
      %564 = vmatpush1.bf16.msra.mxu0 0
      %565 = vmatprep.subr.bf16.mxu0 0
      %566 = vmatpush1.bf16.msra.mxu0 0
      %567 = vmatprep.subr.bf16.mxu0 0
      %568 = vmatpush1.bf16.msra.mxu0 0
      %569 = vmatprep.mubr.bf16.mxu0 0
      %570 = vmatmul.mubr.bf16.gmra.mrb[0].mxu0 %v535
      %v571 = vpop.f32.mrb[0].mxu0
      %v572 = vadd.f32 0.0, %v571
      %v573 = vpop.f32.mrb[0].mxu0
      %v574 = vpop.f32.mrb[0].mxu0
      %v575 = vadd.f32 0.0, %v574
      %v576 = vpop.f32.mrb[0].mxu0
      %577 = vdwg.mxu0
      %v578 = vld [vmem:[%s2] sm:$0xf]
      %v579 = vld [vmem:[%s2 + $0x4] sm:$0xf]
      %v580 = vld [vmem:[%s2 + $0x8] sm:$0xf]
      %v581 = vld [vmem:[%s2 + $0xc] sm:$0xf]
      %v586 = vunpack.c.l.b16 %v578
      %v587 = vunpack.c.l.b16 %v579
      %v588 = vunpack.c.l.b16 %v580
      %v589 = vunpack.c.l.b16 %v581
      %v590 = vpack.c.b16 %v587, %v586
      %v591 = vpack.c.b16 %v589, %v588
      %594 = vmatprep.subr.bf16.mxu0 0
      %595 = vmatpush1.bf16.msra.mxu0 %v590
      %596 = vmatprep.subr.bf16.mxu0 0
      %597 = vmatpush1.bf16.msra.mxu0 %v591
      %598 = vmatprep.subr.bf16.mxu0 0
      %599 = vmatpush1.bf16.msra.mxu0 0
      %600 = vmatprep.subr.bf16.mxu0 0
      %601 = vmatpush1.bf16.msra.mxu0 0
      %602 = vmatprep.subr.bf16.mxu0 0
      %603 = vmatpush1.bf16.msra.mxu0 0
      %604 = vmatprep.subr.bf16.mxu0 0
      %605 = vmatpush1.bf16.msra.mxu0 0
      %606 = vmatprep.subr.bf16.mxu0 0
      %607 = vmatpush1.bf16.msra.mxu0 0
      %608 = vmatprep.subr.bf16.mxu0 0
      %609 = vmatpush1.bf16.msra.mxu0 0
      %610 = vmatprep.subr.bf16.mxu0 0
      %611 = vmatpush1.bf16.msra.mxu0 0
      %612 = vmatprep.subr.bf16.mxu0 0
      %613 = vmatpush1.bf16.msra.mxu0 0
      %614 = vmatprep.subr.bf16.mxu0 0
      %615 = vmatpush1.bf16.msra.mxu0 0
      %616 = vmatprep.subr.bf16.mxu0 0
      %617 = vmatpush1.bf16.msra.mxu0 0
      %618 = vmatprep.subr.bf16.mxu0 0
      %619 = vmatpush1.bf16.msra.mxu0 0
      %620 = vmatprep.subr.bf16.mxu0 0
      %621 = vmatpush1.bf16.msra.mxu0 0
      %622 = vmatprep.subr.bf16.mxu0 0
      %623 = vmatpush1.bf16.msra.mxu0 0
      %624 = vmatprep.subr.bf16.mxu0 0
      %625 = vmatpush1.bf16.msra.mxu0 0
      %626 = vmatprep.mubr.bf16.mxu0 0
      %627 = vmatmul.mubr.bf16.gmra.mrb[0].mxu0 %v535
      %v628 = vpop.f32.mrb[0].mxu0
      %v629 = vadd.f32 0.0, %v628
      %v630 = vpop.f32.mrb[0].mxu0
      %v631 = vpop.f32.mrb[0].mxu0
      %v632 = vadd.f32 0.0, %v631
      %v633 = vpop.f32.mrb[0].mxu0
      %634 = vdwg.mxu0
      %v635 = vpack.c.bf16 %v632, %v629
      %v637 = vsel %vm490, %v513, 0
      %639 = vmatprep.subr.bf16.mxu0 0
      %640 = vmatpush1.bf16.msra.mxu0 %v635
      %641 = vmatprep.subr.bf16.mxu0 0
      %642 = vmatpush1.bf16.msra.mxu0 0
      %643 = vmatprep.subr.bf16.mxu0 0
      %644 = vmatpush1.bf16.msra.mxu0 0
      %645 = vmatprep.subr.bf16.mxu0 0
      %646 = vmatpush1.bf16.msra.mxu0 0
      %647 = vmatprep.subr.bf16.mxu0 0
      %648 = vmatpush1.bf16.msra.mxu0 0
      %649 = vmatprep.subr.bf16.mxu0 0
      %650 = vmatpush1.bf16.msra.mxu0 0
      %651 = vmatprep.subr.bf16.mxu0 0
      %652 = vmatpush1.bf16.msra.mxu0 0
      %653 = vmatprep.subr.bf16.mxu0 0
      %654 = vmatpush1.bf16.msra.mxu0 0
      %655 = vmatprep.subr.bf16.mxu0 0
      %656 = vmatpush1.bf16.msra.mxu0 0
      %657 = vmatprep.subr.bf16.mxu0 0
      %658 = vmatpush1.bf16.msra.mxu0 0
      %659 = vmatprep.subr.bf16.mxu0 0
      %660 = vmatpush1.bf16.msra.mxu0 0
      %661 = vmatprep.subr.bf16.mxu0 0
      %662 = vmatpush1.bf16.msra.mxu0 0
      %663 = vmatprep.subr.bf16.mxu0 0
      %664 = vmatpush1.bf16.msra.mxu0 0
      %665 = vmatprep.subr.bf16.mxu0 0
      %666 = vmatpush1.bf16.msra.mxu0 0
      %667 = vmatprep.subr.bf16.mxu0 0
      %668 = vmatpush1.bf16.msra.mxu0 0
      %669 = vmatprep.subr.bf16.mxu0 0
      %670 = vmatpush1.bf16.msra.mxu0 0
      %671 = vmatprep.mubr.bf16.mxu0 0
      %672 = vmatmul.mubr.bf16.gmra.mrb[0].mxu0 %v637
      %v673 = vpop.f32.mrb[0].mxu0
      %v674 = vadd.f32 %v572, %v673
      %v675 = vpop.f32.mrb[0].mxu0
      %v676 = vpop.f32.mrb[0].mxu0
      %v677 = vadd.f32 %v575, %v676
      %v678 = vpop.f32.mrb[0].mxu0
      %679 = vdwg.mxu0
      %v680 = vmul.f32 %v674, 1.702
      %v681 = vmul.f32 %v677, 1.702
      %v682 = vxor.u32 %v680, 2147483648
      %v683 = vxor.u32 %v681, 2147483648
      %v684 = vmul.f32 %v682, 1.442695
      %v685 = vpow.pop %v684
      %v686 = vmul.f32 %v683, 1.442695
      %v687 = vpow.pop %v686
      %v688 = vadd.f32 %v685, 1.0
      %v689 = vadd.f32 %v687, 1.0
      %v690 = vrcp.pop %v688
      %v691 = vmul.f32 1.0, %v690
      %v692 = vrcp.pop %v689
      %v693 = vmul.f32 1.0, %v692
      %v694 = vmul.f32 %v674, %v691
      %v695 = vmul.f32 %v677, %v693
      %v696 = vpack.c.bf16 %v695, %v694
      %v697 = vld [vmem:[%s4] sm:$0xf]
      %v698 = vld [vmem:[%s4 + $0x4] sm:$0xf]
      %v701 = vunpack.c.l.b16 %v697
      %v702 = vunpack.c.l.b16 %v698
      %v703 = vpack.c.b16 %v702, %v701
      %v706 = vsel %vm490, %v696, 0
      %708 = vmatprep.subr.bf16.mxu0 0
      %709 = vmatpush1.bf16.msra.mxu0 %v703
      %710 = vmatprep.subr.bf16.mxu0 0
      %711 = vmatpush1.bf16.msra.mxu0 0
      %712 = vmatprep.subr.bf16.mxu0 0
      %713 = vmatpush1.bf16.msra.mxu0 0
      %714 = vmatprep.subr.bf16.mxu0 0
      %715 = vmatpush1.bf16.msra.mxu0 0
      %716 = vmatprep.subr.bf16.mxu0 0
      %717 = vmatpush1.bf16.msra.mxu0 0
      %718 = vmatprep.subr.bf16.mxu0 0
      %719 = vmatpush1.bf16.msra.mxu0 0
      %720 = vmatprep.subr.bf16.mxu0 0
      %721 = vmatpush1.bf16.msra.mxu0 0
      %722 = vmatprep.subr.bf16.mxu0 0
      %723 = vmatpush1.bf16.msra.mxu0 0
      %724 = vmatprep.subr.bf16.mxu0 0
      %725 = vmatpush1.bf16.msra.mxu0 0
      %726 = vmatprep.subr.bf16.mxu0 0
      %727 = vmatpush1.bf16.msra.mxu0 0
      %728 = vmatprep.subr.bf16.mxu0 0
      %729 = vmatpush1.bf16.msra.mxu0 0
      %730 = vmatprep.subr.bf16.mxu0 0
      %731 = vmatpush1.bf16.msra.mxu0 0
      %732 = vmatprep.subr.bf16.mxu0 0
      %733 = vmatpush1.bf16.msra.mxu0 0
      %734 = vmatprep.subr.bf16.mxu0 0
      %735 = vmatpush1.bf16.msra.mxu0 0
      %736 = vmatprep.subr.bf16.mxu0 0
      %737 = vmatpush1.bf16.msra.mxu0 0
      %738 = vmatprep.subr.bf16.mxu0 0
      %739 = vmatpush1.bf16.msra.mxu0 0
      %740 = vmatprep.mubr.bf16.mxu0 0
      %741 = vmatmul.mubr.bf16.gmra.mrb[0].mxu0 %v706
      %v742 = vpop.f32.mrb[0].mxu0
      %v743 = vadd.f32 0.0, %v742
      %v744 = vpop.f32.mrb[0].mxu0
      %v745 = vpop.f32.mrb[0].mxu0
      %v746 = vadd.f32 0.0, %v745
      %v747 = vpop.f32.mrb[0].mxu0
      %748 = vdwg.mxu0
      %v749 = vpack.c.bf16 %v746, %v743
      %750 = vmatprep.subr.bf16.mxu0 0
      %751 = vmatpush1.bf16.msra.mxu0 %v749
      %752 = vmatprep.subr.bf16.mxu0 0
      %753 = vmatpush1.bf16.msra.mxu0 0
      %754 = vmatprep.subr.bf16.mxu0 0
      %755 = vmatpush1.bf16.msra.mxu0 0
      %756 = vmatprep.subr.bf16.mxu0 0
      %757 = vmatpush1.bf16.msra.mxu0 0
      %758 = vmatprep.subr.bf16.mxu0 0
      %759 = vmatpush1.bf16.msra.mxu0 0
      %760 = vmatprep.subr.bf16.mxu0 0
      %761 = vmatpush1.bf16.msra.mxu0 0
      %762 = vmatprep.subr.bf16.mxu0 0
      %763 = vmatpush1.bf16.msra.mxu0 0
      %764 = vmatprep.subr.bf16.mxu0 0
      %765 = vmatpush1.bf16.msra.mxu0 0
      %766 = vmatprep.subr.bf16.mxu0 0
      %767 = vmatpush1.bf16.msra.mxu0 0
      %768 = vmatprep.subr.bf16.mxu0 0
      %769 = vmatpush1.bf16.msra.mxu0 0
      %770 = vmatprep.subr.bf16.mxu0 0
      %771 = vmatpush1.bf16.msra.mxu0 0
      %772 = vmatprep.subr.bf16.mxu0 0
      %773 = vmatpush1.bf16.msra.mxu0 0
      %774 = vmatprep.subr.bf16.mxu0 0
      %775 = vmatpush1.bf16.msra.mxu0 0
      %776 = vmatprep.subr.bf16.mxu0 0
      %777 = vmatpush1.bf16.msra.mxu0 0
      %778 = vmatprep.subr.bf16.mxu0 0
      %779 = vmatpush1.bf16.msra.mxu0 0
      %780 = vmatprep.subr.bf16.mxu0 0
      %781 = vmatpush1.bf16.msra.mxu0 0
      %782 = vmatprep.mubr.bf16.mxu0 0
      %783 = vmatmul.mubr.bf16.gmra.mrb[0].mxu0 %v637
      %v784 = vpop.f32.mrb[0].mxu0
      %v785 = vadd.f32 %v694, %v784
      %v786 = vpop.f32.mrb[0].mxu0
      %v787 = vpop.f32.mrb[0].mxu0
      %v788 = vadd.f32 %v695, %v787
      %v789 = vpop.f32.mrb[0].mxu0
      %790 = vdwg.mxu0
      %v791 = vmul.f32 %v785, 1.702
      %v792 = vmul.f32 %v788, 1.702
      %v793 = vxor.u32 %v791, 2147483648
      %v794 = vxor.u32 %v792, 2147483648
      %v795 = vmul.f32 %v793, 1.442695
      %v796 = vpow.pop %v795
      %v797 = vmul.f32 %v794, 1.442695
      %v798 = vpow.pop %v797
      %v799 = vadd.f32 %v796, 1.0
      %v800 = vadd.f32 %v798, 1.0
      %v801 = vrcp.pop %v799
      %v802 = vmul.f32 1.0, %v801
      %v803 = vrcp.pop %v800
      %v804 = vmul.f32 1.0, %v803
      %v805 = vmul.f32 %v785, %v802
      %v806 = vmul.f32 %v788, %v804
      %v807 = vld [vmem:[%s6] sm:$0xf]
      %v808 = vld [vmem:[%s6 + $0x4] sm:$0xf]
      %v809 = vld [vmem:[%s6 + $0x8] sm:$0xf]
      %v810 = vld [vmem:[%s6 + $0xc] sm:$0xf]
      %v815 = vunpack.c.l.b16 %v807
      %v816 = vunpack.c.l.b16 %v808
      %v817 = vunpack.c.l.b16 %v809
      %v818 = vunpack.c.l.b16 %v810
      %v819 = vpack.c.b16 %v816, %v815
      %v820 = vpack.c.b16 %v818, %v817
      %823 = vmatprep.subr.bf16.mxu0 0
      %824 = vmatpush1.bf16.msra.mxu0 %v819
      %825 = vmatprep.subr.bf16.mxu0 0
      %826 = vmatpush1.bf16.msra.mxu0 %v820
      %827 = vmatprep.subr.bf16.mxu0 0
      %828 = vmatpush1.bf16.msra.mxu0 0
      %829 = vmatprep.subr.bf16.mxu0 0
      %830 = vmatpush1.bf16.msra.mxu0 0
      %831 = vmatprep.subr.bf16.mxu0 0
      %832 = vmatpush1.bf16.msra.mxu0 0
      %833 = vmatprep.subr.bf16.mxu0 0
      %834 = vmatpush1.bf16.msra.mxu0 0
      %835 = vmatprep.subr.bf16.mxu0 0
      %836 = vmatpush1.bf16.msra.mxu0 0
      %837 = vmatprep.subr.bf16.mxu0 0
      %838 = vmatpush1.bf16.msra.mxu0 0
      %839 = vmatprep.subr.bf16.mxu0 0
      %840 = vmatpush1.bf16.msra.mxu0 0
      %841 = vmatprep.subr.bf16.mxu0 0
      %842 = vmatpush1.bf16.msra.mxu0 0
      %843 = vmatprep.subr.bf16.mxu0 0
      %844 = vmatpush1.bf16.msra.mxu0 0
      %845 = vmatprep.subr.bf16.mxu0 0
      %846 = vmatpush1.bf16.msra.mxu0 0
      %847 = vmatprep.subr.bf16.mxu0 0
      %848 = vmatpush1.bf16.msra.mxu0 0
      %849 = vmatprep.subr.bf16.mxu0 0
      %850 = vmatpush1.bf16.msra.mxu0 0
      %851 = vmatprep.subr.bf16.mxu0 0
      %852 = vmatpush1.bf16.msra.mxu0 0
      %853 = vmatprep.subr.bf16.mxu0 0
      %854 = vmatpush1.bf16.msra.mxu0 0
      %855 = vmatprep.mubr.bf16.mxu0 0
      %856 = vmatmul.mubr.bf16.gmra.mrb[0].mxu0 %v535
      %v857 = vpop.f32.mrb[0].mxu0
      %v858 = vadd.f32 0.0, %v857
      %v859 = vpop.f32.mrb[0].mxu0
      %v860 = vpop.f32.mrb[0].mxu0
      %v861 = vadd.f32 0.0, %v860
      %v862 = vpop.f32.mrb[0].mxu0
      %863 = vdwg.mxu0
      %v864 = vld [vmem:[%s5] sm:$0xf]
      %v865 = vld [vmem:[%s5 + $0x4] sm:$0xf]
      %v866 = vld [vmem:[%s5 + $0x8] sm:$0xf]
      %v867 = vld [vmem:[%s5 + $0xc] sm:$0xf]
      %v872 = vunpack.c.l.b16 %v864
      %v873 = vunpack.c.l.b16 %v865
      %v874 = vunpack.c.l.b16 %v866
      %v875 = vunpack.c.l.b16 %v867
      %v876 = vpack.c.b16 %v873, %v872
      %v877 = vpack.c.b16 %v875, %v874
      %880 = vmatprep.subr.bf16.mxu0 0
      %881 = vmatpush1.bf16.msra.mxu0 %v876
      %882 = vmatprep.subr.bf16.mxu0 0
      %883 = vmatpush1.bf16.msra.mxu0 %v877
      %884 = vmatprep.subr.bf16.mxu0 0
      %885 = vmatpush1.bf16.msra.mxu0 0
      %886 = vmatprep.subr.bf16.mxu0 0
      %887 = vmatpush1.bf16.msra.mxu0 0
      %888 = vmatprep.subr.bf16.mxu0 0
      %889 = vmatpush1.bf16.msra.mxu0 0
      %890 = vmatprep.subr.bf16.mxu0 0
      %891 = vmatpush1.bf16.msra.mxu0 0
      %892 = vmatprep.subr.bf16.mxu0 0
      %893 = vmatpush1.bf16.msra.mxu0 0
      %894 = vmatprep.subr.bf16.mxu0 0
      %895 = vmatpush1.bf16.msra.mxu0 0
      %896 = vmatprep.subr.bf16.mxu0 0
      %897 = vmatpush1.bf16.msra.mxu0 0
      %898 = vmatprep.subr.bf16.mxu0 0
      %899 = vmatpush1.bf16.msra.mxu0 0
      %900 = vmatprep.subr.bf16.mxu0 0
      %901 = vmatpush1.bf16.msra.mxu0 0
      %902 = vmatprep.subr.bf16.mxu0 0
      %903 = vmatpush1.bf16.msra.mxu0 0
      %904 = vmatprep.subr.bf16.mxu0 0
      %905 = vmatpush1.bf16.msra.mxu0 0
      %906 = vmatprep.subr.bf16.mxu0 0
      %907 = vmatpush1.bf16.msra.mxu0 0
      %908 = vmatprep.subr.bf16.mxu0 0
      %909 = vmatpush1.bf16.msra.mxu0 0
      %910 = vmatprep.subr.bf16.mxu0 0
      %911 = vmatpush1.bf16.msra.mxu0 0
      %912 = vmatprep.mubr.bf16.mxu0 0
      %913 = vmatmul.mubr.bf16.gmra.mrb[0].mxu0 %v535
      %v914 = vpop.f32.mrb[0].mxu0
      %v915 = vadd.f32 0.0, %v914
      %v916 = vpop.f32.mrb[0].mxu0
      %v917 = vpop.f32.mrb[0].mxu0
      %v918 = vadd.f32 0.0, %v917
      %v919 = vpop.f32.mrb[0].mxu0
      %920 = vdwg.mxu0
      %v921 = vpack.c.bf16 %v918, %v915
      %v923 = vsel %vm490, %v516, 0
      %925 = vmatprep.subr.bf16.mxu0 0
      %926 = vmatpush1.bf16.msra.mxu0 %v921
      %927 = vmatprep.subr.bf16.mxu0 0
      %928 = vmatpush1.bf16.msra.mxu0 0
      %929 = vmatprep.subr.bf16.mxu0 0
      %930 = vmatpush1.bf16.msra.mxu0 0
      %931 = vmatprep.subr.bf16.mxu0 0
      %932 = vmatpush1.bf16.msra.mxu0 0
      %933 = vmatprep.subr.bf16.mxu0 0
      %934 = vmatpush1.bf16.msra.mxu0 0
      %935 = vmatprep.subr.bf16.mxu0 0
      %936 = vmatpush1.bf16.msra.mxu0 0
      %937 = vmatprep.subr.bf16.mxu0 0
      %938 = vmatpush1.bf16.msra.mxu0 0
      %939 = vmatprep.subr.bf16.mxu0 0
      %940 = vmatpush1.bf16.msra.mxu0 0
      %941 = vmatprep.subr.bf16.mxu0 0
      %942 = vmatpush1.bf16.msra.mxu0 0
      %943 = vmatprep.subr.bf16.mxu0 0
      %944 = vmatpush1.bf16.msra.mxu0 0
      %945 = vmatprep.subr.bf16.mxu0 0
      %946 = vmatpush1.bf16.msra.mxu0 0
      %947 = vmatprep.subr.bf16.mxu0 0
      %948 = vmatpush1.bf16.msra.mxu0 0
      %949 = vmatprep.subr.bf16.mxu0 0
      %950 = vmatpush1.bf16.msra.mxu0 0
      %951 = vmatprep.subr.bf16.mxu0 0
      %952 = vmatpush1.bf16.msra.mxu0 0
      %953 = vmatprep.subr.bf16.mxu0 0
      %954 = vmatpush1.bf16.msra.mxu0 0
      %955 = vmatprep.subr.bf16.mxu0 0
      %956 = vmatpush1.bf16.msra.mxu0 0
      %957 = vmatprep.mubr.bf16.mxu0 0
      %958 = vmatmul.mubr.bf16.gmra.mrb[0].mxu0 %v923
      %v959 = vpop.f32.mrb[0].mxu0
      %v960 = vadd.f32 %v858, %v959
      %v961 = vpop.f32.mrb[0].mxu0
      %v962 = vpop.f32.mrb[0].mxu0
      %v963 = vadd.f32 %v861, %v962
      %v964 = vpop.f32.mrb[0].mxu0
      %965 = vdwg.mxu0
      %v966 = vmul.f32 %v960, 1.702
      %v967 = vmul.f32 %v963, 1.702
      %v968 = vxor.u32 %v966, 2147483648
      %v969 = vxor.u32 %v967, 2147483648
      %v970 = vmul.f32 %v968, 1.442695
      %v971 = vpow.pop %v970
      %v972 = vmul.f32 %v969, 1.442695
      %v973 = vpow.pop %v972
      %v974 = vadd.f32 %v971, 1.0
      %v975 = vadd.f32 %v973, 1.0
      %v976 = vrcp.pop %v974
      %v977 = vmul.f32 1.0, %v976
      %v978 = vrcp.pop %v975
      %v979 = vmul.f32 1.0, %v978
      %v980 = vmul.f32 %v960, %v977
      %v981 = vmul.f32 %v963, %v979
      %v982 = vpack.c.bf16 %v981, %v980
      %v983 = vld [vmem:[%s7] sm:$0xf]
      %v984 = vld [vmem:[%s7 + $0x4] sm:$0xf]
      %v987 = vunpack.c.l.b16 %v983
      %v988 = vunpack.c.l.b16 %v984
      %v989 = vpack.c.b16 %v988, %v987
      %v992 = vsel %vm490, %v982, 0
      %994 = vmatprep.subr.bf16.mxu0 0
      %995 = vmatpush1.bf16.msra.mxu0 %v989
      %996 = vmatprep.subr.bf16.mxu0 0
      %997 = vmatpush1.bf16.msra.mxu0 0
      %998 = vmatprep.subr.bf16.mxu0 0
      %999 = vmatpush1.bf16.msra.mxu0 0
      %1000 = vmatprep.subr.bf16.mxu0 0
      %1001 = vmatpush1.bf16.msra.mxu0 0
      %1002 = vmatprep.subr.bf16.mxu0 0
      %1003 = vmatpush1.bf16.msra.mxu0 0
      %1004 = vmatprep.subr.bf16.mxu0 0
      %1005 = vmatpush1.bf16.msra.mxu0 0
      %1006 = vmatprep.subr.bf16.mxu0 0
      %1007 = vmatpush1.bf16.msra.mxu0 0
      %1008 = vmatprep.subr.bf16.mxu0 0
      %1009 = vmatpush1.bf16.msra.mxu0 0
      %1010 = vmatprep.subr.bf16.mxu0 0
      %1011 = vmatpush1.bf16.msra.mxu0 0
      %1012 = vmatprep.subr.bf16.mxu0 0
      %1013 = vmatpush1.bf16.msra.mxu0 0
      %1014 = vmatprep.subr.bf16.mxu0 0
      %1015 = vmatpush1.bf16.msra.mxu0 0
      %1016 = vmatprep.subr.bf16.mxu0 0
      %1017 = vmatpush1.bf16.msra.mxu0 0
      %1018 = vmatprep.subr.bf16.mxu0 0
      %1019 = vmatpush1.bf16.msra.mxu0 0
      %1020 = vmatprep.subr.bf16.mxu0 0
      %1021 = vmatpush1.bf16.msra.mxu0 0
      %1022 = vmatprep.subr.bf16.mxu0 0
      %1023 = vmatpush1.bf16.msra.mxu0 0
      %1024 = vmatprep.subr.bf16.mxu0 0
      %1025 = vmatpush1.bf16.msra.mxu0 0
      %1026 = vmatprep.mubr.bf16.mxu0 0
      %1027 = vmatmul.mubr.bf16.gmra.mrb[0].mxu0 %v992
      %v1028 = vpop.f32.mrb[0].mxu0
      %v1029 = vadd.f32 0.0, %v1028
      %v1030 = vpop.f32.mrb[0].mxu0
      %v1031 = vpop.f32.mrb[0].mxu0
      %v1032 = vadd.f32 0.0, %v1031
      %v1033 = vpop.f32.mrb[0].mxu0
      %1034 = vdwg.mxu0
      %v1035 = vpack.c.bf16 %v1032, %v1029
      %1036 = vmatprep.subr.bf16.mxu0 0
      %1037 = vmatpush1.bf16.msra.mxu0 %v1035
      %1038 = vmatprep.subr.bf16.mxu0 0
      %1039 = vmatpush1.bf16.msra.mxu0 0
      %1040 = vmatprep.subr.bf16.mxu0 0
      %1041 = vmatpush1.bf16.msra.mxu0 0
      %1042 = vmatprep.subr.bf16.mxu0 0
      %1043 = vmatpush1.bf16.msra.mxu0 0
      %1044 = vmatprep.subr.bf16.mxu0 0
      %1045 = vmatpush1.bf16.msra.mxu0 0
      %1046 = vmatprep.subr.bf16.mxu0 0
      %1047 = vmatpush1.bf16.msra.mxu0 0
      %1048 = vmatprep.subr.bf16.mxu0 0
      %1049 = vmatpush1.bf16.msra.mxu0 0
      %1050 = vmatprep.subr.bf16.mxu0 0
      %1051 = vmatpush1.bf16.msra.mxu0 0
      %1052 = vmatprep.subr.bf16.mxu0 0
      %1053 = vmatpush1.bf16.msra.mxu0 0
      %1054 = vmatprep.subr.bf16.mxu0 0
      %1055 = vmatpush1.bf16.msra.mxu0 0
      %1056 = vmatprep.subr.bf16.mxu0 0
      %1057 = vmatpush1.bf16.msra.mxu0 0
      %1058 = vmatprep.subr.bf16.mxu0 0
      %1059 = vmatpush1.bf16.msra.mxu0 0
      %1060 = vmatprep.subr.bf16.mxu0 0
      %1061 = vmatpush1.bf16.msra.mxu0 0
      %1062 = vmatprep.subr.bf16.mxu0 0
      %1063 = vmatpush1.bf16.msra.mxu0 0
      %1064 = vmatprep.subr.bf16.mxu0 0
      %1065 = vmatpush1.bf16.msra.mxu0 0
      %1066 = vmatprep.subr.bf16.mxu0 0
      %1067 = vmatpush1.bf16.msra.mxu0 0
      %1068 = vmatprep.mubr.bf16.mxu0 0
      %1069 = vmatmul.mubr.bf16.gmra.mrb[0].mxu0 %v923
      %v1070 = vpop.f32.mrb[0].mxu0
      %v1071 = vadd.f32 %v980, %v1070
      %v1072 = vpop.f32.mrb[0].mxu0
      %v1073 = vpop.f32.mrb[0].mxu0
      %v1074 = vadd.f32 %v981, %v1073
      %v1075 = vpop.f32.mrb[0].mxu0
      %1076 = vdwg.mxu0
      %v1077 = vmul.f32 %v1071, 1.702
      %v1078 = vmul.f32 %v1074, 1.702
      %v1079 = vxor.u32 %v1077, 2147483648
      %v1080 = vxor.u32 %v1078, 2147483648
      %v1081 = vmul.f32 %v1079, 1.442695
      %v1082 = vpow.pop %v1081
      %v1083 = vmul.f32 %v1080, 1.442695
      %v1084 = vpow.pop %v1083
      %v1085 = vadd.f32 %v1082, 1.0
      %v1086 = vadd.f32 %v1084, 1.0
      %v1087 = vrcp.pop %v1085
      %v1088 = vmul.f32 1.0, %v1087
      %v1089 = vrcp.pop %v1086
      %v1090 = vmul.f32 1.0, %v1089
      %v1091 = vmul.f32 %v1071, %v1088
      %v1092 = vmul.f32 %v1074, %v1090
      %v1093 = vpack.c.bf16 %v806, %v805
      %v1094 = vld [vmem:[%s8] sm:$0xf]
      %v1095 = vld [vmem:[%s8 + $0x4] sm:$0xf]
      %v1096 = vpack.c.bf16 %v1092, %v1091
      %v1097 = vld [vmem:[%s9] sm:$0xf]
      %v1098 = vld [vmem:[%s9 + $0x4] sm:$0xf]
      %v1101 = vunpack.c.l.b16 %v1097
      %v1102 = vunpack.c.l.b16 %v1098
      %v1103 = vpack.c.b16 %v1102, %v1101
      %v1106 = vsel %vm490, %v1096, 0
      %1108 = vmatprep.subr.bf16.mxu0 0
      %1109 = vmatpush1.bf16.msra.mxu0 %v1103
      %1110 = vmatprep.subr.bf16.mxu0 0
      %1111 = vmatpush1.bf16.msra.mxu0 0
      %1112 = vmatprep.subr.bf16.mxu0 0
      %1113 = vmatpush1.bf16.msra.mxu0 0
      %1114 = vmatprep.subr.bf16.mxu0 0
      %1115 = vmatpush1.bf16.msra.mxu0 0
      %1116 = vmatprep.subr.bf16.mxu0 0
      %1117 = vmatpush1.bf16.msra.mxu0 0
      %1118 = vmatprep.subr.bf16.mxu0 0
      %1119 = vmatpush1.bf16.msra.mxu0 0
      %1120 = vmatprep.subr.bf16.mxu0 0
      %1121 = vmatpush1.bf16.msra.mxu0 0
      %1122 = vmatprep.subr.bf16.mxu0 0
      %1123 = vmatpush1.bf16.msra.mxu0 0
      %1124 = vmatprep.subr.bf16.mxu0 0
      %1125 = vmatpush1.bf16.msra.mxu0 0
      %1126 = vmatprep.subr.bf16.mxu0 0
      %1127 = vmatpush1.bf16.msra.mxu0 0
      %1128 = vmatprep.subr.bf16.mxu0 0
      %1129 = vmatpush1.bf16.msra.mxu0 0
      %1130 = vmatprep.subr.bf16.mxu0 0
      %1131 = vmatpush1.bf16.msra.mxu0 0
      %1132 = vmatprep.subr.bf16.mxu0 0
      %1133 = vmatpush1.bf16.msra.mxu0 0
      %1134 = vmatprep.subr.bf16.mxu0 0
      %1135 = vmatpush1.bf16.msra.mxu0 0
      %1136 = vmatprep.subr.bf16.mxu0 0
      %1137 = vmatpush1.bf16.msra.mxu0 0
      %1138 = vmatprep.subr.bf16.mxu0 0
      %1139 = vmatpush1.bf16.msra.mxu0 0
      %1140 = vmatprep.mubr.bf16.mxu0 0
      %1141 = vmatmul.mubr.bf16.gmra.mrb[0].mxu0 %v1106
      %v1142 = vpop.f32.mrb[0].mxu0
      %v1143 = vadd.f32 0.0, %v1142
      %v1144 = vpop.f32.mrb[0].mxu0
      %v1145 = vpop.f32.mrb[0].mxu0
      %v1146 = vadd.f32 0.0, %v1145
      %v1147 = vpop.f32.mrb[0].mxu0
      %1148 = vdwg.mxu0
      %v1151 = vunpack.c.l.b16 %v1094
      %v1152 = vunpack.c.l.b16 %v1095
      %v1153 = vpack.c.b16 %v1152, %v1151
      %v1156 = vsel %vm490, %v1093, 0
      %1158 = vmatprep.subr.bf16.mxu0 0
      %1159 = vmatpush1.bf16.msra.mxu0 %v1153
      %1160 = vmatprep.subr.bf16.mxu0 0
      %1161 = vmatpush1.bf16.msra.mxu0 0
      %1162 = vmatprep.subr.bf16.mxu0 0
      %1163 = vmatpush1.bf16.msra.mxu0 0
      %1164 = vmatprep.subr.bf16.mxu0 0
      %1165 = vmatpush1.bf16.msra.mxu0 0
      %1166 = vmatprep.subr.bf16.mxu0 0
      %1167 = vmatpush1.bf16.msra.mxu0 0
      %1168 = vmatprep.subr.bf16.mxu0 0
      %1169 = vmatpush1.bf16.msra.mxu0 0
      %1170 = vmatprep.subr.bf16.mxu0 0
      %1171 = vmatpush1.bf16.msra.mxu0 0
      %1172 = vmatprep.subr.bf16.mxu0 0
      %1173 = vmatpush1.bf16.msra.mxu0 0
      %1174 = vmatprep.subr.bf16.mxu0 0
      %1175 = vmatpush1.bf16.msra.mxu0 0
      %1176 = vmatprep.subr.bf16.mxu0 0
      %1177 = vmatpush1.bf16.msra.mxu0 0
      %1178 = vmatprep.subr.bf16.mxu0 0
      %1179 = vmatpush1.bf16.msra.mxu0 0
      %1180 = vmatprep.subr.bf16.mxu0 0
      %1181 = vmatpush1.bf16.msra.mxu0 0
      %1182 = vmatprep.subr.bf16.mxu0 0
      %1183 = vmatpush1.bf16.msra.mxu0 0
      %1184 = vmatprep.subr.bf16.mxu0 0
      %1185 = vmatpush1.bf16.msra.mxu0 0
      %1186 = vmatprep.subr.bf16.mxu0 0
      %1187 = vmatpush1.bf16.msra.mxu0 0
      %1188 = vmatprep.subr.bf16.mxu0 0
      %1189 = vmatpush1.bf16.msra.mxu0 0
      %1190 = vmatprep.mubr.bf16.mxu0 0
      %1191 = vmatmul.mubr.bf16.gmra.mrb[0].mxu0 %v1156
      %v1192 = vpop.f32.mrb[0].mxu0
      %v1193 = vadd.f32 %v1143, %v1192
      %v1194 = vpop.f32.mrb[0].mxu0
      %v1195 = vpop.f32.mrb[0].mxu0
      %v1196 = vadd.f32 %v1146, %v1195
      %v1197 = vpop.f32.mrb[0].mxu0
      %1198 = vdwg.mxu0
      %v1199 = vld [vmem:[%s10] sm:$0x1]
      %v1201 = vlaneseq
      %v1202 = vshrl.u32 %v1201, 7
      %v1203 = vsub.s32 0, %v1202
      %v1204 = vrot.slane %v1199, %v1203
      %v1206 = vadd.f32 %v1193, %v1204
      %v1207 = vadd.f32 %v1196, %v1204
      %1208 = vst.msk [vmem:[%s386] sm:$0xff] %vm392, %v1206
      %1209 = vst.msk [vmem:[%s386 + $0x8] sm:$0xff] %vm392, %v1207
      %p1210 = scmp.lt.s32.totalorder %s22, 1
      %s1211 = scalar_select %p1210, %s22, 1
      %s1212 = smul.addr %s1211, 2
      %s1213 = smul.addr %s1212, 8
      %s1214 = scalar_lea.vmem %s11, %s1213
      // Predicated region
      $region65: #{_lambda_.25} parent=63 // pred_check
        %p1215 = pneg %p276
      $region66: #{_lambda_.25} parent=63 // pred_check_branch
        %1217 = sbr.rel (%p1215) target = $region68
      $region67: #{_lambda_.25} parent=63 // pred_region
        _
      $region68: #{_lambda_.25} parent=63 // pred_fallthru
        _
    $region64: #{_lambda_.25} parent=5 // pred_fallthru
      _
    %p1218 = scmp.le.s32.totalorder 2, %s17
    // Predicated region
    $region69: #{_lambda_.25} parent=5 // pred_check
      %p1219 = pneg %p1218
    $region70: #{_lambda_.25} parent=5 // pred_check_branch
      %1221 = sbr.rel (%p1219) target = $region72
    $region71: #{_lambda_.25} parent=5 // pred_region
      %s1222 = ssub.s32 %s17, 2
      // Predicated region
      $region73: #{_lambda_.25} parent=71 // pred_check
        %p1223 = pneg %p282
      $region74: #{_lambda_.25} parent=71 // pred_check_branch
        %1225 = sbr.rel (%p1223) target = $region76
      $region75: #{_lambda_.25} parent=71 // pred_region
        %p1226 = scmp.lt.s32.totalorder %s23, 1
        %s1227 = scalar_select %p1226, %s23, 1
        %s1228 = smul.addr %s1227, 2
        %s1229 = smul.addr %s1228, 8
        %s1230 = scalar_lea.vmem %s11, %s1229
      $region76: #{_lambda_.25} parent=71 // pred_fallthru
        _
    $region72: #{_lambda_.25} parent=5 // pred_fallthru
      _
  $region6: #{_lambda_.25} parent=0 // loop_footer
    %s21 = sadd.s32 1, %s17
  $region7: #{_lambda_.25} parent=0 // loop_footer_branch
    %16 = sbr.rel target = $region3
  $region8: #{_lambda_.25} parent=0 // loop_exit
    _

// kernel: _lambda_.31
$region0: #{_lambda_.31}
  #allocation0 [shape = 'u32[]', space=smem, size = 0x4, offset = 0x4, fixed_abs, tag = 'smem constant byte address 0x4 - core index']
  #allocation1 [shape = 'u32[144,128]{1,0:T(1,128)}', space=vmem, size = 0x12000, scoped, tag = 'internal scratch']
  #allocation2 [shape = 'f32[1,1]{1,0:T(1,128)S(1)}', space=vmem, size = 0x200, scoped, tag = 'scoped memory for _lambda_.31']
  %s0 = inlined_call_operand.vmem [shape: f32[32,32], index: 0, kind: input, shape index: {}]
  %s1 = inlined_call_operand.vmem [shape: bf16[32,8], index: 1, kind: input, shape index: {}]
  %s2 = inlined_call_operand.vmem [shape: f32[1,8], index: 2, kind: input, shape index: {}]
  %s3 = inlined_call_operand.vmem [shape: bf16[8,1], index: 3, kind: input, shape index: {}]
  %s4 = inlined_call_operand.<no memory space> [shape: f32[1,1], index: 4, kind: input, shape index: {}]
  %s5 = inlined_call_operand.vmem [shape: f32[32,1], index: 5, kind: output, shape index: {}]
  %s6 = sld [smem:[#allocation0]]
  $region30: #{_lambda_.31} parent=0
    _
  %s8 = ssub.s32 1, %s6
  %s9 = scalar_select 0, %s8, %s6
  %v10 = vstv %s4
  %11 = vst [vmem:[#allocation2] sm:$0x1] %v10
  // Predicated region
  $region2: #{_lambda_.31} parent=0 // pred_check
    _
  $region3: #{_lambda_.31} parent=0 // pred_check_branch
    %13 = sbr.rel (0) target = $region5
  $region4: #{_lambda_.31} parent=0 // pred_region
    _
  $region5: #{_lambda_.31} parent=0 // pred_fallthru
    _
  // Predicated region
  $region6: #{_lambda_.31} parent=0 // pred_check
    _
  $region7: #{_lambda_.31} parent=0 // pred_check_branch
    %15 = sbr.rel (0) target = $region9
  $region8: #{_lambda_.31} parent=0 // pred_region
    _
  $region9: #{_lambda_.31} parent=0 // pred_fallthru
    _
  // Predicated region
  $region10: #{_lambda_.31} parent=0 // pred_check
    _
  $region11: #{_lambda_.31} parent=0 // pred_check_branch
    %17 = sbr.rel (0) target = $region13
  $region12: #{_lambda_.31} parent=0 // pred_region
    _
  $region13: #{_lambda_.31} parent=0 // pred_fallthru
    _
  // Predicated region
  $region14: #{_lambda_.31} parent=0 // pred_check
    _
  $region15: #{_lambda_.31} parent=0 // pred_check_branch
    %19 = sbr.rel (0) target = $region17
  $region16: #{_lambda_.31} parent=0 // pred_region
    _
  $region17: #{_lambda_.31} parent=0 // pred_fallthru
    _
  // Predicated region
  $region18: #{_lambda_.31} parent=0 // pred_check
    _
  $region19: #{_lambda_.31} parent=0 // pred_check_branch
    %21 = sbr.rel (0) target = $region21
  $region20: #{_lambda_.31} parent=0 // pred_region
    _
  $region21: #{_lambda_.31} parent=0 // pred_fallthru
    _
  %v23 = vld [vmem:[%s0] sm:$0xff]
  %v24 = vld [vmem:[%s0 + $0x8] sm:$0xff]
  %v25 = vld [vmem:[%s0 + $0x10] sm:$0xff]
  %v26 = vld [vmem:[%s0 + $0x18] sm:$0xff]
  %v27 = vpack.c.bf16 %v24, %v23
  %v28 = vpack.c.bf16 %v26, %v25
  %v29 = vld [vmem:[%s1] sm:$0xf]
  %v30 = vld [vmem:[%s1 + $0x4] sm:$0xf]
  %v31 = vld [vmem:[%s1 + $0x8] sm:$0xf]
  %v32 = vld [vmem:[%s1 + $0xc] sm:$0xf]
  %v33 = vld [vmem:[%s2] sm:$0x1]
  %v35 = vlaneseq
  %v36 = vshrl.u32 %v35, 7
  %v37 = vsub.s32 0, %v36
  %v38 = vrot.slane %v33, %v37
  %v44 = vunpack.c.l.b16 %v29
  %v45 = vunpack.c.l.b16 %v30
  %v46 = vunpack.c.l.b16 %v31
  %v47 = vunpack.c.l.b16 %v32
  %v48 = vpack.c.b16 %v45, %v44
  %v49 = vpack.c.b16 %v47, %v46
  %vm52 = vcmask 261120
  %v54 = vsel %vm52, %v27, 0
  %v57 = vsel %vm52, %v28, 0
  %59 = vmatprep.subr.bf16.mxu0 0
  %60 = vmatpush1.bf16.msra.mxu0 %v48
  %61 = vmatprep.subr.bf16.mxu0 0
  %62 = vmatpush1.bf16.msra.mxu0 %v49
  %63 = vmatprep.subr.bf16.mxu0 0
  %64 = vmatpush1.bf16.msra.mxu0 0
  %65 = vmatprep.subr.bf16.mxu0 0
  %66 = vmatpush1.bf16.msra.mxu0 0
  %67 = vmatprep.subr.bf16.mxu0 0
  %68 = vmatpush1.bf16.msra.mxu0 0
  %69 = vmatprep.subr.bf16.mxu0 0
  %70 = vmatpush1.bf16.msra.mxu0 0
  %71 = vmatprep.subr.bf16.mxu0 0
  %72 = vmatpush1.bf16.msra.mxu0 0
  %73 = vmatprep.subr.bf16.mxu0 0
  %74 = vmatpush1.bf16.msra.mxu0 0
  %75 = vmatprep.subr.bf16.mxu0 0
  %76 = vmatpush1.bf16.msra.mxu0 0
  %77 = vmatprep.subr.bf16.mxu0 0
  %78 = vmatpush1.bf16.msra.mxu0 0
  %79 = vmatprep.subr.bf16.mxu0 0
  %80 = vmatpush1.bf16.msra.mxu0 0
  %81 = vmatprep.subr.bf16.mxu0 0
  %82 = vmatpush1.bf16.msra.mxu0 0
  %83 = vmatprep.subr.bf16.mxu0 0
  %84 = vmatpush1.bf16.msra.mxu0 0
  %85 = vmatprep.subr.bf16.mxu0 0
  %86 = vmatpush1.bf16.msra.mxu0 0
  %87 = vmatprep.subr.bf16.mxu0 0
  %88 = vmatpush1.bf16.msra.mxu0 0
  %89 = vmatprep.subr.bf16.mxu0 0
  %90 = vmatpush1.bf16.msra.mxu0 0
  %91 = vmatprep.mubr.bf16.mxu0 0
  %92 = vmatmul.mubr.bf16.gmra.mrb[0].mxu0 %v54
  %v93 = vpop.f32.mrb[0].mxu0
  %v94 = vadd.f32 %v38, %v93
  %v95 = vpop.f32.mrb[0].mxu0
  %v96 = vpop.f32.mrb[0].mxu0
  %v97 = vadd.f32 %v38, %v96
  %v98 = vpop.f32.mrb[0].mxu0
  %99 = vmatprep.mubr.bf16.mxu0 0
  %100 = vmatmul.mubr.bf16.gmra.mrb[0].mxu0 %v57
  %v101 = vpop.f32.mrb[0].mxu0
  %v102 = vadd.f32 %v38, %v101
  %v103 = vpop.f32.mrb[0].mxu0
  %v104 = vpop.f32.mrb[0].mxu0
  %v105 = vadd.f32 %v38, %v104
  %v106 = vpop.f32.mrb[0].mxu0
  %107 = vdwg.mxu0
  %v108 = vmul.f32 %v94, 1.702
  %v109 = vmul.f32 %v97, 1.702
  %v110 = vmul.f32 %v102, 1.702
  %v111 = vmul.f32 %v105, 1.702
  %v112 = vxor.u32 %v108, 2147483648
  %v113 = vxor.u32 %v109, 2147483648
  %v114 = vxor.u32 %v110, 2147483648
  %v115 = vxor.u32 %v111, 2147483648
  %v116 = vmul.f32 %v112, 1.442695
  %v117 = vpow.pop %v116
  %v118 = vmul.f32 %v113, 1.442695
  %v119 = vpow.pop %v118
  %v120 = vmul.f32 %v114, 1.442695
  %v121 = vpow.pop %v120
  %v122 = vmul.f32 %v115, 1.442695
  %v123 = vpow.pop %v122
  %v124 = vadd.f32 %v117, 1.0
  %v125 = vadd.f32 %v119, 1.0
  %v126 = vadd.f32 %v121, 1.0
  %v127 = vadd.f32 %v123, 1.0
  %v128 = vrcp.pop %v124
  %v129 = vmul.f32 1.0, %v128
  %v130 = vrcp.pop %v125
  %v131 = vmul.f32 1.0, %v130
  %v132 = vrcp.pop %v126
  %v133 = vmul.f32 1.0, %v132
  %v134 = vrcp.pop %v127
  %v135 = vmul.f32 1.0, %v134
  %v136 = vmul.f32 %v94, %v129
  %v137 = vmul.f32 %v97, %v131
  %v138 = vmul.f32 %v102, %v133
  %v139 = vmul.f32 %v105, %v135
  %v140 = vpack.c.bf16 %v137, %v136
  %v141 = vpack.c.bf16 %v139, %v138
  %v142 = vld [vmem:[%s3] sm:$0xf]
  %v143 = vld [vmem:[#allocation2] sm:$0x1]
  %v145 = vlaneseq
  %v146 = vshrl.u32 %v145, 7
  %v147 = vsub.s32 0, %v146
  %v148 = vrot.slane %v143, %v147
  %vm150 = vcmask 64512
  %v152 = vsel %vm150, %v140, 0
  %v155 = vsel %vm150, %v141, 0
  %vm157 = vcmask 1043456
  %v159 = vsel %vm157, %v142, 0
  %161 = vmatprep.subr.bf16.mxu0 0
  %162 = vmatpush1.bf16.msra.mxu0 %v159
  %163 = vmatprep.subr.bf16.mxu0 0
  %164 = vmatpush1.bf16.msra.mxu0 0
  %165 = vmatprep.subr.bf16.mxu0 0
  %166 = vmatpush1.bf16.msra.mxu0 0
  %167 = vmatprep.subr.bf16.mxu0 0
  %168 = vmatpush1.bf16.msra.mxu0 0
  %169 = vmatprep.subr.bf16.mxu0 0
  %170 = vmatpush1.bf16.msra.mxu0 0
  %171 = vmatprep.subr.bf16.mxu0 0
  %172 = vmatpush1.bf16.msra.mxu0 0
  %173 = vmatprep.subr.bf16.mxu0 0
  %174 = vmatpush1.bf16.msra.mxu0 0
  %175 = vmatprep.subr.bf16.mxu0 0
  %176 = vmatpush1.bf16.msra.mxu0 0
  %177 = vmatprep.subr.bf16.mxu0 0
  %178 = vmatpush1.bf16.msra.mxu0 0
  %179 = vmatprep.subr.bf16.mxu0 0
  %180 = vmatpush1.bf16.msra.mxu0 0
  %181 = vmatprep.subr.bf16.mxu0 0
  %182 = vmatpush1.bf16.msra.mxu0 0
  %183 = vmatprep.subr.bf16.mxu0 0
  %184 = vmatpush1.bf16.msra.mxu0 0
  %185 = vmatprep.subr.bf16.mxu0 0
  %186 = vmatpush1.bf16.msra.mxu0 0
  %187 = vmatprep.subr.bf16.mxu0 0
  %188 = vmatpush1.bf16.msra.mxu0 0
  %189 = vmatprep.subr.bf16.mxu0 0
  %190 = vmatpush1.bf16.msra.mxu0 0
  %191 = vmatprep.subr.bf16.mxu0 0
  %192 = vmatpush1.bf16.msra.mxu0 0
  %193 = vmatprep.mubr.bf16.mxu0 0
  %194 = vmatmul.mubr.bf16.gmra.mrb[0].mxu0 %v152
  %v195 = vpop.f32.mrb[0].mxu0
  %v196 = vadd.f32 %v148, %v195
  %v197 = vpop.f32.mrb[0].mxu0
  %v198 = vpop.f32.mrb[0].mxu0
  %v199 = vadd.f32 %v148, %v198
  %v200 = vpop.f32.mrb[0].mxu0
  %201 = vmatprep.mubr.bf16.mxu0 0
  %202 = vmatmul.mubr.bf16.gmra.mrb[0].mxu0 %v155
  %v203 = vpop.f32.mrb[0].mxu0
  %v204 = vadd.f32 %v148, %v203
  %v205 = vpop.f32.mrb[0].mxu0
  %v206 = vpop.f32.mrb[0].mxu0
  %v207 = vadd.f32 %v148, %v206
  %v208 = vpop.f32.mrb[0].mxu0
  %209 = vdwg.mxu0
  %vm210 = vcmask 7168
  %211 = vst.msk [vmem:[%s5] sm:$0xff] %vm210, %v196
  %212 = vst.msk [vmem:[%s5 + $0x8] sm:$0xff] %vm210, %v199
  %213 = vst.msk [vmem:[%s5 + $0x10] sm:$0xff] %vm210, %v204
  %214 = vst.msk [vmem:[%s5 + $0x18] sm:$0xff] %vm210, %v207
  // Predicated region
  $region22: #{_lambda_.31} parent=0 // pred_check
    _
  $region23: #{_lambda_.31} parent=0 // pred_check_branch
    %216 = sbr.rel (0) target = $region25
  $region24: #{_lambda_.31} parent=0 // pred_region
    _
  $region25: #{_lambda_.31} parent=0 // pred_fallthru
    _
  // Predicated region
  $region26: #{_lambda_.31} parent=0 // pred_check
    _
  $region27: #{_lambda_.31} parent=0 // pred_check_branch
    %218 = sbr.rel (0) target = $region29
  $region28: #{_lambda_.31} parent=0 // pred_region
    _
  $region29: #{_lambda_.31} parent=0 // pred_fallthru
    _

// kernel: _lambda_.33
$region0: #{_lambda_.33}
  #allocation0 [shape = 'u32[]', space=smem, size = 0x4, offset = 0x4, fixed_abs, tag = 'smem constant byte address 0x4 - core index']
  #allocation1 [shape = 'u32[144,128]{1,0:T(1,128)}', space=vmem, size = 0x12000, scoped, tag = 'internal scratch']
  %s0 = inlined_call_operand.vmem [shape: f32[2,16,1], index: 0, kind: input, shape index: {}]
  %s1 = inlined_call_operand.vmem [shape: f32[2,16,32], index: 1, kind: input, shape index: {}]
  %s2 = inlined_call_operand.vmem [shape: f32[3,32], index: 2, kind: input, shape index: {}]
  %s3 = inlined_call_operand.vmem [shape: bf16[32,128], index: 3, kind: input, shape index: {}]
  %s4 = inlined_call_operand.vmem [shape: f32[1,128], index: 4, kind: input, shape index: {}]
  %s5 = inlined_call_operand.vmem [shape: bf16[128,32], index: 5, kind: input, shape index: {}]
  %s6 = inlined_call_operand.vmem [shape: f32[1,32], index: 6, kind: input, shape index: {}]
  %s7 = inlined_call_operand.vmem [shape: f32[2,16,3], index: 7, kind: output, shape index: {}]
  %s8 = sld [smem:[#allocation0]]
  $region61: #{_lambda_.33} parent=0
    _
  %s10 = ssub.s32 1, %s8
  %s11 = scalar_select 0, %s10, %s8
  loop: start=0, step=1, limit=4
  $region2: #{_lambda_.33} parent=0 // loop_pre_header
    _
  $region3: #{_lambda_.33} parent=0 // loop_header
    %s13 = sphi 0, %s17
    %p14 = scmp.ge.s32.totalorder %s13, 4
    %s23 = sphi 0, %s25
    %s26 = sphi 0, %s23
    %s27 = sphi 0, %s26
    %s43 = sphi 0, %s27
    %s49 = sphi 0, %s51
    %s52 = sphi 0, %s49
    %s53 = sphi 0, %s52
    %s69 = sphi 0, %s53
    %s73 = sphi 0, %s73
    %s75 = sphi 0, %s73
    %s76 = sphi 0, %s75
    %s90 = sphi 0, %s76
    %s94 = sphi 0, %s94
    %s96 = sphi 0, %s94
    %s97 = sphi 0, %s96
    %s111 = sphi 0, %s97
    %s115 = sphi 0, %s115
    %s117 = sphi 0, %s115
    %s118 = sphi 0, %s117
    %s132 = sphi 0, %s118
    %s136 = sphi 0, %s136
    %s138 = sphi 0, %s136
    %s139 = sphi 0, %s138
    %s153 = sphi 0, %s139
    %s157 = sphi 0, %s157
    %s159 = sphi 0, %s157
    %s160 = sphi 0, %s159
    %s174 = sphi 0, %s160
    %s180 = sphi 0, %s182
    %s183 = sphi 0, %s180
    %s184 = sphi 0, %s183
    %s200 = sphi 0, %s184
  $region4: #{_lambda_.33} parent=0 // loop_header_branch
    %16 = sbr.rel (%p14) target = $region8
  $region5: #{_lambda_.33} parent=0 // loop_body
    %s18 = ssub.s32 %s13, 1
    %s19 = ssub.s32 %s13, 2
    %s20 = sadd.s32 %s13, 1
    %s21 = ssub.s32 %s13, %s20
    %p22 = scmp.eq.s32.totalorder %s21, 0
    %s24 = sadd.s32 %s23, 1
    %s25 = scalar_select %p22, %s23, %s24
    %p28 = pneg %p22
    %p29 = scmp.eq.s32.totalorder %s13, 1
    %p30 = por %p28, %p29
    %p31 = scmp.ne.s32.totalorder %s23, %s26
    %p32 = scmp.eq.s32.totalorder %s13, 0
    %p33 = por %p31, %p32
    %p34 = scmp.ne.s32.totalorder %s23, %s26
    %p35 = scmp.eq.s32.totalorder %s18, 1
    %p36 = por %p34, %p35
    %p37 = scmp.ne.s32.totalorder %s26, %s27
    %p38 = scmp.eq.s32.totalorder %s18, 0
    %p39 = por %p37, %p38
    %p40 = scmp.ne.s32.totalorder %s26, %s27
    %p41 = scmp.eq.s32.totalorder %s19, 1
    %p42 = por %p40, %p41
    %p44 = scmp.ne.s32.totalorder %s27, %s43
    %p45 = scmp.eq.s32.totalorder %s19, 0
    %p46 = por %p44, %p45
    %s47 = ssub.s32 %s13, %s20
    %p48 = scmp.eq.s32.totalorder %s47, 0
    %s50 = sadd.s32 %s49, 1
    %s51 = scalar_select %p48, %s49, %s50
    %p54 = pneg %p48
    %p55 = scmp.eq.s32.totalorder %s13, 1
    %p56 = por %p54, %p55
    %p57 = scmp.ne.s32.totalorder %s49, %s52
    %p58 = scmp.eq.s32.totalorder %s13, 0
    %p59 = por %p57, %p58
    %p60 = scmp.ne.s32.totalorder %s49, %s52
    %p61 = scmp.eq.s32.totalorder %s18, 1
    %p62 = por %p60, %p61
    %p63 = scmp.ne.s32.totalorder %s52, %s53
    %p64 = scmp.eq.s32.totalorder %s18, 0
    %p65 = por %p63, %p64
    %p66 = scmp.ne.s32.totalorder %s52, %s53
    %p67 = scmp.eq.s32.totalorder %s19, 1
    %p68 = por %p66, %p67
    %p70 = scmp.ne.s32.totalorder %s53, %s69
    %p71 = scmp.eq.s32.totalorder %s19, 0
    %p72 = por %p70, %p71
    %s74 = sadd.s32 %s73, 1
    %p77 = scmp.eq.s32.totalorder %s13, 1
    %p78 = scmp.ne.s32.totalorder %s73, %s75
    %p79 = scmp.eq.s32.totalorder %s13, 0
    %p80 = por %p78, %p79
    %p81 = scmp.ne.s32.totalorder %s73, %s75
    %p82 = scmp.eq.s32.totalorder %s18, 1
    %p83 = por %p81, %p82
    %p84 = scmp.ne.s32.totalorder %s75, %s76
    %p85 = scmp.eq.s32.totalorder %s18, 0
    %p86 = por %p84, %p85
    %p87 = scmp.ne.s32.totalorder %s75, %s76
    %p88 = scmp.eq.s32.totalorder %s19, 1
    %p89 = por %p87, %p88
    %p91 = scmp.ne.s32.totalorder %s76, %s90
    %p92 = scmp.eq.s32.totalorder %s19, 0
    %p93 = por %p91, %p92
    %s95 = sadd.s32 %s94, 1
    %p98 = scmp.eq.s32.totalorder %s13, 1
    %p99 = scmp.ne.s32.totalorder %s94, %s96
    %p100 = scmp.eq.s32.totalorder %s13, 0
    %p101 = por %p99, %p100
    %p102 = scmp.ne.s32.totalorder %s94, %s96
    %p103 = scmp.eq.s32.totalorder %s18, 1
    %p104 = por %p102, %p103
    %p105 = scmp.ne.s32.totalorder %s96, %s97
    %p106 = scmp.eq.s32.totalorder %s18, 0
    %p107 = por %p105, %p106
    %p108 = scmp.ne.s32.totalorder %s96, %s97
    %p109 = scmp.eq.s32.totalorder %s19, 1
    %p110 = por %p108, %p109
    %p112 = scmp.ne.s32.totalorder %s97, %s111
    %p113 = scmp.eq.s32.totalorder %s19, 0
    %p114 = por %p112, %p113
    %s116 = sadd.s32 %s115, 1
    %p119 = scmp.eq.s32.totalorder %s13, 1
    %p120 = scmp.ne.s32.totalorder %s115, %s117
    %p121 = scmp.eq.s32.totalorder %s13, 0
    %p122 = por %p120, %p121
    %p123 = scmp.ne.s32.totalorder %s115, %s117
    %p124 = scmp.eq.s32.totalorder %s18, 1
    %p125 = por %p123, %p124
    %p126 = scmp.ne.s32.totalorder %s117, %s118
    %p127 = scmp.eq.s32.totalorder %s18, 0
    %p128 = por %p126, %p127
    %p129 = scmp.ne.s32.totalorder %s117, %s118
    %p130 = scmp.eq.s32.totalorder %s19, 1
    %p131 = por %p129, %p130
    %p133 = scmp.ne.s32.totalorder %s118, %s132
    %p134 = scmp.eq.s32.totalorder %s19, 0
    %p135 = por %p133, %p134
    %s137 = sadd.s32 %s136, 1
    %p140 = scmp.eq.s32.totalorder %s13, 1
    %p141 = scmp.ne.s32.totalorder %s136, %s138
    %p142 = scmp.eq.s32.totalorder %s13, 0
    %p143 = por %p141, %p142
    %p144 = scmp.ne.s32.totalorder %s136, %s138
    %p145 = scmp.eq.s32.totalorder %s18, 1
    %p146 = por %p144, %p145
    %p147 = scmp.ne.s32.totalorder %s138, %s139
    %p148 = scmp.eq.s32.totalorder %s18, 0
    %p149 = por %p147, %p148
    %p150 = scmp.ne.s32.totalorder %s138, %s139
    %p151 = scmp.eq.s32.totalorder %s19, 1
    %p152 = por %p150, %p151
    %p154 = scmp.ne.s32.totalorder %s139, %s153
    %p155 = scmp.eq.s32.totalorder %s19, 0
    %p156 = por %p154, %p155
    %s158 = sadd.s32 %s157, 1
    %p161 = scmp.eq.s32.totalorder %s13, 1
    %p162 = scmp.ne.s32.totalorder %s157, %s159
    %p163 = scmp.eq.s32.totalorder %s13, 0
    %p164 = por %p162, %p163
    %p165 = scmp.ne.s32.totalorder %s157, %s159
    %p166 = scmp.eq.s32.totalorder %s18, 1
    %p167 = por %p165, %p166
    %p168 = scmp.ne.s32.totalorder %s159, %s160
    %p169 = scmp.eq.s32.totalorder %s18, 0
    %p170 = por %p168, %p169
    %p171 = scmp.ne.s32.totalorder %s159, %s160
    %p172 = scmp.eq.s32.totalorder %s19, 1
    %p173 = por %p171, %p172
    %p175 = scmp.ne.s32.totalorder %s160, %s174
    %p176 = scmp.eq.s32.totalorder %s19, 0
    %p177 = por %p175, %p176
    %s178 = ssub.s32 %s13, %s20
    %p179 = scmp.eq.s32.totalorder %s178, 0
    %s181 = sadd.s32 %s180, 1
    %s182 = scalar_select %p179, %s180, %s181
    %p185 = pneg %p179
    %p186 = scmp.eq.s32.totalorder %s13, 1
    %p187 = por %p185, %p186
    %p188 = scmp.ne.s32.totalorder %s180, %s183
    %p189 = scmp.eq.s32.totalorder %s13, 0
    %p190 = por %p188, %p189
    %p191 = scmp.ne.s32.totalorder %s180, %s183
    %p192 = scmp.eq.s32.totalorder %s18, 1
    %p193 = por %p191, %p192
    %p194 = scmp.ne.s32.totalorder %s183, %s184
    %p195 = scmp.eq.s32.totalorder %s18, 0
    %p196 = por %p194, %p195
    %p197 = scmp.ne.s32.totalorder %s183, %s184
    %p198 = scmp.eq.s32.totalorder %s19, 1
    %p199 = por %p197, %p198
    %p201 = scmp.ne.s32.totalorder %s184, %s200
    %p202 = scmp.eq.s32.totalorder %s19, 0
    %p203 = por %p201, %p202
    %p204 = scmp.le.s32.totalorder 1, %s13
    %p205 = scmp.lt.s32.totalorder %s13, 3
    %p206 = pnand %p204, %p205
    %p207 = pneg %p206
    // Predicated region
    $region9: #{_lambda_.33} parent=5 // pred_check
      _
    $region10: #{_lambda_.33} parent=5 // pred_check_branch
      %209 = sbr.rel (%p206) target = $region12
    $region11: #{_lambda_.33} parent=5 // pred_region
      %s210 = ssub.s32 %s13, 1
      // Predicated region
      $region13: #{_lambda_.33} parent=11 // pred_check
        %p211 = pneg %p86
      $region14: #{_lambda_.33} parent=11 // pred_check_branch
        %213 = sbr.rel (%p211) target = $region16
      $region15: #{_lambda_.33} parent=11 // pred_region
        _
      $region16: #{_lambda_.33} parent=11 // pred_fallthru
        _
      // Predicated region
      $region17: #{_lambda_.33} parent=11 // pred_check
        %p214 = pneg %p107
      $region18: #{_lambda_.33} parent=11 // pred_check_branch
        %216 = sbr.rel (%p214) target = $region20
      $region19: #{_lambda_.33} parent=11 // pred_region
        _
      $region20: #{_lambda_.33} parent=11 // pred_fallthru
        _
      // Predicated region
      $region21: #{_lambda_.33} parent=11 // pred_check
        %p217 = pneg %p128
      $region22: #{_lambda_.33} parent=11 // pred_check_branch
        %219 = sbr.rel (%p217) target = $region24
      $region23: #{_lambda_.33} parent=11 // pred_region
        _
      $region24: #{_lambda_.33} parent=11 // pred_fallthru
        _
      // Predicated region
      $region25: #{_lambda_.33} parent=11 // pred_check
        %p220 = pneg %p149
      $region26: #{_lambda_.33} parent=11 // pred_check_branch
        %222 = sbr.rel (%p220) target = $region28
      $region27: #{_lambda_.33} parent=11 // pred_region
        _
      $region28: #{_lambda_.33} parent=11 // pred_fallthru
        _
      // Predicated region
      $region29: #{_lambda_.33} parent=11 // pred_check
        %p223 = pneg %p170
      $region30: #{_lambda_.33} parent=11 // pred_check_branch
        %225 = sbr.rel (%p223) target = $region32
      $region31: #{_lambda_.33} parent=11 // pred_region
        _
      $region32: #{_lambda_.33} parent=11 // pred_fallthru
        _
    $region12: #{_lambda_.33} parent=5 // pred_fallthru
      _
    %p226 = scmp.lt.s32.totalorder %s13, 2
    // Predicated region
    $region33: #{_lambda_.33} parent=5 // pred_check
      %p227 = pneg %p226
    $region34: #{_lambda_.33} parent=5 // pred_check_branch
      %229 = sbr.rel (%p227) target = $region36
    $region35: #{_lambda_.33} parent=5 // pred_region
      // Predicated region
      $region37: #{_lambda_.33} parent=35 // pred_check
        %p230 = pneg %p33
      $region38: #{_lambda_.33} parent=35 // pred_check_branch
        %232 = sbr.rel (%p230) target = $region40
      $region39: #{_lambda_.33} parent=35 // pred_region
        %p233 = scmp.lt.s32.totalorder %s13, 1
        %s234 = scalar_select %p233, %s13, 1
        %s235 = smul.addr %s234, 2
        %s236 = smul.addr %s235, 8
        %s237 = scalar_lea.vmem %s0, %s236
      $region40: #{_lambda_.33} parent=35 // pred_fallthru
        _
      // Predicated region
      $region41: #{_lambda_.33} parent=35 // pred_check
        %p238 = pneg %p59
      $region42: #{_lambda_.33} parent=35 // pred_check_branch
        %240 = sbr.rel (%p238) target = $region44
      $region43: #{_lambda_.33} parent=35 // pred_region
        %p241 = scmp.lt.s32.totalorder %s13, 1
        %s242 = scalar_select %p241, %s13, 1
        %s243 = smul.addr %s242, 2
        %s244 = smul.addr %s243, 8
        %s245 = scalar_lea.vmem %s1, %s244
      $region44: #{_lambda_.33} parent=35 // pred_fallthru
        _
    $region36: #{_lambda_.33} parent=5 // pred_fallthru
      _
    %p246 = scmp.le.s32.totalorder 1, %s13
    %p247 = scmp.lt.s32.totalorder %s13, 3
    %p248 = pnand %p246, %p247
    %p249 = pneg %p248
    // Predicated region
    $region45: #{_lambda_.33} parent=5 // pred_check
      _
    $region46: #{_lambda_.33} parent=5 // pred_check_branch
      %251 = sbr.rel (%p248) target = $region48
    $region47: #{_lambda_.33} parent=5 // pred_region
      %s252 = ssub.s32 %s13, 1
      %p253 = scmp.lt.s32.totalorder %s18, 1
      %s254 = scalar_select %p253, %s18, 1
      %s255 = smul.addr %s254, 2
      %s256 = smul.addr %s255, 8
      %s257 = scalar_lea.vmem %s0, %s256
      %p258 = pneg %p39
      %p259 = pneg %p36
      %p260 = scmp.lt.s32.totalorder %s18, 1
      %s261 = scalar_select %p260, %s18, 1
      %s262 = smul.addr %s261, 2
      %s263 = smul.addr %s262, 8
      %s264 = scalar_lea.vmem %s1, %s263
      %p265 = pneg %p65
      %p266 = pneg %p62
      %p267 = pneg %p86
      %p268 = pneg %p83
      %p269 = pneg %p107
      %p270 = pneg %p104
      %p271 = pneg %p128
      %p272 = pneg %p125
      %p273 = pneg %p149
      %p274 = pneg %p146
      %p275 = pneg %p170
      %p276 = pneg %p167
      %p277 = pneg %p196
      %p278 = pneg %p193
      %p279 = scmp.lt.s32.totalorder %s18, 1
      %s280 = scalar_select %p279, %s18, 1
      %s281 = smul.addr %s280, 2
      %s282 = smul.addr %s281, 8
      %s283 = scalar_lea.vmem %s7, %s282
      %p284 = scmp.lt.s32.totalorder %s18, 1
      %s285 = scalar_select %p284, %s18, 1
      %s286 = smul.addr %s285, 2
      %s287 = smul.addr %s286, 8
      %s288 = scalar_lea.vmem %s0, %s287
      %p289 = scmp.lt.s32.totalorder %s18, 1
      %s290 = scalar_select %p289, %s18, 1
      %s291 = smul.addr %s290, 2
      %s292 = smul.addr %s291, 8
      %s293 = scalar_lea.vmem %s1, %s292
      %p294 = scmp.lt.s32.totalorder %s18, 1
      %s295 = scalar_select %p294, %s18, 1
      %s296 = smul.addr %s295, 2
      %s297 = smul.addr %s296, 8
      %s298 = scalar_lea.vmem %s7, %s297
      %v300 = vld [vmem:[%s288] sm:$0xff]
      %v301 = vld [vmem:[%s288 + $0x8] sm:$0xff]
      %v302 = vld [vmem:[%s293] sm:$0xff]
      %v303 = vld [vmem:[%s293 + $0x8] sm:$0xff]
      %305 = vset.pattern.permute.xlu0 0
      %306 = vperm.xlu0 %305, %v300
      %v307 = vpop.permute.xlu0 %306
      %310 = vset.pattern.permute.xlu0 0
      %311 = vperm.xlu0 %310, %v301
      %v312 = vpop.permute.xlu0 %311
      %v314 = vmul.f32 %v307, %v302
      %v315 = vmul.f32 %v312, %v303
      %vm316 = vcmask 261120
      %v317 = vsel %vm316, %v314, 0.0
      %v318 = vsel %vm316, %v315, 0.0
      %v319 = vadd.f32 %v317, %v318
      %v320 = vrot.slane %v319, 4
      %v321 = vadd.f32 %v319, %v320
      %v322 = vrot.slane %v321, 2
      %v323 = vadd.f32 %v321, %v322
      %v324 = vrot.slane %v323, 1
      %v325 = vadd.f32 %v323, %v324
      %v326 = vmul.f32 %v325, %v325
      %v327 = vsel %vm316, %v326, 0.0
      %328 = vadd.xlane.f32.xlu0 %v327
      %v329 = vpop.xlane.xlu0 %328
      %v330 = vrsqrt.pop %v329
      %v331 = vmul.f32 %v329, %v330
      %vm332 = vcmp.eq.f32.partialorder %v329, inf
      %v333 = vsel %vm332, %v329, %v331
      %vm334 = vcmp.eq.f32.partialorder %v329, 0.0
      %v335 = vand.u32 %v329, 2147483648
      %v336 = vsel %vm334, %v335, %v333
      %v337 = vadd.f32 %v336, 1e-10
      %v338 = vrcp.pop %v337
      %v339 = vmul.f32 %v325, %v338
      %v340 = vld [vmem:[%s2] sm:$0x7]
      %v341 = vadd.f32 %v340, %v339
      %v342 = vpack.c.bf16 %v341, %v341
      %v343 = vld [vmem:[%s3] sm:$0xf]
      %v344 = vld [vmem:[%s3 + $0x4] sm:$0xf]
      %v345 = vld [vmem:[%s3 + $0x8] sm:$0xf]
      %v346 = vld [vmem:[%s3 + $0xc] sm:$0xf]
      %v347 = vld [vmem:[%s4] sm:$0x1]
      %v349 = vlaneseq
      %v350 = vshrl.u32 %v349, 7
      %v351 = vsub.s32 0, %v350
      %v352 = vrot.slane %v347, %v351
      %v358 = vunpack.c.l.b16 %v343
      %v359 = vunpack.c.l.b16 %v344
      %v360 = vunpack.c.l.b16 %v345
      %v361 = vunpack.c.l.b16 %v346
      %v362 = vpack.c.b16 %v359, %v358
      %v363 = vpack.c.b16 %v361, %v360
      %v367 = vsel %vm316, %v342, 0
      %369 = vmatprep.subr.bf16.mxu0 0
      %370 = vmatpush1.bf16.msra.mxu0 %v362
      %371 = vmatprep.subr.bf16.mxu0 0
      %372 = vmatpush1.bf16.msra.mxu0 %v363
      %373 = vmatprep.subr.bf16.mxu0 0
      %374 = vmatpush1.bf16.msra.mxu0 0
      %375 = vmatprep.subr.bf16.mxu0 0
      %376 = vmatpush1.bf16.msra.mxu0 0
      %377 = vmatprep.subr.bf16.mxu0 0
      %378 = vmatpush1.bf16.msra.mxu0 0
      %379 = vmatprep.subr.bf16.mxu0 0
      %380 = vmatpush1.bf16.msra.mxu0 0
      %381 = vmatprep.subr.bf16.mxu0 0
      %382 = vmatpush1.bf16.msra.mxu0 0
      %383 = vmatprep.subr.bf16.mxu0 0
      %384 = vmatpush1.bf16.msra.mxu0 0
      %385 = vmatprep.subr.bf16.mxu0 0
      %386 = vmatpush1.bf16.msra.mxu0 0
      %387 = vmatprep.subr.bf16.mxu0 0
      %388 = vmatpush1.bf16.msra.mxu0 0
      %389 = vmatprep.subr.bf16.mxu0 0
      %390 = vmatpush1.bf16.msra.mxu0 0
      %391 = vmatprep.subr.bf16.mxu0 0
      %392 = vmatpush1.bf16.msra.mxu0 0
      %393 = vmatprep.subr.bf16.mxu0 0
      %394 = vmatpush1.bf16.msra.mxu0 0
      %395 = vmatprep.subr.bf16.mxu0 0
      %396 = vmatpush1.bf16.msra.mxu0 0
      %397 = vmatprep.subr.bf16.mxu0 0
      %398 = vmatpush1.bf16.msra.mxu0 0
      %399 = vmatprep.subr.bf16.mxu0 0
      %400 = vmatpush1.bf16.msra.mxu0 0
      %401 = vmatprep.mubr.bf16.mxu0 0
      %402 = vmatmul.mubr.bf16.gmra.mrb[0].mxu0 %v367
      %v403 = vpop.f32.mrb[0].mxu0
      %v404 = vadd.f32 %v352, %v403
      %v405 = vpop.f32.mrb[0].mxu0
      %v406 = vpop.f32.mrb[0].mxu0
      %v407 = vpop.f32.mrb[0].mxu0
      %408 = vdwg.mxu0
      %v409 = vmul.f32 %v404, 1.702
      %v410 = vxor.u32 %v409, 2147483648
      %v411 = vmul.f32 %v410, 1.442695
      %v412 = vpow.pop %v411
      %v413 = vadd.f32 %v412, 1.0
      %v414 = vrcp.pop %v413
      %v415 = vmul.f32 1.0, %v414
      %v416 = vmul.f32 %v404, %v415
      %v417 = vpack.c.bf16 %v416, %v416
      %v418 = vld [vmem:[%s5] sm:$0xf]
      %v419 = vld [vmem:[%s5 + $0x4] sm:$0xf]
      %v420 = vld [vmem:[%s5 + $0x8] sm:$0xf]
      %v421 = vld [vmem:[%s5 + $0xc] sm:$0xf]
      %v422 = vld [vmem:[%s5 + $0x10] sm:$0xf]
      %v423 = vld [vmem:[%s5 + $0x14] sm:$0xf]
      %v424 = vld [vmem:[%s5 + $0x18] sm:$0xf]
      %v425 = vld [vmem:[%s5 + $0x1c] sm:$0xf]
      %v426 = vld [vmem:[%s5 + $0x20] sm:$0xf]
      %v427 = vld [vmem:[%s5 + $0x24] sm:$0xf]
      %v428 = vld [vmem:[%s5 + $0x28] sm:$0xf]
      %v429 = vld [vmem:[%s5 + $0x2c] sm:$0xf]
      %v430 = vld [vmem:[%s5 + $0x30] sm:$0xf]
      %v431 = vld [vmem:[%s5 + $0x34] sm:$0xf]
      %v432 = vld [vmem:[%s5 + $0x38] sm:$0xf]
      %v433 = vld [vmem:[%s5 + $0x3c] sm:$0xf]
      %v450 = vunpack.c.l.b16 %v418
      %v451 = vunpack.c.l.b16 %v419
      %v452 = vunpack.c.l.b16 %v420
      %v453 = vunpack.c.l.b16 %v421
      %v454 = vunpack.c.l.b16 %v422
      %v455 = vunpack.c.l.b16 %v423
      %v456 = vunpack.c.l.b16 %v424
      %v457 = vunpack.c.l.b16 %v425
      %v458 = vunpack.c.l.b16 %v426
      %v459 = vunpack.c.l.b16 %v427
      %v460 = vunpack.c.l.b16 %v428
      %v461 = vunpack.c.l.b16 %v429
      %v462 = vunpack.c.l.b16 %v430
      %v463 = vunpack.c.l.b16 %v431
      %v464 = vunpack.c.l.b16 %v432
      %v465 = vunpack.c.l.b16 %v433
      %v466 = vpack.c.b16 %v451, %v450
      %v467 = vpack.c.b16 %v453, %v452
      %v468 = vpack.c.b16 %v455, %v454
      %v469 = vpack.c.b16 %v457, %v456
      %v470 = vpack.c.b16 %v459, %v458
      %v471 = vpack.c.b16 %v461, %v460
      %v472 = vpack.c.b16 %v463, %v462
      %v473 = vpack.c.b16 %v465, %v464
      %482 = vmatprep.subr.bf16.mxu0 0
      %483 = vmatpush1.bf16.msra.mxu0 %v466
      %484 = vmatprep.subr.bf16.mxu0 0
      %485 = vmatpush1.bf16.msra.mxu0 %v467
      %486 = vmatprep.subr.bf16.mxu0 0
      %487 = vmatpush1.bf16.msra.mxu0 %v468
      %488 = vmatprep.subr.bf16.mxu0 0
      %489 = vmatpush1.bf16.msra.mxu0 %v469
      %490 = vmatprep.subr.bf16.mxu0 0
      %491 = vmatpush1.bf16.msra.mxu0 %v470
      %492 = vmatprep.subr.bf16.mxu0 0
      %493 = vmatpush1.bf16.msra.mxu0 %v471
      %494 = vmatprep.subr.bf16.mxu0 0
      %495 = vmatpush1.bf16.msra.mxu0 %v472
      %496 = vmatprep.subr.bf16.mxu0 0
      %497 = vmatpush1.bf16.msra.mxu0 %v473
      %498 = vmatprep.subr.bf16.mxu0 0
      %499 = vmatpush1.bf16.msra.mxu0 0
      %500 = vmatprep.subr.bf16.mxu0 0
      %501 = vmatpush1.bf16.msra.mxu0 0
      %502 = vmatprep.subr.bf16.mxu0 0
      %503 = vmatpush1.bf16.msra.mxu0 0
      %504 = vmatprep.subr.bf16.mxu0 0
      %505 = vmatpush1.bf16.msra.mxu0 0
      %506 = vmatprep.subr.bf16.mxu0 0
      %507 = vmatpush1.bf16.msra.mxu0 0
      %508 = vmatprep.subr.bf16.mxu0 0
      %509 = vmatpush1.bf16.msra.mxu0 0
      %510 = vmatprep.subr.bf16.mxu0 0
      %511 = vmatpush1.bf16.msra.mxu0 0
      %512 = vmatprep.subr.bf16.mxu0 0
      %513 = vmatpush1.bf16.msra.mxu0 0
      %514 = vmatprep.mubr.bf16.mxu0 0
      %515 = vmatmul.mubr.bf16.gmra.mrb[0].mxu0 %v417
      %v516 = vpop.f32.mrb[0].mxu0
      %v517 = vadd.f32 0.0, %v516
      %v518 = vpop.f32.mrb[0].mxu0
      %v519 = vpop.f32.mrb[0].mxu0
      %v520 = vpop.f32.mrb[0].mxu0
      %521 = vdwg.mxu0
      %v522 = vadd.f32 %v341, %v517
      %v523 = vld [vmem:[%s6] sm:$0x1]
      %v525 = vlaneseq
      %v526 = vshrl.u32 %v525, 7
      %v527 = vsub.s32 0, %v526
      %v528 = vrot.slane %v523, %v527
      %v530 = vadd.f32 %v522, %v528
      %v531 = vmul.f32 %v530, %v530
      %vm532 = vcmask 256000
      %v533 = vsel %vm532, %v531, 0.0
      %534 = vadd.xlane.f32.xlu0 %v533
      %v535 = vpop.xlane.xlu0 %534
      %v536 = vrsqrt.pop %v535
      %v537 = vmul.f32 %v535, %v536
      %vm538 = vcmp.eq.f32.partialorder %v535, inf
      %v539 = vsel %vm538, %v535, %v537
      %vm540 = vcmp.eq.f32.partialorder %v535, 0.0
      %v541 = vand.u32 %v535, 2147483648
      %v542 = vsel %vm540, %v541, %v539
      %v543 = vadd.f32 %v542, 1e-10
      %v544 = vrcp.pop %v543
      %v545 = vmul.f32 %v530, %v544
      %v546 = vmul.f32 %v302, %v302
      %v547 = vmul.f32 %v303, %v303
      %v548 = vsel %vm316, %v546, 0.0
      %549 = vadd.xlane.f32.xlu0 %v548
      %v550 = vpop.xlane.xlu0 %549
      %v551 = vsel %vm316, %v547, 0.0
      %552 = vadd.xlane.f32.xlu0 %v551
      %v553 = vpop.xlane.xlu0 %552
      %v554 = vrsqrt.pop %v550
      %v555 = vmul.f32 %v550, %v554
      %vm556 = vcmp.eq.f32.partialorder %v550, inf
      %v557 = vsel %vm556, %v550, %v555
      %vm558 = vcmp.eq.f32.partialorder %v550, 0.0
      %v559 = vand.u32 %v550, 2147483648
      %v560 = vsel %vm558, %v559, %v557
      %v561 = vrsqrt.pop %v553
      %v562 = vmul.f32 %v553, %v561
      %vm563 = vcmp.eq.f32.partialorder %v553, inf
      %v564 = vsel %vm563, %v553, %v562
      %vm565 = vcmp.eq.f32.partialorder %v553, 0.0
      %v566 = vand.u32 %v553, 2147483648
      %v567 = vsel %vm565, %v566, %v564
      %v568 = vadd.f32 %v560, 1e-10
      %v569 = vadd.f32 %v567, 1e-10
      %v570 = vrcp.pop %v568
      %v571 = vmul.f32 %v302, %v570
      %v572 = vrcp.pop %v569
      %v573 = vmul.f32 %v303, %v572
      %v575 = vsel %vm316, %v571, 0
      %v578 = vsel %vm316, %v573, 0
      %v581 = vsel %vm316, %v545, 0
      %583 = vmatprep.subr.mxu0 0.0
      %584 = vmatpush1.xpose.msra.mxu0 %v581
      %585 = vmatprep.subr.mxu0 0.0
      %586 = vmatpush1.xpose.msra.mxu0 0.0
      %587 = vmatprep.subr.mxu0 0.0
      %588 = vmatpush1.xpose.msra.mxu0 0.0
      %589 = vmatprep.subr.mxu0 0.0
      %590 = vmatpush1.xpose.msra.mxu0 0.0
      %591 = vmatprep.subr.mxu0 0.0
      %592 = vmatpush1.xpose.msra.mxu0 0.0
      %593 = vmatprep.subr.mxu0 0.0
      %594 = vmatpush1.xpose.msra.mxu0 0.0
      %595 = vmatprep.subr.mxu0 0.0
      %596 = vmatpush1.xpose.msra.mxu0 0.0
      %597 = vmatprep.subr.mxu0 0.0
      %598 = vmatpush1.xpose.msra.mxu0 0.0
      %599 = vmatprep.subr.mxu0 0.0
      %600 = vmatpush1.xpose.msra.mxu0 0.0
      %601 = vmatprep.subr.mxu0 0.0
      %602 = vmatpush1.xpose.msra.mxu0 0.0
      %603 = vmatprep.subr.mxu0 0.0
      %604 = vmatpush1.xpose.msra.mxu0 0.0
      %605 = vmatprep.subr.mxu0 0.0
      %606 = vmatpush1.xpose.msra.mxu0 0.0
      %607 = vmatprep.subr.mxu0 0.0
      %608 = vmatpush1.xpose.msra.mxu0 0.0
      %609 = vmatprep.subr.mxu0 0.0
      %610 = vmatpush1.xpose.msra.mxu0 0.0
      %611 = vmatprep.subr.mxu0 0.0
      %612 = vmatpush1.xpose.msra.mxu0 0.0
      %613 = vmatprep.subr.mxu0 0.0
      %614 = vmatpush1.xpose.msra.mxu0 0.0
      %615 = vmatprep.subr.mxu0 0.0
      %616 = vmatpush1.xpose.msra.mxu0 0.0
      %617 = vmatprep.subr.mxu0 0.0
      %618 = vmatpush1.xpose.msra.mxu0 0.0
      %619 = vmatprep.subr.mxu0 0.0
      %620 = vmatpush1.xpose.msra.mxu0 0.0
      %621 = vmatprep.subr.mxu0 0.0
      %622 = vmatpush1.xpose.msra.mxu0 0.0
      %623 = vmatprep.subr.mxu0 0.0
      %624 = vmatpush1.xpose.msra.mxu0 0.0
      %625 = vmatprep.subr.mxu0 0.0
      %626 = vmatpush1.xpose.msra.mxu0 0.0
      %627 = vmatprep.subr.mxu0 0.0
      %628 = vmatpush1.xpose.msra.mxu0 0.0
      %629 = vmatprep.subr.mxu0 0.0
      %630 = vmatpush1.xpose.msra.mxu0 0.0
      %631 = vmatprep.subr.mxu0 0.0
      %632 = vmatpush1.xpose.msra.mxu0 0.0
      %633 = vmatprep.subr.mxu0 0.0
      %634 = vmatpush1.xpose.msra.mxu0 0.0
      %635 = vmatprep.subr.mxu0 0.0
      %636 = vmatpush1.xpose.msra.mxu0 0.0
      %637 = vmatprep.subr.mxu0 0.0
      %638 = vmatpush1.xpose.msra.mxu0 0.0
      %639 = vmatprep.subr.mxu0 0.0
      %640 = vmatpush1.xpose.msra.mxu0 0.0
      %641 = vmatprep.subr.mxu0 0.0
      %642 = vmatpush1.xpose.msra.mxu0 0.0
      %643 = vmatprep.subr.mxu0 0.0
      %644 = vmatpush1.xpose.msra.mxu0 0.0
      %645 = vmatprep.subr.mxu0 0.0
      %646 = vmatpush1.xpose.msra.mxu0 0.0
      %647 = vmatprep.mubr.f32.mxu0 0.0
      %648 = vmatmul.mubr.f32.gmra.mrb[0].mxu0 %v575
      %v649 = vpop.f32.mrb[0].mxu0
      %v650 = vadd.f32 0.0, %v649
      %v651 = vpop.f32.mrb[0].mxu0
      %652 = vmatprep.mubr.f32.mxu0 0.0
      %653 = vmatmul.mubr.f32.gmra.mrb[0].mxu0 %v578
      %v654 = vpop.f32.mrb[0].mxu0
      %v655 = vadd.f32 0.0, %v654
      %v656 = vpop.f32.mrb[0].mxu0
      %657 = vdwg.mxu0
      %v658 = vrcp.pop 0.07
      %v659 = vmul.f32 %v650, %v658
      %v660 = vmul.f32 %v655, %v658
      %vm661 = vcmask 23552
      %662 = vst.msk [vmem:[%s298] sm:$0xff] %vm661, %v659
      %663 = vst.msk [vmem:[%s298 + $0x8] sm:$0xff] %vm661, %v660
      %p664 = scmp.lt.s32.totalorder %s18, 1
      %s665 = scalar_select %p664, %s18, 1
      %s666 = smul.addr %s665, 2
      %s667 = smul.addr %s666, 8
      %s668 = scalar_lea.vmem %s7, %s667
      // Predicated region
      $region49: #{_lambda_.33} parent=47 // pred_check
        %p669 = pneg %p193
      $region50: #{_lambda_.33} parent=47 // pred_check_branch
        %671 = sbr.rel (%p669) target = $region52
      $region51: #{_lambda_.33} parent=47 // pred_region
        _
      $region52: #{_lambda_.33} parent=47 // pred_fallthru
        _
    $region48: #{_lambda_.33} parent=5 // pred_fallthru
      _
    %p672 = scmp.le.s32.totalorder 2, %s13
    // Predicated region
    $region53: #{_lambda_.33} parent=5 // pred_check
      %p673 = pneg %p672
    $region54: #{_lambda_.33} parent=5 // pred_check_branch
      %675 = sbr.rel (%p673) target = $region56
    $region55: #{_lambda_.33} parent=5 // pred_region
      %s676 = ssub.s32 %s13, 2
      // Predicated region
      $region57: #{_lambda_.33} parent=55 // pred_check
        %p677 = pneg %p199
      $region58: #{_lambda_.33} parent=55 // pred_check_branch
        %679 = sbr.rel (%p677) target = $region60
      $region59: #{_lambda_.33} parent=55 // pred_region
        %p680 = scmp.lt.s32.totalorder %s19, 1
        %s681 = scalar_select %p680, %s19, 1
        %s682 = smul.addr %s681, 2
        %s683 = smul.addr %s682, 8
        %s684 = scalar_lea.vmem %s7, %s683
      $region60: #{_lambda_.33} parent=55 // pred_fallthru
        _
    $region56: #{_lambda_.33} parent=5 // pred_fallthru
      _
  $region6: #{_lambda_.33} parent=0 // loop_footer
    %s17 = sadd.s32 1, %s13
  $region7: #{_lambda_.33} parent=0 // loop_footer_branch
    %12 = sbr.rel target = $region3
  $region8: #{_lambda_.33} parent=0 // loop_exit
    _

// kernel: _lambda_.28
$region0: #{_lambda_.28}
  #allocation0 [shape = 'u32[]', space=smem, size = 0x4, offset = 0x4, fixed_abs, tag = 'smem constant byte address 0x4 - core index']
  #allocation1 [shape = 'u32[144,128]{1,0:T(1,128)}', space=vmem, size = 0x12000, scoped, tag = 'internal scratch']
  #allocation2 [shape = 'f32[1,1]{1,0:T(1,128)S(1)}', space=vmem, size = 0x200, scoped, tag = 'scoped memory for _lambda_.28']
  %s0 = inlined_call_operand.vmem [shape: f32[32,32], index: 0, kind: input, shape index: {}]
  %s1 = inlined_call_operand.vmem [shape: bf16[32,8], index: 1, kind: input, shape index: {}]
  %s2 = inlined_call_operand.vmem [shape: f32[1,8], index: 2, kind: input, shape index: {}]
  %s3 = inlined_call_operand.vmem [shape: bf16[8,1], index: 3, kind: input, shape index: {}]
  %s4 = inlined_call_operand.<no memory space> [shape: f32[1,1], index: 4, kind: input, shape index: {}]
  %s5 = inlined_call_operand.vmem [shape: f32[32,1], index: 5, kind: output, shape index: {}]
  %s6 = sld [smem:[#allocation0]]
  $region30: #{_lambda_.28} parent=0
    _
  %s8 = ssub.s32 1, %s6
  %s9 = scalar_select 0, %s8, %s6
  %v10 = vstv %s4
  %11 = vst [vmem:[#allocation2] sm:$0x1] %v10
  // Predicated region
  $region2: #{_lambda_.28} parent=0 // pred_check
    _
  $region3: #{_lambda_.28} parent=0 // pred_check_branch
    %13 = sbr.rel (0) target = $region5
  $region4: #{_lambda_.28} parent=0 // pred_region
    _
  $region5: #{_lambda_.28} parent=0 // pred_fallthru
    _
  // Predicated region
  $region6: #{_lambda_.28} parent=0 // pred_check
    _
  $region7: #{_lambda_.28} parent=0 // pred_check_branch
    %15 = sbr.rel (0) target = $region9
  $region8: #{_lambda_.28} parent=0 // pred_region
    _
  $region9: #{_lambda_.28} parent=0 // pred_fallthru
    _
  // Predicated region
  $region10: #{_lambda_.28} parent=0 // pred_check
    _
  $region11: #{_lambda_.28} parent=0 // pred_check_branch
    %17 = sbr.rel (0) target = $region13
  $region12: #{_lambda_.28} parent=0 // pred_region
    _
  $region13: #{_lambda_.28} parent=0 // pred_fallthru
    _
  // Predicated region
  $region14: #{_lambda_.28} parent=0 // pred_check
    _
  $region15: #{_lambda_.28} parent=0 // pred_check_branch
    %19 = sbr.rel (0) target = $region17
  $region16: #{_lambda_.28} parent=0 // pred_region
    _
  $region17: #{_lambda_.28} parent=0 // pred_fallthru
    _
  // Predicated region
  $region18: #{_lambda_.28} parent=0 // pred_check
    _
  $region19: #{_lambda_.28} parent=0 // pred_check_branch
    %21 = sbr.rel (0) target = $region21
  $region20: #{_lambda_.28} parent=0 // pred_region
    _
  $region21: #{_lambda_.28} parent=0 // pred_fallthru
    _
  %v23 = vld [vmem:[%s0] sm:$0xff]
  %v24 = vld [vmem:[%s0 + $0x8] sm:$0xff]
  %v25 = vld [vmem:[%s0 + $0x10] sm:$0xff]
  %v26 = vld [vmem:[%s0 + $0x18] sm:$0xff]
  %v27 = vpack.c.bf16 %v24, %v23
  %v28 = vpack.c.bf16 %v26, %v25
  %v29 = vld [vmem:[%s1] sm:$0xf]
  %v30 = vld [vmem:[%s1 + $0x4] sm:$0xf]
  %v31 = vld [vmem:[%s1 + $0x8] sm:$0xf]
  %v32 = vld [vmem:[%s1 + $0xc] sm:$0xf]
  %v33 = vld [vmem:[%s2] sm:$0x1]
  %v35 = vlaneseq
  %v36 = vshrl.u32 %v35, 7
  %v37 = vsub.s32 0, %v36
  %v38 = vrot.slane %v33, %v37
  %v44 = vunpack.c.l.b16 %v29
  %v45 = vunpack.c.l.b16 %v30
  %v46 = vunpack.c.l.b16 %v31
  %v47 = vunpack.c.l.b16 %v32
  %v48 = vpack.c.b16 %v45, %v44
  %v49 = vpack.c.b16 %v47, %v46
  %vm52 = vcmask 261120
  %v54 = vsel %vm52, %v27, 0
  %v57 = vsel %vm52, %v28, 0
  %59 = vmatprep.subr.bf16.mxu0 0
  %60 = vmatpush1.bf16.msra.mxu0 %v48
  %61 = vmatprep.subr.bf16.mxu0 0
  %62 = vmatpush1.bf16.msra.mxu0 %v49
  %63 = vmatprep.subr.bf16.mxu0 0
  %64 = vmatpush1.bf16.msra.mxu0 0
  %65 = vmatprep.subr.bf16.mxu0 0
  %66 = vmatpush1.bf16.msra.mxu0 0
  %67 = vmatprep.subr.bf16.mxu0 0
  %68 = vmatpush1.bf16.msra.mxu0 0
  %69 = vmatprep.subr.bf16.mxu0 0
  %70 = vmatpush1.bf16.msra.mxu0 0
  %71 = vmatprep.subr.bf16.mxu0 0
  %72 = vmatpush1.bf16.msra.mxu0 0
  %73 = vmatprep.subr.bf16.mxu0 0
  %74 = vmatpush1.bf16.msra.mxu0 0
  %75 = vmatprep.subr.bf16.mxu0 0
  %76 = vmatpush1.bf16.msra.mxu0 0
  %77 = vmatprep.subr.bf16.mxu0 0
  %78 = vmatpush1.bf16.msra.mxu0 0
  %79 = vmatprep.subr.bf16.mxu0 0
  %80 = vmatpush1.bf16.msra.mxu0 0
  %81 = vmatprep.subr.bf16.mxu0 0
  %82 = vmatpush1.bf16.msra.mxu0 0
  %83 = vmatprep.subr.bf16.mxu0 0
  %84 = vmatpush1.bf16.msra.mxu0 0
  %85 = vmatprep.subr.bf16.mxu0 0
  %86 = vmatpush1.bf16.msra.mxu0 0
  %87 = vmatprep.subr.bf16.mxu0 0
  %88 = vmatpush1.bf16.msra.mxu0 0
  %89 = vmatprep.subr.bf16.mxu0 0
  %90 = vmatpush1.bf16.msra.mxu0 0
  %91 = vmatprep.mubr.bf16.mxu0 0
  %92 = vmatmul.mubr.bf16.gmra.mrb[0].mxu0 %v54
  %v93 = vpop.f32.mrb[0].mxu0
  %v94 = vadd.f32 %v38, %v93
  %v95 = vpop.f32.mrb[0].mxu0
  %v96 = vpop.f32.mrb[0].mxu0
  %v97 = vadd.f32 %v38, %v96
  %v98 = vpop.f32.mrb[0].mxu0
  %99 = vmatprep.mubr.bf16.mxu0 0
  %100 = vmatmul.mubr.bf16.gmra.mrb[0].mxu0 %v57
  %v101 = vpop.f32.mrb[0].mxu0
  %v102 = vadd.f32 %v38, %v101
  %v103 = vpop.f32.mrb[0].mxu0
  %v104 = vpop.f32.mrb[0].mxu0
  %v105 = vadd.f32 %v38, %v104
  %v106 = vpop.f32.mrb[0].mxu0
  %107 = vdwg.mxu0
  %v108 = vmul.f32 %v94, 1.702
  %v109 = vmul.f32 %v97, 1.702
  %v110 = vmul.f32 %v102, 1.702
  %v111 = vmul.f32 %v105, 1.702
  %v112 = vxor.u32 %v108, 2147483648
  %v113 = vxor.u32 %v109, 2147483648
  %v114 = vxor.u32 %v110, 2147483648
  %v115 = vxor.u32 %v111, 2147483648
  %v116 = vmul.f32 %v112, 1.442695
  %v117 = vpow.pop %v116
  %v118 = vmul.f32 %v113, 1.442695
  %v119 = vpow.pop %v118
  %v120 = vmul.f32 %v114, 1.442695
  %v121 = vpow.pop %v120
  %v122 = vmul.f32 %v115, 1.442695
  %v123 = vpow.pop %v122
  %v124 = vadd.f32 %v117, 1.0
  %v125 = vadd.f32 %v119, 1.0
  %v126 = vadd.f32 %v121, 1.0
  %v127 = vadd.f32 %v123, 1.0
  %v128 = vrcp.pop %v124
  %v129 = vmul.f32 1.0, %v128
  %v130 = vrcp.pop %v125
  %v131 = vmul.f32 1.0, %v130
  %v132 = vrcp.pop %v126
  %v133 = vmul.f32 1.0, %v132
  %v134 = vrcp.pop %v127
  %v135 = vmul.f32 1.0, %v134
  %v136 = vmul.f32 %v94, %v129
  %v137 = vmul.f32 %v97, %v131
  %v138 = vmul.f32 %v102, %v133
  %v139 = vmul.f32 %v105, %v135
  %v140 = vpack.c.bf16 %v137, %v136
  %v141 = vpack.c.bf16 %v139, %v138
  %v142 = vld [vmem:[%s3] sm:$0xf]
  %v143 = vld [vmem:[#allocation2] sm:$0x1]
  %v145 = vlaneseq
  %v146 = vshrl.u32 %v145, 7
  %v147 = vsub.s32 0, %v146
  %v148 = vrot.slane %v143, %v147
  %vm150 = vcmask 64512
  %v152 = vsel %vm150, %v140, 0
  %v155 = vsel %vm150, %v141, 0
  %vm157 = vcmask 1043456
  %v159 = vsel %vm157, %v142, 0
  %161 = vmatprep.subr.bf16.mxu0 0
  %162 = vmatpush1.bf16.msra.mxu0 %v159
  %163 = vmatprep.subr.bf16.mxu0 0
  %164 = vmatpush1.bf16.msra.mxu0 0
  %165 = vmatprep.subr.bf16.mxu0 0
  %166 = vmatpush1.bf16.msra.mxu0 0
  %167 = vmatprep.subr.bf16.mxu0 0
  %168 = vmatpush1.bf16.msra.mxu0 0
  %169 = vmatprep.subr.bf16.mxu0 0
  %170 = vmatpush1.bf16.msra.mxu0 0
  %171 = vmatprep.subr.bf16.mxu0 0
  %172 = vmatpush1.bf16.msra.mxu0 0
  %173 = vmatprep.subr.bf16.mxu0 0
  %174 = vmatpush1.bf16.msra.mxu0 0
  %175 = vmatprep.subr.bf16.mxu0 0
  %176 = vmatpush1.bf16.msra.mxu0 0
  %177 = vmatprep.subr.bf16.mxu0 0
  %178 = vmatpush1.bf16.msra.mxu0 0
  %179 = vmatprep.subr.bf16.mxu0 0
  %180 = vmatpush1.bf16.msra.mxu0 0
  %181 = vmatprep.subr.bf16.mxu0 0
  %182 = vmatpush1.bf16.msra.mxu0 0
  %183 = vmatprep.subr.bf16.mxu0 0
  %184 = vmatpush1.bf16.msra.mxu0 0
  %185 = vmatprep.subr.bf16.mxu0 0
  %186 = vmatpush1.bf16.msra.mxu0 0
  %187 = vmatprep.subr.bf16.mxu0 0
  %188 = vmatpush1.bf16.msra.mxu0 0
  %189 = vmatprep.subr.bf16.mxu0 0
  %190 = vmatpush1.bf16.msra.mxu0 0
  %191 = vmatprep.subr.bf16.mxu0 0
  %192 = vmatpush1.bf16.msra.mxu0 0
  %193 = vmatprep.mubr.bf16.mxu0 0
  %194 = vmatmul.mubr.bf16.gmra.mrb[0].mxu0 %v152
  %v195 = vpop.f32.mrb[0].mxu0
  %v196 = vadd.f32 %v148, %v195
  %v197 = vpop.f32.mrb[0].mxu0
  %v198 = vpop.f32.mrb[0].mxu0
  %v199 = vadd.f32 %v148, %v198
  %v200 = vpop.f32.mrb[0].mxu0
  %201 = vmatprep.mubr.bf16.mxu0 0
  %202 = vmatmul.mubr.bf16.gmra.mrb[0].mxu0 %v155
  %v203 = vpop.f32.mrb[0].mxu0
  %v204 = vadd.f32 %v148, %v203
  %v205 = vpop.f32.mrb[0].mxu0
  %v206 = vpop.f32.mrb[0].mxu0
  %v207 = vadd.f32 %v148, %v206
  %v208 = vpop.f32.mrb[0].mxu0
  %209 = vdwg.mxu0
  %v210 = vmax.f32 %v196, 0.0
  %v211 = vmax.f32 %v199, 0.0
  %v212 = vmax.f32 %v204, 0.0
  %v213 = vmax.f32 %v207, 0.0
  %vm214 = vcmp.ne.f32.partialorder %v196, %v196
  %vm215 = vcmp.ne.f32.partialorder %v199, %v199
  %vm216 = vcmp.ne.f32.partialorder %v204, %v204
  %vm217 = vcmp.ne.f32.partialorder %v207, %v207
  %v218 = vadd.f32 %v196, 0.0
  %v219 = vadd.f32 %v199, 0.0
  %v220 = vadd.f32 %v204, 0.0
  %v221 = vadd.f32 %v207, 0.0
  %v222 = vand.u32 2147483647, %v196
  %v223 = vand.u32 2147483647, %v199
  %v224 = vand.u32 2147483647, %v204
  %v225 = vand.u32 2147483647, %v207
  %v226 = vsub.f32 0.0, %v222
  %v227 = vsub.f32 0.0, %v223
  %v228 = vsub.f32 0.0, %v224
  %v229 = vsub.f32 0.0, %v225
  %v230 = vmul.f32 %v226, 1.442695
  %v231 = vpow.pop %v230
  %v232 = vmul.f32 %v227, 1.442695
  %v233 = vpow.pop %v232
  %v234 = vmul.f32 %v228, 1.442695
  %v235 = vpow.pop %v234
  %v236 = vmul.f32 %v229, 1.442695
  %v237 = vpow.pop %v236
  %v238 = vadd.f32 %v231, 1.0
  %v239 = vlog2.pop %v238
  %v240 = vmul.f32 %v239, 0.6931472
  %v241 = vmul.f32 -0.5, %v231
  %v242 = vadd.f32 %v241, 1.0
  %v243 = vmul.f32 %v242, %v231
  %v244 = vand.u32 2147483647, %v231
  %vm245 = vcmp.lt.f32.partialorder %v244, 0.0004427343
  %v246 = vsel %vm245, %v243, %v240
  %v247 = vadd.f32 %v233, 1.0
  %v248 = vlog2.pop %v247
  %v249 = vmul.f32 %v248, 0.6931472
  %v250 = vmul.f32 -0.5, %v233
  %v251 = vadd.f32 %v250, 1.0
  %v252 = vmul.f32 %v251, %v233
  %v253 = vand.u32 2147483647, %v233
  %vm254 = vcmp.lt.f32.partialorder %v253, 0.0004427343
  %v255 = vsel %vm254, %v252, %v249
  %v256 = vadd.f32 %v235, 1.0
  %v257 = vlog2.pop %v256
  %v258 = vmul.f32 %v257, 0.6931472
  %v259 = vmul.f32 -0.5, %v235
  %v260 = vadd.f32 %v259, 1.0
  %v261 = vmul.f32 %v260, %v235
  %v262 = vand.u32 2147483647, %v235
  %vm263 = vcmp.lt.f32.partialorder %v262, 0.0004427343
  %v264 = vsel %vm263, %v261, %v258
  %v265 = vadd.f32 %v237, 1.0
  %v266 = vlog2.pop %v265
  %v267 = vmul.f32 %v266, 0.6931472
  %v268 = vmul.f32 -0.5, %v237
  %v269 = vadd.f32 %v268, 1.0
  %v270 = vmul.f32 %v269, %v237
  %v271 = vand.u32 2147483647, %v237
  %vm272 = vcmp.lt.f32.partialorder %v271, 0.0004427343
  %v273 = vsel %vm272, %v270, %v267
  %v274 = vadd.f32 %v210, %v246
  %v275 = vadd.f32 %v211, %v255
  %v276 = vadd.f32 %v212, %v264
  %v277 = vadd.f32 %v213, %v273
  %v278 = vsel %vm214, %v218, %v274
  %v279 = vsel %vm215, %v219, %v275
  %v280 = vsel %vm216, %v220, %v276
  %v281 = vsel %vm217, %v221, %v277
  %vm282 = vcmask 7168
  %283 = vst.msk [vmem:[%s5] sm:$0xff] %vm282, %v278
  %284 = vst.msk [vmem:[%s5 + $0x8] sm:$0xff] %vm282, %v279
  %285 = vst.msk [vmem:[%s5 + $0x10] sm:$0xff] %vm282, %v280
  %286 = vst.msk [vmem:[%s5 + $0x18] sm:$0xff] %vm282, %v281
  // Predicated region
  $region22: #{_lambda_.28} parent=0 // pred_check
    _
  $region23: #{_lambda_.28} parent=0 // pred_check_branch
    %288 = sbr.rel (0) target = $region25
  $region24: #{_lambda_.28} parent=0 // pred_region
    _
  $region25: #{_lambda_.28} parent=0 // pred_fallthru
    _
  // Predicated region
  $region26: #{_lambda_.28} parent=0 // pred_check
    _
  $region27: #{_lambda_.28} parent=0 // pred_check_branch
    %290 = sbr.rel (0) target = $region29
  $region28: #{_lambda_.28} parent=0 // pred_region
    _
  $region29: #{_lambda_.28} parent=0 // pred_fallthru
    _

</llo_original>
